<compile_context>
chip_gen: v7x
topology: tpu7x:2x2x1
jax: 0.10.0
libtpu: 0.0.40
codegen_flags: <defaults>
</compile_context>

<pallas_src>
import jax
import jax.numpy as jnp
from jax import lax
from jax.experimental import pallas as pl
from jax.experimental.pallas import tpu as pltpu

EPS = 1e-5          # BatchNorm eps (PyTorch default)
NEG_SLOPE = 0.01    # leaky_relu negative slope (PyTorch default)
VMEM_LIMIT = 32 * 1024 * 1024   # safe on v5e/v6e (128 MiB) and v7x (64 MiB)


def _pick_tile(n, candidates):
    """Largest candidate tile that exactly divides n (falls back to n)."""
    for t in candidates:
        if t <= n and n % t == 0:
            return t
    return n


# ---------------------------------------------------------------------------
# GNN layer kernel (row-tiled): out_tile = tanh((adj_tile @ X) @ W + b)
# ---------------------------------------------------------------------------
def _gnn_kernel(adj_ref, x_ref, w_ref, b_ref, out_ref):
    # TODO(synk): OGNN_layer definition not provided; implemented as GCN-style
    #             layer out = tanh(adj @ X @ W + b) with act=tanh as in __init__.
    h = jnp.dot(adj_ref[...], x_ref[...], preferred_element_type=jnp.float32)
    g = jnp.dot(h.astype(jnp.bfloat16), w_ref[...],
                preferred_element_type=jnp.float32)
    out_ref[...] = jnp.tanh(g + b_ref[...]).astype(out_ref.dtype)


def gnn_layer(adj, x, w, b):
    n = adj.shape[0]
    din = x.shape[1]
    hid = w.shape[1]
    tm = _pick_tile(n, (256, 128, 64, 32, 16, 8))
    return pl.pallas_call(
        _gnn_kernel,
        out_shape=jax.ShapeDtypeStruct((n, hid), jnp.bfloat16),
        grid=(n // tm,),
        in_specs=[
            pl.BlockSpec((tm, n), lambda i: (i, 0)),     # adj row tile (streamed)
            pl.BlockSpec((n, din), lambda i: (0, 0)),    # X resident
            pl.BlockSpec((din, hid), lambda i: (0, 0)),  # W resident
            pl.BlockSpec((1, hid), lambda i: (0, 0)),    # bias resident
        ],
        out_specs=pl.BlockSpec((tm, hid), lambda i: (i, 0)),
        compiler_params=pltpu.CompilerParams(
            dimension_semantics=("parallel",),
            vmem_limit_bytes=VMEM_LIMIT),
    )(adj, x, w, b)


# ---------------------------------------------------------------------------
# Tucker mixing kernel (transposed layout, K-tiled over the core tensor):
#   x0T   = bn0(e1)^T                                   (hid, B)
#   p     = r_chunk^T (x) x0T  -> (tk*hid, B)           (outer product chunk)
#   accT += WfT_chunk @ p                               (MXU, K = tk*hid)
#   out   = leaky_relu(bn1(acc))^T stored as (hid, B)   (transposed back in wrapper)
# where WfT[j, k*hid + i] = W[k, i, j] (flattened in the wrapper).
# ---------------------------------------------------------------------------
def _mix_kernel(rT_ref, e1T_ref, wf_ref, bn0_ref, bn1_ref, out_ref, acc_ref):
    kc = pl.program_id(0)

    @pl.when(kc == 0)
    def _():
        acc_ref[...] = jnp.zeros_like(acc_ref)

    hid, batch = e1T_ref.shape
    tk = rT_ref.shape[0]

    # bn0 (inference): precomputed scale/shift, one FMA (input_dropout = identity)
    x0T = e1T_ref[...].astype(jnp.float32) * bn0_ref[:, 0:1] + bn0_ref[:, 1:2]
    rblk = rT_ref[...].astype(jnp.float32)                       # (tk, B)

    # p[kk*hid + i, b] = r[b, k0+kk] * x0[b, i]   (leading-dim collapse only)
    p = (rblk[:, None, :] * x0T[None, :, :]).reshape(tk * hid, batch)
    acc_ref[...] += jnp.dot(wf_ref[...], p.astype(jnp.bfloat16),
                            preferred_element_type=jnp.float32)  # (hid, B)

    @pl.when(kc == pl.num_programs(0) - 1)
    def _():
        # bn1 (inference) + leaky_relu, still in transposed (hid, B) layout
        y = acc_ref[...] * bn1_ref[:, 0:1] + bn1_ref[:, 1:2]
        y = jnp.where(y > 0, y, NEG_SLOPE * y)
        out_ref[...] = y.astype(out_ref.dtype)


def tucker_mix(rT, e1T, wfT, bn0s, bn1s):
    hid, batch = e1T.shape
    tk = _pick_tile(hid, (32, 16, 8))
    n_kc = hid // tk
    return pl.pallas_call(
        _mix_kernel,
        out_shape=jax.ShapeDtypeStruct((hid, batch), jnp.bfloat16),
        grid=(n_kc,),
        in_specs=[
            pl.BlockSpec((tk, batch), lambda k: (k, 0)),       # r^T chunk
            pl.BlockSpec((hid, batch), lambda k: (0, 0)),      # e1^T resident
            pl.BlockSpec((hid, tk * hid), lambda k: (0, k)),   # core tensor K-chunk
            pl.BlockSpec((hid, 2), lambda k: (0, 0)),          # bn0 scale/shift
            pl.BlockSpec((hid, 2), lambda k: (0, 0)),          # bn1 scale/shift
        ],
        out_specs=pl.BlockSpec((hid, batch), lambda k: (0, 0)),
        scratch_shapes=[pltpu.VMEM((hid, batch), jnp.float32)],
        compiler_params=pltpu.CompilerParams(
            dimension_semantics=("arbitrary",),
            vmem_limit_bytes=VMEM_LIMIT),
    )(rT, e1T, wfT, bn0s, bn1s)


# ---------------------------------------------------------------------------
# Entity scoring kernel (grid over 128-aligned entity column tiles):
#   out_tile = sigmoid(z @ entT_tile)
# ---------------------------------------------------------------------------
def _score_kernel(z_ref, ent_ref, out_ref):
    s = jnp.dot(z_ref[...], ent_ref[...], preferred_element_type=jnp.float32)
    out_ref[...] = jax.nn.sigmoid(s)


def score_head(z, entT):
    b, hid = z.shape
    e_pad = entT.shape[1]
    tn = _pick_tile(e_pad, (512, 256, 128))
    cost = pl.CostEstimate(flops=2 * b * hid * e_pad,
                           transcendentals=b * e_pad,
                           bytes_accessed=z.size * 2 + entT.size * 2 + b * e_pad * 4)
    return pl.pallas_call(
        _score_kernel,
        out_shape=jax.ShapeDtypeStruct((b, e_pad), jnp.float32),
        grid=(e_pad // tn,),
        in_specs=[
            pl.BlockSpec((b, hid), lambda j: (0, 0)),    # z resident
            pl.BlockSpec((hid, tn), lambda j: (0, j)),   # entity column tile
        ],
        out_specs=pl.BlockSpec((b, tn), lambda j: (0, j)),
        compiler_params=pltpu.CompilerParams(
            dimension_semantics=("parallel",),
            vmem_limit_bytes=VMEM_LIMIT),
        cost_estimate=cost,
    )(z, entT)


# ---------------------------------------------------------------------------
# Full forward (glue: embedding gathers, layout plumbing in plain JAX)
# ---------------------------------------------------------------------------
def otucker_forward(params, adj, e1_idx, r_idx, lst_indexes, n_entities):
    f32, bf16 = jnp.float32, jnp.bfloat16

    # X = self.embeddings(lst_indexes)
    X = jnp.take(params["emb"], lst_indexes, axis=0).astype(bf16)
    adj_bf = adj.astype(bf16)
    # GNN stack (one row-tiled pallas_call per layer; num_layers is small)
    for wg, bg in params["gnn"]:
        X = gnn_layer(adj_bf, X, wg.astype(bf16), bg)

    e1 = jnp.take(X, e1_idx, axis=0)                 # X[e1_idx]           (B, hid)
    r = jnp.take(X, r_idx + n_entities, axis=0)      # X[r_idx + n_ent]    (B, hid)
    ent = X[:n_entities]                             # X[:n_entities]      (E, hid)
    hid = params["W"].shape[0]

    # Precompute BN inference scale/shift, packed (hid, 2) for transposed layout
    def bn_scale_shift(bn):
        gamma, beta, mean, var = bn[0], bn[1], bn[2], bn[3]
        scale = gamma * lax.rsqrt(var + EPS)
        shift = beta - mean * scale
        return jnp.stack([scale, shift], axis=1).astype(f32)
    bn0s = bn_scale_shift(params["bn0"])
    bn1s = bn_scale_shift(params["bn1"])

    # Layout plumbing only (wrapper-side transposes / flatten of the core tensor)
    wfT = params["W"].transpose(2, 0, 1).reshape(hid, hid * hid).astype(bf16)
    zT = tucker_mix(r.T, e1.T, wfT, bn0s, bn1s)      # (hid, B) = leaky(bn1(bilinear))
    z = zT.T                                         # (B, hid) bf16

    # x @ X[:n_entities].T  -> natural (B,K)@(K,E) with lane-dense padded output
    e_pad = ((n_entities + 127) // 128) * 128
    entT = jnp.pad(ent.T, ((0, 0), (0, e_pad - n_entities)))
    scores = score_head(z, entT)                     # (B, e_pad) f32
    return scores[:, :n_entities]


# ---------------------------------------------------------------------------
# Pure-JAX reference (same bf16 casting structure) for a sanity check
# ---------------------------------------------------------------------------
def otucker_reference(params, adj, e1_idx, r_idx, lst_indexes, n_entities):
    f32, bf16 = jnp.float32, jnp.bfloat16
    X = jnp.take(params["emb"], lst_indexes, axis=0).astype(bf16)
    adj_bf = adj.astype(bf16)
    for wg, bg in params["gnn"]:
        h = jnp.dot(adj_bf, X, preferred_element_type=f32)
        g = jnp.dot(h.astype(bf16), wg.astype(bf16), preferred_element_type=f32)
        X = jnp.tanh(g + bg).astype(bf16)
    e1 = X[e1_idx].astype(f32)
    r = X[r_idx + n_entities].astype(f32)
    ent = X[:n_entities]
    gamma, beta, mean, var = params["bn0"]
    x0 = (e1 - mean) * lax.rsqrt(var + EPS) * gamma + beta
    W = params["W"]
    hid = W.shape[0]
    p = (r[:, :, None] * x0[:, None, :]).reshape(-1, hid * hid).astype(bf16)
    y = jnp.dot(p, W.reshape(hid * hid, hid).astype(bf16),
                preferred_element_type=f32)
    gamma, beta, mean, var = params["bn1"]
    y = (y - mean) * lax.rsqrt(var + EPS) * gamma + beta
    y = jnp.where(y > 0, y, NEG_SLOPE * y)
    logits = jnp.dot(y.astype(bf16), ent.T, preferred_element_type=f32)
    return jax.nn.sigmoid(logits)


if __name__ == "__main__":
    # Small, deterministic, TPU-friendly configuration (128-aligned lanes)
    n_entities, n_relations = 384, 64
    N = n_entities + n_relations          # 448 nodes total
    emb_dim = hid_dim = 128
    num_layers = 2
    B = 8

    key = jax.random.PRNGKey(0)
    k_emb, k_w, k_adj, k_bn0, k_bn1, k_e1, k_r, k_g = jax.random.split(key, 8)

    # embeddings ~ xavier_normal
    emb_std = (2.0 / (N + emb_dim)) ** 0.5
    emb = emb_std * jax.random.normal(k_emb, (N, emb_dim), jnp.float32)

    # core tensor W ~ U(-1, 1)
    W = jax.random.uniform(k_w, (hid_dim, hid_dim, hid_dim), jnp.float32,
                           minval=-1.0, maxval=1.0)

    # GNN layer parameters
    gnn_params = []
    din = emb_dim
    gk = k_g
    for _ in range(num_layers):
        gk, kw_, kb_ = jax.random.split(gk, 3)
        wg = (2.0 / (din + hid_dim)) ** 0.5 * jax.random.normal(
            kw_, (din, hid_dim), jnp.float32)
        bg = 0.01 * jax.random.normal(kb_, (1, hid_dim), jnp.float32)
        gnn_params.append((wg, bg))
        din = hid_dim

    # BatchNorm params packed as rows [gamma, beta, running_mean, running_var]
    def make_bn(k):
        kg, kb, km, kv = jax.random.split(k, 4)
        gamma = jax.random.uniform(kg, (hid_dim,), jnp.float32, 0.5, 1.5)
        beta = 0.1 * jax.random.normal(kb, (hid_dim,), jnp.float32)
        mean = 0.1 * jax.random.normal(km, (hid_dim,), jnp.float32)
        var = jax.random.uniform(kv, (hid_dim,), jnp.float32, 0.5, 1.5)
        return jnp.stack([gamma, beta, mean, var], axis=0)

    bn0 = make_bn(k_bn0)
    bn1 = make_bn(k_bn1)

    # Row-normalized random adjacency with self loops
    a = (jax.random.uniform(k_adj, (N, N), jnp.float32) > 0.9).astype(jnp.float32)
    a = jnp.maximum(a, a.T) + jnp.eye(N, dtype=jnp.float32)
    adj = a / jnp.sum(a, axis=1, keepdims=True)

    params = {"emb": emb, "W": W, "gnn": gnn_params, "bn0": bn0, "bn1": bn1}

    lst_indexes = jnp.arange(N, dtype=jnp.int32)
    e1_idx = jax.random.randint(k_e1, (B,), 0, n_entities, jnp.int32)
    r_idx = jax.random.randint(k_r, (B,), 0, n_relations, jnp.int32)

    fwd = jax.jit(otucker_forward, static_argnames=("n_entities",))
    pred = fwd(params, adj, e1_idx, r_idx, lst_indexes, n_entities=n_entities)
    pred = jax.block_until_ready(pred)

    assert pred.shape == (B, n_entities)
    assert bool(jnp.all(jnp.isfinite(pred)))

    ref = otucker_reference(params, adj, e1_idx, r_idx, lst_indexes, n_entities)
    max_err = float(jnp.max(jnp.abs(pred - ref.astype(jnp.float32))))
    assert max_err < 5e-2, max_err

    print("KERNEL_OK")
</pallas_src>

<mosaic_0001>
module attributes {stable_mosaic.version = 11 : i64} {
  func.func @_gnn_kernel(%arg0: i32, %arg1: memref<64x448xbf16, #tpu.memory_space<vmem>>, %arg2: memref<448x128xbf16, #tpu.memory_space<vmem>>, %arg3: memref<128x128xbf16, #tpu.memory_space<vmem>>, %arg4: memref<1x128xf32, #tpu.memory_space<vmem>>, %arg5: memref<64x128xbf16, #tpu.memory_space<vmem>>) attributes {dimension_semantics = [#tpu.dimension_semantics<parallel>], iteration_bounds = array<i64: 7>, scalar_prefetch = 0 : i64, scratch_operands = 0 : i64, tpu.core_type = #tpu.core_type<tc>, window_params = [{transform_indices = @transform_0, window_bounds = array<i64: 64, 448>}, {pipeline_mode = #tpu.pipeline_mode<synchronous>, transform_indices = @transform_1, window_bounds = array<i64: 448, 128>}, {pipeline_mode = #tpu.pipeline_mode<synchronous>, transform_indices = @transform_2, window_bounds = array<i64: 128, 128>}, {pipeline_mode = #tpu.pipeline_mode<synchronous>, transform_indices = @transform_3, window_bounds = array<i64: 1, 128>}, {transform_indices = @transform_4, window_bounds = array<i64: 64, 128>}]} {
    %c0 = arith.constant 0 : index
    %c0_0 = arith.constant 0 : index
    %0 = vector.load %arg1[%c0, %c0_0] : memref<64x448xbf16, #tpu.memory_space<vmem>>, vector<64x448xbf16>
    %c0_1 = arith.constant 0 : index
    %c0_2 = arith.constant 0 : index
    %1 = vector.load %arg2[%c0_1, %c0_2] : memref<448x128xbf16, #tpu.memory_space<vmem>>, vector<448x128xbf16>
    %cst = arith.constant dense<0.000000e+00> : vector<64x128xf32>
    %2 = tpu.matmul %0, %1, %cst {dimension_numbers = #tpu.dot_dimension_numbers<[1], [0], [0], [1], [0, 0, 1, 1], [], []>} : vector<64x448xbf16>, vector<448x128xbf16>, vector<64x128xf32> -> vector<64x128xf32>
    %3 = arith.truncf %2 : vector<64x128xf32> to vector<64x128xbf16>
    %c0_3 = arith.constant 0 : index
    %c0_4 = arith.constant 0 : index
    %4 = vector.load %arg3[%c0_3, %c0_4] : memref<128x128xbf16, #tpu.memory_space<vmem>>, vector<128x128xbf16>
    %cst_5 = arith.constant dense<0.000000e+00> : vector<64x128xf32>
    %5 = tpu.matmul %3, %4, %cst_5 {dimension_numbers = #tpu.dot_dimension_numbers<[1], [0], [0], [1], [0, 0, 1, 1], [], []>} : vector<64x128xbf16>, vector<128x128xbf16>, vector<64x128xf32> -> vector<64x128xf32>
    %c0_6 = arith.constant 0 : index
    %c0_7 = arith.constant 0 : index
    %6 = vector.load %arg4[%c0_6, %c0_7] : memref<1x128xf32, #tpu.memory_space<vmem>>, vector<1x128xf32>
    %7 = vector.broadcast %6 : vector<1x128xf32> to vector<64x128xf32>
    %8 = arith.addf %5, %7 : vector<64x128xf32>
    %9 = math.tanh %8 : vector<64x128xf32>
    %10 = arith.truncf %9 : vector<64x128xf32> to vector<64x128xbf16>
    %c0_8 = arith.constant 0 : index
    %c0_9 = arith.constant 0 : index
    %11 = vector.load %arg5[%c0_8, %c0_9] : memref<64x128xbf16, #tpu.memory_space<vmem>>, vector<64x128xbf16>
    tpu.vector_store %arg5[%c0_8, %c0_9], %10 {strides = array<i32>} : memref<64x128xbf16, #tpu.memory_space<vmem>>, vector<64x128xbf16>,
    return
  }
  func.func @transform_0(%arg0: i32) -> (i32, i32) {
    %c0_i32 = arith.constant 0 : i32
    %c0_i32_0 = arith.constant 0 : i32
    return %arg0, %c0_i32 : i32, i32
  }
  func.func @transform_1(%arg0: i32) -> (i32, i32) {
    %c0_i32 = arith.constant 0 : i32
    %c0_i32_0 = arith.constant 0 : i32
    %c0_i32_1 = arith.constant 0 : i32
    return %c0_i32, %c0_i32_0 : i32, i32
  }
  func.func @transform_2(%arg0: i32) -> (i32, i32) {
    %c0_i32 = arith.constant 0 : i32
    %c0_i32_0 = arith.constant 0 : i32
    %c0_i32_1 = arith.constant 0 : i32
    return %c0_i32, %c0_i32_0 : i32, i32
  }
  func.func @transform_3(%arg0: i32) -> (i32, i32) {
    %c0_i32 = arith.constant 0 : i32
    %c0_i32_0 = arith.constant 0 : i32
    %c0_i32_1 = arith.constant 0 : i32
    return %c0_i32, %c0_i32_0 : i32, i32
  }
  func.func @transform_4(%arg0: i32) -> (i32, i32) {
    %c0_i32 = arith.constant 0 : i32
    %c0_i32_0 = arith.constant 0 : i32
    return %arg0, %c0_i32 : i32, i32
  }
}

module attributes {stable_mosaic.version = 11 : i64} {
  func.func @_mix_kernel(%arg0: i32, %arg1: memref<32x8xbf16, #tpu.memory_space<vmem>>, %arg2: memref<128x8xbf16, #tpu.memory_space<vmem>>, %arg3: memref<128x4096xbf16, #tpu.memory_space<vmem>>, %arg4: memref<128x2xf32, #tpu.memory_space<vmem>>, %arg5: memref<128x2xf32, #tpu.memory_space<vmem>>, %arg6: memref<128x8xbf16, #tpu.memory_space<vmem>>, %arg7: memref<128x8xf32, #tpu.memory_space<vmem>>) attributes {dimension_semantics = [#tpu.dimension_semantics<arbitrary>], iteration_bounds = array<i64: 4>, scalar_prefetch = 0 : i64, scratch_operands = 1 : i64, tpu.core_type = #tpu.core_type<tc>, window_params = [{transform_indices = @transform_0, window_bounds = array<i64: 32, 8>}, {pipeline_mode = #tpu.pipeline_mode<synchronous>, transform_indices = @transform_1, window_bounds = array<i64: 128, 8>}, {transform_indices = @transform_2, window_bounds = array<i64: 128, 4096>}, {pipeline_mode = #tpu.pipeline_mode<synchronous>, transform_indices = @transform_3, window_bounds = array<i64: 128, 2>}, {pipeline_mode = #tpu.pipeline_mode<synchronous>, transform_indices = @transform_4, window_bounds = array<i64: 128, 2>}, {pipeline_mode = #tpu.pipeline_mode<synchronous>, transform_indices = @transform_5, window_bounds = array<i64: 128, 8>}]} {
    %c0_i32 = arith.constant 0 : i32
    %0 = arith.cmpi eq, %arg0, %c0_i32 : i32
    %1 = arith.extui %0 : i1 to i32
    %c0_i32_0 = arith.constant 0 : i32
    %2 = arith.cmpi ne, %1, %c0_i32_0 : i32
    scf.if %2 {
      %cst_14 = arith.constant 0.000000e+00 : f32
      %28 = vector.broadcast %cst_14 : f32 to vector<128x8xf32>
      %c0_15 = arith.constant 0 : index
      %c0_16 = arith.constant 0 : index
      %29 = vector.load %arg7[%c0_15, %c0_16] : memref<128x8xf32, #tpu.memory_space<vmem>>, vector<128x8xf32>
      tpu.vector_store %arg7[%c0_15, %c0_16], %28 {strides = array<i32>} : memref<128x8xf32, #tpu.memory_space<vmem>>, vector<128x8xf32>,
    } else {
    }
    %c0 = arith.constant 0 : index
    %c0_1 = arith.constant 0 : index
    %3 = vector.load %arg2[%c0, %c0_1] : memref<128x8xbf16, #tpu.memory_space<vmem>>, vector<128x8xbf16>
    %4 = arith.extf %3 : vector<128x8xbf16> to vector<128x8xf32>
    %c0_2 = arith.constant 0 : index
    %c0_3 = arith.constant 0 : index
    %5 = vector.load %arg4[%c0_2, %c0_3] : memref<128x2xf32, #tpu.memory_space<vmem>>, vector<128x1xf32>
    %6 = vector.broadcast %5 : vector<128x1xf32> to vector<128x8xf32>
    %7 = arith.mulf %4, %6 : vector<128x8xf32>
    %c0_4 = arith.constant 0 : index
    %c1 = arith.constant 1 : index
    %8 = vector.load %arg4[%c0_4, %c1] : memref<128x2xf32, #tpu.memory_space<vmem>>, vector<128x1xf32>
    %9 = vector.broadcast %8 : vector<128x1xf32> to vector<128x8xf32>
    %10 = arith.addf %7, %9 : vector<128x8xf32>
    %c0_5 = arith.constant 0 : index
    %c0_6 = arith.constant 0 : index
    %11 = vector.load %arg1[%c0_5, %c0_6] : memref<32x8xbf16, #tpu.memory_space<vmem>>, vector<32x8xbf16>
    %12 = arith.extf %11 : vector<32x8xbf16> to vector<32x8xf32>
    %13 = vector.shape_cast %12 : vector<32x8xf32> to vector<32x1x8xf32>
    %14 = vector.shape_cast %10 : vector<128x8xf32> to vector<1x128x8xf32>
    %15 = vector.broadcast %13 : vector<32x1x8xf32> to vector<32x128x8xf32>
    %16 = vector.broadcast %14 : vector<1x128x8xf32> to vector<32x128x8xf32>
    %17 = arith.mulf %15, %16 : vector<32x128x8xf32>
    %18 = vector.shape_cast %17 : vector<32x128x8xf32> to vector<4096x8xf32>
    %c0_7 = arith.constant 0 : index
    %c0_8 = arith.constant 0 : index
    %19 = vector.load %arg7[%c0_7, %c0_8] : memref<128x8xf32, #tpu.memory_space<vmem>>, vector<128x8xf32>
    %c0_9 = arith.constant 0 : index
    %c0_10 = arith.constant 0 : index
    %20 = vector.load %arg3[%c0_9, %c0_10] : memref<128x4096xbf16, #tpu.memory_space<vmem>>, vector<128x4096xbf16>
    %21 = arith.truncf %18 : vector<4096x8xf32> to vector<4096x8xbf16>
    %cst = arith.constant dense<0.000000e+00> : vector<128x8xf32>
    %22 = tpu.matmul %20, %21, %cst {dimension_numbers = #tpu.dot_dimension_numbers<[1], [0], [0], [1], [0, 0, 1, 1], [], []>} : vector<128x4096xbf16>, vector<4096x8xbf16>, vector<128x8xf32> -> vector<128x8xf32>
    %23 = arith.addf %19, %22 : vector<128x8xf32>
    %c0_11 = arith.constant 0 : index
    %c0_12 = arith.constant 0 : index
    %24 = vector.load %arg7[%c0_11, %c0_12] : memref<128x8xf32, #tpu.memory_space<vmem>>, vector<128x8xf32>
    tpu.vector_store %arg7[%c0_11, %c0_12], %23 {strides = array<i32>} : memref<128x8xf32, #tpu.memory_space<vmem>>, vector<128x8xf32>,
    %c3_i32 = arith.constant 3 : i32
    %25 = arith.cmpi eq, %arg0, %c3_i32 : i32
    %26 = arith.extui %25 : i1 to i32
    %c0_i32_13 = arith.constant 0 : i32
    %27 = arith.cmpi ne, %26, %c0_i32_13 : i32
    scf.if %27 {
      %c0_14 = arith.constant 0 : index
      %c0_15 = arith.constant 0 : index
      %28 = vector.load %arg7[%c0_14, %c0_15] : memref<128x8xf32, #tpu.memory_space<vmem>>, vector<128x8xf32>
      %c0_16 = arith.constant 0 : index
      %c0_17 = arith.constant 0 : index
      %29 = vector.load %arg5[%c0_16, %c0_17] : memref<128x2xf32, #tpu.memory_space<vmem>>, vector<128x1xf32>
      %30 = vector.broadcast %29 : vector<128x1xf32> to vector<128x8xf32>
      %31 = arith.mulf %28, %30 : vector<128x8xf32>
      %c0_18 = arith.constant 0 : index
      %c1_19 = arith.constant 1 : index
      %32 = vector.load %arg5[%c0_18, %c1_19] : memref<128x2xf32, #tpu.memory_space<vmem>>, vector<128x1xf32>
      %33 = vector.broadcast %32 : vector<128x1xf32> to vector<128x8xf32>
      %34 = arith.addf %31, %33 : vector<128x8xf32>
      %cst_20 = arith.constant 0.000000e+00 : f32
      %35 = vector.broadcast %cst_20 : f32 to vector<128x8xf32>
      %36 = arith.cmpf ogt, %34, %35 : vector<128x8xf32>
      %cst_21 = arith.constant 0.00999999977 : f32
      %37 = vector.broadcast %cst_21 : f32 to vector<128x8xf32>
      %38 = arith.mulf %37, %34 : vector<128x8xf32>
      %39 = arith.select %36, %34, %38 : vector<128x8xi1>, vector<128x8xf32>
      %40 = arith.truncf %39 : vector<128x8xf32> to vector<128x8xbf16>
      %c0_22 = arith.constant 0 : index
      %c0_23 = arith.constant 0 : index
      %41 = vector.load %arg6[%c0_22, %c0_23] : memref<128x8xbf16, #tpu.memory_space<vmem>>, vector<128x8xbf16>
      tpu.vector_store %arg6[%c0_22, %c0_23], %40 {strides = array<i32>} : memref<128x8xbf16, #tpu.memory_space<vmem>>, vector<128x8xbf16>,
    } else {
    }
    return
  }
  func.func @transform_0(%arg0: i32) -> (i32, i32) {
    %c0_i32 = arith.constant 0 : i32
    %c0_i32_0 = arith.constant 0 : i32
    return %arg0, %c0_i32 : i32, i32
  }
  func.func @transform_1(%arg0: i32) -> (i32, i32) {
    %c0_i32 = arith.constant 0 : i32
    %c0_i32_0 = arith.constant 0 : i32
    %c0_i32_1 = arith.constant 0 : i32
    return %c0_i32, %c0_i32_0 : i32, i32
  }
  func.func @transform_2(%arg0: i32) -> (i32, i32) {
    %c0_i32 = arith.constant 0 : i32
    %c0_i32_0 = arith.constant 0 : i32
    return %c0_i32, %arg0 : i32, i32
  }
  func.func @transform_3(%arg0: i32) -> (i32, i32) {
    %c0_i32 = arith.constant 0 : i32
    %c0_i32_0 = arith.constant 0 : i32
    %c0_i32_1 = arith.constant 0 : i32
    return %c0_i32, %c0_i32_0 : i32, i32
  }
  func.func @transform_4(%arg0: i32) -> (i32, i32) {
    %c0_i32 = arith.constant 0 : i32
    %c0_i32_0 = arith.constant 0 : i32
    %c0_i32_1 = arith.constant 0 : i32
    return %c0_i32, %c0_i32_0 : i32, i32
  }
  func.func @transform_5(%arg0: i32) -> (i32, i32) {
    %c0_i32 = arith.constant 0 : i32
    %c0_i32_0 = arith.constant 0 : i32
    %c0_i32_1 = arith.constant 0 : i32
    return %c0_i32, %c0_i32_0 : i32, i32
  }
}

module attributes {stable_mosaic.version = 11 : i64} {
  func.func @_score_kernel(%arg0: i32, %arg1: memref<8x128xbf16, #tpu.memory_space<vmem>>, %arg2: memref<128x128xbf16, #tpu.memory_space<vmem>>, %arg3: memref<8x128xf32, #tpu.memory_space<vmem>>) attributes {dimension_semantics = [#tpu.dimension_semantics<parallel>], iteration_bounds = array<i64: 3>, scalar_prefetch = 0 : i64, scratch_operands = 0 : i64, tpu.core_type = #tpu.core_type<tc>, window_params = [{pipeline_mode = #tpu.pipeline_mode<synchronous>, transform_indices = @transform_0, window_bounds = array<i64: 8, 128>}, {transform_indices = @transform_1, window_bounds = array<i64: 128, 128>}, {transform_indices = @transform_2, window_bounds = array<i64: 8, 128>}]} {
    %c0 = arith.constant 0 : index
    %c0_0 = arith.constant 0 : index
    %0 = vector.load %arg1[%c0, %c0_0] : memref<8x128xbf16, #tpu.memory_space<vmem>>, vector<8x128xbf16>
    %c0_1 = arith.constant 0 : index
    %c0_2 = arith.constant 0 : index
    %1 = vector.load %arg2[%c0_1, %c0_2] : memref<128x128xbf16, #tpu.memory_space<vmem>>, vector<128x128xbf16>
    %cst = arith.constant dense<0.000000e+00> : vector<8x128xf32>
    %2 = tpu.matmul %0, %1, %cst {dimension_numbers = #tpu.dot_dimension_numbers<[1], [0], [0], [1], [0, 0, 1, 1], [], []>} : vector<8x128xbf16>, vector<128x128xbf16>, vector<8x128xf32> -> vector<8x128xf32>
    %3 = arith.negf %2 : vector<8x128xf32>
    %4 = math.exp %3 : vector<8x128xf32>
    %cst_3 = arith.constant 1.000000e+00 : f32
    %5 = vector.broadcast %cst_3 : f32 to vector<8x128xf32>
    %6 = arith.addf %5, %4 : vector<8x128xf32>
    %7 = arith.divf %5, %6 : vector<8x128xf32>
    %c0_4 = arith.constant 0 : index
    %c0_5 = arith.constant 0 : index
    %8 = vector.load %arg3[%c0_4, %c0_5] : memref<8x128xf32, #tpu.memory_space<vmem>>, vector<8x128xf32>
    tpu.vector_store %arg3[%c0_4, %c0_5], %7 {strides = array<i32>} : memref<8x128xf32, #tpu.memory_space<vmem>>, vector<8x128xf32>,
    return
  }
  func.func @transform_0(%arg0: i32) -> (i32, i32) {
    %c0_i32 = arith.constant 0 : i32
    %c0_i32_0 = arith.constant 0 : i32
    %c0_i32_1 = arith.constant 0 : i32
    return %c0_i32, %c0_i32_0 : i32, i32
  }
  func.func @transform_1(%arg0: i32) -> (i32, i32) {
    %c0_i32 = arith.constant 0 : i32
    %c0_i32_0 = arith.constant 0 : i32
    return %c0_i32, %arg0 : i32, i32
  }
  func.func @transform_2(%arg0: i32) -> (i32, i32) {
    %c0_i32 = arith.constant 0 : i32
    %c0_i32_0 = arith.constant 0 : i32
    return %c0_i32, %arg0 : i32, i32
  }
}

</mosaic_0001>

<llo_original>
// kernel: otucker_forward.4
$region0: #{otucker_forward.4}
  #allocation0 [shape = 'u32[]', space=smem, size = 0x4, offset = 0x4, fixed_abs, tag = 'smem constant byte address 0x4 - core index']
  #allocation1 [shape = 'u32[144,128]{1,0:T(1,128)}', space=vmem, size = 0x12000, scoped, tag = 'internal scratch']
  %s0 = inlined_call_operand.vmem [shape: bf16[448,448], index: 0, kind: input, shape index: {}]
  %s1 = inlined_call_operand.vmem [shape: bf16[448,128], index: 1, kind: input, shape index: {}]
  %s2 = inlined_call_operand.vmem [shape: bf16[128,128], index: 2, kind: input, shape index: {}]
  %s3 = inlined_call_operand.hbm [shape: f32[1,128], index: 3, kind: input, shape index: {}]
  %s4 = inlined_call_operand.vmem [shape: bf16[448,128], index: 4, kind: output, shape index: {}]
  %s5 = sld [smem:[#allocation0]]
  $region53: #{otucker_forward.4} parent=0
    _
  %s7 = ssub.s32 1, %s5
  %s8 = scalar_select 0, %s7, %s5
  $region1: #{otucker_forward.4} parent=0
    #allocation2 [shape = 'u8[512]{0}', space=vmem, size = 0x400, scoped, tag = 'input window, operand 3, single buffered']
    #allocation3 [shape = 's32[2]{0}', space=sflag, size = 0x8, scoped, tag = 'scoped memory for otucker_forward.4']
    %9 = vsyncpa [#allocation3], 0
    loop: start=0, step=1, limit=9
    $region2: #{otucker_forward.4} parent=1 // loop_pre_header
      _
    $region3: #{otucker_forward.4} parent=1 // loop_header
      %s11 = sphi 0, %s15
      %p12 = scmp.ge.s32.totalorder %s11, 9
      %s21 = sphi 0, %s23
      %s24 = sphi 0, %s21
      %s25 = sphi 0, %s24
      %s41 = sphi 0, %s25
      %s45 = sphi 0, %s45
      %s47 = sphi 0, %s45
      %s48 = sphi 0, %s47
      %s62 = sphi 0, %s48
      %s66 = sphi 0, %s66
      %s68 = sphi 0, %s66
      %s69 = sphi 0, %s68
      %s83 = sphi 0, %s69
      %s87 = sphi 0, %s87
      %s89 = sphi 0, %s87
      %s90 = sphi 0, %s89
      %s104 = sphi 0, %s90
      %s110 = sphi 0, %s112
      %s113 = sphi 0, %s110
      %s114 = sphi 0, %s113
      %s130 = sphi 0, %s114
    $region4: #{otucker_forward.4} parent=1 // loop_header_branch
      %14 = sbr.rel (%p12) target = $region8
    $region5: #{otucker_forward.4} parent=1 // loop_body
      %s16 = ssub.s32 %s11, 1
      %s17 = ssub.s32 %s11, 2
      %s18 = sadd.s32 %s11, 1
      %s19 = ssub.s32 %s11, %s18
      %p20 = scmp.eq.s32.totalorder %s19, 0
      %s22 = sadd.s32 %s21, 1
      %s23 = scalar_select %p20, %s21, %s22
      %p26 = pneg %p20
      %p27 = scmp.eq.s32.totalorder %s11, 6
      %p28 = por %p26, %p27
      %p29 = scmp.ne.s32.totalorder %s21, %s24
      %p30 = scmp.eq.s32.totalorder %s11, 0
      %p31 = por %p29, %p30
      %p32 = scmp.ne.s32.totalorder %s21, %s24
      %p33 = scmp.eq.s32.totalorder %s16, 6
      %p34 = por %p32, %p33
      %p35 = scmp.ne.s32.totalorder %s24, %s25
      %p36 = scmp.eq.s32.totalorder %s16, 0
      %p37 = por %p35, %p36
      %p38 = scmp.ne.s32.totalorder %s24, %s25
      %p39 = scmp.eq.s32.totalorder %s17, 6
      %p40 = por %p38, %p39
      %p42 = scmp.ne.s32.totalorder %s25, %s41
      %p43 = scmp.eq.s32.totalorder %s17, 0
      %p44 = por %p42, %p43
      %s46 = sadd.s32 %s45, 1
      %p49 = scmp.eq.s32.totalorder %s11, 6
      %p50 = scmp.ne.s32.totalorder %s45, %s47
      %p51 = scmp.eq.s32.totalorder %s11, 0
      %p52 = por %p50, %p51
      %p53 = scmp.ne.s32.totalorder %s45, %s47
      %p54 = scmp.eq.s32.totalorder %s16, 6
      %p55 = por %p53, %p54
      %p56 = scmp.ne.s32.totalorder %s47, %s48
      %p57 = scmp.eq.s32.totalorder %s16, 0
      %p58 = por %p56, %p57
      %p59 = scmp.ne.s32.totalorder %s47, %s48
      %p60 = scmp.eq.s32.totalorder %s17, 6
      %p61 = por %p59, %p60
      %p63 = scmp.ne.s32.totalorder %s48, %s62
      %p64 = scmp.eq.s32.totalorder %s17, 0
      %p65 = por %p63, %p64
      %s67 = sadd.s32 %s66, 1
      %p70 = scmp.eq.s32.totalorder %s11, 6
      %p71 = scmp.ne.s32.totalorder %s66, %s68
      %p72 = scmp.eq.s32.totalorder %s11, 0
      %p73 = por %p71, %p72
      %p74 = scmp.ne.s32.totalorder %s66, %s68
      %p75 = scmp.eq.s32.totalorder %s16, 6
      %p76 = por %p74, %p75
      %p77 = scmp.ne.s32.totalorder %s68, %s69
      %p78 = scmp.eq.s32.totalorder %s16, 0
      %p79 = por %p77, %p78
      %p80 = scmp.ne.s32.totalorder %s68, %s69
      %p81 = scmp.eq.s32.totalorder %s17, 6
      %p82 = por %p80, %p81
      %p84 = scmp.ne.s32.totalorder %s69, %s83
      %p85 = scmp.eq.s32.totalorder %s17, 0
      %p86 = por %p84, %p85
      %s88 = sadd.s32 %s87, 1
      %p91 = scmp.eq.s32.totalorder %s11, 6
      %p92 = scmp.ne.s32.totalorder %s87, %s89
      %p93 = scmp.eq.s32.totalorder %s11, 0
      %p94 = por %p92, %p93
      %p95 = scmp.ne.s32.totalorder %s87, %s89
      %p96 = scmp.eq.s32.totalorder %s16, 6
      %p97 = por %p95, %p96
      %p98 = scmp.ne.s32.totalorder %s89, %s90
      %p99 = scmp.eq.s32.totalorder %s16, 0
      %p100 = por %p98, %p99
      %p101 = scmp.ne.s32.totalorder %s89, %s90
      %p102 = scmp.eq.s32.totalorder %s17, 6
      %p103 = por %p101, %p102
      %p105 = scmp.ne.s32.totalorder %s90, %s104
      %p106 = scmp.eq.s32.totalorder %s17, 0
      %p107 = por %p105, %p106
      %s108 = ssub.s32 %s11, %s18
      %p109 = scmp.eq.s32.totalorder %s108, 0
      %s111 = sadd.s32 %s110, 1
      %s112 = scalar_select %p109, %s110, %s111
      %p115 = pneg %p109
      %p116 = scmp.eq.s32.totalorder %s11, 6
      %p117 = por %p115, %p116
      %p118 = scmp.ne.s32.totalorder %s110, %s113
      %p119 = scmp.eq.s32.totalorder %s11, 0
      %p120 = por %p118, %p119
      %p121 = scmp.ne.s32.totalorder %s110, %s113
      %p122 = scmp.eq.s32.totalorder %s16, 6
      %p123 = por %p121, %p122
      %p124 = scmp.ne.s32.totalorder %s113, %s114
      %p125 = scmp.eq.s32.totalorder %s16, 0
      %p126 = por %p124, %p125
      %p127 = scmp.ne.s32.totalorder %s113, %s114
      %p128 = scmp.eq.s32.totalorder %s17, 6
      %p129 = por %p127, %p128
      %p131 = scmp.ne.s32.totalorder %s114, %s130
      %p132 = scmp.eq.s32.totalorder %s17, 0
      %p133 = por %p131, %p132
      %p134 = scmp.le.s32.totalorder 1, %s11
      %p135 = scmp.lt.s32.totalorder %s11, 8
      %p136 = pnand %p134, %p135
      %p137 = pneg %p136
      // Predicated region
      $region9: #{otucker_forward.4} parent=5 // pred_check
        _
      $region10: #{otucker_forward.4} parent=5 // pred_check_branch
        %139 = sbr.rel (%p136) target = $region12
      $region11: #{otucker_forward.4} parent=5 // pred_region
        %s140 = ssub.s32 %s11, 1
        // Predicated region
        $region13: #{otucker_forward.4} parent=11 // pred_check
          %p141 = pneg %p58
        $region14: #{otucker_forward.4} parent=11 // pred_check_branch
          %143 = sbr.rel (%p141) target = $region16
        $region15: #{otucker_forward.4} parent=11 // pred_region
          _
        $region16: #{otucker_forward.4} parent=11 // pred_fallthru
          _
        // Predicated region
        $region17: #{otucker_forward.4} parent=11 // pred_check
          %p144 = pneg %p79
        $region18: #{otucker_forward.4} parent=11 // pred_check_branch
          %146 = sbr.rel (%p144) target = $region20
        $region19: #{otucker_forward.4} parent=11 // pred_region
          _
        $region20: #{otucker_forward.4} parent=11 // pred_fallthru
          _
        // Predicated region
        $region21: #{otucker_forward.4} parent=11 // pred_check
          %p147 = pneg %p100
        $region22: #{otucker_forward.4} parent=11 // pred_check_branch
          %149 = sbr.rel (%p147) target = $region24
        $region23: #{otucker_forward.4} parent=11 // pred_region
          %s151 = ssub.s32 16, 16
          %152 = vsyncadd [#allocation3], %s151
          %s154 = sshll.u32 [#allocation2], 4
          %s155 = int_to_ptr.vmem [resolvable:$true] %s154
          %157 = dma.hbm_to_vmem [thread:$0]  %s3, 16, %s155, [#allocation3]
        $region24: #{otucker_forward.4} parent=11 // pred_fallthru
          _
      $region12: #{otucker_forward.4} parent=5 // pred_fallthru
        _
      %p158 = scmp.lt.s32.totalorder %s11, 7
      // Predicated region
      $region25: #{otucker_forward.4} parent=5 // pred_check
        %p159 = pneg %p158
      $region26: #{otucker_forward.4} parent=5 // pred_check_branch
        %161 = sbr.rel (%p159) target = $region28
      $region27: #{otucker_forward.4} parent=5 // pred_region
        // Predicated region
        $region29: #{otucker_forward.4} parent=27 // pred_check
          %p162 = pneg %p31
        $region30: #{otucker_forward.4} parent=27 // pred_check_branch
          %164 = sbr.rel (%p162) target = $region32
        $region31: #{otucker_forward.4} parent=27 // pred_region
          %s165 = smul.u32 8, %s11
          %p166 = scmp.lt.s32.totalorder %s165, 55
          %s167 = scalar_select %p166, %s165, 55
          %s168 = smul.addr %s167, 4
          %s169 = smul.addr %s168, 4
          %s170 = scalar_lea.vmem %s0, %s169
          %s171 = smul.u32 8, %s11
        $region32: #{otucker_forward.4} parent=27 // pred_fallthru
          _
      $region28: #{otucker_forward.4} parent=5 // pred_fallthru
        _
      %p172 = scmp.le.s32.totalorder 1, %s11
      %p173 = scmp.lt.s32.totalorder %s11, 8
      %p174 = pnand %p172, %p173
      %p175 = pneg %p174
      // Predicated region
      $region33: #{otucker_forward.4} parent=5 // pred_check
        _
      $region34: #{otucker_forward.4} parent=5 // pred_check_branch
        %177 = sbr.rel (%p174) target = $region36
      $region35: #{otucker_forward.4} parent=5 // pred_region
        %s178 = ssub.s32 %s11, 1
        // Predicated region
        $region37: #{otucker_forward.4} parent=35 // pred_check
          %p179 = pneg %p100
        $region38: #{otucker_forward.4} parent=35 // pred_check_branch
          %181 = sbr.rel (%p179) target = $region40
        $region39: #{otucker_forward.4} parent=35 // pred_region
          %182 = dma.done [#allocation3], 16
        $region40: #{otucker_forward.4} parent=35 // pred_fallthru
          _
        %s183 = smul.u32 8, %s16
        %p184 = scmp.lt.s32.totalorder %s183, 55
        %s185 = scalar_select %p184, %s183, 55
        %s186 = smul.addr %s185, 4
        %s187 = smul.addr %s186, 4
        %s188 = scalar_lea.vmem %s0, %s187
        %p189 = pneg %p37
        %p190 = pneg %p34
        %p191 = pneg %p58
        %p192 = pneg %p55
        %p193 = pneg %p79
        %p194 = pneg %p76
        %p195 = pneg %p100
        %p196 = pneg %p97
        %p197 = pneg %p126
        %p198 = pneg %p123
        %s199 = smul.u32 8, %s16
        %p200 = scmp.lt.s32.totalorder %s199, 55
        %s201 = scalar_select %p200, %s199, 55
        %s202 = smul.addr %s201, 4
        %s203 = scalar_lea.vmem %s4, %s202
        %s204 = smul.u32 8, %s16
        %p205 = scmp.lt.s32.totalorder %s204, 55
        %s206 = scalar_select %p205, %s204, 55
        %s207 = smul.addr %s206, 4
        %s208 = smul.addr %s207, 4
        %s209 = scalar_lea.vmem %s0, %s208
        %s210 = smul.u32 8, %s16
        %s211 = smul.u32 8, %s16
        %p212 = scmp.lt.s32.totalorder %s211, 55
        %s213 = scalar_select %p212, %s211, 55
        %s214 = smul.addr %s213, 4
        %s215 = scalar_lea.vmem %s4, %s214
        %s216 = smul.u32 8, %s16
        %v218 = vld [vmem:[%s209] sm:$0xff]
        %v219 = vld [vmem:[%s209 + $0x8] sm:$0xff]
        %v220 = vld [vmem:[%s209 + $0x10] sm:$0xff]
        %v221 = vld [vmem:[%s209 + $0x18] sm:$0xff]
        %v222 = vld [vmem:[%s209 + $0x20] sm:$0xff]
        %v223 = vld [vmem:[%s209 + $0x28] sm:$0xff]
        %v224 = vld [vmem:[%s209 + $0x30] sm:$0xff]
        %v225 = vld [vmem:[%s209 + $0x38] sm:$0xff]
        %v226 = vld [vmem:[%s209 + $0x40] sm:$0xff]
        %v227 = vld [vmem:[%s209 + $0x48] sm:$0xff]
        %v228 = vld [vmem:[%s209 + $0x50] sm:$0xff]
        %v229 = vld [vmem:[%s209 + $0x58] sm:$0xff]
        %v230 = vld [vmem:[%s209 + $0x60] sm:$0xff]
        %v231 = vld [vmem:[%s209 + $0x68] sm:$0xff]
        %v232 = vld [vmem:[%s209 + $0x70] sm:$0xff]
        %v233 = vld [vmem:[%s209 + $0x78] sm:$0xff]
        %v234 = vld [vmem:[%s1] sm:$0xf]
        %v235 = vld [vmem:[%s1 + $0x4] sm:$0xf]
        %v236 = vld [vmem:[%s1 + $0x8] sm:$0xf]
        %v237 = vld [vmem:[%s1 + $0xc] sm:$0xf]
        %v238 = vld [vmem:[%s1 + $0x10] sm:$0xf]
        %v239 = vld [vmem:[%s1 + $0x14] sm:$0xf]
        %v240 = vld [vmem:[%s1 + $0x18] sm:$0xf]
        %v241 = vld [vmem:[%s1 + $0x1c] sm:$0xf]
        %v242 = vld [vmem:[%s1 + $0x20] sm:$0xf]
        %v243 = vld [vmem:[%s1 + $0x24] sm:$0xf]
        %v244 = vld [vmem:[%s1 + $0x28] sm:$0xf]
        %v245 = vld [vmem:[%s1 + $0x2c] sm:$0xf]
        %v246 = vld [vmem:[%s1 + $0x30] sm:$0xf]
        %v247 = vld [vmem:[%s1 + $0x34] sm:$0xf]
        %v248 = vld [vmem:[%s1 + $0x38] sm:$0xf]
        %v249 = vld [vmem:[%s1 + $0x3c] sm:$0xf]
        %v250 = vld [vmem:[%s1 + $0x40] sm:$0xf]
        %v251 = vld [vmem:[%s1 + $0x44] sm:$0xf]
        %v252 = vld [vmem:[%s1 + $0x48] sm:$0xf]
        %v253 = vld [vmem:[%s1 + $0x4c] sm:$0xf]
        %v254 = vld [vmem:[%s1 + $0x50] sm:$0xf]
        %v255 = vld [vmem:[%s1 + $0x54] sm:$0xf]
        %v256 = vld [vmem:[%s1 + $0x58] sm:$0xf]
        %v257 = vld [vmem:[%s1 + $0x5c] sm:$0xf]
        %v258 = vld [vmem:[%s1 + $0x60] sm:$0xf]
        %v259 = vld [vmem:[%s1 + $0x64] sm:$0xf]
        %v260 = vld [vmem:[%s1 + $0x68] sm:$0xf]
        %v261 = vld [vmem:[%s1 + $0x6c] sm:$0xf]
        %v262 = vld [vmem:[%s1 + $0x70] sm:$0xf]
        %v263 = vld [vmem:[%s1 + $0x74] sm:$0xf]
        %v264 = vld [vmem:[%s1 + $0x78] sm:$0xf]
        %v265 = vld [vmem:[%s1 + $0x7c] sm:$0xf]
        %v266 = vld [vmem:[%s1 + $0x80] sm:$0xf]
        %v267 = vld [vmem:[%s1 + $0x84] sm:$0xf]
        %v268 = vld [vmem:[%s1 + $0x88] sm:$0xf]
        %v269 = vld [vmem:[%s1 + $0x8c] sm:$0xf]
        %v270 = vld [vmem:[%s1 + $0x90] sm:$0xf]
        %v271 = vld [vmem:[%s1 + $0x94] sm:$0xf]
        %v272 = vld [vmem:[%s1 + $0x98] sm:$0xf]
        %v273 = vld [vmem:[%s1 + $0x9c] sm:$0xf]
        %v274 = vld [vmem:[%s1 + $0xa0] sm:$0xf]
        %v275 = vld [vmem:[%s1 + $0xa4] sm:$0xf]
        %v276 = vld [vmem:[%s1 + $0xa8] sm:$0xf]
        %v277 = vld [vmem:[%s1 + $0xac] sm:$0xf]
        %v278 = vld [vmem:[%s1 + $0xb0] sm:$0xf]
        %v279 = vld [vmem:[%s1 + $0xb4] sm:$0xf]
        %v280 = vld [vmem:[%s1 + $0xb8] sm:$0xf]
        %v281 = vld [vmem:[%s1 + $0xbc] sm:$0xf]
        %v282 = vld [vmem:[%s1 + $0xc0] sm:$0xf]
        %v283 = vld [vmem:[%s1 + $0xc4] sm:$0xf]
        %v284 = vld [vmem:[%s1 + $0xc8] sm:$0xf]
        %v285 = vld [vmem:[%s1 + $0xcc] sm:$0xf]
        %v286 = vld [vmem:[%s1 + $0xd0] sm:$0xf]
        %v287 = vld [vmem:[%s1 + $0xd4] sm:$0xf]
        %v288 = vld [vmem:[%s1 + $0xd8] sm:$0xf]
        %v289 = vld [vmem:[%s1 + $0xdc] sm:$0xf]
        %v306 = vunpack.c.l.b16 %v218
        %v307 = vunpack.c.h.b16 %v218
        %v308 = vunpack.c.l.b16 %v219
        %v309 = vunpack.c.h.b16 %v219
        %v310 = vunpack.c.l.b16 %v220
        %v311 = vunpack.c.h.b16 %v220
        %v312 = vunpack.c.l.b16 %v221
        %v313 = vunpack.c.h.b16 %v221
        %v314 = vunpack.c.l.b16 %v222
        %v315 = vunpack.c.h.b16 %v222
        %v316 = vunpack.c.l.b16 %v223
        %v317 = vunpack.c.h.b16 %v223
        %v318 = vunpack.c.l.b16 %v224
        %v319 = vunpack.c.h.b16 %v224
        %v320 = vunpack.c.l.b16 %v225
        %v321 = vunpack.c.h.b16 %v225
        %v322 = vunpack.c.l.b16 %v226
        %v323 = vunpack.c.h.b16 %v226
        %v324 = vunpack.c.l.b16 %v227
        %v325 = vunpack.c.h.b16 %v227
        %v326 = vunpack.c.l.b16 %v228
        %v327 = vunpack.c.h.b16 %v228
        %v328 = vunpack.c.l.b16 %v229
        %v329 = vunpack.c.h.b16 %v229
        %v330 = vunpack.c.l.b16 %v230
        %v331 = vunpack.c.h.b16 %v230
        %v332 = vunpack.c.l.b16 %v231
        %v333 = vunpack.c.h.b16 %v231
        %v334 = vunpack.c.l.b16 %v232
        %v335 = vunpack.c.h.b16 %v232
        %v336 = vunpack.c.l.b16 %v233
        %v337 = vunpack.c.h.b16 %v233
        %v338 = vpack.c.b16 %v310, %v306
        %v339 = vpack.c.b16 %v311, %v307
        %v340 = vpack.c.b16 %v312, %v308
        %v341 = vpack.c.b16 %v313, %v309
        %v342 = vpack.c.b16 %v318, %v314
        %v343 = vpack.c.b16 %v319, %v315
        %v344 = vpack.c.b16 %v320, %v316
        %v345 = vpack.c.b16 %v321, %v317
        %v346 = vpack.c.b16 %v326, %v322
        %v347 = vpack.c.b16 %v327, %v323
        %v348 = vpack.c.b16 %v328, %v324
        %v349 = vpack.c.b16 %v329, %v325
        %v350 = vpack.c.b16 %v334, %v330
        %v351 = vpack.c.b16 %v335, %v331
        %v352 = vpack.c.b16 %v336, %v332
        %v353 = vpack.c.b16 %v337, %v333
        %v422 = vunpack.c.l.b16 %v234
        %v423 = vunpack.c.l.b16 %v235
        %v424 = vunpack.c.l.b16 %v236
        %v425 = vunpack.c.l.b16 %v237
        %v426 = vunpack.c.l.b16 %v238
        %v427 = vunpack.c.l.b16 %v239
        %v428 = vunpack.c.l.b16 %v240
        %v429 = vunpack.c.l.b16 %v241
        %v430 = vunpack.c.l.b16 %v242
        %v431 = vunpack.c.l.b16 %v243
        %v432 = vunpack.c.l.b16 %v244
        %v433 = vunpack.c.l.b16 %v245
        %v434 = vunpack.c.l.b16 %v246
        %v435 = vunpack.c.l.b16 %v247
        %v436 = vunpack.c.l.b16 %v248
        %v437 = vunpack.c.l.b16 %v249
        %v438 = vunpack.c.l.b16 %v250
        %v439 = vunpack.c.l.b16 %v251
        %v440 = vunpack.c.l.b16 %v252
        %v441 = vunpack.c.l.b16 %v253
        %v442 = vunpack.c.l.b16 %v254
        %v443 = vunpack.c.l.b16 %v255
        %v444 = vunpack.c.l.b16 %v256
        %v445 = vunpack.c.l.b16 %v257
        %v446 = vunpack.c.l.b16 %v258
        %v447 = vunpack.c.l.b16 %v259
        %v448 = vunpack.c.l.b16 %v260
        %v449 = vunpack.c.l.b16 %v261
        %v450 = vunpack.c.l.b16 %v262
        %v451 = vunpack.c.l.b16 %v263
        %v452 = vunpack.c.l.b16 %v264
        %v453 = vunpack.c.l.b16 %v265
        %v454 = vunpack.c.l.b16 %v266
        %v455 = vunpack.c.l.b16 %v267
        %v456 = vunpack.c.l.b16 %v268
        %v457 = vunpack.c.l.b16 %v269
        %v458 = vunpack.c.l.b16 %v270
        %v459 = vunpack.c.l.b16 %v271
        %v460 = vunpack.c.l.b16 %v272
        %v461 = vunpack.c.l.b16 %v273
        %v462 = vunpack.c.l.b16 %v274
        %v463 = vunpack.c.l.b16 %v275
        %v464 = vunpack.c.l.b16 %v276
        %v465 = vunpack.c.l.b16 %v277
        %v466 = vunpack.c.l.b16 %v278
        %v467 = vunpack.c.l.b16 %v279
        %v468 = vunpack.c.l.b16 %v280
        %v469 = vunpack.c.l.b16 %v281
        %v470 = vunpack.c.l.b16 %v282
        %v471 = vunpack.c.l.b16 %v283
        %v472 = vunpack.c.l.b16 %v284
        %v473 = vunpack.c.l.b16 %v285
        %v474 = vunpack.c.l.b16 %v286
        %v475 = vunpack.c.l.b16 %v287
        %v476 = vunpack.c.l.b16 %v288
        %v477 = vunpack.c.l.b16 %v289
        %v478 = vpack.c.b16 %v423, %v422
        %v479 = vpack.c.b16 %v425, %v424
        %v480 = vpack.c.b16 %v427, %v426
        %v481 = vpack.c.b16 %v429, %v428
        %v482 = vpack.c.b16 %v431, %v430
        %v483 = vpack.c.b16 %v433, %v432
        %v484 = vpack.c.b16 %v435, %v434
        %v485 = vpack.c.b16 %v437, %v436
        %v486 = vpack.c.b16 %v439, %v438
        %v487 = vpack.c.b16 %v441, %v440
        %v488 = vpack.c.b16 %v443, %v442
        %v489 = vpack.c.b16 %v445, %v444
        %v490 = vpack.c.b16 %v447, %v446
        %v491 = vpack.c.b16 %v449, %v448
        %v492 = vpack.c.b16 %v451, %v450
        %v493 = vpack.c.b16 %v453, %v452
        %v494 = vpack.c.b16 %v455, %v454
        %v495 = vpack.c.b16 %v457, %v456
        %v496 = vpack.c.b16 %v459, %v458
        %v497 = vpack.c.b16 %v461, %v460
        %v498 = vpack.c.b16 %v463, %v462
        %v499 = vpack.c.b16 %v465, %v464
        %v500 = vpack.c.b16 %v467, %v466
        %v501 = vpack.c.b16 %v469, %v468
        %v502 = vpack.c.b16 %v471, %v470
        %v503 = vpack.c.b16 %v473, %v472
        %v504 = vpack.c.b16 %v475, %v474
        %v505 = vpack.c.b16 %v477, %v476
        %vm534 = vcmask 523264
        %v536 = vsel %vm534, %v341, 0
        %v539 = vsel %vm534, %v345, 0
        %v542 = vsel %vm534, %v349, 0
        %v545 = vsel %vm534, %v353, 0
        %547 = vmatprep.subr.bf16.mxu0 0
        %548 = vmatpush1.bf16.msra.mxu0 %v478
        %549 = vmatprep.subr.bf16.mxu0 0
        %550 = vmatpush1.bf16.msra.mxu0 %v479
        %551 = vmatprep.subr.bf16.mxu0 0
        %552 = vmatpush1.bf16.msra.mxu0 %v480
        %553 = vmatprep.subr.bf16.mxu0 0
        %554 = vmatpush1.bf16.msra.mxu0 %v481
        %555 = vmatprep.subr.bf16.mxu0 0
        %556 = vmatpush1.bf16.msra.mxu0 %v482
        %557 = vmatprep.subr.bf16.mxu0 0
        %558 = vmatpush1.bf16.msra.mxu0 %v483
        %559 = vmatprep.subr.bf16.mxu0 0
        %560 = vmatpush1.bf16.msra.mxu0 %v484
        %561 = vmatprep.subr.bf16.mxu0 0
        %562 = vmatpush1.bf16.msra.mxu0 %v485
        %563 = vmatprep.subr.bf16.mxu0 0
        %564 = vmatpush1.bf16.msra.mxu0 %v486
        %565 = vmatprep.subr.bf16.mxu0 0
        %566 = vmatpush1.bf16.msra.mxu0 %v487
        %567 = vmatprep.subr.bf16.mxu0 0
        %568 = vmatpush1.bf16.msra.mxu0 %v488
        %569 = vmatprep.subr.bf16.mxu0 0
        %570 = vmatpush1.bf16.msra.mxu0 %v489
        %571 = vmatprep.subr.bf16.mxu0 0
        %572 = vmatpush1.bf16.msra.mxu0 %v490
        %573 = vmatprep.subr.bf16.mxu0 0
        %574 = vmatpush1.bf16.msra.mxu0 %v491
        %575 = vmatprep.subr.bf16.mxu0 0
        %576 = vmatpush1.bf16.msra.mxu0 %v492
        %577 = vmatprep.subr.bf16.mxu0 0
        %578 = vmatpush1.bf16.msra.mxu0 %v493
        %579 = vmatprep.mubr.bf16.mxu0 %v339
        %580 = vmatmul.mubr.bf16.gmra.mrb[0].mxu0 %v338
        %v581 = vpop.f32.mrb[0].mxu0
        %v582 = vadd.f32 0.0, %v581
        %v583 = vpop.f32.mrb[0].mxu0
        %v584 = vpop.f32.mrb[0].mxu0
        %v585 = vadd.f32 0.0, %v584
        %v586 = vpop.f32.mrb[0].mxu0
        %587 = vmatprep.mubr.bf16.mxu0 %v343
        %588 = vmatmul.mubr.bf16.gmra.mrb[0].mxu0 %v342
        %v589 = vpop.f32.mrb[0].mxu0
        %v590 = vadd.f32 0.0, %v589
        %v591 = vpop.f32.mrb[0].mxu0
        %v592 = vpop.f32.mrb[0].mxu0
        %v593 = vadd.f32 0.0, %v592
        %v594 = vpop.f32.mrb[0].mxu0
        %595 = vmatprep.mubr.bf16.mxu0 %v347
        %596 = vmatmul.mubr.bf16.gmra.mrb[0].mxu0 %v346
        %v597 = vpop.f32.mrb[0].mxu0
        %v598 = vadd.f32 0.0, %v597
        %v599 = vpop.f32.mrb[0].mxu0
        %v600 = vpop.f32.mrb[0].mxu0
        %v601 = vadd.f32 0.0, %v600
        %v602 = vpop.f32.mrb[0].mxu0
        %603 = vmatprep.mubr.bf16.mxu0 %v351
        %604 = vmatmul.mubr.bf16.gmra.mrb[0].mxu0 %v350
        %v605 = vpop.f32.mrb[0].mxu0
        %v606 = vadd.f32 0.0, %v605
        %v607 = vpop.f32.mrb[0].mxu0
        %v608 = vpop.f32.mrb[0].mxu0
        %v609 = vadd.f32 0.0, %v608
        %v610 = vpop.f32.mrb[0].mxu0
        %611 = vdwg.mxu0
        %612 = vmatprep.subr.bf16.mxu0 0
        %613 = vmatpush1.bf16.msra.mxu0 %v494
        %614 = vmatprep.subr.bf16.mxu0 0
        %615 = vmatpush1.bf16.msra.mxu0 %v495
        %616 = vmatprep.subr.bf16.mxu0 0
        %617 = vmatpush1.bf16.msra.mxu0 %v496
        %618 = vmatprep.subr.bf16.mxu0 0
        %619 = vmatpush1.bf16.msra.mxu0 %v497
        %620 = vmatprep.subr.bf16.mxu0 0
        %621 = vmatpush1.bf16.msra.mxu0 %v498
        %622 = vmatprep.subr.bf16.mxu0 0
        %623 = vmatpush1.bf16.msra.mxu0 %v499
        %624 = vmatprep.subr.bf16.mxu0 0
        %625 = vmatpush1.bf16.msra.mxu0 %v500
        %626 = vmatprep.subr.bf16.mxu0 0
        %627 = vmatpush1.bf16.msra.mxu0 %v501
        %628 = vmatprep.subr.bf16.mxu0 0
        %629 = vmatpush1.bf16.msra.mxu0 %v502
        %630 = vmatprep.subr.bf16.mxu0 0
        %631 = vmatpush1.bf16.msra.mxu0 %v503
        %632 = vmatprep.subr.bf16.mxu0 0
        %633 = vmatpush1.bf16.msra.mxu0 %v504
        %634 = vmatprep.subr.bf16.mxu0 0
        %635 = vmatpush1.bf16.msra.mxu0 %v505
        %636 = vmatprep.subr.bf16.mxu0 0
        %637 = vmatpush1.bf16.msra.mxu0 0
        %638 = vmatprep.subr.bf16.mxu0 0
        %639 = vmatpush1.bf16.msra.mxu0 0
        %640 = vmatprep.subr.bf16.mxu0 0
        %641 = vmatpush1.bf16.msra.mxu0 0
        %642 = vmatprep.subr.bf16.mxu0 0
        %643 = vmatpush1.bf16.msra.mxu0 0
        %644 = vmatprep.mubr.bf16.mxu0 %v536
        %645 = vmatmul.mubr.bf16.gmra.mrb[0].mxu0 %v340
        %v646 = vpop.f32.mrb[0].mxu0
        %v647 = vadd.f32 %v582, %v646
        %v648 = vpop.f32.mrb[0].mxu0
        %v649 = vpop.f32.mrb[0].mxu0
        %v650 = vadd.f32 %v585, %v649
        %v651 = vpop.f32.mrb[0].mxu0
        %652 = vmatprep.mubr.bf16.mxu0 %v539
        %653 = vmatmul.mubr.bf16.gmra.mrb[0].mxu0 %v344
        %v654 = vpop.f32.mrb[0].mxu0
        %v655 = vadd.f32 %v590, %v654
        %v656 = vpop.f32.mrb[0].mxu0
        %v657 = vpop.f32.mrb[0].mxu0
        %v658 = vadd.f32 %v593, %v657
        %v659 = vpop.f32.mrb[0].mxu0
        %660 = vmatprep.mubr.bf16.mxu0 %v542
        %661 = vmatmul.mubr.bf16.gmra.mrb[0].mxu0 %v348
        %v662 = vpop.f32.mrb[0].mxu0
        %v663 = vadd.f32 %v598, %v662
        %v664 = vpop.f32.mrb[0].mxu0
        %v665 = vpop.f32.mrb[0].mxu0
        %v666 = vadd.f32 %v601, %v665
        %v667 = vpop.f32.mrb[0].mxu0
        %668 = vmatprep.mubr.bf16.mxu0 %v545
        %669 = vmatmul.mubr.bf16.gmra.mrb[0].mxu0 %v352
        %v670 = vpop.f32.mrb[0].mxu0
        %v671 = vadd.f32 %v606, %v670
        %v672 = vpop.f32.mrb[0].mxu0
        %v673 = vpop.f32.mrb[0].mxu0
        %v674 = vadd.f32 %v609, %v673
        %v675 = vpop.f32.mrb[0].mxu0
        %676 = vdwg.mxu0
        %v677 = vpack.c.bf16 %v650, %v647
        %v678 = vpack.c.bf16 %v658, %v655
        %v679 = vpack.c.bf16 %v666, %v663
        %v680 = vpack.c.bf16 %v674, %v671
        %v681 = vld [vmem:[%s2] sm:$0xf]
        %v682 = vld [vmem:[%s2 + $0x4] sm:$0xf]
        %v683 = vld [vmem:[%s2 + $0x8] sm:$0xf]
        %v684 = vld [vmem:[%s2 + $0xc] sm:$0xf]
        %v685 = vld [vmem:[%s2 + $0x10] sm:$0xf]
        %v686 = vld [vmem:[%s2 + $0x14] sm:$0xf]
        %v687 = vld [vmem:[%s2 + $0x18] sm:$0xf]
        %v688 = vld [vmem:[%s2 + $0x1c] sm:$0xf]
        %v689 = vld [vmem:[%s2 + $0x20] sm:$0xf]
        %v690 = vld [vmem:[%s2 + $0x24] sm:$0xf]
        %v691 = vld [vmem:[%s2 + $0x28] sm:$0xf]
        %v692 = vld [vmem:[%s2 + $0x2c] sm:$0xf]
        %v693 = vld [vmem:[%s2 + $0x30] sm:$0xf]
        %v694 = vld [vmem:[%s2 + $0x34] sm:$0xf]
        %v695 = vld [vmem:[%s2 + $0x38] sm:$0xf]
        %v696 = vld [vmem:[%s2 + $0x3c] sm:$0xf]
        %v697 = vld [vmem:[#allocation2] sm:$0x1]
        %v699 = vlaneseq
        %v700 = vshrl.u32 %v699, 7
        %v701 = vsub.s32 0, %v700
        %v702 = vrot.slane %v697, %v701
        %v720 = vunpack.c.l.b16 %v681
        %v721 = vunpack.c.l.b16 %v682
        %v722 = vunpack.c.l.b16 %v683
        %v723 = vunpack.c.l.b16 %v684
        %v724 = vunpack.c.l.b16 %v685
        %v725 = vunpack.c.l.b16 %v686
        %v726 = vunpack.c.l.b16 %v687
        %v727 = vunpack.c.l.b16 %v688
        %v728 = vunpack.c.l.b16 %v689
        %v729 = vunpack.c.l.b16 %v690
        %v730 = vunpack.c.l.b16 %v691
        %v731 = vunpack.c.l.b16 %v692
        %v732 = vunpack.c.l.b16 %v693
        %v733 = vunpack.c.l.b16 %v694
        %v734 = vunpack.c.l.b16 %v695
        %v735 = vunpack.c.l.b16 %v696
        %v736 = vpack.c.b16 %v721, %v720
        %v737 = vpack.c.b16 %v723, %v722
        %v738 = vpack.c.b16 %v725, %v724
        %v739 = vpack.c.b16 %v727, %v726
        %v740 = vpack.c.b16 %v729, %v728
        %v741 = vpack.c.b16 %v731, %v730
        %v742 = vpack.c.b16 %v733, %v732
        %v743 = vpack.c.b16 %v735, %v734
        %752 = vmatprep.subr.bf16.mxu0 0
        %753 = vmatpush1.bf16.msra.mxu0 %v736
        %754 = vmatprep.subr.bf16.mxu0 0
        %755 = vmatpush1.bf16.msra.mxu0 %v737
        %756 = vmatprep.subr.bf16.mxu0 0
        %757 = vmatpush1.bf16.msra.mxu0 %v738
        %758 = vmatprep.subr.bf16.mxu0 0
        %759 = vmatpush1.bf16.msra.mxu0 %v739
        %760 = vmatprep.subr.bf16.mxu0 0
        %761 = vmatpush1.bf16.msra.mxu0 %v740
        %762 = vmatprep.subr.bf16.mxu0 0
        %763 = vmatpush1.bf16.msra.mxu0 %v741
        %764 = vmatprep.subr.bf16.mxu0 0
        %765 = vmatpush1.bf16.msra.mxu0 %v742
        %766 = vmatprep.subr.bf16.mxu0 0
        %767 = vmatpush1.bf16.msra.mxu0 %v743
        %768 = vmatprep.subr.bf16.mxu0 0
        %769 = vmatpush1.bf16.msra.mxu0 0
        %770 = vmatprep.subr.bf16.mxu0 0
        %771 = vmatpush1.bf16.msra.mxu0 0
        %772 = vmatprep.subr.bf16.mxu0 0
        %773 = vmatpush1.bf16.msra.mxu0 0
        %774 = vmatprep.subr.bf16.mxu0 0
        %775 = vmatpush1.bf16.msra.mxu0 0
        %776 = vmatprep.subr.bf16.mxu0 0
        %777 = vmatpush1.bf16.msra.mxu0 0
        %778 = vmatprep.subr.bf16.mxu0 0
        %779 = vmatpush1.bf16.msra.mxu0 0
        %780 = vmatprep.subr.bf16.mxu0 0
        %781 = vmatpush1.bf16.msra.mxu0 0
        %782 = vmatprep.subr.bf16.mxu0 0
        %783 = vmatpush1.bf16.msra.mxu0 0
        %784 = vmatprep.mubr.bf16.mxu0 0
        %785 = vmatmul.mubr.bf16.gmra.mrb[0].mxu0 %v677
        %v786 = vpop.f32.mrb[0].mxu0
        %v787 = vadd.f32 %v702, %v786
        %v788 = vpop.f32.mrb[0].mxu0
        %v789 = vpop.f32.mrb[0].mxu0
        %v790 = vadd.f32 %v702, %v789
        %v791 = vpop.f32.mrb[0].mxu0
        %792 = vmatprep.mubr.bf16.mxu0 0
        %793 = vmatmul.mubr.bf16.gmra.mrb[0].mxu0 %v678
        %v794 = vpop.f32.mrb[0].mxu0
        %v795 = vadd.f32 %v702, %v794
        %v796 = vpop.f32.mrb[0].mxu0
        %v797 = vpop.f32.mrb[0].mxu0
        %v798 = vadd.f32 %v702, %v797
        %v799 = vpop.f32.mrb[0].mxu0
        %800 = vmatprep.mubr.bf16.mxu0 0
        %801 = vmatmul.mubr.bf16.gmra.mrb[0].mxu0 %v679
        %v802 = vpop.f32.mrb[0].mxu0
        %v803 = vadd.f32 %v702, %v802
        %v804 = vpop.f32.mrb[0].mxu0
        %v805 = vpop.f32.mrb[0].mxu0
        %v806 = vadd.f32 %v702, %v805
        %v807 = vpop.f32.mrb[0].mxu0
        %808 = vmatprep.mubr.bf16.mxu0 0
        %809 = vmatmul.mubr.bf16.gmra.mrb[0].mxu0 %v680
        %v810 = vpop.f32.mrb[0].mxu0
        %v811 = vadd.f32 %v702, %v810
        %v812 = vpop.f32.mrb[0].mxu0
        %v813 = vpop.f32.mrb[0].mxu0
        %v814 = vadd.f32 %v702, %v813
        %v815 = vpop.f32.mrb[0].mxu0
        %816 = vdwg.mxu0
        %v817 = vtanh.pop %v787
        %v818 = vtanh.pop %v790
        %v819 = vtanh.pop %v795
        %v820 = vtanh.pop %v798
        %v821 = vtanh.pop %v803
        %v822 = vtanh.pop %v806
        %v823 = vtanh.pop %v811
        %v824 = vtanh.pop %v814
        %v825 = vpack.c.bf16 %v818, %v817
        %v826 = vpack.c.bf16 %v820, %v819
        %v827 = vpack.c.bf16 %v822, %v821
        %v828 = vpack.c.bf16 %v824, %v823
        %v833 = vunpack.c.l.b16 %v825
        %v834 = vunpack.c.h.b16 %v825
        %v835 = vunpack.c.l.b16 %v826
        %v836 = vunpack.c.h.b16 %v826
        %v837 = vunpack.c.l.b16 %v827
        %v838 = vunpack.c.h.b16 %v827
        %v839 = vunpack.c.l.b16 %v828
        %v840 = vunpack.c.h.b16 %v828
        %v841 = vpack.c.b16 %v833, %v833
        %v842 = vpack.c.b16 %v834, %v834
        %v843 = vpack.c.b16 %v835, %v835
        %v844 = vpack.c.b16 %v836, %v836
        %v845 = vpack.c.b16 %v837, %v837
        %v846 = vpack.c.b16 %v838, %v838
        %v847 = vpack.c.b16 %v839, %v839
        %v848 = vpack.c.b16 %v840, %v840
        %857 = vst [vmem:[%s215] sm:$0xf] %v841
        %858 = vst [vmem:[%s215 + $0x4] sm:$0xf] %v842
        %859 = vst [vmem:[%s215 + $0x8] sm:$0xf] %v843
        %860 = vst [vmem:[%s215 + $0xc] sm:$0xf] %v844
        %861 = vst [vmem:[%s215 + $0x10] sm:$0xf] %v845
        %862 = vst [vmem:[%s215 + $0x14] sm:$0xf] %v846
        %863 = vst [vmem:[%s215 + $0x18] sm:$0xf] %v847
        %864 = vst [vmem:[%s215 + $0x1c] sm:$0xf] %v848
        %s865 = smul.u32 8, %s16
        %p866 = scmp.lt.s32.totalorder %s865, 55
        %s867 = scalar_select %p866, %s865, 55
        %s868 = smul.addr %s867, 4
        %s869 = scalar_lea.vmem %s4, %s868
        // Predicated region
        $region41: #{otucker_forward.4} parent=35 // pred_check
          %p870 = pneg %p123
        $region42: #{otucker_forward.4} parent=35 // pred_check_branch
          %872 = sbr.rel (%p870) target = $region44
        $region43: #{otucker_forward.4} parent=35 // pred_region
          %s873 = smul.u32 8, %s16
        $region44: #{otucker_forward.4} parent=35 // pred_fallthru
          _
      $region36: #{otucker_forward.4} parent=5 // pred_fallthru
        _
      %p874 = scmp.le.s32.totalorder 2, %s11
      // Predicated region
      $region45: #{otucker_forward.4} parent=5 // pred_check
        %p875 = pneg %p874
      $region46: #{otucker_forward.4} parent=5 // pred_check_branch
        %877 = sbr.rel (%p875) target = $region48
      $region47: #{otucker_forward.4} parent=5 // pred_region
        %s878 = ssub.s32 %s11, 2
        // Predicated region
        $region49: #{otucker_forward.4} parent=47 // pred_check
          %p879 = pneg %p129
        $region50: #{otucker_forward.4} parent=47 // pred_check_branch
          %881 = sbr.rel (%p879) target = $region52
        $region51: #{otucker_forward.4} parent=47 // pred_region
          %s882 = smul.u32 8, %s17
          %p883 = scmp.lt.s32.totalorder %s882, 55
          %s884 = scalar_select %p883, %s882, 55
          %s885 = smul.addr %s884, 4
          %s886 = scalar_lea.vmem %s4, %s885
        $region52: #{otucker_forward.4} parent=47 // pred_fallthru
          _
      $region48: #{otucker_forward.4} parent=5 // pred_fallthru
        _
    $region6: #{otucker_forward.4} parent=1 // loop_footer
      %s15 = sadd.s32 1, %s11
    $region7: #{otucker_forward.4} parent=1 // loop_footer_branch
      %10 = sbr.rel target = $region3
    $region8: #{otucker_forward.4} parent=1 // loop_exit
      _
    %887 = vsyncpa [#allocation3], 1
    %s888 = scalar_lea.sflag [#allocation3], 1
    %889 = vsyncpa %s888, 1

// kernel: otucker_forward.7
$region0: #{otucker_forward.7}
  #allocation0 [shape = 'u32[]', space=smem, size = 0x4, offset = 0x4, fixed_abs, tag = 'smem constant byte address 0x4 - core index']
  #allocation1 [shape = 'u32[144,128]{1,0:T(1,128)}', space=vmem, size = 0x12000, scoped, tag = 'internal scratch']
  %s0 = inlined_call_operand.vmem [shape: bf16[8,128], index: 0, kind: input, shape index: {}]
  %s1 = inlined_call_operand.vmem [shape: bf16[128,384], index: 1, kind: input, shape index: {}]
  %s2 = inlined_call_operand.hbm [shape: f32[8,384], index: 2, kind: output, shape index: {}]
  %s3 = sld [smem:[#allocation0]]
  $region82: #{otucker_forward.7} parent=0
    _
  %s5 = ssub.s32 1, %s3
  %s6 = scalar_select 0, %s5, %s3
  $region1: #{otucker_forward.7} parent=0
    #allocation2 [shape = 'u8[65536]{0}', space=vmem, size = 0x10000, scoped, tag = 'input window, operand 1']
    #allocation3 [shape = 'u8[8192]{0}', space=vmem, size = 0x2000, scoped, tag = 'output window, operand 0']
    #allocation4 [shape = 's32[2]{0}', space=sflag, size = 0x8, scoped, tag = 'scoped memory for otucker_forward.7']
    %7 = vsyncpa [#allocation4], 0
    %s8 = scalar_lea.sflag [#allocation4], 1
    %9 = vsyncpa %s8, 0
    loop: start=0, step=1, limit=5
    $region2: #{otucker_forward.7} parent=1 // loop_pre_header
      _
    $region3: #{otucker_forward.7} parent=1 // loop_header
      %s11 = sphi 0, %s15
      %p12 = scmp.ge.s32.totalorder %s11, 5
      %s19 = sphi 0, %s19
      %s21 = sphi 0, %s19
      %s22 = sphi 0, %s21
      %s36 = sphi 0, %s22
      %s42 = sphi 0, %s44
      %s45 = sphi 0, %s42
      %s46 = sphi 0, %s45
      %s62 = sphi 0, %s46
      %s68 = sphi 0, %s70
      %s71 = sphi 0, %s68
      %s72 = sphi 0, %s71
      %s88 = sphi 0, %s72
    $region4: #{otucker_forward.7} parent=1 // loop_header_branch
      %14 = sbr.rel (%p12) target = $region8
    $region5: #{otucker_forward.7} parent=1 // loop_body
      %s16 = ssub.s32 %s11, 1
      %s17 = ssub.s32 %s11, 2
      %s18 = sadd.s32 %s11, 1
      %s20 = sadd.s32 %s19, 1
      %p23 = scmp.eq.s32.totalorder %s11, 2
      %p24 = scmp.ne.s32.totalorder %s19, %s21
      %p25 = scmp.eq.s32.totalorder %s11, 0
      %p26 = por %p24, %p25
      %p27 = scmp.ne.s32.totalorder %s19, %s21
      %p28 = scmp.eq.s32.totalorder %s16, 2
      %p29 = por %p27, %p28
      %p30 = scmp.ne.s32.totalorder %s21, %s22
      %p31 = scmp.eq.s32.totalorder %s16, 0
      %p32 = por %p30, %p31
      %p33 = scmp.ne.s32.totalorder %s21, %s22
      %p34 = scmp.eq.s32.totalorder %s17, 2
      %p35 = por %p33, %p34
      %p37 = scmp.ne.s32.totalorder %s22, %s36
      %p38 = scmp.eq.s32.totalorder %s17, 0
      %p39 = por %p37, %p38
      %s40 = ssub.s32 %s11, %s18
      %p41 = scmp.eq.s32.totalorder %s40, 0
      %s43 = sadd.s32 %s42, 1
      %s44 = scalar_select %p41, %s42, %s43
      %p47 = pneg %p41
      %p48 = scmp.eq.s32.totalorder %s11, 2
      %p49 = por %p47, %p48
      %p50 = scmp.ne.s32.totalorder %s42, %s45
      %p51 = scmp.eq.s32.totalorder %s11, 0
      %p52 = por %p50, %p51
      %p53 = scmp.ne.s32.totalorder %s42, %s45
      %p54 = scmp.eq.s32.totalorder %s16, 2
      %p55 = por %p53, %p54
      %p56 = scmp.ne.s32.totalorder %s45, %s46
      %p57 = scmp.eq.s32.totalorder %s16, 0
      %p58 = por %p56, %p57
      %p59 = scmp.ne.s32.totalorder %s45, %s46
      %p60 = scmp.eq.s32.totalorder %s17, 2
      %p61 = por %p59, %p60
      %p63 = scmp.ne.s32.totalorder %s46, %s62
      %p64 = scmp.eq.s32.totalorder %s17, 0
      %p65 = por %p63, %p64
      %s66 = ssub.s32 %s11, %s18
      %p67 = scmp.eq.s32.totalorder %s66, 0
      %s69 = sadd.s32 %s68, 1
      %s70 = scalar_select %p67, %s68, %s69
      %p73 = pneg %p67
      %p74 = scmp.eq.s32.totalorder %s11, 2
      %p75 = por %p73, %p74
      %p76 = scmp.ne.s32.totalorder %s68, %s71
      %p77 = scmp.eq.s32.totalorder %s11, 0
      %p78 = por %p76, %p77
      %p79 = scmp.ne.s32.totalorder %s68, %s71
      %p80 = scmp.eq.s32.totalorder %s16, 2
      %p81 = por %p79, %p80
      %p82 = scmp.ne.s32.totalorder %s71, %s72
      %p83 = scmp.eq.s32.totalorder %s16, 0
      %p84 = por %p82, %p83
      %p85 = scmp.ne.s32.totalorder %s71, %s72
      %p86 = scmp.eq.s32.totalorder %s17, 2
      %p87 = por %p85, %p86
      %p89 = scmp.ne.s32.totalorder %s72, %s88
      %p90 = scmp.eq.s32.totalorder %s17, 0
      %p91 = por %p89, %p90
      %p92 = scmp.le.s32.totalorder 1, %s11
      %p93 = scmp.lt.s32.totalorder %s11, 4
      %p94 = pnand %p92, %p93
      %p95 = pneg %p94
      // Predicated region
      $region9: #{otucker_forward.7} parent=5 // pred_check
        _
      $region10: #{otucker_forward.7} parent=5 // pred_check_branch
        %97 = sbr.rel (%p94) target = $region12
      $region11: #{otucker_forward.7} parent=5 // pred_region
        %s98 = ssub.s32 %s11, 1
        // Predicated region
        $region13: #{otucker_forward.7} parent=11 // pred_check
          %p99 = pneg %p32
        $region14: #{otucker_forward.7} parent=11 // pred_check_branch
          %101 = sbr.rel (%p99) target = $region16
        $region15: #{otucker_forward.7} parent=11 // pred_region
          _
        $region16: #{otucker_forward.7} parent=11 // pred_fallthru
          _
      $region12: #{otucker_forward.7} parent=5 // pred_fallthru
        _
      %p102 = scmp.lt.s32.totalorder %s11, 3
      // Predicated region
      $region17: #{otucker_forward.7} parent=5 // pred_check
        %p103 = pneg %p102
      $region18: #{otucker_forward.7} parent=5 // pred_check_branch
        %105 = sbr.rel (%p103) target = $region20
      $region19: #{otucker_forward.7} parent=5 // pred_region
        // Predicated region
        $region21: #{otucker_forward.7} parent=19 // pred_check
          %p106 = pneg %p52
        $region22: #{otucker_forward.7} parent=19 // pred_check_branch
          %108 = sbr.rel (%p106) target = $region24
        $region23: #{otucker_forward.7} parent=19 // pred_region
          %s109 = sand.u32 %s42, 1
          %s110 = sand.u32 %s42, 1
          %s111 = smul.addr %s110, 64
          %s112 = scalar_lea.vmem [#allocation2], %s111
          %s113 = smul.addr %s11, 4
          %s114 = scalar_lea.vmem %s1, %s113
          // Predicated region
          $region25: #{otucker_forward.7} parent=23 // pred_check
            _
          $region26: #{otucker_forward.7} parent=23 // pred_check_branch
            %116 = sbr.rel (0) target = $region28
          $region27: #{otucker_forward.7} parent=23 // pred_region
            // Predicated region
            $region29: #{otucker_forward.7} parent=27 // pred_check
              _
            $region30: #{otucker_forward.7} parent=27 // pred_check_branch
              %118 = sbr.rel target = $region32
            $region31: #{otucker_forward.7} parent=27 // pred_region
              // Predicated region
              $region44: #{otucker_forward.7} parent=31 // pred_check
                _
              $region45: #{otucker_forward.7} parent=31 // pred_check_branch
                %163 = sbr.rel (0) target = $region47
              $region46: #{otucker_forward.7} parent=31 // pred_region
                loop: start=0, step=1, limit=1
                $region48: #{otucker_forward.7} parent=46 // loop_pre_header
                  _
                $region49: #{otucker_forward.7} parent=46 // loop_header
                  %s165 = sphi 0, %s169
                  %p166 = scmp.ge.s32.totalorder %s165, 1
                  %s170 = sphi %s114, %s114
                  %s171 = sphi %s112, %s112
                $region50: #{otucker_forward.7} parent=46 // loop_header_branch
                  %168 = sbr.rel (%p166) target = $region54
                $region51: #{otucker_forward.7} parent=46 // loop_body
                  _
                $region52: #{otucker_forward.7} parent=46 // loop_footer
                  %s169 = sadd.s32 1, %s165
                $region53: #{otucker_forward.7} parent=46 // loop_footer_branch
                  %164 = sbr.rel target = $region49
                $region54: #{otucker_forward.7} parent=46 // loop_exit
                  _
                loop: start=0, step=1, limit=1
                $region55: #{otucker_forward.7} parent=46 // loop_pre_header
                  _
                $region56: #{otucker_forward.7} parent=46 // loop_header
                  %s174 = sphi 0, %s178
                  %p175 = scmp.ge.s32.totalorder %s174, 1
                  %s179 = sphi %s114, %s114
                  %s180 = sphi %s112, %s112
                $region57: #{otucker_forward.7} parent=46 // loop_header_branch
                  %177 = sbr.rel (%p175) target = $region61
                $region58: #{otucker_forward.7} parent=46 // loop_body
                  %v181 = vld [vmem:[%s179] sm:$0xf]
                  %182 = vst [vmem:[%s180] sm:$0xf] %v181
                  %v183 = vld [vmem:[%s179 + $0xc] sm:$0xf]
                  %184 = vst [vmem:[%s180 + $0x4] sm:$0xf] %v183
                  %v185 = vld [vmem:[%s179 + $0x18] sm:$0xf]
                  %186 = vst [vmem:[%s180 + $0x8] sm:$0xf] %v185
                  %v187 = vld [vmem:[%s179 + $0x24] sm:$0xf]
                  %188 = vst [vmem:[%s180 + $0xc] sm:$0xf] %v187
                  %v189 = vld [vmem:[%s179 + $0x30] sm:$0xf]
                  %190 = vst [vmem:[%s180 + $0x10] sm:$0xf] %v189
                  %v191 = vld [vmem:[%s179 + $0x3c] sm:$0xf]
                  %192 = vst [vmem:[%s180 + $0x14] sm:$0xf] %v191
                  %v193 = vld [vmem:[%s179 + $0x48] sm:$0xf]
                  %194 = vst [vmem:[%s180 + $0x18] sm:$0xf] %v193
                  %v195 = vld [vmem:[%s179 + $0x54] sm:$0xf]
                  %196 = vst [vmem:[%s180 + $0x1c] sm:$0xf] %v195
                  %v197 = vld [vmem:[%s179 + $0x60] sm:$0xf]
                  %198 = vst [vmem:[%s180 + $0x20] sm:$0xf] %v197
                  %v199 = vld [vmem:[%s179 + $0x6c] sm:$0xf]
                  %200 = vst [vmem:[%s180 + $0x24] sm:$0xf] %v199
                  %v201 = vld [vmem:[%s179 + $0x78] sm:$0xf]
                  %202 = vst [vmem:[%s180 + $0x28] sm:$0xf] %v201
                  %v203 = vld [vmem:[%s179 + $0x84] sm:$0xf]
                  %204 = vst [vmem:[%s180 + $0x2c] sm:$0xf] %v203
                  %v205 = vld [vmem:[%s179 + $0x90] sm:$0xf]
                  %206 = vst [vmem:[%s180 + $0x30] sm:$0xf] %v205
                  %v207 = vld [vmem:[%s179 + $0x9c] sm:$0xf]
                  %208 = vst [vmem:[%s180 + $0x34] sm:$0xf] %v207
                  %v209 = vld [vmem:[%s179 + $0xa8] sm:$0xf]
                  %210 = vst [vmem:[%s180 + $0x38] sm:$0xf] %v209
                  %v211 = vld [vmem:[%s179 + $0xb4] sm:$0xf]
                  %212 = vst [vmem:[%s180 + $0x3c] sm:$0xf] %v211
                $region59: #{otucker_forward.7} parent=46 // loop_footer
                  %s178 = sadd.s32 1, %s174
                $region60: #{otucker_forward.7} parent=46 // loop_footer_branch
                  %173 = sbr.rel target = $region56
                $region61: #{otucker_forward.7} parent=46 // loop_exit
                  _
              $region47: #{otucker_forward.7} parent=31 // pred_fallthru
                _
            $region32: #{otucker_forward.7} parent=27 // pred_fallthru
              _
            // Predicated region
            $region33: #{otucker_forward.7} parent=27 // pred_check
              _
            $region34: #{otucker_forward.7} parent=27 // pred_check_branch
              %120 = sbr.rel (0) target = $region36
            $region35: #{otucker_forward.7} parent=27 // pred_region
              loop: start=0, step=1, limit=1
              $region37: #{otucker_forward.7} parent=35 // loop_pre_header
                _
              $region38: #{otucker_forward.7} parent=35 // loop_header
                %s123 = sphi 0, %s127
                %p124 = scmp.ge.s32.totalorder %s123, 1
                %s128 = sphi %s114, %s114
                %s129 = sphi %s112, %s112
              $region39: #{otucker_forward.7} parent=35 // loop_header_branch
                %126 = sbr.rel (%p124) target = $region43
              $region40: #{otucker_forward.7} parent=35 // loop_body
                %v130 = vld [vmem:[%s128] sm:$0xf]
                %131 = vst [vmem:[%s129] sm:$0xf] %v130
                %v132 = vld [vmem:[%s128 + $0xc] sm:$0xf]
                %133 = vst [vmem:[%s129 + $0x4] sm:$0xf] %v132
                %v134 = vld [vmem:[%s128 + $0x18] sm:$0xf]
                %135 = vst [vmem:[%s129 + $0x8] sm:$0xf] %v134
                %v136 = vld [vmem:[%s128 + $0x24] sm:$0xf]
                %137 = vst [vmem:[%s129 + $0xc] sm:$0xf] %v136
                %v138 = vld [vmem:[%s128 + $0x30] sm:$0xf]
                %139 = vst [vmem:[%s129 + $0x10] sm:$0xf] %v138
                %v140 = vld [vmem:[%s128 + $0x3c] sm:$0xf]
                %141 = vst [vmem:[%s129 + $0x14] sm:$0xf] %v140
                %v142 = vld [vmem:[%s128 + $0x48] sm:$0xf]
                %143 = vst [vmem:[%s129 + $0x18] sm:$0xf] %v142
                %v144 = vld [vmem:[%s128 + $0x54] sm:$0xf]
                %145 = vst [vmem:[%s129 + $0x1c] sm:$0xf] %v144
                %v146 = vld [vmem:[%s128 + $0x60] sm:$0xf]
                %147 = vst [vmem:[%s129 + $0x20] sm:$0xf] %v146
                %v148 = vld [vmem:[%s128 + $0x6c] sm:$0xf]
                %149 = vst [vmem:[%s129 + $0x24] sm:$0xf] %v148
                %v150 = vld [vmem:[%s128 + $0x78] sm:$0xf]
                %151 = vst [vmem:[%s129 + $0x28] sm:$0xf] %v150
                %v152 = vld [vmem:[%s128 + $0x84] sm:$0xf]
                %153 = vst [vmem:[%s129 + $0x2c] sm:$0xf] %v152
                %v154 = vld [vmem:[%s128 + $0x90] sm:$0xf]
                %155 = vst [vmem:[%s129 + $0x30] sm:$0xf] %v154
                %v156 = vld [vmem:[%s128 + $0x9c] sm:$0xf]
                %157 = vst [vmem:[%s129 + $0x34] sm:$0xf] %v156
                %v158 = vld [vmem:[%s128 + $0xa8] sm:$0xf]
                %159 = vst [vmem:[%s129 + $0x38] sm:$0xf] %v158
                %v160 = vld [vmem:[%s128 + $0xb4] sm:$0xf]
                %161 = vst [vmem:[%s129 + $0x3c] sm:$0xf] %v160
              $region41: #{otucker_forward.7} parent=35 // loop_footer
                %s127 = sadd.s32 1, %s123
              $region42: #{otucker_forward.7} parent=35 // loop_footer_branch
                %122 = sbr.rel target = $region38
              $region43: #{otucker_forward.7} parent=35 // loop_exit
                _
            $region36: #{otucker_forward.7} parent=27 // pred_fallthru
              _
          $region28: #{otucker_forward.7} parent=23 // pred_fallthru
            _
          %213 = vnop
        $region24: #{otucker_forward.7} parent=19 // pred_fallthru
          _
      $region20: #{otucker_forward.7} parent=5 // pred_fallthru
        _
      %p214 = scmp.le.s32.totalorder 1, %s11
      %p215 = scmp.lt.s32.totalorder %s11, 4
      %p216 = pnand %p214, %p215
      %p217 = pneg %p216
      // Predicated region
      $region62: #{otucker_forward.7} parent=5 // pred_check
        _
      $region63: #{otucker_forward.7} parent=5 // pred_check_branch
        %219 = sbr.rel (%p216) target = $region65
      $region64: #{otucker_forward.7} parent=5 // pred_region
        %s220 = ssub.s32 %s11, 1
        %s221 = sand.u32 %s45, 1
        %s222 = sand.u32 %s45, 1
        %s223 = smul.addr %s222, 64
        %s224 = scalar_lea.vmem [#allocation2], %s223
        // Predicated region
        $region66: #{otucker_forward.7} parent=64 // pred_check
          %p225 = pneg %p58
        $region67: #{otucker_forward.7} parent=64 // pred_check_branch
          %227 = sbr.rel (%p225) target = $region69
        $region68: #{otucker_forward.7} parent=64 // pred_region
          _
        $region69: #{otucker_forward.7} parent=64 // pred_fallthru
          _
        %p228 = pneg %p32
        %p229 = pneg %p29
        %s230 = sand.u32 %s45, 1
        %s231 = sand.u32 %s45, 1
        %s232 = smul.addr %s231, 64
        %s233 = scalar_lea.vmem [#allocation2], %s232
        %p234 = pneg %p58
        %p235 = pneg %p55
        %p236 = pneg %p84
        %p237 = pneg %p81
        %s238 = sand.u32 %s71, 1
        %s239 = scalar_lea.sflag [#allocation4], %s238
        %s240 = sand.u32 %s71, 1
        %s241 = smul.addr %s240, 8
        %s242 = scalar_lea.vmem [#allocation3], %s241
        %v244 = vld [vmem:[%s0] sm:$0xf]
        %v245 = vld [vmem:[%s224] sm:$0xf]
        %v246 = vld [vmem:[%s224 + $0x4] sm:$0xf]
        %v247 = vld [vmem:[%s224 + $0x8] sm:$0xf]
        %v248 = vld [vmem:[%s224 + $0xc] sm:$0xf]
        %v249 = vld [vmem:[%s224 + $0x10] sm:$0xf]
        %v250 = vld [vmem:[%s224 + $0x14] sm:$0xf]
        %v251 = vld [vmem:[%s224 + $0x18] sm:$0xf]
        %v252 = vld [vmem:[%s224 + $0x1c] sm:$0xf]
        %v253 = vld [vmem:[%s224 + $0x20] sm:$0xf]
        %v254 = vld [vmem:[%s224 + $0x24] sm:$0xf]
        %v255 = vld [vmem:[%s224 + $0x28] sm:$0xf]
        %v256 = vld [vmem:[%s224 + $0x2c] sm:$0xf]
        %v257 = vld [vmem:[%s224 + $0x30] sm:$0xf]
        %v258 = vld [vmem:[%s224 + $0x34] sm:$0xf]
        %v259 = vld [vmem:[%s224 + $0x38] sm:$0xf]
        %v260 = vld [vmem:[%s224 + $0x3c] sm:$0xf]
        %v277 = vunpack.c.l.b16 %v245
        %v278 = vunpack.c.l.b16 %v246
        %v279 = vunpack.c.l.b16 %v247
        %v280 = vunpack.c.l.b16 %v248
        %v281 = vunpack.c.l.b16 %v249
        %v282 = vunpack.c.l.b16 %v250
        %v283 = vunpack.c.l.b16 %v251
        %v284 = vunpack.c.l.b16 %v252
        %v285 = vunpack.c.l.b16 %v253
        %v286 = vunpack.c.l.b16 %v254
        %v287 = vunpack.c.l.b16 %v255
        %v288 = vunpack.c.l.b16 %v256
        %v289 = vunpack.c.l.b16 %v257
        %v290 = vunpack.c.l.b16 %v258
        %v291 = vunpack.c.l.b16 %v259
        %v292 = vunpack.c.l.b16 %v260
        %v293 = vpack.c.b16 %v278, %v277
        %v294 = vpack.c.b16 %v280, %v279
        %v295 = vpack.c.b16 %v282, %v281
        %v296 = vpack.c.b16 %v284, %v283
        %v297 = vpack.c.b16 %v286, %v285
        %v298 = vpack.c.b16 %v288, %v287
        %v299 = vpack.c.b16 %v290, %v289
        %v300 = vpack.c.b16 %v292, %v291
        %309 = vmatprep.subr.bf16.mxu0 0
        %310 = vmatpush1.bf16.msra.mxu0 %v293
        %311 = vmatprep.subr.bf16.mxu0 0
        %312 = vmatpush1.bf16.msra.mxu0 %v294
        %313 = vmatprep.subr.bf16.mxu0 0
        %314 = vmatpush1.bf16.msra.mxu0 %v295
        %315 = vmatprep.subr.bf16.mxu0 0
        %316 = vmatpush1.bf16.msra.mxu0 %v296
        %317 = vmatprep.subr.bf16.mxu0 0
        %318 = vmatpush1.bf16.msra.mxu0 %v297
        %319 = vmatprep.subr.bf16.mxu0 0
        %320 = vmatpush1.bf16.msra.mxu0 %v298
        %321 = vmatprep.subr.bf16.mxu0 0
        %322 = vmatpush1.bf16.msra.mxu0 %v299
        %323 = vmatprep.subr.bf16.mxu0 0
        %324 = vmatpush1.bf16.msra.mxu0 %v300
        %325 = vmatprep.subr.bf16.mxu0 0
        %326 = vmatpush1.bf16.msra.mxu0 0
        %327 = vmatprep.subr.bf16.mxu0 0
        %328 = vmatpush1.bf16.msra.mxu0 0
        %329 = vmatprep.subr.bf16.mxu0 0
        %330 = vmatpush1.bf16.msra.mxu0 0
        %331 = vmatprep.subr.bf16.mxu0 0
        %332 = vmatpush1.bf16.msra.mxu0 0
        %333 = vmatprep.subr.bf16.mxu0 0
        %334 = vmatpush1.bf16.msra.mxu0 0
        %335 = vmatprep.subr.bf16.mxu0 0
        %336 = vmatpush1.bf16.msra.mxu0 0
        %337 = vmatprep.subr.bf16.mxu0 0
        %338 = vmatpush1.bf16.msra.mxu0 0
        %339 = vmatprep.subr.bf16.mxu0 0
        %340 = vmatpush1.bf16.msra.mxu0 0
        %341 = vmatprep.mubr.bf16.mxu0 0
        %342 = vmatmul.mubr.bf16.gmra.mrb[0].mxu0 %v244
        %v343 = vpop.f32.mrb[0].mxu0
        %v344 = vadd.f32 0.0, %v343
        %v345 = vpop.f32.mrb[0].mxu0
        %v346 = vpop.f32.mrb[0].mxu0
        %v347 = vpop.f32.mrb[0].mxu0
        %348 = vdwg.mxu0
        %v349 = vxor.u32 %v344, 2147483648
        %v350 = vmul.f32 %v349, 1.442695
        %v351 = vpow.pop %v350
        %v352 = vadd.f32 %v351, 1.0
        %v353 = vrcp.pop %v352
        %v354 = vmul.f32 1.0, %v353
        %355 = vst [vmem:[%s242] sm:$0xff] %v354
        %s356 = sand.u32 %s71, 1
        %s357 = scalar_lea.sflag [#allocation4], %s356
        %s358 = sand.u32 %s71, 1
        %s359 = smul.addr %s358, 8
        %s360 = scalar_lea.vmem [#allocation3], %s359
        // Predicated region
        $region70: #{otucker_forward.7} parent=64 // pred_check
          %p361 = pneg %p81
        $region71: #{otucker_forward.7} parent=64 // pred_check_branch
          %363 = sbr.rel (%p361) target = $region73
        $region72: #{otucker_forward.7} parent=64 // pred_region
          %s365 = ssub.s32 128, 128
          %366 = vsyncadd %s357, %s365
          %s367 = smul.addr %s16, 128
          %s368 = scalar_lea.hbm %s2, %s367
          %s370 = sshll.u32 %s360, 4
          %s371 = int_to_ptr.vmem [resolvable:$true] %s370
          %373 = dma.vmem_to_hbm [thread:$0]  %s371, 128, %s368, %s357
        $region73: #{otucker_forward.7} parent=64 // pred_fallthru
          _
      $region65: #{otucker_forward.7} parent=5 // pred_fallthru
        _
      %p374 = scmp.le.s32.totalorder 2, %s11
      // Predicated region
      $region74: #{otucker_forward.7} parent=5 // pred_check
        %p375 = pneg %p374
      $region75: #{otucker_forward.7} parent=5 // pred_check_branch
        %377 = sbr.rel (%p375) target = $region77
      $region76: #{otucker_forward.7} parent=5 // pred_region
        %s378 = ssub.s32 %s11, 2
        // Predicated region
        $region78: #{otucker_forward.7} parent=76 // pred_check
          %p379 = pneg %p87
        $region79: #{otucker_forward.7} parent=76 // pred_check_branch
          %381 = sbr.rel (%p379) target = $region81
        $region80: #{otucker_forward.7} parent=76 // pred_region
          %s382 = sand.u32 %s72, 1
          %s383 = scalar_lea.sflag [#allocation4], %s382
          %s384 = sand.u32 %s72, 1
          %s385 = smul.addr %s384, 8
          %s386 = scalar_lea.vmem [#allocation3], %s385
          %387 = dma.done %s383, 128
        $region81: #{otucker_forward.7} parent=76 // pred_fallthru
          _
      $region77: #{otucker_forward.7} parent=5 // pred_fallthru
        _
    $region6: #{otucker_forward.7} parent=1 // loop_footer
      %s15 = sadd.s32 1, %s11
    $region7: #{otucker_forward.7} parent=1 // loop_footer_branch
      %10 = sbr.rel target = $region3
    $region8: #{otucker_forward.7} parent=1 // loop_exit
      _
    %388 = vsyncpa [#allocation4], 1
    %s389 = scalar_lea.sflag [#allocation4], 1
    %390 = vsyncpa %s389, 1

// kernel: otucker_forward.6
$region0: #{otucker_forward.6}
  #allocation0 [shape = 'u32[]', space=smem, size = 0x4, offset = 0x4, fixed_abs, tag = 'smem constant byte address 0x4 - core index']
  #allocation1 [shape = 'u32[144,128]{1,0:T(1,128)}', space=vmem, size = 0x12000, scoped, tag = 'internal scratch']
  #allocation2 [shape = 'f32[128,8]{1,0:T(8,128)}', space=vmem, size = 0x10000, scoped, tag = 'scratch operand']
  %s0 = inlined_call_operand.vmem [shape: bf16[128,8], index: 0, kind: input, shape index: {}]
  %s1 = inlined_call_operand.vmem [shape: bf16[128,8], index: 1, kind: input, shape index: {}]
  %s2 = inlined_call_operand.vmem [shape: bf16[128,16384], index: 2, kind: input, shape index: {}]
  %s3 = inlined_call_operand.vmem [shape: f32[128,2], index: 3, kind: input, shape index: {}]
  %s4 = inlined_call_operand.vmem [shape: f32[128,2], index: 4, kind: input, shape index: {}]
  %s5 = inlined_call_operand.vmem [shape: bf16[128,8], index: 5, kind: output, shape index: {}]
  %s6 = sld [smem:[#allocation0]]
  $region84: #{otucker_forward.6} parent=0
    _
  %s8 = ssub.s32 1, %s6
  %s9 = scalar_select 0, %s8, %s6
  $region1: #{otucker_forward.6} parent=0
    #allocation3 [shape = 'u8[2097152]{0}', space=vmem, size = 0x200000, scoped, tag = 'input window, operand 2']
    loop: start=0, step=1, limit=6
    $region2: #{otucker_forward.6} parent=1 // loop_pre_header
      _
    $region3: #{otucker_forward.6} parent=1 // loop_header
      %s11 = sphi 0, %s15
      %p12 = scmp.ge.s32.totalorder %s11, 6
      %s21 = sphi 0, %s23
      %s24 = sphi 0, %s21
      %s25 = sphi 0, %s24
      %s41 = sphi 0, %s25
      %s45 = sphi 0, %s45
      %s47 = sphi 0, %s45
      %s48 = sphi 0, %s47
      %s62 = sphi 0, %s48
      %s68 = sphi 0, %s70
      %s71 = sphi 0, %s68
      %s72 = sphi 0, %s71
      %s88 = sphi 0, %s72
      %s92 = sphi 0, %s92
      %s94 = sphi 0, %s92
      %s95 = sphi 0, %s94
      %s109 = sphi 0, %s95
      %s113 = sphi 0, %s113
      %s115 = sphi 0, %s113
      %s116 = sphi 0, %s115
      %s130 = sphi 0, %s116
      %s134 = sphi 0, %s134
      %s136 = sphi 0, %s134
      %s137 = sphi 0, %s136
      %s151 = sphi 0, %s137
    $region4: #{otucker_forward.6} parent=1 // loop_header_branch
      %14 = sbr.rel (%p12) target = $region8
    $region5: #{otucker_forward.6} parent=1 // loop_body
      %s16 = ssub.s32 %s11, 1
      %s17 = ssub.s32 %s11, 2
      %s18 = sadd.s32 %s11, 1
      %s19 = ssub.s32 %s11, %s18
      %p20 = scmp.eq.s32.totalorder %s19, 0
      %s22 = sadd.s32 %s21, 1
      %s23 = scalar_select %p20, %s21, %s22
      %p26 = pneg %p20
      %p27 = scmp.eq.s32.totalorder %s11, 3
      %p28 = por %p26, %p27
      %p29 = scmp.ne.s32.totalorder %s21, %s24
      %p30 = scmp.eq.s32.totalorder %s11, 0
      %p31 = por %p29, %p30
      %p32 = scmp.ne.s32.totalorder %s21, %s24
      %p33 = scmp.eq.s32.totalorder %s16, 3
      %p34 = por %p32, %p33
      %p35 = scmp.ne.s32.totalorder %s24, %s25
      %p36 = scmp.eq.s32.totalorder %s16, 0
      %p37 = por %p35, %p36
      %p38 = scmp.ne.s32.totalorder %s24, %s25
      %p39 = scmp.eq.s32.totalorder %s17, 3
      %p40 = por %p38, %p39
      %p42 = scmp.ne.s32.totalorder %s25, %s41
      %p43 = scmp.eq.s32.totalorder %s17, 0
      %p44 = por %p42, %p43
      %s46 = sadd.s32 %s45, 1
      %p49 = scmp.eq.s32.totalorder %s11, 3
      %p50 = scmp.ne.s32.totalorder %s45, %s47
      %p51 = scmp.eq.s32.totalorder %s11, 0
      %p52 = por %p50, %p51
      %p53 = scmp.ne.s32.totalorder %s45, %s47
      %p54 = scmp.eq.s32.totalorder %s16, 3
      %p55 = por %p53, %p54
      %p56 = scmp.ne.s32.totalorder %s47, %s48
      %p57 = scmp.eq.s32.totalorder %s16, 0
      %p58 = por %p56, %p57
      %p59 = scmp.ne.s32.totalorder %s47, %s48
      %p60 = scmp.eq.s32.totalorder %s17, 3
      %p61 = por %p59, %p60
      %p63 = scmp.ne.s32.totalorder %s48, %s62
      %p64 = scmp.eq.s32.totalorder %s17, 0
      %p65 = por %p63, %p64
      %s66 = ssub.s32 %s11, %s18
      %p67 = scmp.eq.s32.totalorder %s66, 0
      %s69 = sadd.s32 %s68, 1
      %s70 = scalar_select %p67, %s68, %s69
      %p73 = pneg %p67
      %p74 = scmp.eq.s32.totalorder %s11, 3
      %p75 = por %p73, %p74
      %p76 = scmp.ne.s32.totalorder %s68, %s71
      %p77 = scmp.eq.s32.totalorder %s11, 0
      %p78 = por %p76, %p77
      %p79 = scmp.ne.s32.totalorder %s68, %s71
      %p80 = scmp.eq.s32.totalorder %s16, 3
      %p81 = por %p79, %p80
      %p82 = scmp.ne.s32.totalorder %s71, %s72
      %p83 = scmp.eq.s32.totalorder %s16, 0
      %p84 = por %p82, %p83
      %p85 = scmp.ne.s32.totalorder %s71, %s72
      %p86 = scmp.eq.s32.totalorder %s17, 3
      %p87 = por %p85, %p86
      %p89 = scmp.ne.s32.totalorder %s72, %s88
      %p90 = scmp.eq.s32.totalorder %s17, 0
      %p91 = por %p89, %p90
      %s93 = sadd.s32 %s92, 1
      %p96 = scmp.eq.s32.totalorder %s11, 3
      %p97 = scmp.ne.s32.totalorder %s92, %s94
      %p98 = scmp.eq.s32.totalorder %s11, 0
      %p99 = por %p97, %p98
      %p100 = scmp.ne.s32.totalorder %s92, %s94
      %p101 = scmp.eq.s32.totalorder %s16, 3
      %p102 = por %p100, %p101
      %p103 = scmp.ne.s32.totalorder %s94, %s95
      %p104 = scmp.eq.s32.totalorder %s16, 0
      %p105 = por %p103, %p104
      %p106 = scmp.ne.s32.totalorder %s94, %s95
      %p107 = scmp.eq.s32.totalorder %s17, 3
      %p108 = por %p106, %p107
      %p110 = scmp.ne.s32.totalorder %s95, %s109
      %p111 = scmp.eq.s32.totalorder %s17, 0
      %p112 = por %p110, %p111
      %s114 = sadd.s32 %s113, 1
      %p117 = scmp.eq.s32.totalorder %s11, 3
      %p118 = scmp.ne.s32.totalorder %s113, %s115
      %p119 = scmp.eq.s32.totalorder %s11, 0
      %p120 = por %p118, %p119
      %p121 = scmp.ne.s32.totalorder %s113, %s115
      %p122 = scmp.eq.s32.totalorder %s16, 3
      %p123 = por %p121, %p122
      %p124 = scmp.ne.s32.totalorder %s115, %s116
      %p125 = scmp.eq.s32.totalorder %s16, 0
      %p126 = por %p124, %p125
      %p127 = scmp.ne.s32.totalorder %s115, %s116
      %p128 = scmp.eq.s32.totalorder %s17, 3
      %p129 = por %p127, %p128
      %p131 = scmp.ne.s32.totalorder %s116, %s130
      %p132 = scmp.eq.s32.totalorder %s17, 0
      %p133 = por %p131, %p132
      %s135 = sadd.s32 %s134, 1
      %p138 = scmp.eq.s32.totalorder %s11, 3
      %p139 = scmp.ne.s32.totalorder %s134, %s136
      %p140 = scmp.eq.s32.totalorder %s11, 0
      %p141 = por %p139, %p140
      %p142 = scmp.ne.s32.totalorder %s134, %s136
      %p143 = scmp.eq.s32.totalorder %s16, 3
      %p144 = por %p142, %p143
      %p145 = scmp.ne.s32.totalorder %s136, %s137
      %p146 = scmp.eq.s32.totalorder %s16, 0
      %p147 = por %p145, %p146
      %p148 = scmp.ne.s32.totalorder %s136, %s137
      %p149 = scmp.eq.s32.totalorder %s17, 3
      %p150 = por %p148, %p149
      %p152 = scmp.ne.s32.totalorder %s137, %s151
      %p153 = scmp.eq.s32.totalorder %s17, 0
      %p154 = por %p152, %p153
      %p155 = scmp.le.s32.totalorder 1, %s11
      %p156 = scmp.lt.s32.totalorder %s11, 5
      %p157 = pnand %p155, %p156
      %p158 = pneg %p157
      // Predicated region
      $region9: #{otucker_forward.6} parent=5 // pred_check
        _
      $region10: #{otucker_forward.6} parent=5 // pred_check_branch
        %160 = sbr.rel (%p157) target = $region12
      $region11: #{otucker_forward.6} parent=5 // pred_region
        %s161 = ssub.s32 %s11, 1
        // Predicated region
        $region13: #{otucker_forward.6} parent=11 // pred_check
          %p162 = pneg %p58
        $region14: #{otucker_forward.6} parent=11 // pred_check_branch
          %164 = sbr.rel (%p162) target = $region16
        $region15: #{otucker_forward.6} parent=11 // pred_region
          _
        $region16: #{otucker_forward.6} parent=11 // pred_fallthru
          _
        // Predicated region
        $region17: #{otucker_forward.6} parent=11 // pred_check
          %p165 = pneg %p105
        $region18: #{otucker_forward.6} parent=11 // pred_check_branch
          %167 = sbr.rel (%p165) target = $region20
        $region19: #{otucker_forward.6} parent=11 // pred_region
          _
        $region20: #{otucker_forward.6} parent=11 // pred_fallthru
          _
        // Predicated region
        $region21: #{otucker_forward.6} parent=11 // pred_check
          %p168 = pneg %p126
        $region22: #{otucker_forward.6} parent=11 // pred_check_branch
          %170 = sbr.rel (%p168) target = $region24
        $region23: #{otucker_forward.6} parent=11 // pred_region
          _
        $region24: #{otucker_forward.6} parent=11 // pred_fallthru
          _
      $region12: #{otucker_forward.6} parent=5 // pred_fallthru
        _
      %p171 = scmp.lt.s32.totalorder %s11, 4
      // Predicated region
      $region25: #{otucker_forward.6} parent=5 // pred_check
        %p172 = pneg %p171
      $region26: #{otucker_forward.6} parent=5 // pred_check_branch
        %174 = sbr.rel (%p172) target = $region28
      $region27: #{otucker_forward.6} parent=5 // pred_region
        // Predicated region
        $region29: #{otucker_forward.6} parent=27 // pred_check
          %p175 = pneg %p31
        $region30: #{otucker_forward.6} parent=27 // pred_check_branch
          %177 = sbr.rel (%p175) target = $region32
        $region31: #{otucker_forward.6} parent=27 // pred_region
          %s178 = smul.u32 4, %s11
          %p179 = scmp.lt.s32.totalorder %s178, 15
          %s180 = scalar_select %p179, %s178, 15
          %s181 = smul.addr %s180, 4
          %s182 = scalar_lea.vmem %s0, %s181
          %s183 = smul.u32 4, %s11
        $region32: #{otucker_forward.6} parent=27 // pred_fallthru
          _
        // Predicated region
        $region33: #{otucker_forward.6} parent=27 // pred_check
          %p184 = pneg %p78
        $region34: #{otucker_forward.6} parent=27 // pred_check_branch
          %186 = sbr.rel (%p184) target = $region36
        $region35: #{otucker_forward.6} parent=27 // pred_region
          %s187 = sand.u32 %s68, 1
          %s188 = sand.u32 %s68, 1
          %s189 = smul.addr %s188, 2048
          %s190 = scalar_lea.vmem [#allocation3], %s189
          %s191 = smul.u32 32, %s11
          %s192 = smul.addr %s191, 4
          %s193 = scalar_lea.vmem %s2, %s192
          // Predicated region
          $region37: #{otucker_forward.6} parent=35 // pred_check
            _
          $region38: #{otucker_forward.6} parent=35 // pred_check_branch
            %195 = sbr.rel (0) target = $region40
          $region39: #{otucker_forward.6} parent=35 // pred_region
            // Predicated region
            $region41: #{otucker_forward.6} parent=39 // pred_check
              _
            $region42: #{otucker_forward.6} parent=39 // pred_check_branch
              %197 = sbr.rel (0) target = $region44
            $region43: #{otucker_forward.6} parent=39 // pred_region
              loop: start=0, step=1, limit=1
              $region45: #{otucker_forward.6} parent=43 // loop_pre_header
                _
              $region46: #{otucker_forward.6} parent=43 // loop_header
                %s199 = sphi 0, %s203
                %p200 = scmp.ge.s32.totalorder %s199, 1
                %s204 = sphi %s193, %s193
                %s205 = sphi %s190, %s190
              $region47: #{otucker_forward.6} parent=43 // loop_header_branch
                %202 = sbr.rel (%p200) target = $region51
              $region48: #{otucker_forward.6} parent=43 // loop_body
                %v206 = vld [vmem:[%s204] sm:$0xff]
                %207 = vst [vmem:[%s205] sm:$0xff] %v206
                %v208 = vld [vmem:[%s204 + $0x8] sm:$0xff]
                %209 = vst [vmem:[%s205 + $0x8] sm:$0xff] %v208
                %v210 = vld [vmem:[%s204 + $0x10] sm:$0xff]
                %211 = vst [vmem:[%s205 + $0x10] sm:$0xff] %v210
                %v212 = vld [vmem:[%s204 + $0x18] sm:$0xff]
                %213 = vst [vmem:[%s205 + $0x18] sm:$0xff] %v212
                %v214 = vld [vmem:[%s204 + $0x20] sm:$0xff]
                %215 = vst [vmem:[%s205 + $0x20] sm:$0xff] %v214
                %v216 = vld [vmem:[%s204 + $0x28] sm:$0xff]
                %217 = vst [vmem:[%s205 + $0x28] sm:$0xff] %v216
                %v218 = vld [vmem:[%s204 + $0x30] sm:$0xff]
                %219 = vst [vmem:[%s205 + $0x30] sm:$0xff] %v218
                %v220 = vld [vmem:[%s204 + $0x38] sm:$0xff]
                %221 = vst [vmem:[%s205 + $0x38] sm:$0xff] %v220
                %v222 = vld [vmem:[%s204 + $0x40] sm:$0xff]
                %223 = vst [vmem:[%s205 + $0x40] sm:$0xff] %v222
                %v224 = vld [vmem:[%s204 + $0x48] sm:$0xff]
                %225 = vst [vmem:[%s205 + $0x48] sm:$0xff] %v224
                %v226 = vld [vmem:[%s204 + $0x50] sm:$0xff]
                %227 = vst [vmem:[%s205 + $0x50] sm:$0xff] %v226
                %v228 = vld [vmem:[%s204 + $0x58] sm:$0xff]
                %229 = vst [vmem:[%s205 + $0x58] sm:$0xff] %v228
                %v230 = vld [vmem:[%s204 + $0x60] sm:$0xff]
                %231 = vst [vmem:[%s205 + $0x60] sm:$0xff] %v230
                %v232 = vld [vmem:[%s204 + $0x68] sm:$0xff]
                %233 = vst [vmem:[%s205 + $0x68] sm:$0xff] %v232
                %v234 = vld [vmem:[%s204 + $0x70] sm:$0xff]
                %235 = vst [vmem:[%s205 + $0x70] sm:$0xff] %v234
                %v236 = vld [vmem:[%s204 + $0x78] sm:$0xff]
                %237 = vst [vmem:[%s205 + $0x78] sm:$0xff] %v236
                %v238 = vld [vmem:[%s204 + $0x200] sm:$0xff]
                %239 = vst [vmem:[%s205 + $0x80] sm:$0xff] %v238
                %v240 = vld [vmem:[%s204 + $0x208] sm:$0xff]
                %241 = vst [vmem:[%s205 + $0x88] sm:$0xff] %v240
                %v242 = vld [vmem:[%s204 + $0x210] sm:$0xff]
                %243 = vst [vmem:[%s205 + $0x90] sm:$0xff] %v242
                %v244 = vld [vmem:[%s204 + $0x218] sm:$0xff]
                %245 = vst [vmem:[%s205 + $0x98] sm:$0xff] %v244
                %v246 = vld [vmem:[%s204 + $0x220] sm:$0xff]
                %247 = vst [vmem:[%s205 + $0xa0] sm:$0xff] %v246
                %v248 = vld [vmem:[%s204 + $0x228] sm:$0xff]
                %249 = vst [vmem:[%s205 + $0xa8] sm:$0xff] %v248
                %v250 = vld [vmem:[%s204 + $0x230] sm:$0xff]
                %251 = vst [vmem:[%s205 + $0xb0] sm:$0xff] %v250
                %v252 = vld [vmem:[%s204 + $0x238] sm:$0xff]
                %253 = vst [vmem:[%s205 + $0xb8] sm:$0xff] %v252
                %v254 = vld [vmem:[%s204 + $0x240] sm:$0xff]
                %255 = vst [vmem:[%s205 + $0xc0] sm:$0xff] %v254
                %v256 = vld [vmem:[%s204 + $0x248] sm:$0xff]
                %257 = vst [vmem:[%s205 + $0xc8] sm:$0xff] %v256
                %v258 = vld [vmem:[%s204 + $0x250] sm:$0xff]
                %259 = vst [vmem:[%s205 + $0xd0] sm:$0xff] %v258
                %v260 = vld [vmem:[%s204 + $0x258] sm:$0xff]
                %261 = vst [vmem:[%s205 + $0xd8] sm:$0xff] %v260
                %v262 = vld [vmem:[%s204 + $0x260] sm:$0xff]
                %263 = vst [vmem:[%s205 + $0xe0] sm:$0xff] %v262
                %v264 = vld [vmem:[%s204 + $0x268] sm:$0xff]
                %265 = vst [vmem:[%s205 + $0xe8] sm:$0xff] %v264
                %v266 = vld [vmem:[%s204 + $0x270] sm:$0xff]
                %267 = vst [vmem:[%s205 + $0xf0] sm:$0xff] %v266
                %v268 = vld [vmem:[%s204 + $0x278] sm:$0xff]
                %269 = vst [vmem:[%s205 + $0xf8] sm:$0xff] %v268
                %v270 = vld [vmem:[%s204 + $0x400] sm:$0xff]
                %271 = vst [vmem:[%s205 + $0x100] sm:$0xff] %v270
                %v272 = vld [vmem:[%s204 + $0x408] sm:$0xff]
                %273 = vst [vmem:[%s205 + $0x108] sm:$0xff] %v272
                %v274 = vld [vmem:[%s204 + $0x410] sm:$0xff]
                %275 = vst [vmem:[%s205 + $0x110] sm:$0xff] %v274
                %v276 = vld [vmem:[%s204 + $0x418] sm:$0xff]
                %277 = vst [vmem:[%s205 + $0x118] sm:$0xff] %v276
                %v278 = vld [vmem:[%s204 + $0x420] sm:$0xff]
                %279 = vst [vmem:[%s205 + $0x120] sm:$0xff] %v278
                %v280 = vld [vmem:[%s204 + $0x428] sm:$0xff]
                %281 = vst [vmem:[%s205 + $0x128] sm:$0xff] %v280
                %v282 = vld [vmem:[%s204 + $0x430] sm:$0xff]
                %283 = vst [vmem:[%s205 + $0x130] sm:$0xff] %v282
                %v284 = vld [vmem:[%s204 + $0x438] sm:$0xff]
                %285 = vst [vmem:[%s205 + $0x138] sm:$0xff] %v284
                %v286 = vld [vmem:[%s204 + $0x440] sm:$0xff]
                %287 = vst [vmem:[%s205 + $0x140] sm:$0xff] %v286
                %v288 = vld [vmem:[%s204 + $0x448] sm:$0xff]
                %289 = vst [vmem:[%s205 + $0x148] sm:$0xff] %v288
                %v290 = vld [vmem:[%s204 + $0x450] sm:$0xff]
                %291 = vst [vmem:[%s205 + $0x150] sm:$0xff] %v290
                %v292 = vld [vmem:[%s204 + $0x458] sm:$0xff]
                %293 = vst [vmem:[%s205 + $0x158] sm:$0xff] %v292
                %v294 = vld [vmem:[%s204 + $0x460] sm:$0xff]
                %295 = vst [vmem:[%s205 + $0x160] sm:$0xff] %v294
                %v296 = vld [vmem:[%s204 + $0x468] sm:$0xff]
                %297 = vst [vmem:[%s205 + $0x168] sm:$0xff] %v296
                %v298 = vld [vmem:[%s204 + $0x470] sm:$0xff]
                %299 = vst [vmem:[%s205 + $0x170] sm:$0xff] %v298
                %v300 = vld [vmem:[%s204 + $0x478] sm:$0xff]
                %301 = vst [vmem:[%s205 + $0x178] sm:$0xff] %v300
                %v302 = vld [vmem:[%s204 + $0x600] sm:$0xff]
                %303 = vst [vmem:[%s205 + $0x180] sm:$0xff] %v302
                %v304 = vld [vmem:[%s204 + $0x608] sm:$0xff]
                %305 = vst [vmem:[%s205 + $0x188] sm:$0xff] %v304
                %v306 = vld [vmem:[%s204 + $0x610] sm:$0xff]
                %307 = vst [vmem:[%s205 + $0x190] sm:$0xff] %v306
                %v308 = vld [vmem:[%s204 + $0x618] sm:$0xff]
                %309 = vst [vmem:[%s205 + $0x198] sm:$0xff] %v308
                %v310 = vld [vmem:[%s204 + $0x620] sm:$0xff]
                %311 = vst [vmem:[%s205 + $0x1a0] sm:$0xff] %v310
                %v312 = vld [vmem:[%s204 + $0x628] sm:$0xff]
                %313 = vst [vmem:[%s205 + $0x1a8] sm:$0xff] %v312
                %v314 = vld [vmem:[%s204 + $0x630] sm:$0xff]
                %315 = vst [vmem:[%s205 + $0x1b0] sm:$0xff] %v314
                %v316 = vld [vmem:[%s204 + $0x638] sm:$0xff]
                %317 = vst [vmem:[%s205 + $0x1b8] sm:$0xff] %v316
                %v318 = vld [vmem:[%s204 + $0x640] sm:$0xff]
                %319 = vst [vmem:[%s205 + $0x1c0] sm:$0xff] %v318
                %v320 = vld [vmem:[%s204 + $0x648] sm:$0xff]
                %321 = vst [vmem:[%s205 + $0x1c8] sm:$0xff] %v320
                %v322 = vld [vmem:[%s204 + $0x650] sm:$0xff]
                %323 = vst [vmem:[%s205 + $0x1d0] sm:$0xff] %v322
                %v324 = vld [vmem:[%s204 + $0x658] sm:$0xff]
                %325 = vst [vmem:[%s205 + $0x1d8] sm:$0xff] %v324
                %v326 = vld [vmem:[%s204 + $0x660] sm:$0xff]
                %327 = vst [vmem:[%s205 + $0x1e0] sm:$0xff] %v326
                %v328 = vld [vmem:[%s204 + $0x668] sm:$0xff]
                %329 = vst [vmem:[%s205 + $0x1e8] sm:$0xff] %v328
                %v330 = vld [vmem:[%s204 + $0x670] sm:$0xff]
                %331 = vst [vmem:[%s205 + $0x1f0] sm:$0xff] %v330
                %v332 = vld [vmem:[%s204 + $0x678] sm:$0xff]
                %333 = vst [vmem:[%s205 + $0x1f8] sm:$0xff] %v332
                %v334 = vld [vmem:[%s204 + $0x800] sm:$0xff]
                %335 = vst [vmem:[%s205 + $0x200] sm:$0xff] %v334
                %v336 = vld [vmem:[%s204 + $0x808] sm:$0xff]
                %337 = vst [vmem:[%s205 + $0x208] sm:$0xff] %v336
                %v338 = vld [vmem:[%s204 + $0x810] sm:$0xff]
                %339 = vst [vmem:[%s205 + $0x210] sm:$0xff] %v338
                %v340 = vld [vmem:[%s204 + $0x818] sm:$0xff]
                %341 = vst [vmem:[%s205 + $0x218] sm:$0xff] %v340
                %v342 = vld [vmem:[%s204 + $0x820] sm:$0xff]
                %343 = vst [vmem:[%s205 + $0x220] sm:$0xff] %v342
                %v344 = vld [vmem:[%s204 + $0x828] sm:$0xff]
                %345 = vst [vmem:[%s205 + $0x228] sm:$0xff] %v344
                %v346 = vld [vmem:[%s204 + $0x830] sm:$0xff]
                %347 = vst [vmem:[%s205 + $0x230] sm:$0xff] %v346
                %v348 = vld [vmem:[%s204 + $0x838] sm:$0xff]
                %349 = vst [vmem:[%s205 + $0x238] sm:$0xff] %v348
                %v350 = vld [vmem:[%s204 + $0x840] sm:$0xff]
                %351 = vst [vmem:[%s205 + $0x240] sm:$0xff] %v350
                %v352 = vld [vmem:[%s204 + $0x848] sm:$0xff]
                %353 = vst [vmem:[%s205 + $0x248] sm:$0xff] %v352
                %v354 = vld [vmem:[%s204 + $0x850] sm:$0xff]
                %355 = vst [vmem:[%s205 + $0x250] sm:$0xff] %v354
                %v356 = vld [vmem:[%s204 + $0x858] sm:$0xff]
                %357 = vst [vmem:[%s205 + $0x258] sm:$0xff] %v356
                %v358 = vld [vmem:[%s204 + $0x860] sm:$0xff]
                %359 = vst [vmem:[%s205 + $0x260] sm:$0xff] %v358
                %v360 = vld [vmem:[%s204 + $0x868] sm:$0xff]
                %361 = vst [vmem:[%s205 + $0x268] sm:$0xff] %v360
                %v362 = vld [vmem:[%s204 + $0x870] sm:$0xff]
                %363 = vst [vmem:[%s205 + $0x270] sm:$0xff] %v362
                %v364 = vld [vmem:[%s204 + $0x878] sm:$0xff]
                %365 = vst [vmem:[%s205 + $0x278] sm:$0xff] %v364
                %v366 = vld [vmem:[%s204 + $0xa00] sm:$0xff]
                %367 = vst [vmem:[%s205 + $0x280] sm:$0xff] %v366
                %v368 = vld [vmem:[%s204 + $0xa08] sm:$0xff]
                %369 = vst [vmem:[%s205 + $0x288] sm:$0xff] %v368
                %v370 = vld [vmem:[%s204 + $0xa10] sm:$0xff]
                %371 = vst [vmem:[%s205 + $0x290] sm:$0xff] %v370
                %v372 = vld [vmem:[%s204 + $0xa18] sm:$0xff]
                %373 = vst [vmem:[%s205 + $0x298] sm:$0xff] %v372
                %v374 = vld [vmem:[%s204 + $0xa20] sm:$0xff]
                %375 = vst [vmem:[%s205 + $0x2a0] sm:$0xff] %v374
                %v376 = vld [vmem:[%s204 + $0xa28] sm:$0xff]
                %377 = vst [vmem:[%s205 + $0x2a8] sm:$0xff] %v376
                %v378 = vld [vmem:[%s204 + $0xa30] sm:$0xff]
                %379 = vst [vmem:[%s205 + $0x2b0] sm:$0xff] %v378
                %v380 = vld [vmem:[%s204 + $0xa38] sm:$0xff]
                %381 = vst [vmem:[%s205 + $0x2b8] sm:$0xff] %v380
                %v382 = vld [vmem:[%s204 + $0xa40] sm:$0xff]
                %383 = vst [vmem:[%s205 + $0x2c0] sm:$0xff] %v382
                %v384 = vld [vmem:[%s204 + $0xa48] sm:$0xff]
                %385 = vst [vmem:[%s205 + $0x2c8] sm:$0xff] %v384
                %v386 = vld [vmem:[%s204 + $0xa50] sm:$0xff]
                %387 = vst [vmem:[%s205 + $0x2d0] sm:$0xff] %v386
                %v388 = vld [vmem:[%s204 + $0xa58] sm:$0xff]
                %389 = vst [vmem:[%s205 + $0x2d8] sm:$0xff] %v388
                %v390 = vld [vmem:[%s204 + $0xa60] sm:$0xff]
                %391 = vst [vmem:[%s205 + $0x2e0] sm:$0xff] %v390
                %v392 = vld [vmem:[%s204 + $0xa68] sm:$0xff]
                %393 = vst [vmem:[%s205 + $0x2e8] sm:$0xff] %v392
                %v394 = vld [vmem:[%s204 + $0xa70] sm:$0xff]
                %395 = vst [vmem:[%s205 + $0x2f0] sm:$0xff] %v394
                %v396 = vld [vmem:[%s204 + $0xa78] sm:$0xff]
                %397 = vst [vmem:[%s205 + $0x2f8] sm:$0xff] %v396
                %v398 = vld [vmem:[%s204 + $0xc00] sm:$0xff]
                %399 = vst [vmem:[%s205 + $0x300] sm:$0xff] %v398
                %v400 = vld [vmem:[%s204 + $0xc08] sm:$0xff]
                %401 = vst [vmem:[%s205 + $0x308] sm:$0xff] %v400
                %v402 = vld [vmem:[%s204 + $0xc10] sm:$0xff]
                %403 = vst [vmem:[%s205 + $0x310] sm:$0xff] %v402
                %v404 = vld [vmem:[%s204 + $0xc18] sm:$0xff]
                %405 = vst [vmem:[%s205 + $0x318] sm:$0xff] %v404
                %v406 = vld [vmem:[%s204 + $0xc20] sm:$0xff]
                %407 = vst [vmem:[%s205 + $0x320] sm:$0xff] %v406
                %v408 = vld [vmem:[%s204 + $0xc28] sm:$0xff]
                %409 = vst [vmem:[%s205 + $0x328] sm:$0xff] %v408
                %v410 = vld [vmem:[%s204 + $0xc30] sm:$0xff]
                %411 = vst [vmem:[%s205 + $0x330] sm:$0xff] %v410
                %v412 = vld [vmem:[%s204 + $0xc38] sm:$0xff]
                %413 = vst [vmem:[%s205 + $0x338] sm:$0xff] %v412
                %v414 = vld [vmem:[%s204 + $0xc40] sm:$0xff]
                %415 = vst [vmem:[%s205 + $0x340] sm:$0xff] %v414
                %v416 = vld [vmem:[%s204 + $0xc48] sm:$0xff]
                %417 = vst [vmem:[%s205 + $0x348] sm:$0xff] %v416
                %v418 = vld [vmem:[%s204 + $0xc50] sm:$0xff]
                %419 = vst [vmem:[%s205 + $0x350] sm:$0xff] %v418
                %v420 = vld [vmem:[%s204 + $0xc58] sm:$0xff]
                %421 = vst [vmem:[%s205 + $0x358] sm:$0xff] %v420
                %v422 = vld [vmem:[%s204 + $0xc60] sm:$0xff]
                %423 = vst [vmem:[%s205 + $0x360] sm:$0xff] %v422
                %v424 = vld [vmem:[%s204 + $0xc68] sm:$0xff]
                %425 = vst [vmem:[%s205 + $0x368] sm:$0xff] %v424
                %v426 = vld [vmem:[%s204 + $0xc70] sm:$0xff]
                %427 = vst [vmem:[%s205 + $0x370] sm:$0xff] %v426
                %v428 = vld [vmem:[%s204 + $0xc78] sm:$0xff]
                %429 = vst [vmem:[%s205 + $0x378] sm:$0xff] %v428
                %v430 = vld [vmem:[%s204 + $0xe00] sm:$0xff]
                %431 = vst [vmem:[%s205 + $0x380] sm:$0xff] %v430
                %v432 = vld [vmem:[%s204 + $0xe08] sm:$0xff]
                %433 = vst [vmem:[%s205 + $0x388] sm:$0xff] %v432
                %v434 = vld [vmem:[%s204 + $0xe10] sm:$0xff]
                %435 = vst [vmem:[%s205 + $0x390] sm:$0xff] %v434
                %v436 = vld [vmem:[%s204 + $0xe18] sm:$0xff]
                %437 = vst [vmem:[%s205 + $0x398] sm:$0xff] %v436
                %v438 = vld [vmem:[%s204 + $0xe20] sm:$0xff]
                %439 = vst [vmem:[%s205 + $0x3a0] sm:$0xff] %v438
                %v440 = vld [vmem:[%s204 + $0xe28] sm:$0xff]
                %441 = vst [vmem:[%s205 + $0x3a8] sm:$0xff] %v440
                %v442 = vld [vmem:[%s204 + $0xe30] sm:$0xff]
                %443 = vst [vmem:[%s205 + $0x3b0] sm:$0xff] %v442
                %v444 = vld [vmem:[%s204 + $0xe38] sm:$0xff]
                %445 = vst [vmem:[%s205 + $0x3b8] sm:$0xff] %v444
                %v446 = vld [vmem:[%s204 + $0xe40] sm:$0xff]
                %447 = vst [vmem:[%s205 + $0x3c0] sm:$0xff] %v446
                %v448 = vld [vmem:[%s204 + $0xe48] sm:$0xff]
                %449 = vst [vmem:[%s205 + $0x3c8] sm:$0xff] %v448
                %v450 = vld [vmem:[%s204 + $0xe50] sm:$0xff]
                %451 = vst [vmem:[%s205 + $0x3d0] sm:$0xff] %v450
                %v452 = vld [vmem:[%s204 + $0xe58] sm:$0xff]
                %453 = vst [vmem:[%s205 + $0x3d8] sm:$0xff] %v452
                %v454 = vld [vmem:[%s204 + $0xe60] sm:$0xff]
                %455 = vst [vmem:[%s205 + $0x3e0] sm:$0xff] %v454
                %v456 = vld [vmem:[%s204 + $0xe68] sm:$0xff]
                %457 = vst [vmem:[%s205 + $0x3e8] sm:$0xff] %v456
                %v458 = vld [vmem:[%s204 + $0xe70] sm:$0xff]
                %459 = vst [vmem:[%s205 + $0x3f0] sm:$0xff] %v458
                %v460 = vld [vmem:[%s204 + $0xe78] sm:$0xff]
                %461 = vst [vmem:[%s205 + $0x3f8] sm:$0xff] %v460
                %v462 = vld [vmem:[%s204 + $0x1000] sm:$0xff]
                %463 = vst [vmem:[%s205 + $0x400] sm:$0xff] %v462
                %v464 = vld [vmem:[%s204 + $0x1008] sm:$0xff]
                %465 = vst [vmem:[%s205 + $0x408] sm:$0xff] %v464
                %v466 = vld [vmem:[%s204 + $0x1010] sm:$0xff]
                %467 = vst [vmem:[%s205 + $0x410] sm:$0xff] %v466
                %v468 = vld [vmem:[%s204 + $0x1018] sm:$0xff]
                %469 = vst [vmem:[%s205 + $0x418] sm:$0xff] %v468
                %v470 = vld [vmem:[%s204 + $0x1020] sm:$0xff]
                %471 = vst [vmem:[%s205 + $0x420] sm:$0xff] %v470
                %v472 = vld [vmem:[%s204 + $0x1028] sm:$0xff]
                %473 = vst [vmem:[%s205 + $0x428] sm:$0xff] %v472
                %v474 = vld [vmem:[%s204 + $0x1030] sm:$0xff]
                %475 = vst [vmem:[%s205 + $0x430] sm:$0xff] %v474
                %v476 = vld [vmem:[%s204 + $0x1038] sm:$0xff]
                %477 = vst [vmem:[%s205 + $0x438] sm:$0xff] %v476
                %v478 = vld [vmem:[%s204 + $0x1040] sm:$0xff]
                %479 = vst [vmem:[%s205 + $0x440] sm:$0xff] %v478
                %v480 = vld [vmem:[%s204 + $0x1048] sm:$0xff]
                %481 = vst [vmem:[%s205 + $0x448] sm:$0xff] %v480
                %v482 = vld [vmem:[%s204 + $0x1050] sm:$0xff]
                %483 = vst [vmem:[%s205 + $0x450] sm:$0xff] %v482
                %v484 = vld [vmem:[%s204 + $0x1058] sm:$0xff]
                %485 = vst [vmem:[%s205 + $0x458] sm:$0xff] %v484
                %v486 = vld [vmem:[%s204 + $0x1060] sm:$0xff]
                %487 = vst [vmem:[%s205 + $0x460] sm:$0xff] %v486
                %v488 = vld [vmem:[%s204 + $0x1068] sm:$0xff]
                %489 = vst [vmem:[%s205 + $0x468] sm:$0xff] %v488
                %v490 = vld [vmem:[%s204 + $0x1070] sm:$0xff]
                %491 = vst [vmem:[%s205 + $0x470] sm:$0xff] %v490
                %v492 = vld [vmem:[%s204 + $0x1078] sm:$0xff]
                %493 = vst [vmem:[%s205 + $0x478] sm:$0xff] %v492
                %v494 = vld [vmem:[%s204 + $0x1200] sm:$0xff]
                %495 = vst [vmem:[%s205 + $0x480] sm:$0xff] %v494
                %v496 = vld [vmem:[%s204 + $0x1208] sm:$0xff]
                %497 = vst [vmem:[%s205 + $0x488] sm:$0xff] %v496
                %v498 = vld [vmem:[%s204 + $0x1210] sm:$0xff]
                %499 = vst [vmem:[%s205 + $0x490] sm:$0xff] %v498
                %v500 = vld [vmem:[%s204 + $0x1218] sm:$0xff]
                %501 = vst [vmem:[%s205 + $0x498] sm:$0xff] %v500
                %v502 = vld [vmem:[%s204 + $0x1220] sm:$0xff]
                %503 = vst [vmem:[%s205 + $0x4a0] sm:$0xff] %v502
                %v504 = vld [vmem:[%s204 + $0x1228] sm:$0xff]
                %505 = vst [vmem:[%s205 + $0x4a8] sm:$0xff] %v504
                %v506 = vld [vmem:[%s204 + $0x1230] sm:$0xff]
                %507 = vst [vmem:[%s205 + $0x4b0] sm:$0xff] %v506
                %v508 = vld [vmem:[%s204 + $0x1238] sm:$0xff]
                %509 = vst [vmem:[%s205 + $0x4b8] sm:$0xff] %v508
                %v510 = vld [vmem:[%s204 + $0x1240] sm:$0xff]
                %511 = vst [vmem:[%s205 + $0x4c0] sm:$0xff] %v510
                %v512 = vld [vmem:[%s204 + $0x1248] sm:$0xff]
                %513 = vst [vmem:[%s205 + $0x4c8] sm:$0xff] %v512
                %v514 = vld [vmem:[%s204 + $0x1250] sm:$0xff]
                %515 = vst [vmem:[%s205 + $0x4d0] sm:$0xff] %v514
                %v516 = vld [vmem:[%s204 + $0x1258] sm:$0xff]
                %517 = vst [vmem:[%s205 + $0x4d8] sm:$0xff] %v516
                %v518 = vld [vmem:[%s204 + $0x1260] sm:$0xff]
                %519 = vst [vmem:[%s205 + $0x4e0] sm:$0xff] %v518
                %v520 = vld [vmem:[%s204 + $0x1268] sm:$0xff]
                %521 = vst [vmem:[%s205 + $0x4e8] sm:$0xff] %v520
                %v522 = vld [vmem:[%s204 + $0x1270] sm:$0xff]
                %523 = vst [vmem:[%s205 + $0x4f0] sm:$0xff] %v522
                %v524 = vld [vmem:[%s204 + $0x1278] sm:$0xff]
                %525 = vst [vmem:[%s205 + $0x4f8] sm:$0xff] %v524
                %v526 = vld [vmem:[%s204 + $0x1400] sm:$0xff]
                %527 = vst [vmem:[%s205 + $0x500] sm:$0xff] %v526
                %v528 = vld [vmem:[%s204 + $0x1408] sm:$0xff]
                %529 = vst [vmem:[%s205 + $0x508] sm:$0xff] %v528
                %v530 = vld [vmem:[%s204 + $0x1410] sm:$0xff]
                %531 = vst [vmem:[%s205 + $0x510] sm:$0xff] %v530
                %v532 = vld [vmem:[%s204 + $0x1418] sm:$0xff]
                %533 = vst [vmem:[%s205 + $0x518] sm:$0xff] %v532
                %v534 = vld [vmem:[%s204 + $0x1420] sm:$0xff]
                %535 = vst [vmem:[%s205 + $0x520] sm:$0xff] %v534
                %v536 = vld [vmem:[%s204 + $0x1428] sm:$0xff]
                %537 = vst [vmem:[%s205 + $0x528] sm:$0xff] %v536
                %v538 = vld [vmem:[%s204 + $0x1430] sm:$0xff]
                %539 = vst [vmem:[%s205 + $0x530] sm:$0xff] %v538
                %v540 = vld [vmem:[%s204 + $0x1438] sm:$0xff]
                %541 = vst [vmem:[%s205 + $0x538] sm:$0xff] %v540
                %v542 = vld [vmem:[%s204 + $0x1440] sm:$0xff]
                %543 = vst [vmem:[%s205 + $0x540] sm:$0xff] %v542
                %v544 = vld [vmem:[%s204 + $0x1448] sm:$0xff]
                %545 = vst [vmem:[%s205 + $0x548] sm:$0xff] %v544
                %v546 = vld [vmem:[%s204 + $0x1450] sm:$0xff]
                %547 = vst [vmem:[%s205 + $0x550] sm:$0xff] %v546
                %v548 = vld [vmem:[%s204 + $0x1458] sm:$0xff]
                %549 = vst [vmem:[%s205 + $0x558] sm:$0xff] %v548
                %v550 = vld [vmem:[%s204 + $0x1460] sm:$0xff]
                %551 = vst [vmem:[%s205 + $0x560] sm:$0xff] %v550
                %v552 = vld [vmem:[%s204 + $0x1468] sm:$0xff]
                %553 = vst [vmem:[%s205 + $0x568] sm:$0xff] %v552
                %v554 = vld [vmem:[%s204 + $0x1470] sm:$0xff]
                %555 = vst [vmem:[%s205 + $0x570] sm:$0xff] %v554
                %v556 = vld [vmem:[%s204 + $0x1478] sm:$0xff]
                %557 = vst [vmem:[%s205 + $0x578] sm:$0xff] %v556
                %v558 = vld [vmem:[%s204 + $0x1600] sm:$0xff]
                %559 = vst [vmem:[%s205 + $0x580] sm:$0xff] %v558
                %v560 = vld [vmem:[%s204 + $0x1608] sm:$0xff]
                %561 = vst [vmem:[%s205 + $0x588] sm:$0xff] %v560
                %v562 = vld [vmem:[%s204 + $0x1610] sm:$0xff]
                %563 = vst [vmem:[%s205 + $0x590] sm:$0xff] %v562
                %v564 = vld [vmem:[%s204 + $0x1618] sm:$0xff]
                %565 = vst [vmem:[%s205 + $0x598] sm:$0xff] %v564
                %v566 = vld [vmem:[%s204 + $0x1620] sm:$0xff]
                %567 = vst [vmem:[%s205 + $0x5a0] sm:$0xff] %v566
                %v568 = vld [vmem:[%s204 + $0x1628] sm:$0xff]
                %569 = vst [vmem:[%s205 + $0x5a8] sm:$0xff] %v568
                %v570 = vld [vmem:[%s204 + $0x1630] sm:$0xff]
                %571 = vst [vmem:[%s205 + $0x5b0] sm:$0xff] %v570
                %v572 = vld [vmem:[%s204 + $0x1638] sm:$0xff]
                %573 = vst [vmem:[%s205 + $0x5b8] sm:$0xff] %v572
                %v574 = vld [vmem:[%s204 + $0x1640] sm:$0xff]
                %575 = vst [vmem:[%s205 + $0x5c0] sm:$0xff] %v574
                %v576 = vld [vmem:[%s204 + $0x1648] sm:$0xff]
                %577 = vst [vmem:[%s205 + $0x5c8] sm:$0xff] %v576
                %v578 = vld [vmem:[%s204 + $0x1650] sm:$0xff]
                %579 = vst [vmem:[%s205 + $0x5d0] sm:$0xff] %v578
                %v580 = vld [vmem:[%s204 + $0x1658] sm:$0xff]
                %581 = vst [vmem:[%s205 + $0x5d8] sm:$0xff] %v580
                %v582 = vld [vmem:[%s204 + $0x1660] sm:$0xff]
                %583 = vst [vmem:[%s205 + $0x5e0] sm:$0xff] %v582
                %v584 = vld [vmem:[%s204 + $0x1668] sm:$0xff]
                %585 = vst [vmem:[%s205 + $0x5e8] sm:$0xff] %v584
                %v586 = vld [vmem:[%s204 + $0x1670] sm:$0xff]
                %587 = vst [vmem:[%s205 + $0x5f0] sm:$0xff] %v586
                %v588 = vld [vmem:[%s204 + $0x1678] sm:$0xff]
                %589 = vst [vmem:[%s205 + $0x5f8] sm:$0xff] %v588
                %v590 = vld [vmem:[%s204 + $0x1800] sm:$0xff]
                %591 = vst [vmem:[%s205 + $0x600] sm:$0xff] %v590
                %v592 = vld [vmem:[%s204 + $0x1808] sm:$0xff]
                %593 = vst [vmem:[%s205 + $0x608] sm:$0xff] %v592
                %v594 = vld [vmem:[%s204 + $0x1810] sm:$0xff]
                %595 = vst [vmem:[%s205 + $0x610] sm:$0xff] %v594
                %v596 = vld [vmem:[%s204 + $0x1818] sm:$0xff]
                %597 = vst [vmem:[%s205 + $0x618] sm:$0xff] %v596
                %v598 = vld [vmem:[%s204 + $0x1820] sm:$0xff]
                %599 = vst [vmem:[%s205 + $0x620] sm:$0xff] %v598
                %v600 = vld [vmem:[%s204 + $0x1828] sm:$0xff]
                %601 = vst [vmem:[%s205 + $0x628] sm:$0xff] %v600
                %v602 = vld [vmem:[%s204 + $0x1830] sm:$0xff]
                %603 = vst [vmem:[%s205 + $0x630] sm:$0xff] %v602
                %v604 = vld [vmem:[%s204 + $0x1838] sm:$0xff]
                %605 = vst [vmem:[%s205 + $0x638] sm:$0xff] %v604
                %v606 = vld [vmem:[%s204 + $0x1840] sm:$0xff]
                %607 = vst [vmem:[%s205 + $0x640] sm:$0xff] %v606
                %v608 = vld [vmem:[%s204 + $0x1848] sm:$0xff]
                %609 = vst [vmem:[%s205 + $0x648] sm:$0xff] %v608
                %v610 = vld [vmem:[%s204 + $0x1850] sm:$0xff]
                %611 = vst [vmem:[%s205 + $0x650] sm:$0xff] %v610
                %v612 = vld [vmem:[%s204 + $0x1858] sm:$0xff]
                %613 = vst [vmem:[%s205 + $0x658] sm:$0xff] %v612
                %v614 = vld [vmem:[%s204 + $0x1860] sm:$0xff]
                %615 = vst [vmem:[%s205 + $0x660] sm:$0xff] %v614
                %v616 = vld [vmem:[%s204 + $0x1868] sm:$0xff]
                %617 = vst [vmem:[%s205 + $0x668] sm:$0xff] %v616
                %v618 = vld [vmem:[%s204 + $0x1870] sm:$0xff]
                %619 = vst [vmem:[%s205 + $0x670] sm:$0xff] %v618
                %v620 = vld [vmem:[%s204 + $0x1878] sm:$0xff]
                %621 = vst [vmem:[%s205 + $0x678] sm:$0xff] %v620
                %v622 = vld [vmem:[%s204 + $0x1a00] sm:$0xff]
                %623 = vst [vmem:[%s205 + $0x680] sm:$0xff] %v622
                %v624 = vld [vmem:[%s204 + $0x1a08] sm:$0xff]
                %625 = vst [vmem:[%s205 + $0x688] sm:$0xff] %v624
                %v626 = vld [vmem:[%s204 + $0x1a10] sm:$0xff]
                %627 = vst [vmem:[%s205 + $0x690] sm:$0xff] %v626
                %v628 = vld [vmem:[%s204 + $0x1a18] sm:$0xff]
                %629 = vst [vmem:[%s205 + $0x698] sm:$0xff] %v628
                %v630 = vld [vmem:[%s204 + $0x1a20] sm:$0xff]
                %631 = vst [vmem:[%s205 + $0x6a0] sm:$0xff] %v630
                %v632 = vld [vmem:[%s204 + $0x1a28] sm:$0xff]
                %633 = vst [vmem:[%s205 + $0x6a8] sm:$0xff] %v632
                %v634 = vld [vmem:[%s204 + $0x1a30] sm:$0xff]
                %635 = vst [vmem:[%s205 + $0x6b0] sm:$0xff] %v634
                %v636 = vld [vmem:[%s204 + $0x1a38] sm:$0xff]
                %637 = vst [vmem:[%s205 + $0x6b8] sm:$0xff] %v636
                %v638 = vld [vmem:[%s204 + $0x1a40] sm:$0xff]
                %639 = vst [vmem:[%s205 + $0x6c0] sm:$0xff] %v638
                %v640 = vld [vmem:[%s204 + $0x1a48] sm:$0xff]
                %641 = vst [vmem:[%s205 + $0x6c8] sm:$0xff] %v640
                %v642 = vld [vmem:[%s204 + $0x1a50] sm:$0xff]
                %643 = vst [vmem:[%s205 + $0x6d0] sm:$0xff] %v642
                %v644 = vld [vmem:[%s204 + $0x1a58] sm:$0xff]
                %645 = vst [vmem:[%s205 + $0x6d8] sm:$0xff] %v644
                %v646 = vld [vmem:[%s204 + $0x1a60] sm:$0xff]
                %647 = vst [vmem:[%s205 + $0x6e0] sm:$0xff] %v646
                %v648 = vld [vmem:[%s204 + $0x1a68] sm:$0xff]
                %649 = vst [vmem:[%s205 + $0x6e8] sm:$0xff] %v648
                %v650 = vld [vmem:[%s204 + $0x1a70] sm:$0xff]
                %651 = vst [vmem:[%s205 + $0x6f0] sm:$0xff] %v650
                %v652 = vld [vmem:[%s204 + $0x1a78] sm:$0xff]
                %653 = vst [vmem:[%s205 + $0x6f8] sm:$0xff] %v652
                %v654 = vld [vmem:[%s204 + $0x1c00] sm:$0xff]
                %655 = vst [vmem:[%s205 + $0x700] sm:$0xff] %v654
                %v656 = vld [vmem:[%s204 + $0x1c08] sm:$0xff]
                %657 = vst [vmem:[%s205 + $0x708] sm:$0xff] %v656
                %v658 = vld [vmem:[%s204 + $0x1c10] sm:$0xff]
                %659 = vst [vmem:[%s205 + $0x710] sm:$0xff] %v658
                %v660 = vld [vmem:[%s204 + $0x1c18] sm:$0xff]
                %661 = vst [vmem:[%s205 + $0x718] sm:$0xff] %v660
                %v662 = vld [vmem:[%s204 + $0x1c20] sm:$0xff]
                %663 = vst [vmem:[%s205 + $0x720] sm:$0xff] %v662
                %v664 = vld [vmem:[%s204 + $0x1c28] sm:$0xff]
                %665 = vst [vmem:[%s205 + $0x728] sm:$0xff] %v664
                %v666 = vld [vmem:[%s204 + $0x1c30] sm:$0xff]
                %667 = vst [vmem:[%s205 + $0x730] sm:$0xff] %v666
                %v668 = vld [vmem:[%s204 + $0x1c38] sm:$0xff]
                %669 = vst [vmem:[%s205 + $0x738] sm:$0xff] %v668
                %v670 = vld [vmem:[%s204 + $0x1c40] sm:$0xff]
                %671 = vst [vmem:[%s205 + $0x740] sm:$0xff] %v670
                %v672 = vld [vmem:[%s204 + $0x1c48] sm:$0xff]
                %673 = vst [vmem:[%s205 + $0x748] sm:$0xff] %v672
                %v674 = vld [vmem:[%s204 + $0x1c50] sm:$0xff]
                %675 = vst [vmem:[%s205 + $0x750] sm:$0xff] %v674
                %v676 = vld [vmem:[%s204 + $0x1c58] sm:$0xff]
                %677 = vst [vmem:[%s205 + $0x758] sm:$0xff] %v676
                %v678 = vld [vmem:[%s204 + $0x1c60] sm:$0xff]
                %679 = vst [vmem:[%s205 + $0x760] sm:$0xff] %v678
                %v680 = vld [vmem:[%s204 + $0x1c68] sm:$0xff]
                %681 = vst [vmem:[%s205 + $0x768] sm:$0xff] %v680
                %v682 = vld [vmem:[%s204 + $0x1c70] sm:$0xff]
                %683 = vst [vmem:[%s205 + $0x770] sm:$0xff] %v682
                %v684 = vld [vmem:[%s204 + $0x1c78] sm:$0xff]
                %685 = vst [vmem:[%s205 + $0x778] sm:$0xff] %v684
                %v686 = vld [vmem:[%s204 + $0x1e00] sm:$0xff]
                %687 = vst [vmem:[%s205 + $0x780] sm:$0xff] %v686
                %v688 = vld [vmem:[%s204 + $0x1e08] sm:$0xff]
                %689 = vst [vmem:[%s205 + $0x788] sm:$0xff] %v688
                %v690 = vld [vmem:[%s204 + $0x1e10] sm:$0xff]
                %691 = vst [vmem:[%s205 + $0x790] sm:$0xff] %v690
                %v692 = vld [vmem:[%s204 + $0x1e18] sm:$0xff]
                %693 = vst [vmem:[%s205 + $0x798] sm:$0xff] %v692
                %v694 = vld [vmem:[%s204 + $0x1e20] sm:$0xff]
                %695 = vst [vmem:[%s205 + $0x7a0] sm:$0xff] %v694
                %v696 = vld [vmem:[%s204 + $0x1e28] sm:$0xff]
                %697 = vst [vmem:[%s205 + $0x7a8] sm:$0xff] %v696
                %v698 = vld [vmem:[%s204 + $0x1e30] sm:$0xff]
                %699 = vst [vmem:[%s205 + $0x7b0] sm:$0xff] %v698
                %v700 = vld [vmem:[%s204 + $0x1e38] sm:$0xff]
                %701 = vst [vmem:[%s205 + $0x7b8] sm:$0xff] %v700
                %v702 = vld [vmem:[%s204 + $0x1e40] sm:$0xff]
                %703 = vst [vmem:[%s205 + $0x7c0] sm:$0xff] %v702
                %v704 = vld [vmem:[%s204 + $0x1e48] sm:$0xff]
                %705 = vst [vmem:[%s205 + $0x7c8] sm:$0xff] %v704
                %v706 = vld [vmem:[%s204 + $0x1e50] sm:$0xff]
                %707 = vst [vmem:[%s205 + $0x7d0] sm:$0xff] %v706
                %v708 = vld [vmem:[%s204 + $0x1e58] sm:$0xff]
                %709 = vst [vmem:[%s205 + $0x7d8] sm:$0xff] %v708
                %v710 = vld [vmem:[%s204 + $0x1e60] sm:$0xff]
                %711 = vst [vmem:[%s205 + $0x7e0] sm:$0xff] %v710
                %v712 = vld [vmem:[%s204 + $0x1e68] sm:$0xff]
                %713 = vst [vmem:[%s205 + $0x7e8] sm:$0xff] %v712
                %v714 = vld [vmem:[%s204 + $0x1e70] sm:$0xff]
                %715 = vst [vmem:[%s205 + $0x7f0] sm:$0xff] %v714
                %v716 = vld [vmem:[%s204 + $0x1e78] sm:$0xff]
                %717 = vst [vmem:[%s205 + $0x7f8] sm:$0xff] %v716
              $region49: #{otucker_forward.6} parent=43 // loop_footer
                %s203 = sadd.s32 1, %s199
              $region50: #{otucker_forward.6} parent=43 // loop_footer_branch
                %198 = sbr.rel target = $region46
              $region51: #{otucker_forward.6} parent=43 // loop_exit
                _
            $region44: #{otucker_forward.6} parent=39 // pred_fallthru
              _
            // Predicated region
            $region52: #{otucker_forward.6} parent=39 // pred_check
              _
            $region53: #{otucker_forward.6} parent=39 // pred_check_branch
              %719 = sbr.rel target = $region55
            $region54: #{otucker_forward.6} parent=39 // pred_region
              _
            $region55: #{otucker_forward.6} parent=39 // pred_fallthru
              _
          $region40: #{otucker_forward.6} parent=35 // pred_fallthru
            _
          %720 = vnop
        $region36: #{otucker_forward.6} parent=27 // pred_fallthru
          _
      $region28: #{otucker_forward.6} parent=5 // pred_fallthru
        _
      %p721 = scmp.le.s32.totalorder 1, %s11
      %p722 = scmp.lt.s32.totalorder %s11, 5
      %p723 = pnand %p721, %p722
      %p724 = pneg %p723
      // Predicated region
      $region56: #{otucker_forward.6} parent=5 // pred_check
        _
      $region57: #{otucker_forward.6} parent=5 // pred_check_branch
        %726 = sbr.rel (%p723) target = $region59
      $region58: #{otucker_forward.6} parent=5 // pred_region
        %s727 = ssub.s32 %s11, 1
        %s728 = sand.u32 %s71, 1
        %s729 = sand.u32 %s71, 1
        %s730 = smul.addr %s729, 2048
        %s731 = scalar_lea.vmem [#allocation3], %s730
        // Predicated region
        $region60: #{otucker_forward.6} parent=58 // pred_check
          %p732 = pneg %p84
        $region61: #{otucker_forward.6} parent=58 // pred_check_branch
          %734 = sbr.rel (%p732) target = $region63
        $region62: #{otucker_forward.6} parent=58 // pred_region
          _
        $region63: #{otucker_forward.6} parent=58 // pred_fallthru
          _
        %s735 = smul.u32 4, %s16
        %p736 = scmp.lt.s32.totalorder %s735, 15
        %s737 = scalar_select %p736, %s735, 15
        %s738 = smul.addr %s737, 4
        %s739 = scalar_lea.vmem %s0, %s738
        %p740 = pneg %p37
        %p741 = pneg %p34
        %p742 = pneg %p58
        %p743 = pneg %p55
        %s744 = sand.u32 %s71, 1
        %s745 = sand.u32 %s71, 1
        %s746 = smul.addr %s745, 2048
        %s747 = scalar_lea.vmem [#allocation3], %s746
        %p748 = pneg %p84
        %p749 = pneg %p81
        %p750 = pneg %p105
        %p751 = pneg %p102
        %p752 = pneg %p126
        %p753 = pneg %p123
        %p754 = pneg %p147
        %p755 = pneg %p144
        %s756 = smul.u32 4, %s16
        %p757 = scmp.lt.s32.totalorder %s756, 15
        %s758 = scalar_select %p757, %s756, 15
        %s759 = smul.addr %s758, 4
        %s760 = scalar_lea.vmem %s0, %s759
        %s761 = smul.u32 4, %s16
        %s762 = smul.u32 32, %s16
        %p764 = scmp.eq.s32.totalorder %s16, 0
        // Predicated region
        $region64: #{otucker_forward.6} parent=58 // pred_check
          %p765 = pneg %p764
        $region65: #{otucker_forward.6} parent=58 // pred_check_branch
          %767 = sbr.rel (%p765) target = $region67
        $region66: #{otucker_forward.6} parent=58 // pred_region
          %vm768 = vcmask 64512
          %769 = vst.msk [vmem:[#allocation2] sm:$0xff] %vm768, 0.0
          %770 = vst.msk [vmem:[#allocation2 + $0x8] sm:$0xff] %vm768, 0.0
          %771 = vst.msk [vmem:[#allocation2 + $0x10] sm:$0xff] %vm768, 0.0
          %772 = vst.msk [vmem:[#allocation2 + $0x18] sm:$0xff] %vm768, 0.0
          %773 = vst.msk [vmem:[#allocation2 + $0x20] sm:$0xff] %vm768, 0.0
          %774 = vst.msk [vmem:[#allocation2 + $0x28] sm:$0xff] %vm768, 0.0
          %775 = vst.msk [vmem:[#allocation2 + $0x30] sm:$0xff] %vm768, 0.0
          %776 = vst.msk [vmem:[#allocation2 + $0x38] sm:$0xff] %vm768, 0.0
          %777 = vst.msk [vmem:[#allocation2 + $0x40] sm:$0xff] %vm768, 0.0
          %778 = vst.msk [vmem:[#allocation2 + $0x48] sm:$0xff] %vm768, 0.0
          %779 = vst.msk [vmem:[#allocation2 + $0x50] sm:$0xff] %vm768, 0.0
          %780 = vst.msk [vmem:[#allocation2 + $0x58] sm:$0xff] %vm768, 0.0
          %781 = vst.msk [vmem:[#allocation2 + $0x60] sm:$0xff] %vm768, 0.0
          %782 = vst.msk [vmem:[#allocation2 + $0x68] sm:$0xff] %vm768, 0.0
          %783 = vst.msk [vmem:[#allocation2 + $0x70] sm:$0xff] %vm768, 0.0
          %784 = vst.msk [vmem:[#allocation2 + $0x78] sm:$0xff] %vm768, 0.0
        $region67: #{otucker_forward.6} parent=58 // pred_fallthru
          _
        %v785 = vld [vmem:[%s1] sm:$0xf]
        %v786 = vld [vmem:[%s1 + $0x4] sm:$0xf]
        %v787 = vld [vmem:[%s1 + $0x8] sm:$0xf]
        %v788 = vld [vmem:[%s1 + $0xc] sm:$0xf]
        %v789 = vld [vmem:[%s1 + $0x10] sm:$0xf]
        %v790 = vld [vmem:[%s1 + $0x14] sm:$0xf]
        %v791 = vld [vmem:[%s1 + $0x18] sm:$0xf]
        %v792 = vld [vmem:[%s1 + $0x1c] sm:$0xf]
        %v793 = vld [vmem:[%s1 + $0x20] sm:$0xf]
        %v794 = vld [vmem:[%s1 + $0x24] sm:$0xf]
        %v795 = vld [vmem:[%s1 + $0x28] sm:$0xf]
        %v796 = vld [vmem:[%s1 + $0x2c] sm:$0xf]
        %v797 = vld [vmem:[%s1 + $0x30] sm:$0xf]
        %v798 = vld [vmem:[%s1 + $0x34] sm:$0xf]
        %v799 = vld [vmem:[%s1 + $0x38] sm:$0xf]
        %v800 = vld [vmem:[%s1 + $0x3c] sm:$0xf]
        %v801 = vunpack.c.l.bf16 %v785
        %v802 = vunpack.c.l.bf16 %v786
        %v803 = vunpack.c.l.bf16 %v787
        %v804 = vunpack.c.l.bf16 %v788
        %v805 = vunpack.c.l.bf16 %v789
        %v806 = vunpack.c.l.bf16 %v790
        %v807 = vunpack.c.l.bf16 %v791
        %v808 = vunpack.c.l.bf16 %v792
        %v809 = vunpack.c.l.bf16 %v793
        %v810 = vunpack.c.l.bf16 %v794
        %v811 = vunpack.c.l.bf16 %v795
        %v812 = vunpack.c.l.bf16 %v796
        %v813 = vunpack.c.l.bf16 %v797
        %v814 = vunpack.c.l.bf16 %v798
        %v815 = vunpack.c.l.bf16 %v799
        %v816 = vunpack.c.l.bf16 %v800
        %v817 = vld [vmem:[%s3] sm:$0xff]
        %v818 = vld [vmem:[%s3 + $0x8] sm:$0xff]
        %v819 = vld [vmem:[%s3 + $0x10] sm:$0xff]
        %v820 = vld [vmem:[%s3 + $0x18] sm:$0xff]
        %v821 = vld [vmem:[%s3 + $0x20] sm:$0xff]
        %v822 = vld [vmem:[%s3 + $0x28] sm:$0xff]
        %v823 = vld [vmem:[%s3 + $0x30] sm:$0xff]
        %v824 = vld [vmem:[%s3 + $0x38] sm:$0xff]
        %v825 = vld [vmem:[%s3 + $0x40] sm:$0xff]
        %v826 = vld [vmem:[%s3 + $0x48] sm:$0xff]
        %v827 = vld [vmem:[%s3 + $0x50] sm:$0xff]
        %v828 = vld [vmem:[%s3 + $0x58] sm:$0xff]
        %v829 = vld [vmem:[%s3 + $0x60] sm:$0xff]
        %v830 = vld [vmem:[%s3 + $0x68] sm:$0xff]
        %v831 = vld [vmem:[%s3 + $0x70] sm:$0xff]
        %v832 = vld [vmem:[%s3 + $0x78] sm:$0xff]
        %834 = vset.pattern.permute.xlu0 0
        %835 = vperm.xlu0 %834, %v817
        %v836 = vpop.permute.xlu0 %835
        %839 = vset.pattern.permute.xlu0 0
        %840 = vperm.xlu0 %839, %v818
        %v841 = vpop.permute.xlu0 %840
        %844 = vset.pattern.permute.xlu0 0
        %845 = vperm.xlu0 %844, %v819
        %v846 = vpop.permute.xlu0 %845
        %849 = vset.pattern.permute.xlu0 0
        %850 = vperm.xlu0 %849, %v820
        %v851 = vpop.permute.xlu0 %850
        %854 = vset.pattern.permute.xlu0 0
        %855 = vperm.xlu0 %854, %v821
        %v856 = vpop.permute.xlu0 %855
        %859 = vset.pattern.permute.xlu0 0
        %860 = vperm.xlu0 %859, %v822
        %v861 = vpop.permute.xlu0 %860
        %864 = vset.pattern.permute.xlu0 0
        %865 = vperm.xlu0 %864, %v823
        %v866 = vpop.permute.xlu0 %865
        %869 = vset.pattern.permute.xlu0 0
        %870 = vperm.xlu0 %869, %v824
        %v871 = vpop.permute.xlu0 %870
        %874 = vset.pattern.permute.xlu0 0
        %875 = vperm.xlu0 %874, %v825
        %v876 = vpop.permute.xlu0 %875
        %879 = vset.pattern.permute.xlu0 0
        %880 = vperm.xlu0 %879, %v826
        %v881 = vpop.permute.xlu0 %880
        %884 = vset.pattern.permute.xlu0 0
        %885 = vperm.xlu0 %884, %v827
        %v886 = vpop.permute.xlu0 %885
        %889 = vset.pattern.permute.xlu0 0
        %890 = vperm.xlu0 %889, %v828
        %v891 = vpop.permute.xlu0 %890
        %894 = vset.pattern.permute.xlu0 0
        %895 = vperm.xlu0 %894, %v829
        %v896 = vpop.permute.xlu0 %895
        %899 = vset.pattern.permute.xlu0 0
        %900 = vperm.xlu0 %899, %v830
        %v901 = vpop.permute.xlu0 %900
        %904 = vset.pattern.permute.xlu0 0
        %905 = vperm.xlu0 %904, %v831
        %v906 = vpop.permute.xlu0 %905
        %909 = vset.pattern.permute.xlu0 0
        %910 = vperm.xlu0 %909, %v832
        %v911 = vpop.permute.xlu0 %910
        %v913 = vmul.f32 %v801, %v836
        %v914 = vmul.f32 %v802, %v841
        %v915 = vmul.f32 %v803, %v846
        %v916 = vmul.f32 %v804, %v851
        %v917 = vmul.f32 %v805, %v856
        %v918 = vmul.f32 %v806, %v861
        %v919 = vmul.f32 %v807, %v866
        %v920 = vmul.f32 %v808, %v871
        %v921 = vmul.f32 %v809, %v876
        %v922 = vmul.f32 %v810, %v881
        %v923 = vmul.f32 %v811, %v886
        %v924 = vmul.f32 %v812, %v891
        %v925 = vmul.f32 %v813, %v896
        %v926 = vmul.f32 %v814, %v901
        %v927 = vmul.f32 %v815, %v906
        %v928 = vmul.f32 %v816, %v911
        %929 = vset.pattern.permute.xlu0 1
        %930 = vperm.xlu0 %929, %v817
        %v931 = vpop.permute.xlu0 %930
        %933 = vset.pattern.permute.xlu0 1
        %934 = vperm.xlu0 %933, %v818
        %v935 = vpop.permute.xlu0 %934
        %937 = vset.pattern.permute.xlu0 1
        %938 = vperm.xlu0 %937, %v819
        %v939 = vpop.permute.xlu0 %938
        %941 = vset.pattern.permute.xlu0 1
        %942 = vperm.xlu0 %941, %v820
        %v943 = vpop.permute.xlu0 %942
        %945 = vset.pattern.permute.xlu0 1
        %946 = vperm.xlu0 %945, %v821
        %v947 = vpop.permute.xlu0 %946
        %949 = vset.pattern.permute.xlu0 1
        %950 = vperm.xlu0 %949, %v822
        %v951 = vpop.permute.xlu0 %950
        %953 = vset.pattern.permute.xlu0 1
        %954 = vperm.xlu0 %953, %v823
        %v955 = vpop.permute.xlu0 %954
        %957 = vset.pattern.permute.xlu0 1
        %958 = vperm.xlu0 %957, %v824
        %v959 = vpop.permute.xlu0 %958
        %961 = vset.pattern.permute.xlu0 1
        %962 = vperm.xlu0 %961, %v825
        %v963 = vpop.permute.xlu0 %962
        %965 = vset.pattern.permute.xlu0 1
        %966 = vperm.xlu0 %965, %v826
        %v967 = vpop.permute.xlu0 %966
        %969 = vset.pattern.permute.xlu0 1
        %970 = vperm.xlu0 %969, %v827
        %v971 = vpop.permute.xlu0 %970
        %973 = vset.pattern.permute.xlu0 1
        %974 = vperm.xlu0 %973, %v828
        %v975 = vpop.permute.xlu0 %974
        %977 = vset.pattern.permute.xlu0 1
        %978 = vperm.xlu0 %977, %v829
        %v979 = vpop.permute.xlu0 %978
        %981 = vset.pattern.permute.xlu0 1
        %982 = vperm.xlu0 %981, %v830
        %v983 = vpop.permute.xlu0 %982
        %985 = vset.pattern.permute.xlu0 1
        %986 = vperm.xlu0 %985, %v831
        %v987 = vpop.permute.xlu0 %986
        %989 = vset.pattern.permute.xlu0 1
        %990 = vperm.xlu0 %989, %v832
        %v991 = vpop.permute.xlu0 %990
        %v993 = vadd.f32 %v913, %v931
        %v994 = vadd.f32 %v914, %v935
        %v995 = vadd.f32 %v915, %v939
        %v996 = vadd.f32 %v916, %v943
        %v997 = vadd.f32 %v917, %v947
        %v998 = vadd.f32 %v918, %v951
        %v999 = vadd.f32 %v919, %v955
        %v1000 = vadd.f32 %v920, %v959
        %v1001 = vadd.f32 %v921, %v963
        %v1002 = vadd.f32 %v922, %v967
        %v1003 = vadd.f32 %v923, %v971
        %v1004 = vadd.f32 %v924, %v975
        %v1005 = vadd.f32 %v925, %v979
        %v1006 = vadd.f32 %v926, %v983
        %v1007 = vadd.f32 %v927, %v987
        %v1008 = vadd.f32 %v928, %v991
        %v1009 = vld [vmem:[%s760] sm:$0xf]
        %v1010 = vld [vmem:[%s760 + $0x4] sm:$0xf]
        %v1011 = vld [vmem:[%s760 + $0x8] sm:$0xf]
        %v1012 = vld [vmem:[%s760 + $0xc] sm:$0xf]
        %v1013 = vunpack.c.l.bf16 %v1009
        %v1014 = vunpack.c.l.bf16 %v1010
        %v1015 = vunpack.c.l.bf16 %v1011
        %v1016 = vunpack.c.l.bf16 %v1012
        %v1021 = vcombine.high %v1013, %v1013
        %v1023 = vunpack.c.l.s4 1966171168
        %v1024 = vunpack.c.0.s8 %v1023
        %v1025 = vlaneseq
        %v1026 = vshrl.u32 %v1025, 7
        %v1027 = vsub.s32 %v1024, %v1026
        %v1028 = vrot.slane %v1013, %v1027
        %v1030 = vunpack.c.l.s4 1966171168
        %v1031 = vunpack.c.0.s8 %v1030
        %v1032 = vlaneseq
        %v1033 = vshrl.u32 %v1032, 7
        %v1034 = vsub.s32 %v1031, %v1033
        %v1035 = vrot.slane %v1021, %v1034
        %v1036 = vcombine.high %v1028, %v1028
        %v1037 = vcombine.high %v1035, %v1035
        %v1039 = vunpack.c.l.s4 1966171168
        %v1040 = vunpack.c.0.s8 %v1039
        %v1041 = vlaneseq
        %v1042 = vshrl.u32 %v1041, 7
        %v1043 = vsub.s32 %v1040, %v1042
        %v1044 = vrot.slane %v1028, %v1043
        %v1046 = vunpack.c.l.s4 1966171168
        %v1047 = vunpack.c.0.s8 %v1046
        %v1048 = vlaneseq
        %v1049 = vshrl.u32 %v1048, 7
        %v1050 = vsub.s32 %v1047, %v1049
        %v1051 = vrot.slane %v1035, %v1050
        %v1053 = vunpack.c.l.s4 1966171168
        %v1054 = vunpack.c.0.s8 %v1053
        %v1055 = vlaneseq
        %v1056 = vshrl.u32 %v1055, 7
        %v1057 = vsub.s32 %v1054, %v1056
        %v1058 = vrot.slane %v1036, %v1057
        %v1060 = vunpack.c.l.s4 1966171168
        %v1061 = vunpack.c.0.s8 %v1060
        %v1062 = vlaneseq
        %v1063 = vshrl.u32 %v1062, 7
        %v1064 = vsub.s32 %v1061, %v1063
        %v1065 = vrot.slane %v1037, %v1064
        %v1066 = vcombine.high %v1044, %v1044
        %v1067 = vcombine.high %v1051, %v1051
        %v1068 = vcombine.high %v1058, %v1058
        %v1069 = vcombine.high %v1065, %v1065
        %v1070 = vcombine.high %v1014, %v1014
        %v1072 = vunpack.c.l.s4 1966171168
        %v1073 = vunpack.c.0.s8 %v1072
        %v1074 = vlaneseq
        %v1075 = vshrl.u32 %v1074, 7
        %v1076 = vsub.s32 %v1073, %v1075
        %v1077 = vrot.slane %v1014, %v1076
        %v1079 = vunpack.c.l.s4 1966171168
        %v1080 = vunpack.c.0.s8 %v1079
        %v1081 = vlaneseq
        %v1082 = vshrl.u32 %v1081, 7
        %v1083 = vsub.s32 %v1080, %v1082
        %v1084 = vrot.slane %v1070, %v1083
        %v1085 = vcombine.high %v1077, %v1077
        %v1086 = vcombine.high %v1084, %v1084
        %v1088 = vunpack.c.l.s4 1966171168
        %v1089 = vunpack.c.0.s8 %v1088
        %v1090 = vlaneseq
        %v1091 = vshrl.u32 %v1090, 7
        %v1092 = vsub.s32 %v1089, %v1091
        %v1093 = vrot.slane %v1077, %v1092
        %v1095 = vunpack.c.l.s4 1966171168
        %v1096 = vunpack.c.0.s8 %v1095
        %v1097 = vlaneseq
        %v1098 = vshrl.u32 %v1097, 7
        %v1099 = vsub.s32 %v1096, %v1098
        %v1100 = vrot.slane %v1084, %v1099
        %v1102 = vunpack.c.l.s4 1966171168
        %v1103 = vunpack.c.0.s8 %v1102
        %v1104 = vlaneseq
        %v1105 = vshrl.u32 %v1104, 7
        %v1106 = vsub.s32 %v1103, %v1105
        %v1107 = vrot.slane %v1085, %v1106
        %v1109 = vunpack.c.l.s4 1966171168
        %v1110 = vunpack.c.0.s8 %v1109
        %v1111 = vlaneseq
        %v1112 = vshrl.u32 %v1111, 7
        %v1113 = vsub.s32 %v1110, %v1112
        %v1114 = vrot.slane %v1086, %v1113
        %v1115 = vcombine.high %v1093, %v1093
        %v1116 = vcombine.high %v1100, %v1100
        %v1117 = vcombine.high %v1107, %v1107
        %v1118 = vcombine.high %v1114, %v1114
        %v1119 = vcombine.high %v1015, %v1015
        %v1121 = vunpack.c.l.s4 1966171168
        %v1122 = vunpack.c.0.s8 %v1121
        %v1123 = vlaneseq
        %v1124 = vshrl.u32 %v1123, 7
        %v1125 = vsub.s32 %v1122, %v1124
        %v1126 = vrot.slane %v1015, %v1125
        %v1128 = vunpack.c.l.s4 1966171168
        %v1129 = vunpack.c.0.s8 %v1128
        %v1130 = vlaneseq
        %v1131 = vshrl.u32 %v1130, 7
        %v1132 = vsub.s32 %v1129, %v1131
        %v1133 = vrot.slane %v1119, %v1132
        %v1134 = vcombine.high %v1126, %v1126
        %v1135 = vcombine.high %v1133, %v1133
        %v1137 = vunpack.c.l.s4 1966171168
        %v1138 = vunpack.c.0.s8 %v1137
        %v1139 = vlaneseq
        %v1140 = vshrl.u32 %v1139, 7
        %v1141 = vsub.s32 %v1138, %v1140
        %v1142 = vrot.slane %v1126, %v1141
        %v1144 = vunpack.c.l.s4 1966171168
        %v1145 = vunpack.c.0.s8 %v1144
        %v1146 = vlaneseq
        %v1147 = vshrl.u32 %v1146, 7
        %v1148 = vsub.s32 %v1145, %v1147
        %v1149 = vrot.slane %v1133, %v1148
        %v1151 = vunpack.c.l.s4 1966171168
        %v1152 = vunpack.c.0.s8 %v1151
        %v1153 = vlaneseq
        %v1154 = vshrl.u32 %v1153, 7
        %v1155 = vsub.s32 %v1152, %v1154
        %v1156 = vrot.slane %v1134, %v1155
        %v1158 = vunpack.c.l.s4 1966171168
        %v1159 = vunpack.c.0.s8 %v1158
        %v1160 = vlaneseq
        %v1161 = vshrl.u32 %v1160, 7
        %v1162 = vsub.s32 %v1159, %v1161
        %v1163 = vrot.slane %v1135, %v1162
        %v1164 = vcombine.high %v1142, %v1142
        %v1165 = vcombine.high %v1149, %v1149
        %v1166 = vcombine.high %v1156, %v1156
        %v1167 = vcombine.high %v1163, %v1163
        %v1168 = vcombine.high %v1016, %v1016
        %v1170 = vunpack.c.l.s4 1966171168
        %v1171 = vunpack.c.0.s8 %v1170
        %v1172 = vlaneseq
        %v1173 = vshrl.u32 %v1172, 7
        %v1174 = vsub.s32 %v1171, %v1173
        %v1175 = vrot.slane %v1016, %v1174
        %v1177 = vunpack.c.l.s4 1966171168
        %v1178 = vunpack.c.0.s8 %v1177
        %v1179 = vlaneseq
        %v1180 = vshrl.u32 %v1179, 7
        %v1181 = vsub.s32 %v1178, %v1180
        %v1182 = vrot.slane %v1168, %v1181
        %v1183 = vcombine.high %v1175, %v1175
        %v1184 = vcombine.high %v1182, %v1182
        %v1186 = vunpack.c.l.s4 1966171168
        %v1187 = vunpack.c.0.s8 %v1186
        %v1188 = vlaneseq
        %v1189 = vshrl.u32 %v1188, 7
        %v1190 = vsub.s32 %v1187, %v1189
        %v1191 = vrot.slane %v1175, %v1190
        %v1193 = vunpack.c.l.s4 1966171168
        %v1194 = vunpack.c.0.s8 %v1193
        %v1195 = vlaneseq
        %v1196 = vshrl.u32 %v1195, 7
        %v1197 = vsub.s32 %v1194, %v1196
        %v1198 = vrot.slane %v1182, %v1197
        %v1200 = vunpack.c.l.s4 1966171168
        %v1201 = vunpack.c.0.s8 %v1200
        %v1202 = vlaneseq
        %v1203 = vshrl.u32 %v1202, 7
        %v1204 = vsub.s32 %v1201, %v1203
        %v1205 = vrot.slane %v1183, %v1204
        %v1207 = vunpack.c.l.s4 1966171168
        %v1208 = vunpack.c.0.s8 %v1207
        %v1209 = vlaneseq
        %v1210 = vshrl.u32 %v1209, 7
        %v1211 = vsub.s32 %v1208, %v1210
        %v1212 = vrot.slane %v1184, %v1211
        %v1213 = vcombine.high %v1191, %v1191
        %v1214 = vcombine.high %v1198, %v1198
        %v1215 = vcombine.high %v1205, %v1205
        %v1216 = vcombine.high %v1212, %v1212
        %v1217 = vlaneseq
        %v1218 = vshrl.u32 %v1217, 7
        %v1219 = vsub.s32 0, %v1218
        %v1220 = vrot.slane %v1044, %v1219
        %v1221 = vlaneseq
        %v1222 = vshrl.u32 %v1221, 7
        %v1223 = vsub.s32 0, %v1222
        %v1224 = vrot.slane %v1058, %v1223
        %v1225 = vlaneseq
        %v1226 = vshrl.u32 %v1225, 7
        %v1227 = vsub.s32 0, %v1226
        %v1228 = vrot.slane %v1066, %v1227
        %v1229 = vlaneseq
        %v1230 = vshrl.u32 %v1229, 7
        %v1231 = vsub.s32 0, %v1230
        %v1232 = vrot.slane %v1068, %v1231
        %v1233 = vlaneseq
        %v1234 = vshrl.u32 %v1233, 7
        %v1235 = vsub.s32 0, %v1234
        %v1236 = vrot.slane %v1051, %v1235
        %v1237 = vlaneseq
        %v1238 = vshrl.u32 %v1237, 7
        %v1239 = vsub.s32 0, %v1238
        %v1240 = vrot.slane %v1065, %v1239
        %v1241 = vlaneseq
        %v1242 = vshrl.u32 %v1241, 7
        %v1243 = vsub.s32 0, %v1242
        %v1244 = vrot.slane %v1067, %v1243
        %v1245 = vlaneseq
        %v1246 = vshrl.u32 %v1245, 7
        %v1247 = vsub.s32 0, %v1246
        %v1248 = vrot.slane %v1069, %v1247
        %v1249 = vlaneseq
        %v1250 = vshrl.u32 %v1249, 7
        %v1251 = vsub.s32 0, %v1250
        %v1252 = vrot.slane %v1093, %v1251
        %v1253 = vlaneseq
        %v1254 = vshrl.u32 %v1253, 7
        %v1255 = vsub.s32 0, %v1254
        %v1256 = vrot.slane %v1107, %v1255
        %v1257 = vlaneseq
        %v1258 = vshrl.u32 %v1257, 7
        %v1259 = vsub.s32 0, %v1258
        %v1260 = vrot.slane %v1115, %v1259
        %v1261 = vlaneseq
        %v1262 = vshrl.u32 %v1261, 7
        %v1263 = vsub.s32 0, %v1262
        %v1264 = vrot.slane %v1117, %v1263
        %v1265 = vlaneseq
        %v1266 = vshrl.u32 %v1265, 7
        %v1267 = vsub.s32 0, %v1266
        %v1268 = vrot.slane %v1100, %v1267
        %v1269 = vlaneseq
        %v1270 = vshrl.u32 %v1269, 7
        %v1271 = vsub.s32 0, %v1270
        %v1272 = vrot.slane %v1114, %v1271
        %v1273 = vlaneseq
        %v1274 = vshrl.u32 %v1273, 7
        %v1275 = vsub.s32 0, %v1274
        %v1276 = vrot.slane %v1116, %v1275
        %v1277 = vlaneseq
        %v1278 = vshrl.u32 %v1277, 7
        %v1279 = vsub.s32 0, %v1278
        %v1280 = vrot.slane %v1118, %v1279
        %v1281 = vlaneseq
        %v1282 = vshrl.u32 %v1281, 7
        %v1283 = vsub.s32 0, %v1282
        %v1284 = vrot.slane %v1142, %v1283
        %v1285 = vlaneseq
        %v1286 = vshrl.u32 %v1285, 7
        %v1287 = vsub.s32 0, %v1286
        %v1288 = vrot.slane %v1156, %v1287
        %v1289 = vlaneseq
        %v1290 = vshrl.u32 %v1289, 7
        %v1291 = vsub.s32 0, %v1290
        %v1292 = vrot.slane %v1164, %v1291
        %v1293 = vlaneseq
        %v1294 = vshrl.u32 %v1293, 7
        %v1295 = vsub.s32 0, %v1294
        %v1296 = vrot.slane %v1166, %v1295
        %v1297 = vlaneseq
        %v1298 = vshrl.u32 %v1297, 7
        %v1299 = vsub.s32 0, %v1298
        %v1300 = vrot.slane %v1149, %v1299
        %v1301 = vlaneseq
        %v1302 = vshrl.u32 %v1301, 7
        %v1303 = vsub.s32 0, %v1302
        %v1304 = vrot.slane %v1163, %v1303
        %v1305 = vlaneseq
        %v1306 = vshrl.u32 %v1305, 7
        %v1307 = vsub.s32 0, %v1306
        %v1308 = vrot.slane %v1165, %v1307
        %v1309 = vlaneseq
        %v1310 = vshrl.u32 %v1309, 7
        %v1311 = vsub.s32 0, %v1310
        %v1312 = vrot.slane %v1167, %v1311
        %v1313 = vlaneseq
        %v1314 = vshrl.u32 %v1313, 7
        %v1315 = vsub.s32 0, %v1314
        %v1316 = vrot.slane %v1191, %v1315
        %v1317 = vlaneseq
        %v1318 = vshrl.u32 %v1317, 7
        %v1319 = vsub.s32 0, %v1318
        %v1320 = vrot.slane %v1205, %v1319
        %v1321 = vlaneseq
        %v1322 = vshrl.u32 %v1321, 7
        %v1323 = vsub.s32 0, %v1322
        %v1324 = vrot.slane %v1213, %v1323
        %v1325 = vlaneseq
        %v1326 = vshrl.u32 %v1325, 7
        %v1327 = vsub.s32 0, %v1326
        %v1328 = vrot.slane %v1215, %v1327
        %v1329 = vlaneseq
        %v1330 = vshrl.u32 %v1329, 7
        %v1331 = vsub.s32 0, %v1330
        %v1332 = vrot.slane %v1198, %v1331
        %v1333 = vlaneseq
        %v1334 = vshrl.u32 %v1333, 7
        %v1335 = vsub.s32 0, %v1334
        %v1336 = vrot.slane %v1212, %v1335
        %v1337 = vlaneseq
        %v1338 = vshrl.u32 %v1337, 7
        %v1339 = vsub.s32 0, %v1338
        %v1340 = vrot.slane %v1214, %v1339
        %v1341 = vlaneseq
        %v1342 = vshrl.u32 %v1341, 7
        %v1343 = vsub.s32 0, %v1342
        %v1344 = vrot.slane %v1216, %v1343
        %v1377 = vmul.f32 %v1220, %v993
        %v1378 = vmul.f32 %v1220, %v994
        %v1379 = vmul.f32 %v1220, %v995
        %v1380 = vmul.f32 %v1220, %v996
        %v1381 = vmul.f32 %v1220, %v997
        %v1382 = vmul.f32 %v1220, %v998
        %v1383 = vmul.f32 %v1220, %v999
        %v1384 = vmul.f32 %v1220, %v1000
        %v1385 = vmul.f32 %v1220, %v1001
        %v1386 = vmul.f32 %v1220, %v1002
        %v1387 = vmul.f32 %v1220, %v1003
        %v1388 = vmul.f32 %v1220, %v1004
        %v1389 = vmul.f32 %v1220, %v1005
        %v1390 = vmul.f32 %v1220, %v1006
        %v1391 = vmul.f32 %v1220, %v1007
        %v1392 = vmul.f32 %v1220, %v1008
        %v1393 = vmul.f32 %v1224, %v993
        %v1394 = vmul.f32 %v1224, %v994
        %v1395 = vmul.f32 %v1224, %v995
        %v1396 = vmul.f32 %v1224, %v996
        %v1397 = vmul.f32 %v1224, %v997
        %v1398 = vmul.f32 %v1224, %v998
        %v1399 = vmul.f32 %v1224, %v999
        %v1400 = vmul.f32 %v1224, %v1000
        %v1401 = vmul.f32 %v1224, %v1001
        %v1402 = vmul.f32 %v1224, %v1002
        %v1403 = vmul.f32 %v1224, %v1003
        %v1404 = vmul.f32 %v1224, %v1004
        %v1405 = vmul.f32 %v1224, %v1005
        %v1406 = vmul.f32 %v1224, %v1006
        %v1407 = vmul.f32 %v1224, %v1007
        %v1408 = vmul.f32 %v1224, %v1008
        %v1409 = vmul.f32 %v1228, %v993
        %v1410 = vmul.f32 %v1228, %v994
        %v1411 = vmul.f32 %v1228, %v995
        %v1412 = vmul.f32 %v1228, %v996
        %v1413 = vmul.f32 %v1228, %v997
        %v1414 = vmul.f32 %v1228, %v998
        %v1415 = vmul.f32 %v1228, %v999
        %v1416 = vmul.f32 %v1228, %v1000
        %v1417 = vmul.f32 %v1228, %v1001
        %v1418 = vmul.f32 %v1228, %v1002
        %v1419 = vmul.f32 %v1228, %v1003
        %v1420 = vmul.f32 %v1228, %v1004
        %v1421 = vmul.f32 %v1228, %v1005
        %v1422 = vmul.f32 %v1228, %v1006
        %v1423 = vmul.f32 %v1228, %v1007
        %v1424 = vmul.f32 %v1228, %v1008
        %v1425 = vmul.f32 %v1232, %v993
        %v1426 = vmul.f32 %v1232, %v994
        %v1427 = vmul.f32 %v1232, %v995
        %v1428 = vmul.f32 %v1232, %v996
        %v1429 = vmul.f32 %v1232, %v997
        %v1430 = vmul.f32 %v1232, %v998
        %v1431 = vmul.f32 %v1232, %v999
        %v1432 = vmul.f32 %v1232, %v1000
        %v1433 = vmul.f32 %v1232, %v1001
        %v1434 = vmul.f32 %v1232, %v1002
        %v1435 = vmul.f32 %v1232, %v1003
        %v1436 = vmul.f32 %v1232, %v1004
        %v1437 = vmul.f32 %v1232, %v1005
        %v1438 = vmul.f32 %v1232, %v1006
        %v1439 = vmul.f32 %v1232, %v1007
        %v1440 = vmul.f32 %v1232, %v1008
        %v1441 = vmul.f32 %v1236, %v993
        %v1442 = vmul.f32 %v1236, %v994
        %v1443 = vmul.f32 %v1236, %v995
        %v1444 = vmul.f32 %v1236, %v996
        %v1445 = vmul.f32 %v1236, %v997
        %v1446 = vmul.f32 %v1236, %v998
        %v1447 = vmul.f32 %v1236, %v999
        %v1448 = vmul.f32 %v1236, %v1000
        %v1449 = vmul.f32 %v1236, %v1001
        %v1450 = vmul.f32 %v1236, %v1002
        %v1451 = vmul.f32 %v1236, %v1003
        %v1452 = vmul.f32 %v1236, %v1004
        %v1453 = vmul.f32 %v1236, %v1005
        %v1454 = vmul.f32 %v1236, %v1006
        %v1455 = vmul.f32 %v1236, %v1007
        %v1456 = vmul.f32 %v1236, %v1008
        %v1457 = vmul.f32 %v1240, %v993
        %v1458 = vmul.f32 %v1240, %v994
        %v1459 = vmul.f32 %v1240, %v995
        %v1460 = vmul.f32 %v1240, %v996
        %v1461 = vmul.f32 %v1240, %v997
        %v1462 = vmul.f32 %v1240, %v998
        %v1463 = vmul.f32 %v1240, %v999
        %v1464 = vmul.f32 %v1240, %v1000
        %v1465 = vmul.f32 %v1240, %v1001
        %v1466 = vmul.f32 %v1240, %v1002
        %v1467 = vmul.f32 %v1240, %v1003
        %v1468 = vmul.f32 %v1240, %v1004
        %v1469 = vmul.f32 %v1240, %v1005
        %v1470 = vmul.f32 %v1240, %v1006
        %v1471 = vmul.f32 %v1240, %v1007
        %v1472 = vmul.f32 %v1240, %v1008
        %v1473 = vmul.f32 %v1244, %v993
        %v1474 = vmul.f32 %v1244, %v994
        %v1475 = vmul.f32 %v1244, %v995
        %v1476 = vmul.f32 %v1244, %v996
        %v1477 = vmul.f32 %v1244, %v997
        %v1478 = vmul.f32 %v1244, %v998
        %v1479 = vmul.f32 %v1244, %v999
        %v1480 = vmul.f32 %v1244, %v1000
        %v1481 = vmul.f32 %v1244, %v1001
        %v1482 = vmul.f32 %v1244, %v1002
        %v1483 = vmul.f32 %v1244, %v1003
        %v1484 = vmul.f32 %v1244, %v1004
        %v1485 = vmul.f32 %v1244, %v1005
        %v1486 = vmul.f32 %v1244, %v1006
        %v1487 = vmul.f32 %v1244, %v1007
        %v1488 = vmul.f32 %v1244, %v1008
        %v1489 = vmul.f32 %v1248, %v993
        %v1490 = vmul.f32 %v1248, %v994
        %v1491 = vmul.f32 %v1248, %v995
        %v1492 = vmul.f32 %v1248, %v996
        %v1493 = vmul.f32 %v1248, %v997
        %v1494 = vmul.f32 %v1248, %v998
        %v1495 = vmul.f32 %v1248, %v999
        %v1496 = vmul.f32 %v1248, %v1000
        %v1497 = vmul.f32 %v1248, %v1001
        %v1498 = vmul.f32 %v1248, %v1002
        %v1499 = vmul.f32 %v1248, %v1003
        %v1500 = vmul.f32 %v1248, %v1004
        %v1501 = vmul.f32 %v1248, %v1005
        %v1502 = vmul.f32 %v1248, %v1006
        %v1503 = vmul.f32 %v1248, %v1007
        %v1504 = vmul.f32 %v1248, %v1008
        %v1505 = vmul.f32 %v1252, %v993
        %v1506 = vmul.f32 %v1252, %v994
        %v1507 = vmul.f32 %v1252, %v995
        %v1508 = vmul.f32 %v1252, %v996
        %v1509 = vmul.f32 %v1252, %v997
        %v1510 = vmul.f32 %v1252, %v998
        %v1511 = vmul.f32 %v1252, %v999
        %v1512 = vmul.f32 %v1252, %v1000
        %v1513 = vmul.f32 %v1252, %v1001
        %v1514 = vmul.f32 %v1252, %v1002
        %v1515 = vmul.f32 %v1252, %v1003
        %v1516 = vmul.f32 %v1252, %v1004
        %v1517 = vmul.f32 %v1252, %v1005
        %v1518 = vmul.f32 %v1252, %v1006
        %v1519 = vmul.f32 %v1252, %v1007
        %v1520 = vmul.f32 %v1252, %v1008
        %v1521 = vmul.f32 %v1256, %v993
        %v1522 = vmul.f32 %v1256, %v994
        %v1523 = vmul.f32 %v1256, %v995
        %v1524 = vmul.f32 %v1256, %v996
        %v1525 = vmul.f32 %v1256, %v997
        %v1526 = vmul.f32 %v1256, %v998
        %v1527 = vmul.f32 %v1256, %v999
        %v1528 = vmul.f32 %v1256, %v1000
        %v1529 = vmul.f32 %v1256, %v1001
        %v1530 = vmul.f32 %v1256, %v1002
        %v1531 = vmul.f32 %v1256, %v1003
        %v1532 = vmul.f32 %v1256, %v1004
        %v1533 = vmul.f32 %v1256, %v1005
        %v1534 = vmul.f32 %v1256, %v1006
        %v1535 = vmul.f32 %v1256, %v1007
        %v1536 = vmul.f32 %v1256, %v1008
        %v1537 = vmul.f32 %v1260, %v993
        %v1538 = vmul.f32 %v1260, %v994
        %v1539 = vmul.f32 %v1260, %v995
        %v1540 = vmul.f32 %v1260, %v996
        %v1541 = vmul.f32 %v1260, %v997
        %v1542 = vmul.f32 %v1260, %v998
        %v1543 = vmul.f32 %v1260, %v999
        %v1544 = vmul.f32 %v1260, %v1000
        %v1545 = vmul.f32 %v1260, %v1001
        %v1546 = vmul.f32 %v1260, %v1002
        %v1547 = vmul.f32 %v1260, %v1003
        %v1548 = vmul.f32 %v1260, %v1004
        %v1549 = vmul.f32 %v1260, %v1005
        %v1550 = vmul.f32 %v1260, %v1006
        %v1551 = vmul.f32 %v1260, %v1007
        %v1552 = vmul.f32 %v1260, %v1008
        %v1553 = vmul.f32 %v1264, %v993
        %v1554 = vmul.f32 %v1264, %v994
        %v1555 = vmul.f32 %v1264, %v995
        %v1556 = vmul.f32 %v1264, %v996
        %v1557 = vmul.f32 %v1264, %v997
        %v1558 = vmul.f32 %v1264, %v998
        %v1559 = vmul.f32 %v1264, %v999
        %v1560 = vmul.f32 %v1264, %v1000
        %v1561 = vmul.f32 %v1264, %v1001
        %v1562 = vmul.f32 %v1264, %v1002
        %v1563 = vmul.f32 %v1264, %v1003
        %v1564 = vmul.f32 %v1264, %v1004
        %v1565 = vmul.f32 %v1264, %v1005
        %v1566 = vmul.f32 %v1264, %v1006
        %v1567 = vmul.f32 %v1264, %v1007
        %v1568 = vmul.f32 %v1264, %v1008
        %v1569 = vmul.f32 %v1268, %v993
        %v1570 = vmul.f32 %v1268, %v994
        %v1571 = vmul.f32 %v1268, %v995
        %v1572 = vmul.f32 %v1268, %v996
        %v1573 = vmul.f32 %v1268, %v997
        %v1574 = vmul.f32 %v1268, %v998
        %v1575 = vmul.f32 %v1268, %v999
        %v1576 = vmul.f32 %v1268, %v1000
        %v1577 = vmul.f32 %v1268, %v1001
        %v1578 = vmul.f32 %v1268, %v1002
        %v1579 = vmul.f32 %v1268, %v1003
        %v1580 = vmul.f32 %v1268, %v1004
        %v1581 = vmul.f32 %v1268, %v1005
        %v1582 = vmul.f32 %v1268, %v1006
        %v1583 = vmul.f32 %v1268, %v1007
        %v1584 = vmul.f32 %v1268, %v1008
        %v1585 = vmul.f32 %v1272, %v993
        %v1586 = vmul.f32 %v1272, %v994
        %v1587 = vmul.f32 %v1272, %v995
        %v1588 = vmul.f32 %v1272, %v996
        %v1589 = vmul.f32 %v1272, %v997
        %v1590 = vmul.f32 %v1272, %v998
        %v1591 = vmul.f32 %v1272, %v999
        %v1592 = vmul.f32 %v1272, %v1000
        %v1593 = vmul.f32 %v1272, %v1001
        %v1594 = vmul.f32 %v1272, %v1002
        %v1595 = vmul.f32 %v1272, %v1003
        %v1596 = vmul.f32 %v1272, %v1004
        %v1597 = vmul.f32 %v1272, %v1005
        %v1598 = vmul.f32 %v1272, %v1006
        %v1599 = vmul.f32 %v1272, %v1007
        %v1600 = vmul.f32 %v1272, %v1008
        %v1601 = vmul.f32 %v1276, %v993
        %v1602 = vmul.f32 %v1276, %v994
        %v1603 = vmul.f32 %v1276, %v995
        %v1604 = vmul.f32 %v1276, %v996
        %v1605 = vmul.f32 %v1276, %v997
        %v1606 = vmul.f32 %v1276, %v998
        %v1607 = vmul.f32 %v1276, %v999
        %v1608 = vmul.f32 %v1276, %v1000
        %v1609 = vmul.f32 %v1276, %v1001
        %v1610 = vmul.f32 %v1276, %v1002
        %v1611 = vmul.f32 %v1276, %v1003
        %v1612 = vmul.f32 %v1276, %v1004
        %v1613 = vmul.f32 %v1276, %v1005
        %v1614 = vmul.f32 %v1276, %v1006
        %v1615 = vmul.f32 %v1276, %v1007
        %v1616 = vmul.f32 %v1276, %v1008
        %v1617 = vmul.f32 %v1280, %v993
        %v1618 = vmul.f32 %v1280, %v994
        %v1619 = vmul.f32 %v1280, %v995
        %v1620 = vmul.f32 %v1280, %v996
        %v1621 = vmul.f32 %v1280, %v997
        %v1622 = vmul.f32 %v1280, %v998
        %v1623 = vmul.f32 %v1280, %v999
        %v1624 = vmul.f32 %v1280, %v1000
        %v1625 = vmul.f32 %v1280, %v1001
        %v1626 = vmul.f32 %v1280, %v1002
        %v1627 = vmul.f32 %v1280, %v1003
        %v1628 = vmul.f32 %v1280, %v1004
        %v1629 = vmul.f32 %v1280, %v1005
        %v1630 = vmul.f32 %v1280, %v1006
        %v1631 = vmul.f32 %v1280, %v1007
        %v1632 = vmul.f32 %v1280, %v1008
        %v1633 = vmul.f32 %v1284, %v993
        %v1634 = vmul.f32 %v1284, %v994
        %v1635 = vmul.f32 %v1284, %v995
        %v1636 = vmul.f32 %v1284, %v996
        %v1637 = vmul.f32 %v1284, %v997
        %v1638 = vmul.f32 %v1284, %v998
        %v1639 = vmul.f32 %v1284, %v999
        %v1640 = vmul.f32 %v1284, %v1000
        %v1641 = vmul.f32 %v1284, %v1001
        %v1642 = vmul.f32 %v1284, %v1002
        %v1643 = vmul.f32 %v1284, %v1003
        %v1644 = vmul.f32 %v1284, %v1004
        %v1645 = vmul.f32 %v1284, %v1005
        %v1646 = vmul.f32 %v1284, %v1006
        %v1647 = vmul.f32 %v1284, %v1007
        %v1648 = vmul.f32 %v1284, %v1008
        %v1649 = vmul.f32 %v1288, %v993
        %v1650 = vmul.f32 %v1288, %v994
        %v1651 = vmul.f32 %v1288, %v995
        %v1652 = vmul.f32 %v1288, %v996
        %v1653 = vmul.f32 %v1288, %v997
        %v1654 = vmul.f32 %v1288, %v998
        %v1655 = vmul.f32 %v1288, %v999
        %v1656 = vmul.f32 %v1288, %v1000
        %v1657 = vmul.f32 %v1288, %v1001
        %v1658 = vmul.f32 %v1288, %v1002
        %v1659 = vmul.f32 %v1288, %v1003
        %v1660 = vmul.f32 %v1288, %v1004
        %v1661 = vmul.f32 %v1288, %v1005
        %v1662 = vmul.f32 %v1288, %v1006
        %v1663 = vmul.f32 %v1288, %v1007
        %v1664 = vmul.f32 %v1288, %v1008
        %v1665 = vmul.f32 %v1292, %v993
        %v1666 = vmul.f32 %v1292, %v994
        %v1667 = vmul.f32 %v1292, %v995
        %v1668 = vmul.f32 %v1292, %v996
        %v1669 = vmul.f32 %v1292, %v997
        %v1670 = vmul.f32 %v1292, %v998
        %v1671 = vmul.f32 %v1292, %v999
        %v1672 = vmul.f32 %v1292, %v1000
        %v1673 = vmul.f32 %v1292, %v1001
        %v1674 = vmul.f32 %v1292, %v1002
        %v1675 = vmul.f32 %v1292, %v1003
        %v1676 = vmul.f32 %v1292, %v1004
        %v1677 = vmul.f32 %v1292, %v1005
        %v1678 = vmul.f32 %v1292, %v1006
        %v1679 = vmul.f32 %v1292, %v1007
        %v1680 = vmul.f32 %v1292, %v1008
        %v1681 = vmul.f32 %v1296, %v993
        %v1682 = vmul.f32 %v1296, %v994
        %v1683 = vmul.f32 %v1296, %v995
        %v1684 = vmul.f32 %v1296, %v996
        %v1685 = vmul.f32 %v1296, %v997
        %v1686 = vmul.f32 %v1296, %v998
        %v1687 = vmul.f32 %v1296, %v999
        %v1688 = vmul.f32 %v1296, %v1000
        %v1689 = vmul.f32 %v1296, %v1001
        %v1690 = vmul.f32 %v1296, %v1002
        %v1691 = vmul.f32 %v1296, %v1003
        %v1692 = vmul.f32 %v1296, %v1004
        %v1693 = vmul.f32 %v1296, %v1005
        %v1694 = vmul.f32 %v1296, %v1006
        %v1695 = vmul.f32 %v1296, %v1007
        %v1696 = vmul.f32 %v1296, %v1008
        %v1697 = vmul.f32 %v1300, %v993
        %v1698 = vmul.f32 %v1300, %v994
        %v1699 = vmul.f32 %v1300, %v995
        %v1700 = vmul.f32 %v1300, %v996
        %v1701 = vmul.f32 %v1300, %v997
        %v1702 = vmul.f32 %v1300, %v998
        %v1703 = vmul.f32 %v1300, %v999
        %v1704 = vmul.f32 %v1300, %v1000
        %v1705 = vmul.f32 %v1300, %v1001
        %v1706 = vmul.f32 %v1300, %v1002
        %v1707 = vmul.f32 %v1300, %v1003
        %v1708 = vmul.f32 %v1300, %v1004
        %v1709 = vmul.f32 %v1300, %v1005
        %v1710 = vmul.f32 %v1300, %v1006
        %v1711 = vmul.f32 %v1300, %v1007
        %v1712 = vmul.f32 %v1300, %v1008
        %v1713 = vmul.f32 %v1304, %v993
        %v1714 = vmul.f32 %v1304, %v994
        %v1715 = vmul.f32 %v1304, %v995
        %v1716 = vmul.f32 %v1304, %v996
        %v1717 = vmul.f32 %v1304, %v997
        %v1718 = vmul.f32 %v1304, %v998
        %v1719 = vmul.f32 %v1304, %v999
        %v1720 = vmul.f32 %v1304, %v1000
        %v1721 = vmul.f32 %v1304, %v1001
        %v1722 = vmul.f32 %v1304, %v1002
        %v1723 = vmul.f32 %v1304, %v1003
        %v1724 = vmul.f32 %v1304, %v1004
        %v1725 = vmul.f32 %v1304, %v1005
        %v1726 = vmul.f32 %v1304, %v1006
        %v1727 = vmul.f32 %v1304, %v1007
        %v1728 = vmul.f32 %v1304, %v1008
        %v1729 = vmul.f32 %v1308, %v993
        %v1730 = vmul.f32 %v1308, %v994
        %v1731 = vmul.f32 %v1308, %v995
        %v1732 = vmul.f32 %v1308, %v996
        %v1733 = vmul.f32 %v1308, %v997
        %v1734 = vmul.f32 %v1308, %v998
        %v1735 = vmul.f32 %v1308, %v999
        %v1736 = vmul.f32 %v1308, %v1000
        %v1737 = vmul.f32 %v1308, %v1001
        %v1738 = vmul.f32 %v1308, %v1002
        %v1739 = vmul.f32 %v1308, %v1003
        %v1740 = vmul.f32 %v1308, %v1004
        %v1741 = vmul.f32 %v1308, %v1005
        %v1742 = vmul.f32 %v1308, %v1006
        %v1743 = vmul.f32 %v1308, %v1007
        %v1744 = vmul.f32 %v1308, %v1008
        %v1745 = vmul.f32 %v1312, %v993
        %v1746 = vmul.f32 %v1312, %v994
        %v1747 = vmul.f32 %v1312, %v995
        %v1748 = vmul.f32 %v1312, %v996
        %v1749 = vmul.f32 %v1312, %v997
        %v1750 = vmul.f32 %v1312, %v998
        %v1751 = vmul.f32 %v1312, %v999
        %v1752 = vmul.f32 %v1312, %v1000
        %v1753 = vmul.f32 %v1312, %v1001
        %v1754 = vmul.f32 %v1312, %v1002
        %v1755 = vmul.f32 %v1312, %v1003
        %v1756 = vmul.f32 %v1312, %v1004
        %v1757 = vmul.f32 %v1312, %v1005
        %v1758 = vmul.f32 %v1312, %v1006
        %v1759 = vmul.f32 %v1312, %v1007
        %v1760 = vmul.f32 %v1312, %v1008
        %v1761 = vmul.f32 %v1316, %v993
        %v1762 = vmul.f32 %v1316, %v994
        %v1763 = vmul.f32 %v1316, %v995
        %v1764 = vmul.f32 %v1316, %v996
        %v1765 = vmul.f32 %v1316, %v997
        %v1766 = vmul.f32 %v1316, %v998
        %v1767 = vmul.f32 %v1316, %v999
        %v1768 = vmul.f32 %v1316, %v1000
        %v1769 = vmul.f32 %v1316, %v1001
        %v1770 = vmul.f32 %v1316, %v1002
        %v1771 = vmul.f32 %v1316, %v1003
        %v1772 = vmul.f32 %v1316, %v1004
        %v1773 = vmul.f32 %v1316, %v1005
        %v1774 = vmul.f32 %v1316, %v1006
        %v1775 = vmul.f32 %v1316, %v1007
        %v1776 = vmul.f32 %v1316, %v1008
        %v1777 = vmul.f32 %v1320, %v993
        %v1778 = vmul.f32 %v1320, %v994
        %v1779 = vmul.f32 %v1320, %v995
        %v1780 = vmul.f32 %v1320, %v996
        %v1781 = vmul.f32 %v1320, %v997
        %v1782 = vmul.f32 %v1320, %v998
        %v1783 = vmul.f32 %v1320, %v999
        %v1784 = vmul.f32 %v1320, %v1000
        %v1785 = vmul.f32 %v1320, %v1001
        %v1786 = vmul.f32 %v1320, %v1002
        %v1787 = vmul.f32 %v1320, %v1003
        %v1788 = vmul.f32 %v1320, %v1004
        %v1789 = vmul.f32 %v1320, %v1005
        %v1790 = vmul.f32 %v1320, %v1006
        %v1791 = vmul.f32 %v1320, %v1007
        %v1792 = vmul.f32 %v1320, %v1008
        %v1793 = vmul.f32 %v1324, %v993
        %v1794 = vmul.f32 %v1324, %v994
        %v1795 = vmul.f32 %v1324, %v995
        %v1796 = vmul.f32 %v1324, %v996
        %v1797 = vmul.f32 %v1324, %v997
        %v1798 = vmul.f32 %v1324, %v998
        %v1799 = vmul.f32 %v1324, %v999
        %v1800 = vmul.f32 %v1324, %v1000
        %v1801 = vmul.f32 %v1324, %v1001
        %v1802 = vmul.f32 %v1324, %v1002
        %v1803 = vmul.f32 %v1324, %v1003
        %v1804 = vmul.f32 %v1324, %v1004
        %v1805 = vmul.f32 %v1324, %v1005
        %v1806 = vmul.f32 %v1324, %v1006
        %v1807 = vmul.f32 %v1324, %v1007
        %v1808 = vmul.f32 %v1324, %v1008
        %v1809 = vmul.f32 %v1328, %v993
        %v1810 = vmul.f32 %v1328, %v994
        %v1811 = vmul.f32 %v1328, %v995
        %v1812 = vmul.f32 %v1328, %v996
        %v1813 = vmul.f32 %v1328, %v997
        %v1814 = vmul.f32 %v1328, %v998
        %v1815 = vmul.f32 %v1328, %v999
        %v1816 = vmul.f32 %v1328, %v1000
        %v1817 = vmul.f32 %v1328, %v1001
        %v1818 = vmul.f32 %v1328, %v1002
        %v1819 = vmul.f32 %v1328, %v1003
        %v1820 = vmul.f32 %v1328, %v1004
        %v1821 = vmul.f32 %v1328, %v1005
        %v1822 = vmul.f32 %v1328, %v1006
        %v1823 = vmul.f32 %v1328, %v1007
        %v1824 = vmul.f32 %v1328, %v1008
        %v1825 = vmul.f32 %v1332, %v993
        %v1826 = vmul.f32 %v1332, %v994
        %v1827 = vmul.f32 %v1332, %v995
        %v1828 = vmul.f32 %v1332, %v996
        %v1829 = vmul.f32 %v1332, %v997
        %v1830 = vmul.f32 %v1332, %v998
        %v1831 = vmul.f32 %v1332, %v999
        %v1832 = vmul.f32 %v1332, %v1000
        %v1833 = vmul.f32 %v1332, %v1001
        %v1834 = vmul.f32 %v1332, %v1002
        %v1835 = vmul.f32 %v1332, %v1003
        %v1836 = vmul.f32 %v1332, %v1004
        %v1837 = vmul.f32 %v1332, %v1005
        %v1838 = vmul.f32 %v1332, %v1006
        %v1839 = vmul.f32 %v1332, %v1007
        %v1840 = vmul.f32 %v1332, %v1008
        %v1841 = vmul.f32 %v1336, %v993
        %v1842 = vmul.f32 %v1336, %v994
        %v1843 = vmul.f32 %v1336, %v995
        %v1844 = vmul.f32 %v1336, %v996
        %v1845 = vmul.f32 %v1336, %v997
        %v1846 = vmul.f32 %v1336, %v998
        %v1847 = vmul.f32 %v1336, %v999
        %v1848 = vmul.f32 %v1336, %v1000
        %v1849 = vmul.f32 %v1336, %v1001
        %v1850 = vmul.f32 %v1336, %v1002
        %v1851 = vmul.f32 %v1336, %v1003
        %v1852 = vmul.f32 %v1336, %v1004
        %v1853 = vmul.f32 %v1336, %v1005
        %v1854 = vmul.f32 %v1336, %v1006
        %v1855 = vmul.f32 %v1336, %v1007
        %v1856 = vmul.f32 %v1336, %v1008
        %v1857 = vmul.f32 %v1340, %v993
        %v1858 = vmul.f32 %v1340, %v994
        %v1859 = vmul.f32 %v1340, %v995
        %v1860 = vmul.f32 %v1340, %v996
        %v1861 = vmul.f32 %v1340, %v997
        %v1862 = vmul.f32 %v1340, %v998
        %v1863 = vmul.f32 %v1340, %v999
        %v1864 = vmul.f32 %v1340, %v1000
        %v1865 = vmul.f32 %v1340, %v1001
        %v1866 = vmul.f32 %v1340, %v1002
        %v1867 = vmul.f32 %v1340, %v1003
        %v1868 = vmul.f32 %v1340, %v1004
        %v1869 = vmul.f32 %v1340, %v1005
        %v1870 = vmul.f32 %v1340, %v1006
        %v1871 = vmul.f32 %v1340, %v1007
        %v1872 = vmul.f32 %v1340, %v1008
        %v1873 = vmul.f32 %v1344, %v993
        %v1874 = vmul.f32 %v1344, %v994
        %v1875 = vmul.f32 %v1344, %v995
        %v1876 = vmul.f32 %v1344, %v996
        %v1877 = vmul.f32 %v1344, %v997
        %v1878 = vmul.f32 %v1344, %v998
        %v1879 = vmul.f32 %v1344, %v999
        %v1880 = vmul.f32 %v1344, %v1000
        %v1881 = vmul.f32 %v1344, %v1001
        %v1882 = vmul.f32 %v1344, %v1002
        %v1883 = vmul.f32 %v1344, %v1003
        %v1884 = vmul.f32 %v1344, %v1004
        %v1885 = vmul.f32 %v1344, %v1005
        %v1886 = vmul.f32 %v1344, %v1006
        %v1887 = vmul.f32 %v1344, %v1007
        %v1888 = vmul.f32 %v1344, %v1008
        %v1889 = vld [vmem:[#allocation2] sm:$0xff]
        %v1890 = vld [vmem:[#allocation2 + $0x8] sm:$0xff]
        %v1891 = vld [vmem:[#allocation2 + $0x10] sm:$0xff]
        %v1892 = vld [vmem:[#allocation2 + $0x18] sm:$0xff]
        %v1893 = vld [vmem:[#allocation2 + $0x20] sm:$0xff]
        %v1894 = vld [vmem:[#allocation2 + $0x28] sm:$0xff]
        %v1895 = vld [vmem:[#allocation2 + $0x30] sm:$0xff]
        %v1896 = vld [vmem:[#allocation2 + $0x38] sm:$0xff]
        %v1897 = vld [vmem:[#allocation2 + $0x40] sm:$0xff]
        %v1898 = vld [vmem:[#allocation2 + $0x48] sm:$0xff]
        %v1899 = vld [vmem:[#allocation2 + $0x50] sm:$0xff]
        %v1900 = vld [vmem:[#allocation2 + $0x58] sm:$0xff]
        %v1901 = vld [vmem:[#allocation2 + $0x60] sm:$0xff]
        %v1902 = vld [vmem:[#allocation2 + $0x68] sm:$0xff]
        %v1903 = vld [vmem:[#allocation2 + $0x70] sm:$0xff]
        %v1904 = vld [vmem:[#allocation2 + $0x78] sm:$0xff]
        %v1905 = vld [vmem:[%s731] sm:$0xff]
        %v1906 = vld [vmem:[%s731 + $0x8] sm:$0xff]
        %v1907 = vld [vmem:[%s731 + $0x10] sm:$0xff]
        %v1908 = vld [vmem:[%s731 + $0x18] sm:$0xff]
        %v1909 = vld [vmem:[%s731 + $0x20] sm:$0xff]
        %v1910 = vld [vmem:[%s731 + $0x28] sm:$0xff]
        %v1911 = vld [vmem:[%s731 + $0x30] sm:$0xff]
        %v1912 = vld [vmem:[%s731 + $0x38] sm:$0xff]
        %v1913 = vld [vmem:[%s731 + $0x40] sm:$0xff]
        %v1914 = vld [vmem:[%s731 + $0x48] sm:$0xff]
        %v1915 = vld [vmem:[%s731 + $0x50] sm:$0xff]
        %v1916 = vld [vmem:[%s731 + $0x58] sm:$0xff]
        %v1917 = vld [vmem:[%s731 + $0x60] sm:$0xff]
        %v1918 = vld [vmem:[%s731 + $0x68] sm:$0xff]
        %v1919 = vld [vmem:[%s731 + $0x70] sm:$0xff]
        %v1920 = vld [vmem:[%s731 + $0x78] sm:$0xff]
        %v1921 = vld [vmem:[%s731 + $0x80] sm:$0xff]
        %v1922 = vld [vmem:[%s731 + $0x88] sm:$0xff]
        %v1923 = vld [vmem:[%s731 + $0x90] sm:$0xff]
        %v1924 = vld [vmem:[%s731 + $0x98] sm:$0xff]
        %v1925 = vld [vmem:[%s731 + $0xa0] sm:$0xff]
        %v1926 = vld [vmem:[%s731 + $0xa8] sm:$0xff]
        %v1927 = vld [vmem:[%s731 + $0xb0] sm:$0xff]
        %v1928 = vld [vmem:[%s731 + $0xb8] sm:$0xff]
        %v1929 = vld [vmem:[%s731 + $0xc0] sm:$0xff]
        %v1930 = vld [vmem:[%s731 + $0xc8] sm:$0xff]
        %v1931 = vld [vmem:[%s731 + $0xd0] sm:$0xff]
        %v1932 = vld [vmem:[%s731 + $0xd8] sm:$0xff]
        %v1933 = vld [vmem:[%s731 + $0xe0] sm:$0xff]
        %v1934 = vld [vmem:[%s731 + $0xe8] sm:$0xff]
        %v1935 = vld [vmem:[%s731 + $0xf0] sm:$0xff]
        %v1936 = vld [vmem:[%s731 + $0xf8] sm:$0xff]
        %v1937 = vld [vmem:[%s731 + $0x100] sm:$0xff]
        %v1938 = vld [vmem:[%s731 + $0x108] sm:$0xff]
        %v1939 = vld [vmem:[%s731 + $0x110] sm:$0xff]
        %v1940 = vld [vmem:[%s731 + $0x118] sm:$0xff]
        %v1941 = vld [vmem:[%s731 + $0x120] sm:$0xff]
        %v1942 = vld [vmem:[%s731 + $0x128] sm:$0xff]
        %v1943 = vld [vmem:[%s731 + $0x130] sm:$0xff]
        %v1944 = vld [vmem:[%s731 + $0x138] sm:$0xff]
        %v1945 = vld [vmem:[%s731 + $0x140] sm:$0xff]
        %v1946 = vld [vmem:[%s731 + $0x148] sm:$0xff]
        %v1947 = vld [vmem:[%s731 + $0x150] sm:$0xff]
        %v1948 = vld [vmem:[%s731 + $0x158] sm:$0xff]
        %v1949 = vld [vmem:[%s731 + $0x160] sm:$0xff]
        %v1950 = vld [vmem:[%s731 + $0x168] sm:$0xff]
        %v1951 = vld [vmem:[%s731 + $0x170] sm:$0xff]
        %v1952 = vld [vmem:[%s731 + $0x178] sm:$0xff]
        %v1953 = vld [vmem:[%s731 + $0x180] sm:$0xff]
        %v1954 = vld [vmem:[%s731 + $0x188] sm:$0xff]
        %v1955 = vld [vmem:[%s731 + $0x190] sm:$0xff]
        %v1956 = vld [vmem:[%s731 + $0x198] sm:$0xff]
        %v1957 = vld [vmem:[%s731 + $0x1a0] sm:$0xff]
        %v1958 = vld [vmem:[%s731 + $0x1a8] sm:$0xff]
        %v1959 = vld [vmem:[%s731 + $0x1b0] sm:$0xff]
        %v1960 = vld [vmem:[%s731 + $0x1b8] sm:$0xff]
        %v1961 = vld [vmem:[%s731 + $0x1c0] sm:$0xff]
        %v1962 = vld [vmem:[%s731 + $0x1c8] sm:$0xff]
        %v1963 = vld [vmem:[%s731 + $0x1d0] sm:$0xff]
        %v1964 = vld [vmem:[%s731 + $0x1d8] sm:$0xff]
        %v1965 = vld [vmem:[%s731 + $0x1e0] sm:$0xff]
        %v1966 = vld [vmem:[%s731 + $0x1e8] sm:$0xff]
        %v1967 = vld [vmem:[%s731 + $0x1f0] sm:$0xff]
        %v1968 = vld [vmem:[%s731 + $0x1f8] sm:$0xff]
        %v1969 = vld [vmem:[%s731 + $0x200] sm:$0xff]
        %v1970 = vld [vmem:[%s731 + $0x208] sm:$0xff]
        %v1971 = vld [vmem:[%s731 + $0x210] sm:$0xff]
        %v1972 = vld [vmem:[%s731 + $0x218] sm:$0xff]
        %v1973 = vld [vmem:[%s731 + $0x220] sm:$0xff]
        %v1974 = vld [vmem:[%s731 + $0x228] sm:$0xff]
        %v1975 = vld [vmem:[%s731 + $0x230] sm:$0xff]
        %v1976 = vld [vmem:[%s731 + $0x238] sm:$0xff]
        %v1977 = vld [vmem:[%s731 + $0x240] sm:$0xff]
        %v1978 = vld [vmem:[%s731 + $0x248] sm:$0xff]
        %v1979 = vld [vmem:[%s731 + $0x250] sm:$0xff]
        %v1980 = vld [vmem:[%s731 + $0x258] sm:$0xff]
        %v1981 = vld [vmem:[%s731 + $0x260] sm:$0xff]
        %v1982 = vld [vmem:[%s731 + $0x268] sm:$0xff]
        %v1983 = vld [vmem:[%s731 + $0x270] sm:$0xff]
        %v1984 = vld [vmem:[%s731 + $0x278] sm:$0xff]
        %v1985 = vld [vmem:[%s731 + $0x280] sm:$0xff]
        %v1986 = vld [vmem:[%s731 + $0x288] sm:$0xff]
        %v1987 = vld [vmem:[%s731 + $0x290] sm:$0xff]
        %v1988 = vld [vmem:[%s731 + $0x298] sm:$0xff]
        %v1989 = vld [vmem:[%s731 + $0x2a0] sm:$0xff]
        %v1990 = vld [vmem:[%s731 + $0x2a8] sm:$0xff]
        %v1991 = vld [vmem:[%s731 + $0x2b0] sm:$0xff]
        %v1992 = vld [vmem:[%s731 + $0x2b8] sm:$0xff]
        %v1993 = vld [vmem:[%s731 + $0x2c0] sm:$0xff]
        %v1994 = vld [vmem:[%s731 + $0x2c8] sm:$0xff]
        %v1995 = vld [vmem:[%s731 + $0x2d0] sm:$0xff]
        %v1996 = vld [vmem:[%s731 + $0x2d8] sm:$0xff]
        %v1997 = vld [vmem:[%s731 + $0x2e0] sm:$0xff]
        %v1998 = vld [vmem:[%s731 + $0x2e8] sm:$0xff]
        %v1999 = vld [vmem:[%s731 + $0x2f0] sm:$0xff]
        %v2000 = vld [vmem:[%s731 + $0x2f8] sm:$0xff]
        %v2001 = vld [vmem:[%s731 + $0x300] sm:$0xff]
        %v2002 = vld [vmem:[%s731 + $0x308] sm:$0xff]
        %v2003 = vld [vmem:[%s731 + $0x310] sm:$0xff]
        %v2004 = vld [vmem:[%s731 + $0x318] sm:$0xff]
        %v2005 = vld [vmem:[%s731 + $0x320] sm:$0xff]
        %v2006 = vld [vmem:[%s731 + $0x328] sm:$0xff]
        %v2007 = vld [vmem:[%s731 + $0x330] sm:$0xff]
        %v2008 = vld [vmem:[%s731 + $0x338] sm:$0xff]
        %v2009 = vld [vmem:[%s731 + $0x340] sm:$0xff]
        %v2010 = vld [vmem:[%s731 + $0x348] sm:$0xff]
        %v2011 = vld [vmem:[%s731 + $0x350] sm:$0xff]
        %v2012 = vld [vmem:[%s731 + $0x358] sm:$0xff]
        %v2013 = vld [vmem:[%s731 + $0x360] sm:$0xff]
        %v2014 = vld [vmem:[%s731 + $0x368] sm:$0xff]
        %v2015 = vld [vmem:[%s731 + $0x370] sm:$0xff]
        %v2016 = vld [vmem:[%s731 + $0x378] sm:$0xff]
        %v2017 = vld [vmem:[%s731 + $0x380] sm:$0xff]
        %v2018 = vld [vmem:[%s731 + $0x388] sm:$0xff]
        %v2019 = vld [vmem:[%s731 + $0x390] sm:$0xff]
        %v2020 = vld [vmem:[%s731 + $0x398] sm:$0xff]
        %v2021 = vld [vmem:[%s731 + $0x3a0] sm:$0xff]
        %v2022 = vld [vmem:[%s731 + $0x3a8] sm:$0xff]
        %v2023 = vld [vmem:[%s731 + $0x3b0] sm:$0xff]
        %v2024 = vld [vmem:[%s731 + $0x3b8] sm:$0xff]
        %v2025 = vld [vmem:[%s731 + $0x3c0] sm:$0xff]
        %v2026 = vld [vmem:[%s731 + $0x3c8] sm:$0xff]
        %v2027 = vld [vmem:[%s731 + $0x3d0] sm:$0xff]
        %v2028 = vld [vmem:[%s731 + $0x3d8] sm:$0xff]
        %v2029 = vld [vmem:[%s731 + $0x3e0] sm:$0xff]
        %v2030 = vld [vmem:[%s731 + $0x3e8] sm:$0xff]
        %v2031 = vld [vmem:[%s731 + $0x3f0] sm:$0xff]
        %v2032 = vld [vmem:[%s731 + $0x3f8] sm:$0xff]
        %v2033 = vld [vmem:[%s731 + $0x400] sm:$0xff]
        %v2034 = vld [vmem:[%s731 + $0x408] sm:$0xff]
        %v2035 = vld [vmem:[%s731 + $0x410] sm:$0xff]
        %v2036 = vld [vmem:[%s731 + $0x418] sm:$0xff]
        %v2037 = vld [vmem:[%s731 + $0x420] sm:$0xff]
        %v2038 = vld [vmem:[%s731 + $0x428] sm:$0xff]
        %v2039 = vld [vmem:[%s731 + $0x430] sm:$0xff]
        %v2040 = vld [vmem:[%s731 + $0x438] sm:$0xff]
        %v2041 = vld [vmem:[%s731 + $0x440] sm:$0xff]
        %v2042 = vld [vmem:[%s731 + $0x448] sm:$0xff]
        %v2043 = vld [vmem:[%s731 + $0x450] sm:$0xff]
        %v2044 = vld [vmem:[%s731 + $0x458] sm:$0xff]
        %v2045 = vld [vmem:[%s731 + $0x460] sm:$0xff]
        %v2046 = vld [vmem:[%s731 + $0x468] sm:$0xff]
        %v2047 = vld [vmem:[%s731 + $0x470] sm:$0xff]
        %v2048 = vld [vmem:[%s731 + $0x478] sm:$0xff]
        %v2049 = vld [vmem:[%s731 + $0x480] sm:$0xff]
        %v2050 = vld [vmem:[%s731 + $0x488] sm:$0xff]
        %v2051 = vld [vmem:[%s731 + $0x490] sm:$0xff]
        %v2052 = vld [vmem:[%s731 + $0x498] sm:$0xff]
        %v2053 = vld [vmem:[%s731 + $0x4a0] sm:$0xff]
        %v2054 = vld [vmem:[%s731 + $0x4a8] sm:$0xff]
        %v2055 = vld [vmem:[%s731 + $0x4b0] sm:$0xff]
        %v2056 = vld [vmem:[%s731 + $0x4b8] sm:$0xff]
        %v2057 = vld [vmem:[%s731 + $0x4c0] sm:$0xff]
        %v2058 = vld [vmem:[%s731 + $0x4c8] sm:$0xff]
        %v2059 = vld [vmem:[%s731 + $0x4d0] sm:$0xff]
        %v2060 = vld [vmem:[%s731 + $0x4d8] sm:$0xff]
        %v2061 = vld [vmem:[%s731 + $0x4e0] sm:$0xff]
        %v2062 = vld [vmem:[%s731 + $0x4e8] sm:$0xff]
        %v2063 = vld [vmem:[%s731 + $0x4f0] sm:$0xff]
        %v2064 = vld [vmem:[%s731 + $0x4f8] sm:$0xff]
        %v2065 = vld [vmem:[%s731 + $0x500] sm:$0xff]
        %v2066 = vld [vmem:[%s731 + $0x508] sm:$0xff]
        %v2067 = vld [vmem:[%s731 + $0x510] sm:$0xff]
        %v2068 = vld [vmem:[%s731 + $0x518] sm:$0xff]
        %v2069 = vld [vmem:[%s731 + $0x520] sm:$0xff]
        %v2070 = vld [vmem:[%s731 + $0x528] sm:$0xff]
        %v2071 = vld [vmem:[%s731 + $0x530] sm:$0xff]
        %v2072 = vld [vmem:[%s731 + $0x538] sm:$0xff]
        %v2073 = vld [vmem:[%s731 + $0x540] sm:$0xff]
        %v2074 = vld [vmem:[%s731 + $0x548] sm:$0xff]
        %v2075 = vld [vmem:[%s731 + $0x550] sm:$0xff]
        %v2076 = vld [vmem:[%s731 + $0x558] sm:$0xff]
        %v2077 = vld [vmem:[%s731 + $0x560] sm:$0xff]
        %v2078 = vld [vmem:[%s731 + $0x568] sm:$0xff]
        %v2079 = vld [vmem:[%s731 + $0x570] sm:$0xff]
        %v2080 = vld [vmem:[%s731 + $0x578] sm:$0xff]
        %v2081 = vld [vmem:[%s731 + $0x580] sm:$0xff]
        %v2082 = vld [vmem:[%s731 + $0x588] sm:$0xff]
        %v2083 = vld [vmem:[%s731 + $0x590] sm:$0xff]
        %v2084 = vld [vmem:[%s731 + $0x598] sm:$0xff]
        %v2085 = vld [vmem:[%s731 + $0x5a0] sm:$0xff]
        %v2086 = vld [vmem:[%s731 + $0x5a8] sm:$0xff]
        %v2087 = vld [vmem:[%s731 + $0x5b0] sm:$0xff]
        %v2088 = vld [vmem:[%s731 + $0x5b8] sm:$0xff]
        %v2089 = vld [vmem:[%s731 + $0x5c0] sm:$0xff]
        %v2090 = vld [vmem:[%s731 + $0x5c8] sm:$0xff]
        %v2091 = vld [vmem:[%s731 + $0x5d0] sm:$0xff]
        %v2092 = vld [vmem:[%s731 + $0x5d8] sm:$0xff]
        %v2093 = vld [vmem:[%s731 + $0x5e0] sm:$0xff]
        %v2094 = vld [vmem:[%s731 + $0x5e8] sm:$0xff]
        %v2095 = vld [vmem:[%s731 + $0x5f0] sm:$0xff]
        %v2096 = vld [vmem:[%s731 + $0x5f8] sm:$0xff]
        %v2097 = vld [vmem:[%s731 + $0x600] sm:$0xff]
        %v2098 = vld [vmem:[%s731 + $0x608] sm:$0xff]
        %v2099 = vld [vmem:[%s731 + $0x610] sm:$0xff]
        %v2100 = vld [vmem:[%s731 + $0x618] sm:$0xff]
        %v2101 = vld [vmem:[%s731 + $0x620] sm:$0xff]
        %v2102 = vld [vmem:[%s731 + $0x628] sm:$0xff]
        %v2103 = vld [vmem:[%s731 + $0x630] sm:$0xff]
        %v2104 = vld [vmem:[%s731 + $0x638] sm:$0xff]
        %v2105 = vld [vmem:[%s731 + $0x640] sm:$0xff]
        %v2106 = vld [vmem:[%s731 + $0x648] sm:$0xff]
        %v2107 = vld [vmem:[%s731 + $0x650] sm:$0xff]
        %v2108 = vld [vmem:[%s731 + $0x658] sm:$0xff]
        %v2109 = vld [vmem:[%s731 + $0x660] sm:$0xff]
        %v2110 = vld [vmem:[%s731 + $0x668] sm:$0xff]
        %v2111 = vld [vmem:[%s731 + $0x670] sm:$0xff]
        %v2112 = vld [vmem:[%s731 + $0x678] sm:$0xff]
        %v2113 = vld [vmem:[%s731 + $0x680] sm:$0xff]
        %v2114 = vld [vmem:[%s731 + $0x688] sm:$0xff]
        %v2115 = vld [vmem:[%s731 + $0x690] sm:$0xff]
        %v2116 = vld [vmem:[%s731 + $0x698] sm:$0xff]
        %v2117 = vld [vmem:[%s731 + $0x6a0] sm:$0xff]
        %v2118 = vld [vmem:[%s731 + $0x6a8] sm:$0xff]
        %v2119 = vld [vmem:[%s731 + $0x6b0] sm:$0xff]
        %v2120 = vld [vmem:[%s731 + $0x6b8] sm:$0xff]
        %v2121 = vld [vmem:[%s731 + $0x6c0] sm:$0xff]
        %v2122 = vld [vmem:[%s731 + $0x6c8] sm:$0xff]
        %v2123 = vld [vmem:[%s731 + $0x6d0] sm:$0xff]
        %v2124 = vld [vmem:[%s731 + $0x6d8] sm:$0xff]
        %v2125 = vld [vmem:[%s731 + $0x6e0] sm:$0xff]
        %v2126 = vld [vmem:[%s731 + $0x6e8] sm:$0xff]
        %v2127 = vld [vmem:[%s731 + $0x6f0] sm:$0xff]
        %v2128 = vld [vmem:[%s731 + $0x6f8] sm:$0xff]
        %v2129 = vld [vmem:[%s731 + $0x700] sm:$0xff]
        %v2130 = vld [vmem:[%s731 + $0x708] sm:$0xff]
        %v2131 = vld [vmem:[%s731 + $0x710] sm:$0xff]
        %v2132 = vld [vmem:[%s731 + $0x718] sm:$0xff]
        %v2133 = vld [vmem:[%s731 + $0x720] sm:$0xff]
        %v2134 = vld [vmem:[%s731 + $0x728] sm:$0xff]
        %v2135 = vld [vmem:[%s731 + $0x730] sm:$0xff]
        %v2136 = vld [vmem:[%s731 + $0x738] sm:$0xff]
        %v2137 = vld [vmem:[%s731 + $0x740] sm:$0xff]
        %v2138 = vld [vmem:[%s731 + $0x748] sm:$0xff]
        %v2139 = vld [vmem:[%s731 + $0x750] sm:$0xff]
        %v2140 = vld [vmem:[%s731 + $0x758] sm:$0xff]
        %v2141 = vld [vmem:[%s731 + $0x760] sm:$0xff]
        %v2142 = vld [vmem:[%s731 + $0x768] sm:$0xff]
        %v2143 = vld [vmem:[%s731 + $0x770] sm:$0xff]
        %v2144 = vld [vmem:[%s731 + $0x778] sm:$0xff]
        %v2145 = vld [vmem:[%s731 + $0x780] sm:$0xff]
        %v2146 = vld [vmem:[%s731 + $0x788] sm:$0xff]
        %v2147 = vld [vmem:[%s731 + $0x790] sm:$0xff]
        %v2148 = vld [vmem:[%s731 + $0x798] sm:$0xff]
        %v2149 = vld [vmem:[%s731 + $0x7a0] sm:$0xff]
        %v2150 = vld [vmem:[%s731 + $0x7a8] sm:$0xff]
        %v2151 = vld [vmem:[%s731 + $0x7b0] sm:$0xff]
        %v2152 = vld [vmem:[%s731 + $0x7b8] sm:$0xff]
        %v2153 = vld [vmem:[%s731 + $0x7c0] sm:$0xff]
        %v2154 = vld [vmem:[%s731 + $0x7c8] sm:$0xff]
        %v2155 = vld [vmem:[%s731 + $0x7d0] sm:$0xff]
        %v2156 = vld [vmem:[%s731 + $0x7d8] sm:$0xff]
        %v2157 = vld [vmem:[%s731 + $0x7e0] sm:$0xff]
        %v2158 = vld [vmem:[%s731 + $0x7e8] sm:$0xff]
        %v2159 = vld [vmem:[%s731 + $0x7f0] sm:$0xff]
        %v2160 = vld [vmem:[%s731 + $0x7f8] sm:$0xff]
        %v2161 = vpack.c.bf16 %v1378, %v1377
        %v2162 = vpack.c.bf16 %v1380, %v1379
        %v2163 = vpack.c.bf16 %v1382, %v1381
        %v2164 = vpack.c.bf16 %v1384, %v1383
        %v2165 = vpack.c.bf16 %v1386, %v1385
        %v2166 = vpack.c.bf16 %v1388, %v1387
        %v2167 = vpack.c.bf16 %v1390, %v1389
        %v2168 = vpack.c.bf16 %v1392, %v1391
        %v2169 = vpack.c.bf16 %v1394, %v1393
        %v2170 = vpack.c.bf16 %v1396, %v1395
        %v2171 = vpack.c.bf16 %v1398, %v1397
        %v2172 = vpack.c.bf16 %v1400, %v1399
        %v2173 = vpack.c.bf16 %v1402, %v1401
        %v2174 = vpack.c.bf16 %v1404, %v1403
        %v2175 = vpack.c.bf16 %v1406, %v1405
        %v2176 = vpack.c.bf16 %v1408, %v1407
        %v2177 = vpack.c.bf16 %v1410, %v1409
        %v2178 = vpack.c.bf16 %v1412, %v1411
        %v2179 = vpack.c.bf16 %v1414, %v1413
        %v2180 = vpack.c.bf16 %v1416, %v1415
        %v2181 = vpack.c.bf16 %v1418, %v1417
        %v2182 = vpack.c.bf16 %v1420, %v1419
        %v2183 = vpack.c.bf16 %v1422, %v1421
        %v2184 = vpack.c.bf16 %v1424, %v1423
        %v2185 = vpack.c.bf16 %v1426, %v1425
        %v2186 = vpack.c.bf16 %v1428, %v1427
        %v2187 = vpack.c.bf16 %v1430, %v1429
        %v2188 = vpack.c.bf16 %v1432, %v1431
        %v2189 = vpack.c.bf16 %v1434, %v1433
        %v2190 = vpack.c.bf16 %v1436, %v1435
        %v2191 = vpack.c.bf16 %v1438, %v1437
        %v2192 = vpack.c.bf16 %v1440, %v1439
        %v2193 = vpack.c.bf16 %v1442, %v1441
        %v2194 = vpack.c.bf16 %v1444, %v1443
        %v2195 = vpack.c.bf16 %v1446, %v1445
        %v2196 = vpack.c.bf16 %v1448, %v1447
        %v2197 = vpack.c.bf16 %v1450, %v1449
        %v2198 = vpack.c.bf16 %v1452, %v1451
        %v2199 = vpack.c.bf16 %v1454, %v1453
        %v2200 = vpack.c.bf16 %v1456, %v1455
        %v2201 = vpack.c.bf16 %v1458, %v1457
        %v2202 = vpack.c.bf16 %v1460, %v1459
        %v2203 = vpack.c.bf16 %v1462, %v1461
        %v2204 = vpack.c.bf16 %v1464, %v1463
        %v2205 = vpack.c.bf16 %v1466, %v1465
        %v2206 = vpack.c.bf16 %v1468, %v1467
        %v2207 = vpack.c.bf16 %v1470, %v1469
        %v2208 = vpack.c.bf16 %v1472, %v1471
        %v2209 = vpack.c.bf16 %v1474, %v1473
        %v2210 = vpack.c.bf16 %v1476, %v1475
        %v2211 = vpack.c.bf16 %v1478, %v1477
        %v2212 = vpack.c.bf16 %v1480, %v1479
        %v2213 = vpack.c.bf16 %v1482, %v1481
        %v2214 = vpack.c.bf16 %v1484, %v1483
        %v2215 = vpack.c.bf16 %v1486, %v1485
        %v2216 = vpack.c.bf16 %v1488, %v1487
        %v2217 = vpack.c.bf16 %v1490, %v1489
        %v2218 = vpack.c.bf16 %v1492, %v1491
        %v2219 = vpack.c.bf16 %v1494, %v1493
        %v2220 = vpack.c.bf16 %v1496, %v1495
        %v2221 = vpack.c.bf16 %v1498, %v1497
        %v2222 = vpack.c.bf16 %v1500, %v1499
        %v2223 = vpack.c.bf16 %v1502, %v1501
        %v2224 = vpack.c.bf16 %v1504, %v1503
        %v2225 = vpack.c.bf16 %v1506, %v1505
        %v2226 = vpack.c.bf16 %v1508, %v1507
        %v2227 = vpack.c.bf16 %v1510, %v1509
        %v2228 = vpack.c.bf16 %v1512, %v1511
        %v2229 = vpack.c.bf16 %v1514, %v1513
        %v2230 = vpack.c.bf16 %v1516, %v1515
        %v2231 = vpack.c.bf16 %v1518, %v1517
        %v2232 = vpack.c.bf16 %v1520, %v1519
        %v2233 = vpack.c.bf16 %v1522, %v1521
        %v2234 = vpack.c.bf16 %v1524, %v1523
        %v2235 = vpack.c.bf16 %v1526, %v1525
        %v2236 = vpack.c.bf16 %v1528, %v1527
        %v2237 = vpack.c.bf16 %v1530, %v1529
        %v2238 = vpack.c.bf16 %v1532, %v1531
        %v2239 = vpack.c.bf16 %v1534, %v1533
        %v2240 = vpack.c.bf16 %v1536, %v1535
        %v2241 = vpack.c.bf16 %v1538, %v1537
        %v2242 = vpack.c.bf16 %v1540, %v1539
        %v2243 = vpack.c.bf16 %v1542, %v1541
        %v2244 = vpack.c.bf16 %v1544, %v1543
        %v2245 = vpack.c.bf16 %v1546, %v1545
        %v2246 = vpack.c.bf16 %v1548, %v1547
        %v2247 = vpack.c.bf16 %v1550, %v1549
        %v2248 = vpack.c.bf16 %v1552, %v1551
        %v2249 = vpack.c.bf16 %v1554, %v1553
        %v2250 = vpack.c.bf16 %v1556, %v1555
        %v2251 = vpack.c.bf16 %v1558, %v1557
        %v2252 = vpack.c.bf16 %v1560, %v1559
        %v2253 = vpack.c.bf16 %v1562, %v1561
        %v2254 = vpack.c.bf16 %v1564, %v1563
        %v2255 = vpack.c.bf16 %v1566, %v1565
        %v2256 = vpack.c.bf16 %v1568, %v1567
        %v2257 = vpack.c.bf16 %v1570, %v1569
        %v2258 = vpack.c.bf16 %v1572, %v1571
        %v2259 = vpack.c.bf16 %v1574, %v1573
        %v2260 = vpack.c.bf16 %v1576, %v1575
        %v2261 = vpack.c.bf16 %v1578, %v1577
        %v2262 = vpack.c.bf16 %v1580, %v1579
        %v2263 = vpack.c.bf16 %v1582, %v1581
        %v2264 = vpack.c.bf16 %v1584, %v1583
        %v2265 = vpack.c.bf16 %v1586, %v1585
        %v2266 = vpack.c.bf16 %v1588, %v1587
        %v2267 = vpack.c.bf16 %v1590, %v1589
        %v2268 = vpack.c.bf16 %v1592, %v1591
        %v2269 = vpack.c.bf16 %v1594, %v1593
        %v2270 = vpack.c.bf16 %v1596, %v1595
        %v2271 = vpack.c.bf16 %v1598, %v1597
        %v2272 = vpack.c.bf16 %v1600, %v1599
        %v2273 = vpack.c.bf16 %v1602, %v1601
        %v2274 = vpack.c.bf16 %v1604, %v1603
        %v2275 = vpack.c.bf16 %v1606, %v1605
        %v2276 = vpack.c.bf16 %v1608, %v1607
        %v2277 = vpack.c.bf16 %v1610, %v1609
        %v2278 = vpack.c.bf16 %v1612, %v1611
        %v2279 = vpack.c.bf16 %v1614, %v1613
        %v2280 = vpack.c.bf16 %v1616, %v1615
        %v2281 = vpack.c.bf16 %v1618, %v1617
        %v2282 = vpack.c.bf16 %v1620, %v1619
        %v2283 = vpack.c.bf16 %v1622, %v1621
        %v2284 = vpack.c.bf16 %v1624, %v1623
        %v2285 = vpack.c.bf16 %v1626, %v1625
        %v2286 = vpack.c.bf16 %v1628, %v1627
        %v2287 = vpack.c.bf16 %v1630, %v1629
        %v2288 = vpack.c.bf16 %v1632, %v1631
        %v2289 = vpack.c.bf16 %v1634, %v1633
        %v2290 = vpack.c.bf16 %v1636, %v1635
        %v2291 = vpack.c.bf16 %v1638, %v1637
        %v2292 = vpack.c.bf16 %v1640, %v1639
        %v2293 = vpack.c.bf16 %v1642, %v1641
        %v2294 = vpack.c.bf16 %v1644, %v1643
        %v2295 = vpack.c.bf16 %v1646, %v1645
        %v2296 = vpack.c.bf16 %v1648, %v1647
        %v2297 = vpack.c.bf16 %v1650, %v1649
        %v2298 = vpack.c.bf16 %v1652, %v1651
        %v2299 = vpack.c.bf16 %v1654, %v1653
        %v2300 = vpack.c.bf16 %v1656, %v1655
        %v2301 = vpack.c.bf16 %v1658, %v1657
        %v2302 = vpack.c.bf16 %v1660, %v1659
        %v2303 = vpack.c.bf16 %v1662, %v1661
        %v2304 = vpack.c.bf16 %v1664, %v1663
        %v2305 = vpack.c.bf16 %v1666, %v1665
        %v2306 = vpack.c.bf16 %v1668, %v1667
        %v2307 = vpack.c.bf16 %v1670, %v1669
        %v2308 = vpack.c.bf16 %v1672, %v1671
        %v2309 = vpack.c.bf16 %v1674, %v1673
        %v2310 = vpack.c.bf16 %v1676, %v1675
        %v2311 = vpack.c.bf16 %v1678, %v1677
        %v2312 = vpack.c.bf16 %v1680, %v1679
        %v2313 = vpack.c.bf16 %v1682, %v1681
        %v2314 = vpack.c.bf16 %v1684, %v1683
        %v2315 = vpack.c.bf16 %v1686, %v1685
        %v2316 = vpack.c.bf16 %v1688, %v1687
        %v2317 = vpack.c.bf16 %v1690, %v1689
        %v2318 = vpack.c.bf16 %v1692, %v1691
        %v2319 = vpack.c.bf16 %v1694, %v1693
        %v2320 = vpack.c.bf16 %v1696, %v1695
        %v2321 = vpack.c.bf16 %v1698, %v1697
        %v2322 = vpack.c.bf16 %v1700, %v1699
        %v2323 = vpack.c.bf16 %v1702, %v1701
        %v2324 = vpack.c.bf16 %v1704, %v1703
        %v2325 = vpack.c.bf16 %v1706, %v1705
        %v2326 = vpack.c.bf16 %v1708, %v1707
        %v2327 = vpack.c.bf16 %v1710, %v1709
        %v2328 = vpack.c.bf16 %v1712, %v1711
        %v2329 = vpack.c.bf16 %v1714, %v1713
        %v2330 = vpack.c.bf16 %v1716, %v1715
        %v2331 = vpack.c.bf16 %v1718, %v1717
        %v2332 = vpack.c.bf16 %v1720, %v1719
        %v2333 = vpack.c.bf16 %v1722, %v1721
        %v2334 = vpack.c.bf16 %v1724, %v1723
        %v2335 = vpack.c.bf16 %v1726, %v1725
        %v2336 = vpack.c.bf16 %v1728, %v1727
        %v2337 = vpack.c.bf16 %v1730, %v1729
        %v2338 = vpack.c.bf16 %v1732, %v1731
        %v2339 = vpack.c.bf16 %v1734, %v1733
        %v2340 = vpack.c.bf16 %v1736, %v1735
        %v2341 = vpack.c.bf16 %v1738, %v1737
        %v2342 = vpack.c.bf16 %v1740, %v1739
        %v2343 = vpack.c.bf16 %v1742, %v1741
        %v2344 = vpack.c.bf16 %v1744, %v1743
        %v2345 = vpack.c.bf16 %v1746, %v1745
        %v2346 = vpack.c.bf16 %v1748, %v1747
        %v2347 = vpack.c.bf16 %v1750, %v1749
        %v2348 = vpack.c.bf16 %v1752, %v1751
        %v2349 = vpack.c.bf16 %v1754, %v1753
        %v2350 = vpack.c.bf16 %v1756, %v1755
        %v2351 = vpack.c.bf16 %v1758, %v1757
        %v2352 = vpack.c.bf16 %v1760, %v1759
        %v2353 = vpack.c.bf16 %v1762, %v1761
        %v2354 = vpack.c.bf16 %v1764, %v1763
        %v2355 = vpack.c.bf16 %v1766, %v1765
        %v2356 = vpack.c.bf16 %v1768, %v1767
        %v2357 = vpack.c.bf16 %v1770, %v1769
        %v2358 = vpack.c.bf16 %v1772, %v1771
        %v2359 = vpack.c.bf16 %v1774, %v1773
        %v2360 = vpack.c.bf16 %v1776, %v1775
        %v2361 = vpack.c.bf16 %v1778, %v1777
        %v2362 = vpack.c.bf16 %v1780, %v1779
        %v2363 = vpack.c.bf16 %v1782, %v1781
        %v2364 = vpack.c.bf16 %v1784, %v1783
        %v2365 = vpack.c.bf16 %v1786, %v1785
        %v2366 = vpack.c.bf16 %v1788, %v1787
        %v2367 = vpack.c.bf16 %v1790, %v1789
        %v2368 = vpack.c.bf16 %v1792, %v1791
        %v2369 = vpack.c.bf16 %v1794, %v1793
        %v2370 = vpack.c.bf16 %v1796, %v1795
        %v2371 = vpack.c.bf16 %v1798, %v1797
        %v2372 = vpack.c.bf16 %v1800, %v1799
        %v2373 = vpack.c.bf16 %v1802, %v1801
        %v2374 = vpack.c.bf16 %v1804, %v1803
        %v2375 = vpack.c.bf16 %v1806, %v1805
        %v2376 = vpack.c.bf16 %v1808, %v1807
        %v2377 = vpack.c.bf16 %v1810, %v1809
        %v2378 = vpack.c.bf16 %v1812, %v1811
        %v2379 = vpack.c.bf16 %v1814, %v1813
        %v2380 = vpack.c.bf16 %v1816, %v1815
        %v2381 = vpack.c.bf16 %v1818, %v1817
        %v2382 = vpack.c.bf16 %v1820, %v1819
        %v2383 = vpack.c.bf16 %v1822, %v1821
        %v2384 = vpack.c.bf16 %v1824, %v1823
        %v2385 = vpack.c.bf16 %v1826, %v1825
        %v2386 = vpack.c.bf16 %v1828, %v1827
        %v2387 = vpack.c.bf16 %v1830, %v1829
        %v2388 = vpack.c.bf16 %v1832, %v1831
        %v2389 = vpack.c.bf16 %v1834, %v1833
        %v2390 = vpack.c.bf16 %v1836, %v1835
        %v2391 = vpack.c.bf16 %v1838, %v1837
        %v2392 = vpack.c.bf16 %v1840, %v1839
        %v2393 = vpack.c.bf16 %v1842, %v1841
        %v2394 = vpack.c.bf16 %v1844, %v1843
        %v2395 = vpack.c.bf16 %v1846, %v1845
        %v2396 = vpack.c.bf16 %v1848, %v1847
        %v2397 = vpack.c.bf16 %v1850, %v1849
        %v2398 = vpack.c.bf16 %v1852, %v1851
        %v2399 = vpack.c.bf16 %v1854, %v1853
        %v2400 = vpack.c.bf16 %v1856, %v1855
        %v2401 = vpack.c.bf16 %v1858, %v1857
        %v2402 = vpack.c.bf16 %v1860, %v1859
        %v2403 = vpack.c.bf16 %v1862, %v1861
        %v2404 = vpack.c.bf16 %v1864, %v1863
        %v2405 = vpack.c.bf16 %v1866, %v1865
        %v2406 = vpack.c.bf16 %v1868, %v1867
        %v2407 = vpack.c.bf16 %v1870, %v1869
        %v2408 = vpack.c.bf16 %v1872, %v1871
        %v2409 = vpack.c.bf16 %v1874, %v1873
        %v2410 = vpack.c.bf16 %v1876, %v1875
        %v2411 = vpack.c.bf16 %v1878, %v1877
        %v2412 = vpack.c.bf16 %v1880, %v1879
        %v2413 = vpack.c.bf16 %v1882, %v1881
        %v2414 = vpack.c.bf16 %v1884, %v1883
        %v2415 = vpack.c.bf16 %v1886, %v1885
        %v2416 = vpack.c.bf16 %v1888, %v1887
        %v2673 = vunpack.c.l.b16 %v1905
        %v2674 = vunpack.c.h.b16 %v1905
        %v2675 = vunpack.c.l.b16 %v1906
        %v2676 = vunpack.c.h.b16 %v1906
        %v2677 = vunpack.c.l.b16 %v1907
        %v2678 = vunpack.c.h.b16 %v1907
        %v2679 = vunpack.c.l.b16 %v1908
        %v2680 = vunpack.c.h.b16 %v1908
        %v2681 = vunpack.c.l.b16 %v1909
        %v2682 = vunpack.c.h.b16 %v1909
        %v2683 = vunpack.c.l.b16 %v1910
        %v2684 = vunpack.c.h.b16 %v1910
        %v2685 = vunpack.c.l.b16 %v1911
        %v2686 = vunpack.c.h.b16 %v1911
        %v2687 = vunpack.c.l.b16 %v1912
        %v2688 = vunpack.c.h.b16 %v1912
        %v2689 = vunpack.c.l.b16 %v1913
        %v2690 = vunpack.c.h.b16 %v1913
        %v2691 = vunpack.c.l.b16 %v1914
        %v2692 = vunpack.c.h.b16 %v1914
        %v2693 = vunpack.c.l.b16 %v1915
        %v2694 = vunpack.c.h.b16 %v1915
        %v2695 = vunpack.c.l.b16 %v1916
        %v2696 = vunpack.c.h.b16 %v1916
        %v2697 = vunpack.c.l.b16 %v1917
        %v2698 = vunpack.c.h.b16 %v1917
        %v2699 = vunpack.c.l.b16 %v1918
        %v2700 = vunpack.c.h.b16 %v1918
        %v2701 = vunpack.c.l.b16 %v1919
        %v2702 = vunpack.c.h.b16 %v1919
        %v2703 = vunpack.c.l.b16 %v1920
        %v2704 = vunpack.c.h.b16 %v1920
        %v2705 = vunpack.c.l.b16 %v1921
        %v2706 = vunpack.c.h.b16 %v1921
        %v2707 = vunpack.c.l.b16 %v1922
        %v2708 = vunpack.c.h.b16 %v1922
        %v2709 = vunpack.c.l.b16 %v1923
        %v2710 = vunpack.c.h.b16 %v1923
        %v2711 = vunpack.c.l.b16 %v1924
        %v2712 = vunpack.c.h.b16 %v1924
        %v2713 = vunpack.c.l.b16 %v1925
        %v2714 = vunpack.c.h.b16 %v1925
        %v2715 = vunpack.c.l.b16 %v1926
        %v2716 = vunpack.c.h.b16 %v1926
        %v2717 = vunpack.c.l.b16 %v1927
        %v2718 = vunpack.c.h.b16 %v1927
        %v2719 = vunpack.c.l.b16 %v1928
        %v2720 = vunpack.c.h.b16 %v1928
        %v2721 = vunpack.c.l.b16 %v1929
        %v2722 = vunpack.c.h.b16 %v1929
        %v2723 = vunpack.c.l.b16 %v1930
        %v2724 = vunpack.c.h.b16 %v1930
        %v2725 = vunpack.c.l.b16 %v1931
        %v2726 = vunpack.c.h.b16 %v1931
        %v2727 = vunpack.c.l.b16 %v1932
        %v2728 = vunpack.c.h.b16 %v1932
        %v2729 = vunpack.c.l.b16 %v1933
        %v2730 = vunpack.c.h.b16 %v1933
        %v2731 = vunpack.c.l.b16 %v1934
        %v2732 = vunpack.c.h.b16 %v1934
        %v2733 = vunpack.c.l.b16 %v1935
        %v2734 = vunpack.c.h.b16 %v1935
        %v2735 = vunpack.c.l.b16 %v1936
        %v2736 = vunpack.c.h.b16 %v1936
        %v2737 = vunpack.c.l.b16 %v1937
        %v2738 = vunpack.c.h.b16 %v1937
        %v2739 = vunpack.c.l.b16 %v1938
        %v2740 = vunpack.c.h.b16 %v1938
        %v2741 = vunpack.c.l.b16 %v1939
        %v2742 = vunpack.c.h.b16 %v1939
        %v2743 = vunpack.c.l.b16 %v1940
        %v2744 = vunpack.c.h.b16 %v1940
        %v2745 = vunpack.c.l.b16 %v1941
        %v2746 = vunpack.c.h.b16 %v1941
        %v2747 = vunpack.c.l.b16 %v1942
        %v2748 = vunpack.c.h.b16 %v1942
        %v2749 = vunpack.c.l.b16 %v1943
        %v2750 = vunpack.c.h.b16 %v1943
        %v2751 = vunpack.c.l.b16 %v1944
        %v2752 = vunpack.c.h.b16 %v1944
        %v2753 = vunpack.c.l.b16 %v1945
        %v2754 = vunpack.c.h.b16 %v1945
        %v2755 = vunpack.c.l.b16 %v1946
        %v2756 = vunpack.c.h.b16 %v1946
        %v2757 = vunpack.c.l.b16 %v1947
        %v2758 = vunpack.c.h.b16 %v1947
        %v2759 = vunpack.c.l.b16 %v1948
        %v2760 = vunpack.c.h.b16 %v1948
        %v2761 = vunpack.c.l.b16 %v1949
        %v2762 = vunpack.c.h.b16 %v1949
        %v2763 = vunpack.c.l.b16 %v1950
        %v2764 = vunpack.c.h.b16 %v1950
        %v2765 = vunpack.c.l.b16 %v1951
        %v2766 = vunpack.c.h.b16 %v1951
        %v2767 = vunpack.c.l.b16 %v1952
        %v2768 = vunpack.c.h.b16 %v1952
        %v2769 = vunpack.c.l.b16 %v1953
        %v2770 = vunpack.c.h.b16 %v1953
        %v2771 = vunpack.c.l.b16 %v1954
        %v2772 = vunpack.c.h.b16 %v1954
        %v2773 = vunpack.c.l.b16 %v1955
        %v2774 = vunpack.c.h.b16 %v1955
        %v2775 = vunpack.c.l.b16 %v1956
        %v2776 = vunpack.c.h.b16 %v1956
        %v2777 = vunpack.c.l.b16 %v1957
        %v2778 = vunpack.c.h.b16 %v1957
        %v2779 = vunpack.c.l.b16 %v1958
        %v2780 = vunpack.c.h.b16 %v1958
        %v2781 = vunpack.c.l.b16 %v1959
        %v2782 = vunpack.c.h.b16 %v1959
        %v2783 = vunpack.c.l.b16 %v1960
        %v2784 = vunpack.c.h.b16 %v1960
        %v2785 = vunpack.c.l.b16 %v1961
        %v2786 = vunpack.c.h.b16 %v1961
        %v2787 = vunpack.c.l.b16 %v1962
        %v2788 = vunpack.c.h.b16 %v1962
        %v2789 = vunpack.c.l.b16 %v1963
        %v2790 = vunpack.c.h.b16 %v1963
        %v2791 = vunpack.c.l.b16 %v1964
        %v2792 = vunpack.c.h.b16 %v1964
        %v2793 = vunpack.c.l.b16 %v1965
        %v2794 = vunpack.c.h.b16 %v1965
        %v2795 = vunpack.c.l.b16 %v1966
        %v2796 = vunpack.c.h.b16 %v1966
        %v2797 = vunpack.c.l.b16 %v1967
        %v2798 = vunpack.c.h.b16 %v1967
        %v2799 = vunpack.c.l.b16 %v1968
        %v2800 = vunpack.c.h.b16 %v1968
        %v2801 = vunpack.c.l.b16 %v1969
        %v2802 = vunpack.c.h.b16 %v1969
        %v2803 = vunpack.c.l.b16 %v1970
        %v2804 = vunpack.c.h.b16 %v1970
        %v2805 = vunpack.c.l.b16 %v1971
        %v2806 = vunpack.c.h.b16 %v1971
        %v2807 = vunpack.c.l.b16 %v1972
        %v2808 = vunpack.c.h.b16 %v1972
        %v2809 = vunpack.c.l.b16 %v1973
        %v2810 = vunpack.c.h.b16 %v1973
        %v2811 = vunpack.c.l.b16 %v1974
        %v2812 = vunpack.c.h.b16 %v1974
        %v2813 = vunpack.c.l.b16 %v1975
        %v2814 = vunpack.c.h.b16 %v1975
        %v2815 = vunpack.c.l.b16 %v1976
        %v2816 = vunpack.c.h.b16 %v1976
        %v2817 = vunpack.c.l.b16 %v1977
        %v2818 = vunpack.c.h.b16 %v1977
        %v2819 = vunpack.c.l.b16 %v1978
        %v2820 = vunpack.c.h.b16 %v1978
        %v2821 = vunpack.c.l.b16 %v1979
        %v2822 = vunpack.c.h.b16 %v1979
        %v2823 = vunpack.c.l.b16 %v1980
        %v2824 = vunpack.c.h.b16 %v1980
        %v2825 = vunpack.c.l.b16 %v1981
        %v2826 = vunpack.c.h.b16 %v1981
        %v2827 = vunpack.c.l.b16 %v1982
        %v2828 = vunpack.c.h.b16 %v1982
        %v2829 = vunpack.c.l.b16 %v1983
        %v2830 = vunpack.c.h.b16 %v1983
        %v2831 = vunpack.c.l.b16 %v1984
        %v2832 = vunpack.c.h.b16 %v1984
        %v2833 = vunpack.c.l.b16 %v1985
        %v2834 = vunpack.c.h.b16 %v1985
        %v2835 = vunpack.c.l.b16 %v1986
        %v2836 = vunpack.c.h.b16 %v1986
        %v2837 = vunpack.c.l.b16 %v1987
        %v2838 = vunpack.c.h.b16 %v1987
        %v2839 = vunpack.c.l.b16 %v1988
        %v2840 = vunpack.c.h.b16 %v1988
        %v2841 = vunpack.c.l.b16 %v1989
        %v2842 = vunpack.c.h.b16 %v1989
        %v2843 = vunpack.c.l.b16 %v1990
        %v2844 = vunpack.c.h.b16 %v1990
        %v2845 = vunpack.c.l.b16 %v1991
        %v2846 = vunpack.c.h.b16 %v1991
        %v2847 = vunpack.c.l.b16 %v1992
        %v2848 = vunpack.c.h.b16 %v1992
        %v2849 = vunpack.c.l.b16 %v1993
        %v2850 = vunpack.c.h.b16 %v1993
        %v2851 = vunpack.c.l.b16 %v1994
        %v2852 = vunpack.c.h.b16 %v1994
        %v2853 = vunpack.c.l.b16 %v1995
        %v2854 = vunpack.c.h.b16 %v1995
        %v2855 = vunpack.c.l.b16 %v1996
        %v2856 = vunpack.c.h.b16 %v1996
        %v2857 = vunpack.c.l.b16 %v1997
        %v2858 = vunpack.c.h.b16 %v1997
        %v2859 = vunpack.c.l.b16 %v1998
        %v2860 = vunpack.c.h.b16 %v1998
        %v2861 = vunpack.c.l.b16 %v1999
        %v2862 = vunpack.c.h.b16 %v1999
        %v2863 = vunpack.c.l.b16 %v2000
        %v2864 = vunpack.c.h.b16 %v2000
        %v2865 = vunpack.c.l.b16 %v2001
        %v2866 = vunpack.c.h.b16 %v2001
        %v2867 = vunpack.c.l.b16 %v2002
        %v2868 = vunpack.c.h.b16 %v2002
        %v2869 = vunpack.c.l.b16 %v2003
        %v2870 = vunpack.c.h.b16 %v2003
        %v2871 = vunpack.c.l.b16 %v2004
        %v2872 = vunpack.c.h.b16 %v2004
        %v2873 = vunpack.c.l.b16 %v2005
        %v2874 = vunpack.c.h.b16 %v2005
        %v2875 = vunpack.c.l.b16 %v2006
        %v2876 = vunpack.c.h.b16 %v2006
        %v2877 = vunpack.c.l.b16 %v2007
        %v2878 = vunpack.c.h.b16 %v2007
        %v2879 = vunpack.c.l.b16 %v2008
        %v2880 = vunpack.c.h.b16 %v2008
        %v2881 = vunpack.c.l.b16 %v2009
        %v2882 = vunpack.c.h.b16 %v2009
        %v2883 = vunpack.c.l.b16 %v2010
        %v2884 = vunpack.c.h.b16 %v2010
        %v2885 = vunpack.c.l.b16 %v2011
        %v2886 = vunpack.c.h.b16 %v2011
        %v2887 = vunpack.c.l.b16 %v2012
        %v2888 = vunpack.c.h.b16 %v2012
        %v2889 = vunpack.c.l.b16 %v2013
        %v2890 = vunpack.c.h.b16 %v2013
        %v2891 = vunpack.c.l.b16 %v2014
        %v2892 = vunpack.c.h.b16 %v2014
        %v2893 = vunpack.c.l.b16 %v2015
        %v2894 = vunpack.c.h.b16 %v2015
        %v2895 = vunpack.c.l.b16 %v2016
        %v2896 = vunpack.c.h.b16 %v2016
        %v2897 = vunpack.c.l.b16 %v2017
        %v2898 = vunpack.c.h.b16 %v2017
        %v2899 = vunpack.c.l.b16 %v2018
        %v2900 = vunpack.c.h.b16 %v2018
        %v2901 = vunpack.c.l.b16 %v2019
        %v2902 = vunpack.c.h.b16 %v2019
        %v2903 = vunpack.c.l.b16 %v2020
        %v2904 = vunpack.c.h.b16 %v2020
        %v2905 = vunpack.c.l.b16 %v2021
        %v2906 = vunpack.c.h.b16 %v2021
        %v2907 = vunpack.c.l.b16 %v2022
        %v2908 = vunpack.c.h.b16 %v2022
        %v2909 = vunpack.c.l.b16 %v2023
        %v2910 = vunpack.c.h.b16 %v2023
        %v2911 = vunpack.c.l.b16 %v2024
        %v2912 = vunpack.c.h.b16 %v2024
        %v2913 = vunpack.c.l.b16 %v2025
        %v2914 = vunpack.c.h.b16 %v2025
        %v2915 = vunpack.c.l.b16 %v2026
        %v2916 = vunpack.c.h.b16 %v2026
        %v2917 = vunpack.c.l.b16 %v2027
        %v2918 = vunpack.c.h.b16 %v2027
        %v2919 = vunpack.c.l.b16 %v2028
        %v2920 = vunpack.c.h.b16 %v2028
        %v2921 = vunpack.c.l.b16 %v2029
        %v2922 = vunpack.c.h.b16 %v2029
        %v2923 = vunpack.c.l.b16 %v2030
        %v2924 = vunpack.c.h.b16 %v2030
        %v2925 = vunpack.c.l.b16 %v2031
        %v2926 = vunpack.c.h.b16 %v2031
        %v2927 = vunpack.c.l.b16 %v2032
        %v2928 = vunpack.c.h.b16 %v2032
        %v2929 = vunpack.c.l.b16 %v2033
        %v2930 = vunpack.c.h.b16 %v2033
        %v2931 = vunpack.c.l.b16 %v2034
        %v2932 = vunpack.c.h.b16 %v2034
        %v2933 = vunpack.c.l.b16 %v2035
        %v2934 = vunpack.c.h.b16 %v2035
        %v2935 = vunpack.c.l.b16 %v2036
        %v2936 = vunpack.c.h.b16 %v2036
        %v2937 = vunpack.c.l.b16 %v2037
        %v2938 = vunpack.c.h.b16 %v2037
        %v2939 = vunpack.c.l.b16 %v2038
        %v2940 = vunpack.c.h.b16 %v2038
        %v2941 = vunpack.c.l.b16 %v2039
        %v2942 = vunpack.c.h.b16 %v2039
        %v2943 = vunpack.c.l.b16 %v2040
        %v2944 = vunpack.c.h.b16 %v2040
        %v2945 = vunpack.c.l.b16 %v2041
        %v2946 = vunpack.c.h.b16 %v2041
        %v2947 = vunpack.c.l.b16 %v2042
        %v2948 = vunpack.c.h.b16 %v2042
        %v2949 = vunpack.c.l.b16 %v2043
        %v2950 = vunpack.c.h.b16 %v2043
        %v2951 = vunpack.c.l.b16 %v2044
        %v2952 = vunpack.c.h.b16 %v2044
        %v2953 = vunpack.c.l.b16 %v2045
        %v2954 = vunpack.c.h.b16 %v2045
        %v2955 = vunpack.c.l.b16 %v2046
        %v2956 = vunpack.c.h.b16 %v2046
        %v2957 = vunpack.c.l.b16 %v2047
        %v2958 = vunpack.c.h.b16 %v2047
        %v2959 = vunpack.c.l.b16 %v2048
        %v2960 = vunpack.c.h.b16 %v2048
        %v2961 = vunpack.c.l.b16 %v2049
        %v2962 = vunpack.c.h.b16 %v2049
        %v2963 = vunpack.c.l.b16 %v2050
        %v2964 = vunpack.c.h.b16 %v2050
        %v2965 = vunpack.c.l.b16 %v2051
        %v2966 = vunpack.c.h.b16 %v2051
        %v2967 = vunpack.c.l.b16 %v2052
        %v2968 = vunpack.c.h.b16 %v2052
        %v2969 = vunpack.c.l.b16 %v2053
        %v2970 = vunpack.c.h.b16 %v2053
        %v2971 = vunpack.c.l.b16 %v2054
        %v2972 = vunpack.c.h.b16 %v2054
        %v2973 = vunpack.c.l.b16 %v2055
        %v2974 = vunpack.c.h.b16 %v2055
        %v2975 = vunpack.c.l.b16 %v2056
        %v2976 = vunpack.c.h.b16 %v2056
        %v2977 = vunpack.c.l.b16 %v2057
        %v2978 = vunpack.c.h.b16 %v2057
        %v2979 = vunpack.c.l.b16 %v2058
        %v2980 = vunpack.c.h.b16 %v2058
        %v2981 = vunpack.c.l.b16 %v2059
        %v2982 = vunpack.c.h.b16 %v2059
        %v2983 = vunpack.c.l.b16 %v2060
        %v2984 = vunpack.c.h.b16 %v2060
        %v2985 = vunpack.c.l.b16 %v2061
        %v2986 = vunpack.c.h.b16 %v2061
        %v2987 = vunpack.c.l.b16 %v2062
        %v2988 = vunpack.c.h.b16 %v2062
        %v2989 = vunpack.c.l.b16 %v2063
        %v2990 = vunpack.c.h.b16 %v2063
        %v2991 = vunpack.c.l.b16 %v2064
        %v2992 = vunpack.c.h.b16 %v2064
        %v2993 = vunpack.c.l.b16 %v2065
        %v2994 = vunpack.c.h.b16 %v2065
        %v2995 = vunpack.c.l.b16 %v2066
        %v2996 = vunpack.c.h.b16 %v2066
        %v2997 = vunpack.c.l.b16 %v2067
        %v2998 = vunpack.c.h.b16 %v2067
        %v2999 = vunpack.c.l.b16 %v2068
        %v3000 = vunpack.c.h.b16 %v2068
        %v3001 = vunpack.c.l.b16 %v2069
        %v3002 = vunpack.c.h.b16 %v2069
        %v3003 = vunpack.c.l.b16 %v2070
        %v3004 = vunpack.c.h.b16 %v2070
        %v3005 = vunpack.c.l.b16 %v2071
        %v3006 = vunpack.c.h.b16 %v2071
        %v3007 = vunpack.c.l.b16 %v2072
        %v3008 = vunpack.c.h.b16 %v2072
        %v3009 = vunpack.c.l.b16 %v2073
        %v3010 = vunpack.c.h.b16 %v2073
        %v3011 = vunpack.c.l.b16 %v2074
        %v3012 = vunpack.c.h.b16 %v2074
        %v3013 = vunpack.c.l.b16 %v2075
        %v3014 = vunpack.c.h.b16 %v2075
        %v3015 = vunpack.c.l.b16 %v2076
        %v3016 = vunpack.c.h.b16 %v2076
        %v3017 = vunpack.c.l.b16 %v2077
        %v3018 = vunpack.c.h.b16 %v2077
        %v3019 = vunpack.c.l.b16 %v2078
        %v3020 = vunpack.c.h.b16 %v2078
        %v3021 = vunpack.c.l.b16 %v2079
        %v3022 = vunpack.c.h.b16 %v2079
        %v3023 = vunpack.c.l.b16 %v2080
        %v3024 = vunpack.c.h.b16 %v2080
        %v3025 = vunpack.c.l.b16 %v2081
        %v3026 = vunpack.c.h.b16 %v2081
        %v3027 = vunpack.c.l.b16 %v2082
        %v3028 = vunpack.c.h.b16 %v2082
        %v3029 = vunpack.c.l.b16 %v2083
        %v3030 = vunpack.c.h.b16 %v2083
        %v3031 = vunpack.c.l.b16 %v2084
        %v3032 = vunpack.c.h.b16 %v2084
        %v3033 = vunpack.c.l.b16 %v2085
        %v3034 = vunpack.c.h.b16 %v2085
        %v3035 = vunpack.c.l.b16 %v2086
        %v3036 = vunpack.c.h.b16 %v2086
        %v3037 = vunpack.c.l.b16 %v2087
        %v3038 = vunpack.c.h.b16 %v2087
        %v3039 = vunpack.c.l.b16 %v2088
        %v3040 = vunpack.c.h.b16 %v2088
        %v3041 = vunpack.c.l.b16 %v2089
        %v3042 = vunpack.c.h.b16 %v2089
        %v3043 = vunpack.c.l.b16 %v2090
        %v3044 = vunpack.c.h.b16 %v2090
        %v3045 = vunpack.c.l.b16 %v2091
        %v3046 = vunpack.c.h.b16 %v2091
        %v3047 = vunpack.c.l.b16 %v2092
        %v3048 = vunpack.c.h.b16 %v2092
        %v3049 = vunpack.c.l.b16 %v2093
        %v3050 = vunpack.c.h.b16 %v2093
        %v3051 = vunpack.c.l.b16 %v2094
        %v3052 = vunpack.c.h.b16 %v2094
        %v3053 = vunpack.c.l.b16 %v2095
        %v3054 = vunpack.c.h.b16 %v2095
        %v3055 = vunpack.c.l.b16 %v2096
        %v3056 = vunpack.c.h.b16 %v2096
        %v3057 = vunpack.c.l.b16 %v2097
        %v3058 = vunpack.c.h.b16 %v2097
        %v3059 = vunpack.c.l.b16 %v2098
        %v3060 = vunpack.c.h.b16 %v2098
        %v3061 = vunpack.c.l.b16 %v2099
        %v3062 = vunpack.c.h.b16 %v2099
        %v3063 = vunpack.c.l.b16 %v2100
        %v3064 = vunpack.c.h.b16 %v2100
        %v3065 = vunpack.c.l.b16 %v2101
        %v3066 = vunpack.c.h.b16 %v2101
        %v3067 = vunpack.c.l.b16 %v2102
        %v3068 = vunpack.c.h.b16 %v2102
        %v3069 = vunpack.c.l.b16 %v2103
        %v3070 = vunpack.c.h.b16 %v2103
        %v3071 = vunpack.c.l.b16 %v2104
        %v3072 = vunpack.c.h.b16 %v2104
        %v3073 = vunpack.c.l.b16 %v2105
        %v3074 = vunpack.c.h.b16 %v2105
        %v3075 = vunpack.c.l.b16 %v2106
        %v3076 = vunpack.c.h.b16 %v2106
        %v3077 = vunpack.c.l.b16 %v2107
        %v3078 = vunpack.c.h.b16 %v2107
        %v3079 = vunpack.c.l.b16 %v2108
        %v3080 = vunpack.c.h.b16 %v2108
        %v3081 = vunpack.c.l.b16 %v2109
        %v3082 = vunpack.c.h.b16 %v2109
        %v3083 = vunpack.c.l.b16 %v2110
        %v3084 = vunpack.c.h.b16 %v2110
        %v3085 = vunpack.c.l.b16 %v2111
        %v3086 = vunpack.c.h.b16 %v2111
        %v3087 = vunpack.c.l.b16 %v2112
        %v3088 = vunpack.c.h.b16 %v2112
        %v3089 = vunpack.c.l.b16 %v2113
        %v3090 = vunpack.c.h.b16 %v2113
        %v3091 = vunpack.c.l.b16 %v2114
        %v3092 = vunpack.c.h.b16 %v2114
        %v3093 = vunpack.c.l.b16 %v2115
        %v3094 = vunpack.c.h.b16 %v2115
        %v3095 = vunpack.c.l.b16 %v2116
        %v3096 = vunpack.c.h.b16 %v2116
        %v3097 = vunpack.c.l.b16 %v2117
        %v3098 = vunpack.c.h.b16 %v2117
        %v3099 = vunpack.c.l.b16 %v2118
        %v3100 = vunpack.c.h.b16 %v2118
        %v3101 = vunpack.c.l.b16 %v2119
        %v3102 = vunpack.c.h.b16 %v2119
        %v3103 = vunpack.c.l.b16 %v2120
        %v3104 = vunpack.c.h.b16 %v2120
        %v3105 = vunpack.c.l.b16 %v2121
        %v3106 = vunpack.c.h.b16 %v2121
        %v3107 = vunpack.c.l.b16 %v2122
        %v3108 = vunpack.c.h.b16 %v2122
        %v3109 = vunpack.c.l.b16 %v2123
        %v3110 = vunpack.c.h.b16 %v2123
        %v3111 = vunpack.c.l.b16 %v2124
        %v3112 = vunpack.c.h.b16 %v2124
        %v3113 = vunpack.c.l.b16 %v2125
        %v3114 = vunpack.c.h.b16 %v2125
        %v3115 = vunpack.c.l.b16 %v2126
        %v3116 = vunpack.c.h.b16 %v2126
        %v3117 = vunpack.c.l.b16 %v2127
        %v3118 = vunpack.c.h.b16 %v2127
        %v3119 = vunpack.c.l.b16 %v2128
        %v3120 = vunpack.c.h.b16 %v2128
        %v3121 = vunpack.c.l.b16 %v2129
        %v3122 = vunpack.c.h.b16 %v2129
        %v3123 = vunpack.c.l.b16 %v2130
        %v3124 = vunpack.c.h.b16 %v2130
        %v3125 = vunpack.c.l.b16 %v2131
        %v3126 = vunpack.c.h.b16 %v2131
        %v3127 = vunpack.c.l.b16 %v2132
        %v3128 = vunpack.c.h.b16 %v2132
        %v3129 = vunpack.c.l.b16 %v2133
        %v3130 = vunpack.c.h.b16 %v2133
        %v3131 = vunpack.c.l.b16 %v2134
        %v3132 = vunpack.c.h.b16 %v2134
        %v3133 = vunpack.c.l.b16 %v2135
        %v3134 = vunpack.c.h.b16 %v2135
        %v3135 = vunpack.c.l.b16 %v2136
        %v3136 = vunpack.c.h.b16 %v2136
        %v3137 = vunpack.c.l.b16 %v2137
        %v3138 = vunpack.c.h.b16 %v2137
        %v3139 = vunpack.c.l.b16 %v2138
        %v3140 = vunpack.c.h.b16 %v2138
        %v3141 = vunpack.c.l.b16 %v2139
        %v3142 = vunpack.c.h.b16 %v2139
        %v3143 = vunpack.c.l.b16 %v2140
        %v3144 = vunpack.c.h.b16 %v2140
        %v3145 = vunpack.c.l.b16 %v2141
        %v3146 = vunpack.c.h.b16 %v2141
        %v3147 = vunpack.c.l.b16 %v2142
        %v3148 = vunpack.c.h.b16 %v2142
        %v3149 = vunpack.c.l.b16 %v2143
        %v3150 = vunpack.c.h.b16 %v2143
        %v3151 = vunpack.c.l.b16 %v2144
        %v3152 = vunpack.c.h.b16 %v2144
        %v3153 = vunpack.c.l.b16 %v2145
        %v3154 = vunpack.c.h.b16 %v2145
        %v3155 = vunpack.c.l.b16 %v2146
        %v3156 = vunpack.c.h.b16 %v2146
        %v3157 = vunpack.c.l.b16 %v2147
        %v3158 = vunpack.c.h.b16 %v2147
        %v3159 = vunpack.c.l.b16 %v2148
        %v3160 = vunpack.c.h.b16 %v2148
        %v3161 = vunpack.c.l.b16 %v2149
        %v3162 = vunpack.c.h.b16 %v2149
        %v3163 = vunpack.c.l.b16 %v2150
        %v3164 = vunpack.c.h.b16 %v2150
        %v3165 = vunpack.c.l.b16 %v2151
        %v3166 = vunpack.c.h.b16 %v2151
        %v3167 = vunpack.c.l.b16 %v2152
        %v3168 = vunpack.c.h.b16 %v2152
        %v3169 = vunpack.c.l.b16 %v2153
        %v3170 = vunpack.c.h.b16 %v2153
        %v3171 = vunpack.c.l.b16 %v2154
        %v3172 = vunpack.c.h.b16 %v2154
        %v3173 = vunpack.c.l.b16 %v2155
        %v3174 = vunpack.c.h.b16 %v2155
        %v3175 = vunpack.c.l.b16 %v2156
        %v3176 = vunpack.c.h.b16 %v2156
        %v3177 = vunpack.c.l.b16 %v2157
        %v3178 = vunpack.c.h.b16 %v2157
        %v3179 = vunpack.c.l.b16 %v2158
        %v3180 = vunpack.c.h.b16 %v2158
        %v3181 = vunpack.c.l.b16 %v2159
        %v3182 = vunpack.c.h.b16 %v2159
        %v3183 = vunpack.c.l.b16 %v2160
        %v3184 = vunpack.c.h.b16 %v2160
        %v3185 = vpack.c.b16 %v2705, %v2673
        %v3186 = vpack.c.b16 %v2706, %v2674
        %v3187 = vpack.c.b16 %v2707, %v2675
        %v3188 = vpack.c.b16 %v2708, %v2676
        %v3189 = vpack.c.b16 %v2709, %v2677
        %v3190 = vpack.c.b16 %v2710, %v2678
        %v3191 = vpack.c.b16 %v2711, %v2679
        %v3192 = vpack.c.b16 %v2712, %v2680
        %v3193 = vpack.c.b16 %v2713, %v2681
        %v3194 = vpack.c.b16 %v2714, %v2682
        %v3195 = vpack.c.b16 %v2715, %v2683
        %v3196 = vpack.c.b16 %v2716, %v2684
        %v3197 = vpack.c.b16 %v2717, %v2685
        %v3198 = vpack.c.b16 %v2718, %v2686
        %v3199 = vpack.c.b16 %v2719, %v2687
        %v3200 = vpack.c.b16 %v2720, %v2688
        %v3201 = vpack.c.b16 %v2721, %v2689
        %v3202 = vpack.c.b16 %v2722, %v2690
        %v3203 = vpack.c.b16 %v2723, %v2691
        %v3204 = vpack.c.b16 %v2724, %v2692
        %v3205 = vpack.c.b16 %v2725, %v2693
        %v3206 = vpack.c.b16 %v2726, %v2694
        %v3207 = vpack.c.b16 %v2727, %v2695
        %v3208 = vpack.c.b16 %v2728, %v2696
        %v3209 = vpack.c.b16 %v2729, %v2697
        %v3210 = vpack.c.b16 %v2730, %v2698
        %v3211 = vpack.c.b16 %v2731, %v2699
        %v3212 = vpack.c.b16 %v2732, %v2700
        %v3213 = vpack.c.b16 %v2733, %v2701
        %v3214 = vpack.c.b16 %v2734, %v2702
        %v3215 = vpack.c.b16 %v2735, %v2703
        %v3216 = vpack.c.b16 %v2736, %v2704
        %v3217 = vpack.c.b16 %v2769, %v2737
        %v3218 = vpack.c.b16 %v2770, %v2738
        %v3219 = vpack.c.b16 %v2771, %v2739
        %v3220 = vpack.c.b16 %v2772, %v2740
        %v3221 = vpack.c.b16 %v2773, %v2741
        %v3222 = vpack.c.b16 %v2774, %v2742
        %v3223 = vpack.c.b16 %v2775, %v2743
        %v3224 = vpack.c.b16 %v2776, %v2744
        %v3225 = vpack.c.b16 %v2777, %v2745
        %v3226 = vpack.c.b16 %v2778, %v2746
        %v3227 = vpack.c.b16 %v2779, %v2747
        %v3228 = vpack.c.b16 %v2780, %v2748
        %v3229 = vpack.c.b16 %v2781, %v2749
        %v3230 = vpack.c.b16 %v2782, %v2750
        %v3231 = vpack.c.b16 %v2783, %v2751
        %v3232 = vpack.c.b16 %v2784, %v2752
        %v3233 = vpack.c.b16 %v2785, %v2753
        %v3234 = vpack.c.b16 %v2786, %v2754
        %v3235 = vpack.c.b16 %v2787, %v2755
        %v3236 = vpack.c.b16 %v2788, %v2756
        %v3237 = vpack.c.b16 %v2789, %v2757
        %v3238 = vpack.c.b16 %v2790, %v2758
        %v3239 = vpack.c.b16 %v2791, %v2759
        %v3240 = vpack.c.b16 %v2792, %v2760
        %v3241 = vpack.c.b16 %v2793, %v2761
        %v3242 = vpack.c.b16 %v2794, %v2762
        %v3243 = vpack.c.b16 %v2795, %v2763
        %v3244 = vpack.c.b16 %v2796, %v2764
        %v3245 = vpack.c.b16 %v2797, %v2765
        %v3246 = vpack.c.b16 %v2798, %v2766
        %v3247 = vpack.c.b16 %v2799, %v2767
        %v3248 = vpack.c.b16 %v2800, %v2768
        %v3249 = vpack.c.b16 %v2833, %v2801
        %v3250 = vpack.c.b16 %v2834, %v2802
        %v3251 = vpack.c.b16 %v2835, %v2803
        %v3252 = vpack.c.b16 %v2836, %v2804
        %v3253 = vpack.c.b16 %v2837, %v2805
        %v3254 = vpack.c.b16 %v2838, %v2806
        %v3255 = vpack.c.b16 %v2839, %v2807
        %v3256 = vpack.c.b16 %v2840, %v2808
        %v3257 = vpack.c.b16 %v2841, %v2809
        %v3258 = vpack.c.b16 %v2842, %v2810
        %v3259 = vpack.c.b16 %v2843, %v2811
        %v3260 = vpack.c.b16 %v2844, %v2812
        %v3261 = vpack.c.b16 %v2845, %v2813
        %v3262 = vpack.c.b16 %v2846, %v2814
        %v3263 = vpack.c.b16 %v2847, %v2815
        %v3264 = vpack.c.b16 %v2848, %v2816
        %v3265 = vpack.c.b16 %v2849, %v2817
        %v3266 = vpack.c.b16 %v2850, %v2818
        %v3267 = vpack.c.b16 %v2851, %v2819
        %v3268 = vpack.c.b16 %v2852, %v2820
        %v3269 = vpack.c.b16 %v2853, %v2821
        %v3270 = vpack.c.b16 %v2854, %v2822
        %v3271 = vpack.c.b16 %v2855, %v2823
        %v3272 = vpack.c.b16 %v2856, %v2824
        %v3273 = vpack.c.b16 %v2857, %v2825
        %v3274 = vpack.c.b16 %v2858, %v2826
        %v3275 = vpack.c.b16 %v2859, %v2827
        %v3276 = vpack.c.b16 %v2860, %v2828
        %v3277 = vpack.c.b16 %v2861, %v2829
        %v3278 = vpack.c.b16 %v2862, %v2830
        %v3279 = vpack.c.b16 %v2863, %v2831
        %v3280 = vpack.c.b16 %v2864, %v2832
        %v3281 = vpack.c.b16 %v2897, %v2865
        %v3282 = vpack.c.b16 %v2898, %v2866
        %v3283 = vpack.c.b16 %v2899, %v2867
        %v3284 = vpack.c.b16 %v2900, %v2868
        %v3285 = vpack.c.b16 %v2901, %v2869
        %v3286 = vpack.c.b16 %v2902, %v2870
        %v3287 = vpack.c.b16 %v2903, %v2871
        %v3288 = vpack.c.b16 %v2904, %v2872
        %v3289 = vpack.c.b16 %v2905, %v2873
        %v3290 = vpack.c.b16 %v2906, %v2874
        %v3291 = vpack.c.b16 %v2907, %v2875
        %v3292 = vpack.c.b16 %v2908, %v2876
        %v3293 = vpack.c.b16 %v2909, %v2877
        %v3294 = vpack.c.b16 %v2910, %v2878
        %v3295 = vpack.c.b16 %v2911, %v2879
        %v3296 = vpack.c.b16 %v2912, %v2880
        %v3297 = vpack.c.b16 %v2913, %v2881
        %v3298 = vpack.c.b16 %v2914, %v2882
        %v3299 = vpack.c.b16 %v2915, %v2883
        %v3300 = vpack.c.b16 %v2916, %v2884
        %v3301 = vpack.c.b16 %v2917, %v2885
        %v3302 = vpack.c.b16 %v2918, %v2886
        %v3303 = vpack.c.b16 %v2919, %v2887
        %v3304 = vpack.c.b16 %v2920, %v2888
        %v3305 = vpack.c.b16 %v2921, %v2889
        %v3306 = vpack.c.b16 %v2922, %v2890
        %v3307 = vpack.c.b16 %v2923, %v2891
        %v3308 = vpack.c.b16 %v2924, %v2892
        %v3309 = vpack.c.b16 %v2925, %v2893
        %v3310 = vpack.c.b16 %v2926, %v2894
        %v3311 = vpack.c.b16 %v2927, %v2895
        %v3312 = vpack.c.b16 %v2928, %v2896
        %v3313 = vpack.c.b16 %v2961, %v2929
        %v3314 = vpack.c.b16 %v2962, %v2930
        %v3315 = vpack.c.b16 %v2963, %v2931
        %v3316 = vpack.c.b16 %v2964, %v2932
        %v3317 = vpack.c.b16 %v2965, %v2933
        %v3318 = vpack.c.b16 %v2966, %v2934
        %v3319 = vpack.c.b16 %v2967, %v2935
        %v3320 = vpack.c.b16 %v2968, %v2936
        %v3321 = vpack.c.b16 %v2969, %v2937
        %v3322 = vpack.c.b16 %v2970, %v2938
        %v3323 = vpack.c.b16 %v2971, %v2939
        %v3324 = vpack.c.b16 %v2972, %v2940
        %v3325 = vpack.c.b16 %v2973, %v2941
        %v3326 = vpack.c.b16 %v2974, %v2942
        %v3327 = vpack.c.b16 %v2975, %v2943
        %v3328 = vpack.c.b16 %v2976, %v2944
        %v3329 = vpack.c.b16 %v2977, %v2945
        %v3330 = vpack.c.b16 %v2978, %v2946
        %v3331 = vpack.c.b16 %v2979, %v2947
        %v3332 = vpack.c.b16 %v2980, %v2948
        %v3333 = vpack.c.b16 %v2981, %v2949
        %v3334 = vpack.c.b16 %v2982, %v2950
        %v3335 = vpack.c.b16 %v2983, %v2951
        %v3336 = vpack.c.b16 %v2984, %v2952
        %v3337 = vpack.c.b16 %v2985, %v2953
        %v3338 = vpack.c.b16 %v2986, %v2954
        %v3339 = vpack.c.b16 %v2987, %v2955
        %v3340 = vpack.c.b16 %v2988, %v2956
        %v3341 = vpack.c.b16 %v2989, %v2957
        %v3342 = vpack.c.b16 %v2990, %v2958
        %v3343 = vpack.c.b16 %v2991, %v2959
        %v3344 = vpack.c.b16 %v2992, %v2960
        %v3345 = vpack.c.b16 %v3025, %v2993
        %v3346 = vpack.c.b16 %v3026, %v2994
        %v3347 = vpack.c.b16 %v3027, %v2995
        %v3348 = vpack.c.b16 %v3028, %v2996
        %v3349 = vpack.c.b16 %v3029, %v2997
        %v3350 = vpack.c.b16 %v3030, %v2998
        %v3351 = vpack.c.b16 %v3031, %v2999
        %v3352 = vpack.c.b16 %v3032, %v3000
        %v3353 = vpack.c.b16 %v3033, %v3001
        %v3354 = vpack.c.b16 %v3034, %v3002
        %v3355 = vpack.c.b16 %v3035, %v3003
        %v3356 = vpack.c.b16 %v3036, %v3004
        %v3357 = vpack.c.b16 %v3037, %v3005
        %v3358 = vpack.c.b16 %v3038, %v3006
        %v3359 = vpack.c.b16 %v3039, %v3007
        %v3360 = vpack.c.b16 %v3040, %v3008
        %v3361 = vpack.c.b16 %v3041, %v3009
        %v3362 = vpack.c.b16 %v3042, %v3010
        %v3363 = vpack.c.b16 %v3043, %v3011
        %v3364 = vpack.c.b16 %v3044, %v3012
        %v3365 = vpack.c.b16 %v3045, %v3013
        %v3366 = vpack.c.b16 %v3046, %v3014
        %v3367 = vpack.c.b16 %v3047, %v3015
        %v3368 = vpack.c.b16 %v3048, %v3016
        %v3369 = vpack.c.b16 %v3049, %v3017
        %v3370 = vpack.c.b16 %v3050, %v3018
        %v3371 = vpack.c.b16 %v3051, %v3019
        %v3372 = vpack.c.b16 %v3052, %v3020
        %v3373 = vpack.c.b16 %v3053, %v3021
        %v3374 = vpack.c.b16 %v3054, %v3022
        %v3375 = vpack.c.b16 %v3055, %v3023
        %v3376 = vpack.c.b16 %v3056, %v3024
        %v3377 = vpack.c.b16 %v3089, %v3057
        %v3378 = vpack.c.b16 %v3090, %v3058
        %v3379 = vpack.c.b16 %v3091, %v3059
        %v3380 = vpack.c.b16 %v3092, %v3060
        %v3381 = vpack.c.b16 %v3093, %v3061
        %v3382 = vpack.c.b16 %v3094, %v3062
        %v3383 = vpack.c.b16 %v3095, %v3063
        %v3384 = vpack.c.b16 %v3096, %v3064
        %v3385 = vpack.c.b16 %v3097, %v3065
        %v3386 = vpack.c.b16 %v3098, %v3066
        %v3387 = vpack.c.b16 %v3099, %v3067
        %v3388 = vpack.c.b16 %v3100, %v3068
        %v3389 = vpack.c.b16 %v3101, %v3069
        %v3390 = vpack.c.b16 %v3102, %v3070
        %v3391 = vpack.c.b16 %v3103, %v3071
        %v3392 = vpack.c.b16 %v3104, %v3072
        %v3393 = vpack.c.b16 %v3105, %v3073
        %v3394 = vpack.c.b16 %v3106, %v3074
        %v3395 = vpack.c.b16 %v3107, %v3075
        %v3396 = vpack.c.b16 %v3108, %v3076
        %v3397 = vpack.c.b16 %v3109, %v3077
        %v3398 = vpack.c.b16 %v3110, %v3078
        %v3399 = vpack.c.b16 %v3111, %v3079
        %v3400 = vpack.c.b16 %v3112, %v3080
        %v3401 = vpack.c.b16 %v3113, %v3081
        %v3402 = vpack.c.b16 %v3114, %v3082
        %v3403 = vpack.c.b16 %v3115, %v3083
        %v3404 = vpack.c.b16 %v3116, %v3084
        %v3405 = vpack.c.b16 %v3117, %v3085
        %v3406 = vpack.c.b16 %v3118, %v3086
        %v3407 = vpack.c.b16 %v3119, %v3087
        %v3408 = vpack.c.b16 %v3120, %v3088
        %v3409 = vpack.c.b16 %v3153, %v3121
        %v3410 = vpack.c.b16 %v3154, %v3122
        %v3411 = vpack.c.b16 %v3155, %v3123
        %v3412 = vpack.c.b16 %v3156, %v3124
        %v3413 = vpack.c.b16 %v3157, %v3125
        %v3414 = vpack.c.b16 %v3158, %v3126
        %v3415 = vpack.c.b16 %v3159, %v3127
        %v3416 = vpack.c.b16 %v3160, %v3128
        %v3417 = vpack.c.b16 %v3161, %v3129
        %v3418 = vpack.c.b16 %v3162, %v3130
        %v3419 = vpack.c.b16 %v3163, %v3131
        %v3420 = vpack.c.b16 %v3164, %v3132
        %v3421 = vpack.c.b16 %v3165, %v3133
        %v3422 = vpack.c.b16 %v3166, %v3134
        %v3423 = vpack.c.b16 %v3167, %v3135
        %v3424 = vpack.c.b16 %v3168, %v3136
        %v3425 = vpack.c.b16 %v3169, %v3137
        %v3426 = vpack.c.b16 %v3170, %v3138
        %v3427 = vpack.c.b16 %v3171, %v3139
        %v3428 = vpack.c.b16 %v3172, %v3140
        %v3429 = vpack.c.b16 %v3173, %v3141
        %v3430 = vpack.c.b16 %v3174, %v3142
        %v3431 = vpack.c.b16 %v3175, %v3143
        %v3432 = vpack.c.b16 %v3176, %v3144
        %v3433 = vpack.c.b16 %v3177, %v3145
        %v3434 = vpack.c.b16 %v3178, %v3146
        %v3435 = vpack.c.b16 %v3179, %v3147
        %v3436 = vpack.c.b16 %v3180, %v3148
        %v3437 = vpack.c.b16 %v3181, %v3149
        %v3438 = vpack.c.b16 %v3182, %v3150
        %v3439 = vpack.c.b16 %v3183, %v3151
        %v3440 = vpack.c.b16 %v3184, %v3152
        %3697 = vmatprep.subr.bf16.mxu0 0
        %3698 = vmatpush1.bf16.msra.mxu0 %v2161
        %3699 = vmatprep.subr.bf16.mxu0 0
        %3700 = vmatpush1.bf16.msra.mxu0 %v2162
        %3701 = vmatprep.subr.bf16.mxu0 0
        %3702 = vmatpush1.bf16.msra.mxu0 %v2163
        %3703 = vmatprep.subr.bf16.mxu0 0
        %3704 = vmatpush1.bf16.msra.mxu0 %v2164
        %3705 = vmatprep.subr.bf16.mxu0 0
        %3706 = vmatpush1.bf16.msra.mxu0 %v2165
        %3707 = vmatprep.subr.bf16.mxu0 0
        %3708 = vmatpush1.bf16.msra.mxu0 %v2166
        %3709 = vmatprep.subr.bf16.mxu0 0
        %3710 = vmatpush1.bf16.msra.mxu0 %v2167
        %3711 = vmatprep.subr.bf16.mxu0 0
        %3712 = vmatpush1.bf16.msra.mxu0 %v2168
        %3713 = vmatprep.subr.bf16.mxu0 0
        %3714 = vmatpush1.bf16.msra.mxu0 %v2169
        %3715 = vmatprep.subr.bf16.mxu0 0
        %3716 = vmatpush1.bf16.msra.mxu0 %v2170
        %3717 = vmatprep.subr.bf16.mxu0 0
        %3718 = vmatpush1.bf16.msra.mxu0 %v2171
        %3719 = vmatprep.subr.bf16.mxu0 0
        %3720 = vmatpush1.bf16.msra.mxu0 %v2172
        %3721 = vmatprep.subr.bf16.mxu0 0
        %3722 = vmatpush1.bf16.msra.mxu0 %v2173
        %3723 = vmatprep.subr.bf16.mxu0 0
        %3724 = vmatpush1.bf16.msra.mxu0 %v2174
        %3725 = vmatprep.subr.bf16.mxu0 0
        %3726 = vmatpush1.bf16.msra.mxu0 %v2175
        %3727 = vmatprep.subr.bf16.mxu0 0
        %3728 = vmatpush1.bf16.msra.mxu0 %v2176
        %3729 = vmatprep.mubr.bf16.mxu0 %v3186
        %3730 = vmatmul.mubr.bf16.gmra.mrb[0].mxu0 %v3185
        %v3731 = vpop.f32.mrb[0].mxu0
        %v3732 = vadd.f32 0.0, %v3731
        %v3733 = vpop.f32.mrb[0].mxu0
        %v3734 = vpop.f32.mrb[0].mxu0
        %v3735 = vadd.f32 0.0, %v3734
        %v3736 = vpop.f32.mrb[0].mxu0
        %3737 = vmatprep.mubr.bf16.mxu0 %v3218
        %3738 = vmatmul.mubr.bf16.gmra.mrb[0].mxu0 %v3217
        %v3739 = vpop.f32.mrb[0].mxu0
        %v3740 = vadd.f32 0.0, %v3739
        %v3741 = vpop.f32.mrb[0].mxu0
        %v3742 = vpop.f32.mrb[0].mxu0
        %v3743 = vadd.f32 0.0, %v3742
        %v3744 = vpop.f32.mrb[0].mxu0
        %3745 = vmatprep.mubr.bf16.mxu0 %v3250
        %3746 = vmatmul.mubr.bf16.gmra.mrb[0].mxu0 %v3249
        %v3747 = vpop.f32.mrb[0].mxu0
        %v3748 = vadd.f32 0.0, %v3747
        %v3749 = vpop.f32.mrb[0].mxu0
        %v3750 = vpop.f32.mrb[0].mxu0
        %v3751 = vadd.f32 0.0, %v3750
        %v3752 = vpop.f32.mrb[0].mxu0
        %3753 = vmatprep.mubr.bf16.mxu0 %v3282
        %3754 = vmatmul.mubr.bf16.gmra.mrb[0].mxu0 %v3281
        %v3755 = vpop.f32.mrb[0].mxu0
        %v3756 = vadd.f32 0.0, %v3755
        %v3757 = vpop.f32.mrb[0].mxu0
        %v3758 = vpop.f32.mrb[0].mxu0
        %v3759 = vadd.f32 0.0, %v3758
        %v3760 = vpop.f32.mrb[0].mxu0
        %3761 = vmatprep.mubr.bf16.mxu0 %v3314
        %3762 = vmatmul.mubr.bf16.gmra.mrb[0].mxu0 %v3313
        %v3763 = vpop.f32.mrb[0].mxu0
        %v3764 = vadd.f32 0.0, %v3763
        %v3765 = vpop.f32.mrb[0].mxu0
        %v3766 = vpop.f32.mrb[0].mxu0
        %v3767 = vadd.f32 0.0, %v3766
        %v3768 = vpop.f32.mrb[0].mxu0
        %3769 = vmatprep.mubr.bf16.mxu0 %v3346
        %3770 = vmatmul.mubr.bf16.gmra.mrb[0].mxu0 %v3345
        %v3771 = vpop.f32.mrb[0].mxu0
        %v3772 = vadd.f32 0.0, %v3771
        %v3773 = vpop.f32.mrb[0].mxu0
        %v3774 = vpop.f32.mrb[0].mxu0
        %v3775 = vadd.f32 0.0, %v3774
        %v3776 = vpop.f32.mrb[0].mxu0
        %3777 = vmatprep.mubr.bf16.mxu0 %v3378
        %3778 = vmatmul.mubr.bf16.gmra.mrb[0].mxu0 %v3377
        %v3779 = vpop.f32.mrb[0].mxu0
        %v3780 = vadd.f32 0.0, %v3779
        %v3781 = vpop.f32.mrb[0].mxu0
        %v3782 = vpop.f32.mrb[0].mxu0
        %v3783 = vadd.f32 0.0, %v3782
        %v3784 = vpop.f32.mrb[0].mxu0
        %3785 = vmatprep.mubr.bf16.mxu0 %v3410
        %3786 = vmatmul.mubr.bf16.gmra.mrb[0].mxu0 %v3409
        %v3787 = vpop.f32.mrb[0].mxu0
        %v3788 = vadd.f32 0.0, %v3787
        %v3789 = vpop.f32.mrb[0].mxu0
        %v3790 = vpop.f32.mrb[0].mxu0
        %v3791 = vadd.f32 0.0, %v3790
        %v3792 = vpop.f32.mrb[0].mxu0
        %3793 = vdwg.mxu0
        %3794 = vmatprep.subr.bf16.mxu0 0
        %3795 = vmatpush1.bf16.msra.mxu0 %v2177
        %3796 = vmatprep.subr.bf16.mxu0 0
        %3797 = vmatpush1.bf16.msra.mxu0 %v2178
        %3798 = vmatprep.subr.bf16.mxu0 0
        %3799 = vmatpush1.bf16.msra.mxu0 %v2179
        %3800 = vmatprep.subr.bf16.mxu0 0
        %3801 = vmatpush1.bf16.msra.mxu0 %v2180
        %3802 = vmatprep.subr.bf16.mxu0 0
        %3803 = vmatpush1.bf16.msra.mxu0 %v2181
        %3804 = vmatprep.subr.bf16.mxu0 0
        %3805 = vmatpush1.bf16.msra.mxu0 %v2182
        %3806 = vmatprep.subr.bf16.mxu0 0
        %3807 = vmatpush1.bf16.msra.mxu0 %v2183
        %3808 = vmatprep.subr.bf16.mxu0 0
        %3809 = vmatpush1.bf16.msra.mxu0 %v2184
        %3810 = vmatprep.subr.bf16.mxu0 0
        %3811 = vmatpush1.bf16.msra.mxu0 %v2185
        %3812 = vmatprep.subr.bf16.mxu0 0
        %3813 = vmatpush1.bf16.msra.mxu0 %v2186
        %3814 = vmatprep.subr.bf16.mxu0 0
        %3815 = vmatpush1.bf16.msra.mxu0 %v2187
        %3816 = vmatprep.subr.bf16.mxu0 0
        %3817 = vmatpush1.bf16.msra.mxu0 %v2188
        %3818 = vmatprep.subr.bf16.mxu0 0
        %3819 = vmatpush1.bf16.msra.mxu0 %v2189
        %3820 = vmatprep.subr.bf16.mxu0 0
        %3821 = vmatpush1.bf16.msra.mxu0 %v2190
        %3822 = vmatprep.subr.bf16.mxu0 0
        %3823 = vmatpush1.bf16.msra.mxu0 %v2191
        %3824 = vmatprep.subr.bf16.mxu0 0
        %3825 = vmatpush1.bf16.msra.mxu0 %v2192
        %3826 = vmatprep.mubr.bf16.mxu0 %v3188
        %3827 = vmatmul.mubr.bf16.gmra.mrb[0].mxu0 %v3187
        %v3828 = vpop.f32.mrb[0].mxu0
        %v3829 = vadd.f32 %v3732, %v3828
        %v3830 = vpop.f32.mrb[0].mxu0
        %v3831 = vpop.f32.mrb[0].mxu0
        %v3832 = vadd.f32 %v3735, %v3831
        %v3833 = vpop.f32.mrb[0].mxu0
        %3834 = vmatprep.mubr.bf16.mxu0 %v3220
        %3835 = vmatmul.mubr.bf16.gmra.mrb[0].mxu0 %v3219
        %v3836 = vpop.f32.mrb[0].mxu0
        %v3837 = vadd.f32 %v3740, %v3836
        %v3838 = vpop.f32.mrb[0].mxu0
        %v3839 = vpop.f32.mrb[0].mxu0
        %v3840 = vadd.f32 %v3743, %v3839
        %v3841 = vpop.f32.mrb[0].mxu0
        %3842 = vmatprep.mubr.bf16.mxu0 %v3252
        %3843 = vmatmul.mubr.bf16.gmra.mrb[0].mxu0 %v3251
        %v3844 = vpop.f32.mrb[0].mxu0
        %v3845 = vadd.f32 %v3748, %v3844
        %v3846 = vpop.f32.mrb[0].mxu0
        %v3847 = vpop.f32.mrb[0].mxu0
        %v3848 = vadd.f32 %v3751, %v3847
        %v3849 = vpop.f32.mrb[0].mxu0
        %3850 = vmatprep.mubr.bf16.mxu0 %v3284
        %3851 = vmatmul.mubr.bf16.gmra.mrb[0].mxu0 %v3283
        %v3852 = vpop.f32.mrb[0].mxu0
        %v3853 = vadd.f32 %v3756, %v3852
        %v3854 = vpop.f32.mrb[0].mxu0
        %v3855 = vpop.f32.mrb[0].mxu0
        %v3856 = vadd.f32 %v3759, %v3855
        %v3857 = vpop.f32.mrb[0].mxu0
        %3858 = vmatprep.mubr.bf16.mxu0 %v3316
        %3859 = vmatmul.mubr.bf16.gmra.mrb[0].mxu0 %v3315
        %v3860 = vpop.f32.mrb[0].mxu0
        %v3861 = vadd.f32 %v3764, %v3860
        %v3862 = vpop.f32.mrb[0].mxu0
        %v3863 = vpop.f32.mrb[0].mxu0
        %v3864 = vadd.f32 %v3767, %v3863
        %v3865 = vpop.f32.mrb[0].mxu0
        %3866 = vmatprep.mubr.bf16.mxu0 %v3348
        %3867 = vmatmul.mubr.bf16.gmra.mrb[0].mxu0 %v3347
        %v3868 = vpop.f32.mrb[0].mxu0
        %v3869 = vadd.f32 %v3772, %v3868
        %v3870 = vpop.f32.mrb[0].mxu0
        %v3871 = vpop.f32.mrb[0].mxu0
        %v3872 = vadd.f32 %v3775, %v3871
        %v3873 = vpop.f32.mrb[0].mxu0
        %3874 = vmatprep.mubr.bf16.mxu0 %v3380
        %3875 = vmatmul.mubr.bf16.gmra.mrb[0].mxu0 %v3379
        %v3876 = vpop.f32.mrb[0].mxu0
        %v3877 = vadd.f32 %v3780, %v3876
        %v3878 = vpop.f32.mrb[0].mxu0
        %v3879 = vpop.f32.mrb[0].mxu0
        %v3880 = vadd.f32 %v3783, %v3879
        %v3881 = vpop.f32.mrb[0].mxu0
        %3882 = vmatprep.mubr.bf16.mxu0 %v3412
        %3883 = vmatmul.mubr.bf16.gmra.mrb[0].mxu0 %v3411
        %v3884 = vpop.f32.mrb[0].mxu0
        %v3885 = vadd.f32 %v3788, %v3884
        %v3886 = vpop.f32.mrb[0].mxu0
        %v3887 = vpop.f32.mrb[0].mxu0
        %v3888 = vadd.f32 %v3791, %v3887
        %v3889 = vpop.f32.mrb[0].mxu0
        %3890 = vdwg.mxu0
        %3891 = vmatprep.subr.bf16.mxu0 0
        %3892 = vmatpush1.bf16.msra.mxu0 %v2193
        %3893 = vmatprep.subr.bf16.mxu0 0
        %3894 = vmatpush1.bf16.msra.mxu0 %v2194
        %3895 = vmatprep.subr.bf16.mxu0 0
        %3896 = vmatpush1.bf16.msra.mxu0 %v2195
        %3897 = vmatprep.subr.bf16.mxu0 0
        %3898 = vmatpush1.bf16.msra.mxu0 %v2196
        %3899 = vmatprep.subr.bf16.mxu0 0
        %3900 = vmatpush1.bf16.msra.mxu0 %v2197
        %3901 = vmatprep.subr.bf16.mxu0 0
        %3902 = vmatpush1.bf16.msra.mxu0 %v2198
        %3903 = vmatprep.subr.bf16.mxu0 0
        %3904 = vmatpush1.bf16.msra.mxu0 %v2199
        %3905 = vmatprep.subr.bf16.mxu0 0
        %3906 = vmatpush1.bf16.msra.mxu0 %v2200
        %3907 = vmatprep.subr.bf16.mxu0 0
        %3908 = vmatpush1.bf16.msra.mxu0 %v2201
        %3909 = vmatprep.subr.bf16.mxu0 0
        %3910 = vmatpush1.bf16.msra.mxu0 %v2202
        %3911 = vmatprep.subr.bf16.mxu0 0
        %3912 = vmatpush1.bf16.msra.mxu0 %v2203
        %3913 = vmatprep.subr.bf16.mxu0 0
        %3914 = vmatpush1.bf16.msra.mxu0 %v2204
        %3915 = vmatprep.subr.bf16.mxu0 0
        %3916 = vmatpush1.bf16.msra.mxu0 %v2205
        %3917 = vmatprep.subr.bf16.mxu0 0
        %3918 = vmatpush1.bf16.msra.mxu0 %v2206
        %3919 = vmatprep.subr.bf16.mxu0 0
        %3920 = vmatpush1.bf16.msra.mxu0 %v2207
        %3921 = vmatprep.subr.bf16.mxu0 0
        %3922 = vmatpush1.bf16.msra.mxu0 %v2208
        %3923 = vmatprep.mubr.bf16.mxu0 %v3190
        %3924 = vmatmul.mubr.bf16.gmra.mrb[0].mxu0 %v3189
        %v3925 = vpop.f32.mrb[0].mxu0
        %v3926 = vadd.f32 %v3829, %v3925
        %v3927 = vpop.f32.mrb[0].mxu0
        %v3928 = vpop.f32.mrb[0].mxu0
        %v3929 = vadd.f32 %v3832, %v3928
        %v3930 = vpop.f32.mrb[0].mxu0
        %3931 = vmatprep.mubr.bf16.mxu0 %v3222
        %3932 = vmatmul.mubr.bf16.gmra.mrb[0].mxu0 %v3221
        %v3933 = vpop.f32.mrb[0].mxu0
        %v3934 = vadd.f32 %v3837, %v3933
        %v3935 = vpop.f32.mrb[0].mxu0
        %v3936 = vpop.f32.mrb[0].mxu0
        %v3937 = vadd.f32 %v3840, %v3936
        %v3938 = vpop.f32.mrb[0].mxu0
        %3939 = vmatprep.mubr.bf16.mxu0 %v3254
        %3940 = vmatmul.mubr.bf16.gmra.mrb[0].mxu0 %v3253
        %v3941 = vpop.f32.mrb[0].mxu0
        %v3942 = vadd.f32 %v3845, %v3941
        %v3943 = vpop.f32.mrb[0].mxu0
        %v3944 = vpop.f32.mrb[0].mxu0
        %v3945 = vadd.f32 %v3848, %v3944
        %v3946 = vpop.f32.mrb[0].mxu0
        %3947 = vmatprep.mubr.bf16.mxu0 %v3286
        %3948 = vmatmul.mubr.bf16.gmra.mrb[0].mxu0 %v3285
        %v3949 = vpop.f32.mrb[0].mxu0
        %v3950 = vadd.f32 %v3853, %v3949
        %v3951 = vpop.f32.mrb[0].mxu0
        %v3952 = vpop.f32.mrb[0].mxu0
        %v3953 = vadd.f32 %v3856, %v3952
        %v3954 = vpop.f32.mrb[0].mxu0
        %3955 = vmatprep.mubr.bf16.mxu0 %v3318
        %3956 = vmatmul.mubr.bf16.gmra.mrb[0].mxu0 %v3317
        %v3957 = vpop.f32.mrb[0].mxu0
        %v3958 = vadd.f32 %v3861, %v3957
        %v3959 = vpop.f32.mrb[0].mxu0
        %v3960 = vpop.f32.mrb[0].mxu0
        %v3961 = vadd.f32 %v3864, %v3960
        %v3962 = vpop.f32.mrb[0].mxu0
        %3963 = vmatprep.mubr.bf16.mxu0 %v3350
        %3964 = vmatmul.mubr.bf16.gmra.mrb[0].mxu0 %v3349
        %v3965 = vpop.f32.mrb[0].mxu0
        %v3966 = vadd.f32 %v3869, %v3965
        %v3967 = vpop.f32.mrb[0].mxu0
        %v3968 = vpop.f32.mrb[0].mxu0
        %v3969 = vadd.f32 %v3872, %v3968
        %v3970 = vpop.f32.mrb[0].mxu0
        %3971 = vmatprep.mubr.bf16.mxu0 %v3382
        %3972 = vmatmul.mubr.bf16.gmra.mrb[0].mxu0 %v3381
        %v3973 = vpop.f32.mrb[0].mxu0
        %v3974 = vadd.f32 %v3877, %v3973
        %v3975 = vpop.f32.mrb[0].mxu0
        %v3976 = vpop.f32.mrb[0].mxu0
        %v3977 = vadd.f32 %v3880, %v3976
        %v3978 = vpop.f32.mrb[0].mxu0
        %3979 = vmatprep.mubr.bf16.mxu0 %v3414
        %3980 = vmatmul.mubr.bf16.gmra.mrb[0].mxu0 %v3413
        %v3981 = vpop.f32.mrb[0].mxu0
        %v3982 = vadd.f32 %v3885, %v3981
        %v3983 = vpop.f32.mrb[0].mxu0
        %v3984 = vpop.f32.mrb[0].mxu0
        %v3985 = vadd.f32 %v3888, %v3984
        %v3986 = vpop.f32.mrb[0].mxu0
        %3987 = vdwg.mxu0
        %3988 = vmatprep.subr.bf16.mxu0 0
        %3989 = vmatpush1.bf16.msra.mxu0 %v2209
        %3990 = vmatprep.subr.bf16.mxu0 0
        %3991 = vmatpush1.bf16.msra.mxu0 %v2210
        %3992 = vmatprep.subr.bf16.mxu0 0
        %3993 = vmatpush1.bf16.msra.mxu0 %v2211
        %3994 = vmatprep.subr.bf16.mxu0 0
        %3995 = vmatpush1.bf16.msra.mxu0 %v2212
        %3996 = vmatprep.subr.bf16.mxu0 0
        %3997 = vmatpush1.bf16.msra.mxu0 %v2213
        %3998 = vmatprep.subr.bf16.mxu0 0
        %3999 = vmatpush1.bf16.msra.mxu0 %v2214
        %4000 = vmatprep.subr.bf16.mxu0 0
        %4001 = vmatpush1.bf16.msra.mxu0 %v2215
        %4002 = vmatprep.subr.bf16.mxu0 0
        %4003 = vmatpush1.bf16.msra.mxu0 %v2216
        %4004 = vmatprep.subr.bf16.mxu0 0
        %4005 = vmatpush1.bf16.msra.mxu0 %v2217
        %4006 = vmatprep.subr.bf16.mxu0 0
        %4007 = vmatpush1.bf16.msra.mxu0 %v2218
        %4008 = vmatprep.subr.bf16.mxu0 0
        %4009 = vmatpush1.bf16.msra.mxu0 %v2219
        %4010 = vmatprep.subr.bf16.mxu0 0
        %4011 = vmatpush1.bf16.msra.mxu0 %v2220
        %4012 = vmatprep.subr.bf16.mxu0 0
        %4013 = vmatpush1.bf16.msra.mxu0 %v2221
        %4014 = vmatprep.subr.bf16.mxu0 0
        %4015 = vmatpush1.bf16.msra.mxu0 %v2222
        %4016 = vmatprep.subr.bf16.mxu0 0
        %4017 = vmatpush1.bf16.msra.mxu0 %v2223
        %4018 = vmatprep.subr.bf16.mxu0 0
        %4019 = vmatpush1.bf16.msra.mxu0 %v2224
        %4020 = vmatprep.mubr.bf16.mxu0 %v3192
        %4021 = vmatmul.mubr.bf16.gmra.mrb[0].mxu0 %v3191
        %v4022 = vpop.f32.mrb[0].mxu0
        %v4023 = vadd.f32 %v3926, %v4022
        %v4024 = vpop.f32.mrb[0].mxu0
        %v4025 = vpop.f32.mrb[0].mxu0
        %v4026 = vadd.f32 %v3929, %v4025
        %v4027 = vpop.f32.mrb[0].mxu0
        %4028 = vmatprep.mubr.bf16.mxu0 %v3224
        %4029 = vmatmul.mubr.bf16.gmra.mrb[0].mxu0 %v3223
        %v4030 = vpop.f32.mrb[0].mxu0
        %v4031 = vadd.f32 %v3934, %v4030
        %v4032 = vpop.f32.mrb[0].mxu0
        %v4033 = vpop.f32.mrb[0].mxu0
        %v4034 = vadd.f32 %v3937, %v4033
        %v4035 = vpop.f32.mrb[0].mxu0
        %4036 = vmatprep.mubr.bf16.mxu0 %v3256
        %4037 = vmatmul.mubr.bf16.gmra.mrb[0].mxu0 %v3255
        %v4038 = vpop.f32.mrb[0].mxu0
        %v4039 = vadd.f32 %v3942, %v4038
        %v4040 = vpop.f32.mrb[0].mxu0
        %v4041 = vpop.f32.mrb[0].mxu0
        %v4042 = vadd.f32 %v3945, %v4041
        %v4043 = vpop.f32.mrb[0].mxu0
        %4044 = vmatprep.mubr.bf16.mxu0 %v3288
        %4045 = vmatmul.mubr.bf16.gmra.mrb[0].mxu0 %v3287
        %v4046 = vpop.f32.mrb[0].mxu0
        %v4047 = vadd.f32 %v3950, %v4046
        %v4048 = vpop.f32.mrb[0].mxu0
        %v4049 = vpop.f32.mrb[0].mxu0
        %v4050 = vadd.f32 %v3953, %v4049
        %v4051 = vpop.f32.mrb[0].mxu0
        %4052 = vmatprep.mubr.bf16.mxu0 %v3320
        %4053 = vmatmul.mubr.bf16.gmra.mrb[0].mxu0 %v3319
        %v4054 = vpop.f32.mrb[0].mxu0
        %v4055 = vadd.f32 %v3958, %v4054
        %v4056 = vpop.f32.mrb[0].mxu0
        %v4057 = vpop.f32.mrb[0].mxu0
        %v4058 = vadd.f32 %v3961, %v4057
        %v4059 = vpop.f32.mrb[0].mxu0
        %4060 = vmatprep.mubr.bf16.mxu0 %v3352
        %4061 = vmatmul.mubr.bf16.gmra.mrb[0].mxu0 %v3351
        %v4062 = vpop.f32.mrb[0].mxu0
        %v4063 = vadd.f32 %v3966, %v4062
        %v4064 = vpop.f32.mrb[0].mxu0
        %v4065 = vpop.f32.mrb[0].mxu0
        %v4066 = vadd.f32 %v3969, %v4065
        %v4067 = vpop.f32.mrb[0].mxu0
        %4068 = vmatprep.mubr.bf16.mxu0 %v3384
        %4069 = vmatmul.mubr.bf16.gmra.mrb[0].mxu0 %v3383
        %v4070 = vpop.f32.mrb[0].mxu0
        %v4071 = vadd.f32 %v3974, %v4070
        %v4072 = vpop.f32.mrb[0].mxu0
        %v4073 = vpop.f32.mrb[0].mxu0
        %v4074 = vadd.f32 %v3977, %v4073
        %v4075 = vpop.f32.mrb[0].mxu0
        %4076 = vmatprep.mubr.bf16.mxu0 %v3416
        %4077 = vmatmul.mubr.bf16.gmra.mrb[0].mxu0 %v3415
        %v4078 = vpop.f32.mrb[0].mxu0
        %v4079 = vadd.f32 %v3982, %v4078
        %v4080 = vpop.f32.mrb[0].mxu0
        %v4081 = vpop.f32.mrb[0].mxu0
        %v4082 = vadd.f32 %v3985, %v4081
        %v4083 = vpop.f32.mrb[0].mxu0
        %4084 = vdwg.mxu0
        %4085 = vmatprep.subr.bf16.mxu0 0
        %4086 = vmatpush1.bf16.msra.mxu0 %v2225
        %4087 = vmatprep.subr.bf16.mxu0 0
        %4088 = vmatpush1.bf16.msra.mxu0 %v2226
        %4089 = vmatprep.subr.bf16.mxu0 0
        %4090 = vmatpush1.bf16.msra.mxu0 %v2227
        %4091 = vmatprep.subr.bf16.mxu0 0
        %4092 = vmatpush1.bf16.msra.mxu0 %v2228
        %4093 = vmatprep.subr.bf16.mxu0 0
        %4094 = vmatpush1.bf16.msra.mxu0 %v2229
        %4095 = vmatprep.subr.bf16.mxu0 0
        %4096 = vmatpush1.bf16.msra.mxu0 %v2230
        %4097 = vmatprep.subr.bf16.mxu0 0
        %4098 = vmatpush1.bf16.msra.mxu0 %v2231
        %4099 = vmatprep.subr.bf16.mxu0 0
        %4100 = vmatpush1.bf16.msra.mxu0 %v2232
        %4101 = vmatprep.subr.bf16.mxu0 0
        %4102 = vmatpush1.bf16.msra.mxu0 %v2233
        %4103 = vmatprep.subr.bf16.mxu0 0
        %4104 = vmatpush1.bf16.msra.mxu0 %v2234
        %4105 = vmatprep.subr.bf16.mxu0 0
        %4106 = vmatpush1.bf16.msra.mxu0 %v2235
        %4107 = vmatprep.subr.bf16.mxu0 0
        %4108 = vmatpush1.bf16.msra.mxu0 %v2236
        %4109 = vmatprep.subr.bf16.mxu0 0
        %4110 = vmatpush1.bf16.msra.mxu0 %v2237
        %4111 = vmatprep.subr.bf16.mxu0 0
        %4112 = vmatpush1.bf16.msra.mxu0 %v2238
        %4113 = vmatprep.subr.bf16.mxu0 0
        %4114 = vmatpush1.bf16.msra.mxu0 %v2239
        %4115 = vmatprep.subr.bf16.mxu0 0
        %4116 = vmatpush1.bf16.msra.mxu0 %v2240
        %4117 = vmatprep.mubr.bf16.mxu0 %v3194
        %4118 = vmatmul.mubr.bf16.gmra.mrb[0].mxu0 %v3193
        %v4119 = vpop.f32.mrb[0].mxu0
        %v4120 = vadd.f32 %v4023, %v4119
        %v4121 = vpop.f32.mrb[0].mxu0
        %v4122 = vpop.f32.mrb[0].mxu0
        %v4123 = vadd.f32 %v4026, %v4122
        %v4124 = vpop.f32.mrb[0].mxu0
        %4125 = vmatprep.mubr.bf16.mxu0 %v3226
        %4126 = vmatmul.mubr.bf16.gmra.mrb[0].mxu0 %v3225
        %v4127 = vpop.f32.mrb[0].mxu0
        %v4128 = vadd.f32 %v4031, %v4127
        %v4129 = vpop.f32.mrb[0].mxu0
        %v4130 = vpop.f32.mrb[0].mxu0
        %v4131 = vadd.f32 %v4034, %v4130
        %v4132 = vpop.f32.mrb[0].mxu0
        %4133 = vmatprep.mubr.bf16.mxu0 %v3258
        %4134 = vmatmul.mubr.bf16.gmra.mrb[0].mxu0 %v3257
        %v4135 = vpop.f32.mrb[0].mxu0
        %v4136 = vadd.f32 %v4039, %v4135
        %v4137 = vpop.f32.mrb[0].mxu0
        %v4138 = vpop.f32.mrb[0].mxu0
        %v4139 = vadd.f32 %v4042, %v4138
        %v4140 = vpop.f32.mrb[0].mxu0
        %4141 = vmatprep.mubr.bf16.mxu0 %v3290
        %4142 = vmatmul.mubr.bf16.gmra.mrb[0].mxu0 %v3289
        %v4143 = vpop.f32.mrb[0].mxu0
        %v4144 = vadd.f32 %v4047, %v4143
        %v4145 = vpop.f32.mrb[0].mxu0
        %v4146 = vpop.f32.mrb[0].mxu0
        %v4147 = vadd.f32 %v4050, %v4146
        %v4148 = vpop.f32.mrb[0].mxu0
        %4149 = vmatprep.mubr.bf16.mxu0 %v3322
        %4150 = vmatmul.mubr.bf16.gmra.mrb[0].mxu0 %v3321
        %v4151 = vpop.f32.mrb[0].mxu0
        %v4152 = vadd.f32 %v4055, %v4151
        %v4153 = vpop.f32.mrb[0].mxu0
        %v4154 = vpop.f32.mrb[0].mxu0
        %v4155 = vadd.f32 %v4058, %v4154
        %v4156 = vpop.f32.mrb[0].mxu0
        %4157 = vmatprep.mubr.bf16.mxu0 %v3354
        %4158 = vmatmul.mubr.bf16.gmra.mrb[0].mxu0 %v3353
        %v4159 = vpop.f32.mrb[0].mxu0
        %v4160 = vadd.f32 %v4063, %v4159
        %v4161 = vpop.f32.mrb[0].mxu0
        %v4162 = vpop.f32.mrb[0].mxu0
        %v4163 = vadd.f32 %v4066, %v4162
        %v4164 = vpop.f32.mrb[0].mxu0
        %4165 = vmatprep.mubr.bf16.mxu0 %v3386
        %4166 = vmatmul.mubr.bf16.gmra.mrb[0].mxu0 %v3385
        %v4167 = vpop.f32.mrb[0].mxu0
        %v4168 = vadd.f32 %v4071, %v4167
        %v4169 = vpop.f32.mrb[0].mxu0
        %v4170 = vpop.f32.mrb[0].mxu0
        %v4171 = vadd.f32 %v4074, %v4170
        %v4172 = vpop.f32.mrb[0].mxu0
        %4173 = vmatprep.mubr.bf16.mxu0 %v3418
        %4174 = vmatmul.mubr.bf16.gmra.mrb[0].mxu0 %v3417
        %v4175 = vpop.f32.mrb[0].mxu0
        %v4176 = vadd.f32 %v4079, %v4175
        %v4177 = vpop.f32.mrb[0].mxu0
        %v4178 = vpop.f32.mrb[0].mxu0
        %v4179 = vadd.f32 %v4082, %v4178
        %v4180 = vpop.f32.mrb[0].mxu0
        %4181 = vdwg.mxu0
        %4182 = vmatprep.subr.bf16.mxu0 0
        %4183 = vmatpush1.bf16.msra.mxu0 %v2241
        %4184 = vmatprep.subr.bf16.mxu0 0
        %4185 = vmatpush1.bf16.msra.mxu0 %v2242
        %4186 = vmatprep.subr.bf16.mxu0 0
        %4187 = vmatpush1.bf16.msra.mxu0 %v2243
        %4188 = vmatprep.subr.bf16.mxu0 0
        %4189 = vmatpush1.bf16.msra.mxu0 %v2244
        %4190 = vmatprep.subr.bf16.mxu0 0
        %4191 = vmatpush1.bf16.msra.mxu0 %v2245
        %4192 = vmatprep.subr.bf16.mxu0 0
        %4193 = vmatpush1.bf16.msra.mxu0 %v2246
        %4194 = vmatprep.subr.bf16.mxu0 0
        %4195 = vmatpush1.bf16.msra.mxu0 %v2247
        %4196 = vmatprep.subr.bf16.mxu0 0
        %4197 = vmatpush1.bf16.msra.mxu0 %v2248
        %4198 = vmatprep.subr.bf16.mxu0 0
        %4199 = vmatpush1.bf16.msra.mxu0 %v2249
        %4200 = vmatprep.subr.bf16.mxu0 0
        %4201 = vmatpush1.bf16.msra.mxu0 %v2250
        %4202 = vmatprep.subr.bf16.mxu0 0
        %4203 = vmatpush1.bf16.msra.mxu0 %v2251
        %4204 = vmatprep.subr.bf16.mxu0 0
        %4205 = vmatpush1.bf16.msra.mxu0 %v2252
        %4206 = vmatprep.subr.bf16.mxu0 0
        %4207 = vmatpush1.bf16.msra.mxu0 %v2253
        %4208 = vmatprep.subr.bf16.mxu0 0
        %4209 = vmatpush1.bf16.msra.mxu0 %v2254
        %4210 = vmatprep.subr.bf16.mxu0 0
        %4211 = vmatpush1.bf16.msra.mxu0 %v2255
        %4212 = vmatprep.subr.bf16.mxu0 0
        %4213 = vmatpush1.bf16.msra.mxu0 %v2256
        %4214 = vmatprep.mubr.bf16.mxu0 %v3196
        %4215 = vmatmul.mubr.bf16.gmra.mrb[0].mxu0 %v3195
        %v4216 = vpop.f32.mrb[0].mxu0
        %v4217 = vadd.f32 %v4120, %v4216
        %v4218 = vpop.f32.mrb[0].mxu0
        %v4219 = vpop.f32.mrb[0].mxu0
        %v4220 = vadd.f32 %v4123, %v4219
        %v4221 = vpop.f32.mrb[0].mxu0
        %4222 = vmatprep.mubr.bf16.mxu0 %v3228
        %4223 = vmatmul.mubr.bf16.gmra.mrb[0].mxu0 %v3227
        %v4224 = vpop.f32.mrb[0].mxu0
        %v4225 = vadd.f32 %v4128, %v4224
        %v4226 = vpop.f32.mrb[0].mxu0
        %v4227 = vpop.f32.mrb[0].mxu0
        %v4228 = vadd.f32 %v4131, %v4227
        %v4229 = vpop.f32.mrb[0].mxu0
        %4230 = vmatprep.mubr.bf16.mxu0 %v3260
        %4231 = vmatmul.mubr.bf16.gmra.mrb[0].mxu0 %v3259
        %v4232 = vpop.f32.mrb[0].mxu0
        %v4233 = vadd.f32 %v4136, %v4232
        %v4234 = vpop.f32.mrb[0].mxu0
        %v4235 = vpop.f32.mrb[0].mxu0
        %v4236 = vadd.f32 %v4139, %v4235
        %v4237 = vpop.f32.mrb[0].mxu0
        %4238 = vmatprep.mubr.bf16.mxu0 %v3292
        %4239 = vmatmul.mubr.bf16.gmra.mrb[0].mxu0 %v3291
        %v4240 = vpop.f32.mrb[0].mxu0
        %v4241 = vadd.f32 %v4144, %v4240
        %v4242 = vpop.f32.mrb[0].mxu0
        %v4243 = vpop.f32.mrb[0].mxu0
        %v4244 = vadd.f32 %v4147, %v4243
        %v4245 = vpop.f32.mrb[0].mxu0
        %4246 = vmatprep.mubr.bf16.mxu0 %v3324
        %4247 = vmatmul.mubr.bf16.gmra.mrb[0].mxu0 %v3323
        %v4248 = vpop.f32.mrb[0].mxu0
        %v4249 = vadd.f32 %v4152, %v4248
        %v4250 = vpop.f32.mrb[0].mxu0
        %v4251 = vpop.f32.mrb[0].mxu0
        %v4252 = vadd.f32 %v4155, %v4251
        %v4253 = vpop.f32.mrb[0].mxu0
        %4254 = vmatprep.mubr.bf16.mxu0 %v3356
        %4255 = vmatmul.mubr.bf16.gmra.mrb[0].mxu0 %v3355
        %v4256 = vpop.f32.mrb[0].mxu0
        %v4257 = vadd.f32 %v4160, %v4256
        %v4258 = vpop.f32.mrb[0].mxu0
        %v4259 = vpop.f32.mrb[0].mxu0
        %v4260 = vadd.f32 %v4163, %v4259
        %v4261 = vpop.f32.mrb[0].mxu0
        %4262 = vmatprep.mubr.bf16.mxu0 %v3388
        %4263 = vmatmul.mubr.bf16.gmra.mrb[0].mxu0 %v3387
        %v4264 = vpop.f32.mrb[0].mxu0
        %v4265 = vadd.f32 %v4168, %v4264
        %v4266 = vpop.f32.mrb[0].mxu0
        %v4267 = vpop.f32.mrb[0].mxu0
        %v4268 = vadd.f32 %v4171, %v4267
        %v4269 = vpop.f32.mrb[0].mxu0
        %4270 = vmatprep.mubr.bf16.mxu0 %v3420
        %4271 = vmatmul.mubr.bf16.gmra.mrb[0].mxu0 %v3419
        %v4272 = vpop.f32.mrb[0].mxu0
        %v4273 = vadd.f32 %v4176, %v4272
        %v4274 = vpop.f32.mrb[0].mxu0
        %v4275 = vpop.f32.mrb[0].mxu0
        %v4276 = vadd.f32 %v4179, %v4275
        %v4277 = vpop.f32.mrb[0].mxu0
        %4278 = vdwg.mxu0
        %4279 = vmatprep.subr.bf16.mxu0 0
        %4280 = vmatpush1.bf16.msra.mxu0 %v2257
        %4281 = vmatprep.subr.bf16.mxu0 0
        %4282 = vmatpush1.bf16.msra.mxu0 %v2258
        %4283 = vmatprep.subr.bf16.mxu0 0
        %4284 = vmatpush1.bf16.msra.mxu0 %v2259
        %4285 = vmatprep.subr.bf16.mxu0 0
        %4286 = vmatpush1.bf16.msra.mxu0 %v2260
        %4287 = vmatprep.subr.bf16.mxu0 0
        %4288 = vmatpush1.bf16.msra.mxu0 %v2261
        %4289 = vmatprep.subr.bf16.mxu0 0
        %4290 = vmatpush1.bf16.msra.mxu0 %v2262
        %4291 = vmatprep.subr.bf16.mxu0 0
        %4292 = vmatpush1.bf16.msra.mxu0 %v2263
        %4293 = vmatprep.subr.bf16.mxu0 0
        %4294 = vmatpush1.bf16.msra.mxu0 %v2264
        %4295 = vmatprep.subr.bf16.mxu0 0
        %4296 = vmatpush1.bf16.msra.mxu0 %v2265
        %4297 = vmatprep.subr.bf16.mxu0 0
        %4298 = vmatpush1.bf16.msra.mxu0 %v2266
        %4299 = vmatprep.subr.bf16.mxu0 0
        %4300 = vmatpush1.bf16.msra.mxu0 %v2267
        %4301 = vmatprep.subr.bf16.mxu0 0
        %4302 = vmatpush1.bf16.msra.mxu0 %v2268
        %4303 = vmatprep.subr.bf16.mxu0 0
        %4304 = vmatpush1.bf16.msra.mxu0 %v2269
        %4305 = vmatprep.subr.bf16.mxu0 0
        %4306 = vmatpush1.bf16.msra.mxu0 %v2270
        %4307 = vmatprep.subr.bf16.mxu0 0
        %4308 = vmatpush1.bf16.msra.mxu0 %v2271
        %4309 = vmatprep.subr.bf16.mxu0 0
        %4310 = vmatpush1.bf16.msra.mxu0 %v2272
        %4311 = vmatprep.mubr.bf16.mxu0 %v3198
        %4312 = vmatmul.mubr.bf16.gmra.mrb[0].mxu0 %v3197
        %v4313 = vpop.f32.mrb[0].mxu0
        %v4314 = vadd.f32 %v4217, %v4313
        %v4315 = vpop.f32.mrb[0].mxu0
        %v4316 = vpop.f32.mrb[0].mxu0
        %v4317 = vadd.f32 %v4220, %v4316
        %v4318 = vpop.f32.mrb[0].mxu0
        %4319 = vmatprep.mubr.bf16.mxu0 %v3230
        %4320 = vmatmul.mubr.bf16.gmra.mrb[0].mxu0 %v3229
        %v4321 = vpop.f32.mrb[0].mxu0
        %v4322 = vadd.f32 %v4225, %v4321
        %v4323 = vpop.f32.mrb[0].mxu0
        %v4324 = vpop.f32.mrb[0].mxu0
        %v4325 = vadd.f32 %v4228, %v4324
        %v4326 = vpop.f32.mrb[0].mxu0
        %4327 = vmatprep.mubr.bf16.mxu0 %v3262
        %4328 = vmatmul.mubr.bf16.gmra.mrb[0].mxu0 %v3261
        %v4329 = vpop.f32.mrb[0].mxu0
        %v4330 = vadd.f32 %v4233, %v4329
        %v4331 = vpop.f32.mrb[0].mxu0
        %v4332 = vpop.f32.mrb[0].mxu0
        %v4333 = vadd.f32 %v4236, %v4332
        %v4334 = vpop.f32.mrb[0].mxu0
        %4335 = vmatprep.mubr.bf16.mxu0 %v3294
        %4336 = vmatmul.mubr.bf16.gmra.mrb[0].mxu0 %v3293
        %v4337 = vpop.f32.mrb[0].mxu0
        %v4338 = vadd.f32 %v4241, %v4337
        %v4339 = vpop.f32.mrb[0].mxu0
        %v4340 = vpop.f32.mrb[0].mxu0
        %v4341 = vadd.f32 %v4244, %v4340
        %v4342 = vpop.f32.mrb[0].mxu0
        %4343 = vmatprep.mubr.bf16.mxu0 %v3326
        %4344 = vmatmul.mubr.bf16.gmra.mrb[0].mxu0 %v3325
        %v4345 = vpop.f32.mrb[0].mxu0
        %v4346 = vadd.f32 %v4249, %v4345
        %v4347 = vpop.f32.mrb[0].mxu0
        %v4348 = vpop.f32.mrb[0].mxu0
        %v4349 = vadd.f32 %v4252, %v4348
        %v4350 = vpop.f32.mrb[0].mxu0
        %4351 = vmatprep.mubr.bf16.mxu0 %v3358
        %4352 = vmatmul.mubr.bf16.gmra.mrb[0].mxu0 %v3357
        %v4353 = vpop.f32.mrb[0].mxu0
        %v4354 = vadd.f32 %v4257, %v4353
        %v4355 = vpop.f32.mrb[0].mxu0
        %v4356 = vpop.f32.mrb[0].mxu0
        %v4357 = vadd.f32 %v4260, %v4356
        %v4358 = vpop.f32.mrb[0].mxu0
        %4359 = vmatprep.mubr.bf16.mxu0 %v3390
        %4360 = vmatmul.mubr.bf16.gmra.mrb[0].mxu0 %v3389
        %v4361 = vpop.f32.mrb[0].mxu0
        %v4362 = vadd.f32 %v4265, %v4361
        %v4363 = vpop.f32.mrb[0].mxu0
        %v4364 = vpop.f32.mrb[0].mxu0
        %v4365 = vadd.f32 %v4268, %v4364
        %v4366 = vpop.f32.mrb[0].mxu0
        %4367 = vmatprep.mubr.bf16.mxu0 %v3422
        %4368 = vmatmul.mubr.bf16.gmra.mrb[0].mxu0 %v3421
        %v4369 = vpop.f32.mrb[0].mxu0
        %v4370 = vadd.f32 %v4273, %v4369
        %v4371 = vpop.f32.mrb[0].mxu0
        %v4372 = vpop.f32.mrb[0].mxu0
        %v4373 = vadd.f32 %v4276, %v4372
        %v4374 = vpop.f32.mrb[0].mxu0
        %4375 = vdwg.mxu0
        %4376 = vmatprep.subr.bf16.mxu0 0
        %4377 = vmatpush1.bf16.msra.mxu0 %v2273
        %4378 = vmatprep.subr.bf16.mxu0 0
        %4379 = vmatpush1.bf16.msra.mxu0 %v2274
        %4380 = vmatprep.subr.bf16.mxu0 0
        %4381 = vmatpush1.bf16.msra.mxu0 %v2275
        %4382 = vmatprep.subr.bf16.mxu0 0
        %4383 = vmatpush1.bf16.msra.mxu0 %v2276
        %4384 = vmatprep.subr.bf16.mxu0 0
        %4385 = vmatpush1.bf16.msra.mxu0 %v2277
        %4386 = vmatprep.subr.bf16.mxu0 0
        %4387 = vmatpush1.bf16.msra.mxu0 %v2278
        %4388 = vmatprep.subr.bf16.mxu0 0
        %4389 = vmatpush1.bf16.msra.mxu0 %v2279
        %4390 = vmatprep.subr.bf16.mxu0 0
        %4391 = vmatpush1.bf16.msra.mxu0 %v2280
        %4392 = vmatprep.subr.bf16.mxu0 0
        %4393 = vmatpush1.bf16.msra.mxu0 %v2281
        %4394 = vmatprep.subr.bf16.mxu0 0
        %4395 = vmatpush1.bf16.msra.mxu0 %v2282
        %4396 = vmatprep.subr.bf16.mxu0 0
        %4397 = vmatpush1.bf16.msra.mxu0 %v2283
        %4398 = vmatprep.subr.bf16.mxu0 0
        %4399 = vmatpush1.bf16.msra.mxu0 %v2284
        %4400 = vmatprep.subr.bf16.mxu0 0
        %4401 = vmatpush1.bf16.msra.mxu0 %v2285
        %4402 = vmatprep.subr.bf16.mxu0 0
        %4403 = vmatpush1.bf16.msra.mxu0 %v2286
        %4404 = vmatprep.subr.bf16.mxu0 0
        %4405 = vmatpush1.bf16.msra.mxu0 %v2287
        %4406 = vmatprep.subr.bf16.mxu0 0
        %4407 = vmatpush1.bf16.msra.mxu0 %v2288
        %4408 = vmatprep.mubr.bf16.mxu0 %v3200
        %4409 = vmatmul.mubr.bf16.gmra.mrb[0].mxu0 %v3199
        %v4410 = vpop.f32.mrb[0].mxu0
        %v4411 = vadd.f32 %v4314, %v4410
        %v4412 = vpop.f32.mrb[0].mxu0
        %v4413 = vpop.f32.mrb[0].mxu0
        %v4414 = vadd.f32 %v4317, %v4413
        %v4415 = vpop.f32.mrb[0].mxu0
        %4416 = vmatprep.mubr.bf16.mxu0 %v3232
        %4417 = vmatmul.mubr.bf16.gmra.mrb[0].mxu0 %v3231
        %v4418 = vpop.f32.mrb[0].mxu0
        %v4419 = vadd.f32 %v4322, %v4418
        %v4420 = vpop.f32.mrb[0].mxu0
        %v4421 = vpop.f32.mrb[0].mxu0
        %v4422 = vadd.f32 %v4325, %v4421
        %v4423 = vpop.f32.mrb[0].mxu0
        %4424 = vmatprep.mubr.bf16.mxu0 %v3264
        %4425 = vmatmul.mubr.bf16.gmra.mrb[0].mxu0 %v3263
        %v4426 = vpop.f32.mrb[0].mxu0
        %v4427 = vadd.f32 %v4330, %v4426
        %v4428 = vpop.f32.mrb[0].mxu0
        %v4429 = vpop.f32.mrb[0].mxu0
        %v4430 = vadd.f32 %v4333, %v4429
        %v4431 = vpop.f32.mrb[0].mxu0
        %4432 = vmatprep.mubr.bf16.mxu0 %v3296
        %4433 = vmatmul.mubr.bf16.gmra.mrb[0].mxu0 %v3295
        %v4434 = vpop.f32.mrb[0].mxu0
        %v4435 = vadd.f32 %v4338, %v4434
        %v4436 = vpop.f32.mrb[0].mxu0
        %v4437 = vpop.f32.mrb[0].mxu0
        %v4438 = vadd.f32 %v4341, %v4437
        %v4439 = vpop.f32.mrb[0].mxu0
        %4440 = vmatprep.mubr.bf16.mxu0 %v3328
        %4441 = vmatmul.mubr.bf16.gmra.mrb[0].mxu0 %v3327
        %v4442 = vpop.f32.mrb[0].mxu0
        %v4443 = vadd.f32 %v4346, %v4442
        %v4444 = vpop.f32.mrb[0].mxu0
        %v4445 = vpop.f32.mrb[0].mxu0
        %v4446 = vadd.f32 %v4349, %v4445
        %v4447 = vpop.f32.mrb[0].mxu0
        %4448 = vmatprep.mubr.bf16.mxu0 %v3360
        %4449 = vmatmul.mubr.bf16.gmra.mrb[0].mxu0 %v3359
        %v4450 = vpop.f32.mrb[0].mxu0
        %v4451 = vadd.f32 %v4354, %v4450
        %v4452 = vpop.f32.mrb[0].mxu0
        %v4453 = vpop.f32.mrb[0].mxu0
        %v4454 = vadd.f32 %v4357, %v4453
        %v4455 = vpop.f32.mrb[0].mxu0
        %4456 = vmatprep.mubr.bf16.mxu0 %v3392
        %4457 = vmatmul.mubr.bf16.gmra.mrb[0].mxu0 %v3391
        %v4458 = vpop.f32.mrb[0].mxu0
        %v4459 = vadd.f32 %v4362, %v4458
        %v4460 = vpop.f32.mrb[0].mxu0
        %v4461 = vpop.f32.mrb[0].mxu0
        %v4462 = vadd.f32 %v4365, %v4461
        %v4463 = vpop.f32.mrb[0].mxu0
        %4464 = vmatprep.mubr.bf16.mxu0 %v3424
        %4465 = vmatmul.mubr.bf16.gmra.mrb[0].mxu0 %v3423
        %v4466 = vpop.f32.mrb[0].mxu0
        %v4467 = vadd.f32 %v4370, %v4466
        %v4468 = vpop.f32.mrb[0].mxu0
        %v4469 = vpop.f32.mrb[0].mxu0
        %v4470 = vadd.f32 %v4373, %v4469
        %v4471 = vpop.f32.mrb[0].mxu0
        %4472 = vdwg.mxu0
        %4473 = vmatprep.subr.bf16.mxu0 0
        %4474 = vmatpush1.bf16.msra.mxu0 %v2289
        %4475 = vmatprep.subr.bf16.mxu0 0
        %4476 = vmatpush1.bf16.msra.mxu0 %v2290
        %4477 = vmatprep.subr.bf16.mxu0 0
        %4478 = vmatpush1.bf16.msra.mxu0 %v2291
        %4479 = vmatprep.subr.bf16.mxu0 0
        %4480 = vmatpush1.bf16.msra.mxu0 %v2292
        %4481 = vmatprep.subr.bf16.mxu0 0
        %4482 = vmatpush1.bf16.msra.mxu0 %v2293
        %4483 = vmatprep.subr.bf16.mxu0 0
        %4484 = vmatpush1.bf16.msra.mxu0 %v2294
        %4485 = vmatprep.subr.bf16.mxu0 0
        %4486 = vmatpush1.bf16.msra.mxu0 %v2295
        %4487 = vmatprep.subr.bf16.mxu0 0
        %4488 = vmatpush1.bf16.msra.mxu0 %v2296
        %4489 = vmatprep.subr.bf16.mxu0 0
        %4490 = vmatpush1.bf16.msra.mxu0 %v2297
        %4491 = vmatprep.subr.bf16.mxu0 0
        %4492 = vmatpush1.bf16.msra.mxu0 %v2298
        %4493 = vmatprep.subr.bf16.mxu0 0
        %4494 = vmatpush1.bf16.msra.mxu0 %v2299
        %4495 = vmatprep.subr.bf16.mxu0 0
        %4496 = vmatpush1.bf16.msra.mxu0 %v2300
        %4497 = vmatprep.subr.bf16.mxu0 0
        %4498 = vmatpush1.bf16.msra.mxu0 %v2301
        %4499 = vmatprep.subr.bf16.mxu0 0
        %4500 = vmatpush1.bf16.msra.mxu0 %v2302
        %4501 = vmatprep.subr.bf16.mxu0 0
        %4502 = vmatpush1.bf16.msra.mxu0 %v2303
        %4503 = vmatprep.subr.bf16.mxu0 0
        %4504 = vmatpush1.bf16.msra.mxu0 %v2304
        %4505 = vmatprep.mubr.bf16.mxu0 %v3202
        %4506 = vmatmul.mubr.bf16.gmra.mrb[0].mxu0 %v3201
        %v4507 = vpop.f32.mrb[0].mxu0
        %v4508 = vadd.f32 %v4411, %v4507
        %v4509 = vpop.f32.mrb[0].mxu0
        %v4510 = vpop.f32.mrb[0].mxu0
        %v4511 = vadd.f32 %v4414, %v4510
        %v4512 = vpop.f32.mrb[0].mxu0
        %4513 = vmatprep.mubr.bf16.mxu0 %v3234
        %4514 = vmatmul.mubr.bf16.gmra.mrb[0].mxu0 %v3233
        %v4515 = vpop.f32.mrb[0].mxu0
        %v4516 = vadd.f32 %v4419, %v4515
        %v4517 = vpop.f32.mrb[0].mxu0
        %v4518 = vpop.f32.mrb[0].mxu0
        %v4519 = vadd.f32 %v4422, %v4518
        %v4520 = vpop.f32.mrb[0].mxu0
        %4521 = vmatprep.mubr.bf16.mxu0 %v3266
        %4522 = vmatmul.mubr.bf16.gmra.mrb[0].mxu0 %v3265
        %v4523 = vpop.f32.mrb[0].mxu0
        %v4524 = vadd.f32 %v4427, %v4523
        %v4525 = vpop.f32.mrb[0].mxu0
        %v4526 = vpop.f32.mrb[0].mxu0
        %v4527 = vadd.f32 %v4430, %v4526
        %v4528 = vpop.f32.mrb[0].mxu0
        %4529 = vmatprep.mubr.bf16.mxu0 %v3298
        %4530 = vmatmul.mubr.bf16.gmra.mrb[0].mxu0 %v3297
        %v4531 = vpop.f32.mrb[0].mxu0
        %v4532 = vadd.f32 %v4435, %v4531
        %v4533 = vpop.f32.mrb[0].mxu0
        %v4534 = vpop.f32.mrb[0].mxu0
        %v4535 = vadd.f32 %v4438, %v4534
        %v4536 = vpop.f32.mrb[0].mxu0
        %4537 = vmatprep.mubr.bf16.mxu0 %v3330
        %4538 = vmatmul.mubr.bf16.gmra.mrb[0].mxu0 %v3329
        %v4539 = vpop.f32.mrb[0].mxu0
        %v4540 = vadd.f32 %v4443, %v4539
        %v4541 = vpop.f32.mrb[0].mxu0
        %v4542 = vpop.f32.mrb[0].mxu0
        %v4543 = vadd.f32 %v4446, %v4542
        %v4544 = vpop.f32.mrb[0].mxu0
        %4545 = vmatprep.mubr.bf16.mxu0 %v3362
        %4546 = vmatmul.mubr.bf16.gmra.mrb[0].mxu0 %v3361
        %v4547 = vpop.f32.mrb[0].mxu0
        %v4548 = vadd.f32 %v4451, %v4547
        %v4549 = vpop.f32.mrb[0].mxu0
        %v4550 = vpop.f32.mrb[0].mxu0
        %v4551 = vadd.f32 %v4454, %v4550
        %v4552 = vpop.f32.mrb[0].mxu0
        %4553 = vmatprep.mubr.bf16.mxu0 %v3394
        %4554 = vmatmul.mubr.bf16.gmra.mrb[0].mxu0 %v3393
        %v4555 = vpop.f32.mrb[0].mxu0
        %v4556 = vadd.f32 %v4459, %v4555
        %v4557 = vpop.f32.mrb[0].mxu0
        %v4558 = vpop.f32.mrb[0].mxu0
        %v4559 = vadd.f32 %v4462, %v4558
        %v4560 = vpop.f32.mrb[0].mxu0
        %4561 = vmatprep.mubr.bf16.mxu0 %v3426
        %4562 = vmatmul.mubr.bf16.gmra.mrb[0].mxu0 %v3425
        %v4563 = vpop.f32.mrb[0].mxu0
        %v4564 = vadd.f32 %v4467, %v4563
        %v4565 = vpop.f32.mrb[0].mxu0
        %v4566 = vpop.f32.mrb[0].mxu0
        %v4567 = vadd.f32 %v4470, %v4566
        %v4568 = vpop.f32.mrb[0].mxu0
        %4569 = vdwg.mxu0
        %4570 = vmatprep.subr.bf16.mxu0 0
        %4571 = vmatpush1.bf16.msra.mxu0 %v2305
        %4572 = vmatprep.subr.bf16.mxu0 0
        %4573 = vmatpush1.bf16.msra.mxu0 %v2306
        %4574 = vmatprep.subr.bf16.mxu0 0
        %4575 = vmatpush1.bf16.msra.mxu0 %v2307
        %4576 = vmatprep.subr.bf16.mxu0 0
        %4577 = vmatpush1.bf16.msra.mxu0 %v2308
        %4578 = vmatprep.subr.bf16.mxu0 0
        %4579 = vmatpush1.bf16.msra.mxu0 %v2309
        %4580 = vmatprep.subr.bf16.mxu0 0
        %4581 = vmatpush1.bf16.msra.mxu0 %v2310
        %4582 = vmatprep.subr.bf16.mxu0 0
        %4583 = vmatpush1.bf16.msra.mxu0 %v2311
        %4584 = vmatprep.subr.bf16.mxu0 0
        %4585 = vmatpush1.bf16.msra.mxu0 %v2312
        %4586 = vmatprep.subr.bf16.mxu0 0
        %4587 = vmatpush1.bf16.msra.mxu0 %v2313
        %4588 = vmatprep.subr.bf16.mxu0 0
        %4589 = vmatpush1.bf16.msra.mxu0 %v2314
        %4590 = vmatprep.subr.bf16.mxu0 0
        %4591 = vmatpush1.bf16.msra.mxu0 %v2315
        %4592 = vmatprep.subr.bf16.mxu0 0
        %4593 = vmatpush1.bf16.msra.mxu0 %v2316
        %4594 = vmatprep.subr.bf16.mxu0 0
        %4595 = vmatpush1.bf16.msra.mxu0 %v2317
        %4596 = vmatprep.subr.bf16.mxu0 0
        %4597 = vmatpush1.bf16.msra.mxu0 %v2318
        %4598 = vmatprep.subr.bf16.mxu0 0
        %4599 = vmatpush1.bf16.msra.mxu0 %v2319
        %4600 = vmatprep.subr.bf16.mxu0 0
        %4601 = vmatpush1.bf16.msra.mxu0 %v2320
        %4602 = vmatprep.mubr.bf16.mxu0 %v3204
        %4603 = vmatmul.mubr.bf16.gmra.mrb[0].mxu0 %v3203
        %v4604 = vpop.f32.mrb[0].mxu0
        %v4605 = vadd.f32 %v4508, %v4604
        %v4606 = vpop.f32.mrb[0].mxu0
        %v4607 = vpop.f32.mrb[0].mxu0
        %v4608 = vadd.f32 %v4511, %v4607
        %v4609 = vpop.f32.mrb[0].mxu0
        %4610 = vmatprep.mubr.bf16.mxu0 %v3236
        %4611 = vmatmul.mubr.bf16.gmra.mrb[0].mxu0 %v3235
        %v4612 = vpop.f32.mrb[0].mxu0
        %v4613 = vadd.f32 %v4516, %v4612
        %v4614 = vpop.f32.mrb[0].mxu0
        %v4615 = vpop.f32.mrb[0].mxu0
        %v4616 = vadd.f32 %v4519, %v4615
        %v4617 = vpop.f32.mrb[0].mxu0
        %4618 = vmatprep.mubr.bf16.mxu0 %v3268
        %4619 = vmatmul.mubr.bf16.gmra.mrb[0].mxu0 %v3267
        %v4620 = vpop.f32.mrb[0].mxu0
        %v4621 = vadd.f32 %v4524, %v4620
        %v4622 = vpop.f32.mrb[0].mxu0
        %v4623 = vpop.f32.mrb[0].mxu0
        %v4624 = vadd.f32 %v4527, %v4623
        %v4625 = vpop.f32.mrb[0].mxu0
        %4626 = vmatprep.mubr.bf16.mxu0 %v3300
        %4627 = vmatmul.mubr.bf16.gmra.mrb[0].mxu0 %v3299
        %v4628 = vpop.f32.mrb[0].mxu0
        %v4629 = vadd.f32 %v4532, %v4628
        %v4630 = vpop.f32.mrb[0].mxu0
        %v4631 = vpop.f32.mrb[0].mxu0
        %v4632 = vadd.f32 %v4535, %v4631
        %v4633 = vpop.f32.mrb[0].mxu0
        %4634 = vmatprep.mubr.bf16.mxu0 %v3332
        %4635 = vmatmul.mubr.bf16.gmra.mrb[0].mxu0 %v3331
        %v4636 = vpop.f32.mrb[0].mxu0
        %v4637 = vadd.f32 %v4540, %v4636
        %v4638 = vpop.f32.mrb[0].mxu0
        %v4639 = vpop.f32.mrb[0].mxu0
        %v4640 = vadd.f32 %v4543, %v4639
        %v4641 = vpop.f32.mrb[0].mxu0
        %4642 = vmatprep.mubr.bf16.mxu0 %v3364
        %4643 = vmatmul.mubr.bf16.gmra.mrb[0].mxu0 %v3363
        %v4644 = vpop.f32.mrb[0].mxu0
        %v4645 = vadd.f32 %v4548, %v4644
        %v4646 = vpop.f32.mrb[0].mxu0
        %v4647 = vpop.f32.mrb[0].mxu0
        %v4648 = vadd.f32 %v4551, %v4647
        %v4649 = vpop.f32.mrb[0].mxu0
        %4650 = vmatprep.mubr.bf16.mxu0 %v3396
        %4651 = vmatmul.mubr.bf16.gmra.mrb[0].mxu0 %v3395
        %v4652 = vpop.f32.mrb[0].mxu0
        %v4653 = vadd.f32 %v4556, %v4652
        %v4654 = vpop.f32.mrb[0].mxu0
        %v4655 = vpop.f32.mrb[0].mxu0
        %v4656 = vadd.f32 %v4559, %v4655
        %v4657 = vpop.f32.mrb[0].mxu0
        %4658 = vmatprep.mubr.bf16.mxu0 %v3428
        %4659 = vmatmul.mubr.bf16.gmra.mrb[0].mxu0 %v3427
        %v4660 = vpop.f32.mrb[0].mxu0
        %v4661 = vadd.f32 %v4564, %v4660
        %v4662 = vpop.f32.mrb[0].mxu0
        %v4663 = vpop.f32.mrb[0].mxu0
        %v4664 = vadd.f32 %v4567, %v4663
        %v4665 = vpop.f32.mrb[0].mxu0
        %4666 = vdwg.mxu0
        %4667 = vmatprep.subr.bf16.mxu0 0
        %4668 = vmatpush1.bf16.msra.mxu0 %v2321
        %4669 = vmatprep.subr.bf16.mxu0 0
        %4670 = vmatpush1.bf16.msra.mxu0 %v2322
        %4671 = vmatprep.subr.bf16.mxu0 0
        %4672 = vmatpush1.bf16.msra.mxu0 %v2323
        %4673 = vmatprep.subr.bf16.mxu0 0
        %4674 = vmatpush1.bf16.msra.mxu0 %v2324
        %4675 = vmatprep.subr.bf16.mxu0 0
        %4676 = vmatpush1.bf16.msra.mxu0 %v2325
        %4677 = vmatprep.subr.bf16.mxu0 0
        %4678 = vmatpush1.bf16.msra.mxu0 %v2326
        %4679 = vmatprep.subr.bf16.mxu0 0
        %4680 = vmatpush1.bf16.msra.mxu0 %v2327
        %4681 = vmatprep.subr.bf16.mxu0 0
        %4682 = vmatpush1.bf16.msra.mxu0 %v2328
        %4683 = vmatprep.subr.bf16.mxu0 0
        %4684 = vmatpush1.bf16.msra.mxu0 %v2329
        %4685 = vmatprep.subr.bf16.mxu0 0
        %4686 = vmatpush1.bf16.msra.mxu0 %v2330
        %4687 = vmatprep.subr.bf16.mxu0 0
        %4688 = vmatpush1.bf16.msra.mxu0 %v2331
        %4689 = vmatprep.subr.bf16.mxu0 0
        %4690 = vmatpush1.bf16.msra.mxu0 %v2332
        %4691 = vmatprep.subr.bf16.mxu0 0
        %4692 = vmatpush1.bf16.msra.mxu0 %v2333
        %4693 = vmatprep.subr.bf16.mxu0 0
        %4694 = vmatpush1.bf16.msra.mxu0 %v2334
        %4695 = vmatprep.subr.bf16.mxu0 0
        %4696 = vmatpush1.bf16.msra.mxu0 %v2335
        %4697 = vmatprep.subr.bf16.mxu0 0
        %4698 = vmatpush1.bf16.msra.mxu0 %v2336
        %4699 = vmatprep.mubr.bf16.mxu0 %v3206
        %4700 = vmatmul.mubr.bf16.gmra.mrb[0].mxu0 %v3205
        %v4701 = vpop.f32.mrb[0].mxu0
        %v4702 = vadd.f32 %v4605, %v4701
        %v4703 = vpop.f32.mrb[0].mxu0
        %v4704 = vpop.f32.mrb[0].mxu0
        %v4705 = vadd.f32 %v4608, %v4704
        %v4706 = vpop.f32.mrb[0].mxu0
        %4707 = vmatprep.mubr.bf16.mxu0 %v3238
        %4708 = vmatmul.mubr.bf16.gmra.mrb[0].mxu0 %v3237
        %v4709 = vpop.f32.mrb[0].mxu0
        %v4710 = vadd.f32 %v4613, %v4709
        %v4711 = vpop.f32.mrb[0].mxu0
        %v4712 = vpop.f32.mrb[0].mxu0
        %v4713 = vadd.f32 %v4616, %v4712
        %v4714 = vpop.f32.mrb[0].mxu0
        %4715 = vmatprep.mubr.bf16.mxu0 %v3270
        %4716 = vmatmul.mubr.bf16.gmra.mrb[0].mxu0 %v3269
        %v4717 = vpop.f32.mrb[0].mxu0
        %v4718 = vadd.f32 %v4621, %v4717
        %v4719 = vpop.f32.mrb[0].mxu0
        %v4720 = vpop.f32.mrb[0].mxu0
        %v4721 = vadd.f32 %v4624, %v4720
        %v4722 = vpop.f32.mrb[0].mxu0
        %4723 = vmatprep.mubr.bf16.mxu0 %v3302
        %4724 = vmatmul.mubr.bf16.gmra.mrb[0].mxu0 %v3301
        %v4725 = vpop.f32.mrb[0].mxu0
        %v4726 = vadd.f32 %v4629, %v4725
        %v4727 = vpop.f32.mrb[0].mxu0
        %v4728 = vpop.f32.mrb[0].mxu0
        %v4729 = vadd.f32 %v4632, %v4728
        %v4730 = vpop.f32.mrb[0].mxu0
        %4731 = vmatprep.mubr.bf16.mxu0 %v3334
        %4732 = vmatmul.mubr.bf16.gmra.mrb[0].mxu0 %v3333
        %v4733 = vpop.f32.mrb[0].mxu0
        %v4734 = vadd.f32 %v4637, %v4733
        %v4735 = vpop.f32.mrb[0].mxu0
        %v4736 = vpop.f32.mrb[0].mxu0
        %v4737 = vadd.f32 %v4640, %v4736
        %v4738 = vpop.f32.mrb[0].mxu0
        %4739 = vmatprep.mubr.bf16.mxu0 %v3366
        %4740 = vmatmul.mubr.bf16.gmra.mrb[0].mxu0 %v3365
        %v4741 = vpop.f32.mrb[0].mxu0
        %v4742 = vadd.f32 %v4645, %v4741
        %v4743 = vpop.f32.mrb[0].mxu0
        %v4744 = vpop.f32.mrb[0].mxu0
        %v4745 = vadd.f32 %v4648, %v4744
        %v4746 = vpop.f32.mrb[0].mxu0
        %4747 = vmatprep.mubr.bf16.mxu0 %v3398
        %4748 = vmatmul.mubr.bf16.gmra.mrb[0].mxu0 %v3397
        %v4749 = vpop.f32.mrb[0].mxu0
        %v4750 = vadd.f32 %v4653, %v4749
        %v4751 = vpop.f32.mrb[0].mxu0
        %v4752 = vpop.f32.mrb[0].mxu0
        %v4753 = vadd.f32 %v4656, %v4752
        %v4754 = vpop.f32.mrb[0].mxu0
        %4755 = vmatprep.mubr.bf16.mxu0 %v3430
        %4756 = vmatmul.mubr.bf16.gmra.mrb[0].mxu0 %v3429
        %v4757 = vpop.f32.mrb[0].mxu0
        %v4758 = vadd.f32 %v4661, %v4757
        %v4759 = vpop.f32.mrb[0].mxu0
        %v4760 = vpop.f32.mrb[0].mxu0
        %v4761 = vadd.f32 %v4664, %v4760
        %v4762 = vpop.f32.mrb[0].mxu0
        %4763 = vdwg.mxu0
        %4764 = vmatprep.subr.bf16.mxu0 0
        %4765 = vmatpush1.bf16.msra.mxu0 %v2337
        %4766 = vmatprep.subr.bf16.mxu0 0
        %4767 = vmatpush1.bf16.msra.mxu0 %v2338
        %4768 = vmatprep.subr.bf16.mxu0 0
        %4769 = vmatpush1.bf16.msra.mxu0 %v2339
        %4770 = vmatprep.subr.bf16.mxu0 0
        %4771 = vmatpush1.bf16.msra.mxu0 %v2340
        %4772 = vmatprep.subr.bf16.mxu0 0
        %4773 = vmatpush1.bf16.msra.mxu0 %v2341
        %4774 = vmatprep.subr.bf16.mxu0 0
        %4775 = vmatpush1.bf16.msra.mxu0 %v2342
        %4776 = vmatprep.subr.bf16.mxu0 0
        %4777 = vmatpush1.bf16.msra.mxu0 %v2343
        %4778 = vmatprep.subr.bf16.mxu0 0
        %4779 = vmatpush1.bf16.msra.mxu0 %v2344
        %4780 = vmatprep.subr.bf16.mxu0 0
        %4781 = vmatpush1.bf16.msra.mxu0 %v2345
        %4782 = vmatprep.subr.bf16.mxu0 0
        %4783 = vmatpush1.bf16.msra.mxu0 %v2346
        %4784 = vmatprep.subr.bf16.mxu0 0
        %4785 = vmatpush1.bf16.msra.mxu0 %v2347
        %4786 = vmatprep.subr.bf16.mxu0 0
        %4787 = vmatpush1.bf16.msra.mxu0 %v2348
        %4788 = vmatprep.subr.bf16.mxu0 0
        %4789 = vmatpush1.bf16.msra.mxu0 %v2349
        %4790 = vmatprep.subr.bf16.mxu0 0
        %4791 = vmatpush1.bf16.msra.mxu0 %v2350
        %4792 = vmatprep.subr.bf16.mxu0 0
        %4793 = vmatpush1.bf16.msra.mxu0 %v2351
        %4794 = vmatprep.subr.bf16.mxu0 0
        %4795 = vmatpush1.bf16.msra.mxu0 %v2352
        %4796 = vmatprep.mubr.bf16.mxu0 %v3208
        %4797 = vmatmul.mubr.bf16.gmra.mrb[0].mxu0 %v3207
        %v4798 = vpop.f32.mrb[0].mxu0
        %v4799 = vadd.f32 %v4702, %v4798
        %v4800 = vpop.f32.mrb[0].mxu0
        %v4801 = vpop.f32.mrb[0].mxu0
        %v4802 = vadd.f32 %v4705, %v4801
        %v4803 = vpop.f32.mrb[0].mxu0
        %4804 = vmatprep.mubr.bf16.mxu0 %v3240
        %4805 = vmatmul.mubr.bf16.gmra.mrb[0].mxu0 %v3239
        %v4806 = vpop.f32.mrb[0].mxu0
        %v4807 = vadd.f32 %v4710, %v4806
        %v4808 = vpop.f32.mrb[0].mxu0
        %v4809 = vpop.f32.mrb[0].mxu0
        %v4810 = vadd.f32 %v4713, %v4809
        %v4811 = vpop.f32.mrb[0].mxu0
        %4812 = vmatprep.mubr.bf16.mxu0 %v3272
        %4813 = vmatmul.mubr.bf16.gmra.mrb[0].mxu0 %v3271
        %v4814 = vpop.f32.mrb[0].mxu0
        %v4815 = vadd.f32 %v4718, %v4814
        %v4816 = vpop.f32.mrb[0].mxu0
        %v4817 = vpop.f32.mrb[0].mxu0
        %v4818 = vadd.f32 %v4721, %v4817
        %v4819 = vpop.f32.mrb[0].mxu0
        %4820 = vmatprep.mubr.bf16.mxu0 %v3304
        %4821 = vmatmul.mubr.bf16.gmra.mrb[0].mxu0 %v3303
        %v4822 = vpop.f32.mrb[0].mxu0
        %v4823 = vadd.f32 %v4726, %v4822
        %v4824 = vpop.f32.mrb[0].mxu0
        %v4825 = vpop.f32.mrb[0].mxu0
        %v4826 = vadd.f32 %v4729, %v4825
        %v4827 = vpop.f32.mrb[0].mxu0
        %4828 = vmatprep.mubr.bf16.mxu0 %v3336
        %4829 = vmatmul.mubr.bf16.gmra.mrb[0].mxu0 %v3335
        %v4830 = vpop.f32.mrb[0].mxu0
        %v4831 = vadd.f32 %v4734, %v4830
        %v4832 = vpop.f32.mrb[0].mxu0
        %v4833 = vpop.f32.mrb[0].mxu0
        %v4834 = vadd.f32 %v4737, %v4833
        %v4835 = vpop.f32.mrb[0].mxu0
        %4836 = vmatprep.mubr.bf16.mxu0 %v3368
        %4837 = vmatmul.mubr.bf16.gmra.mrb[0].mxu0 %v3367
        %v4838 = vpop.f32.mrb[0].mxu0
        %v4839 = vadd.f32 %v4742, %v4838
        %v4840 = vpop.f32.mrb[0].mxu0
        %v4841 = vpop.f32.mrb[0].mxu0
        %v4842 = vadd.f32 %v4745, %v4841
        %v4843 = vpop.f32.mrb[0].mxu0
        %4844 = vmatprep.mubr.bf16.mxu0 %v3400
        %4845 = vmatmul.mubr.bf16.gmra.mrb[0].mxu0 %v3399
        %v4846 = vpop.f32.mrb[0].mxu0
        %v4847 = vadd.f32 %v4750, %v4846
        %v4848 = vpop.f32.mrb[0].mxu0
        %v4849 = vpop.f32.mrb[0].mxu0
        %v4850 = vadd.f32 %v4753, %v4849
        %v4851 = vpop.f32.mrb[0].mxu0
        %4852 = vmatprep.mubr.bf16.mxu0 %v3432
        %4853 = vmatmul.mubr.bf16.gmra.mrb[0].mxu0 %v3431
        %v4854 = vpop.f32.mrb[0].mxu0
        %v4855 = vadd.f32 %v4758, %v4854
        %v4856 = vpop.f32.mrb[0].mxu0
        %v4857 = vpop.f32.mrb[0].mxu0
        %v4858 = vadd.f32 %v4761, %v4857
        %v4859 = vpop.f32.mrb[0].mxu0
        %4860 = vdwg.mxu0
        %4861 = vmatprep.subr.bf16.mxu0 0
        %4862 = vmatpush1.bf16.msra.mxu0 %v2353
        %4863 = vmatprep.subr.bf16.mxu0 0
        %4864 = vmatpush1.bf16.msra.mxu0 %v2354
        %4865 = vmatprep.subr.bf16.mxu0 0
        %4866 = vmatpush1.bf16.msra.mxu0 %v2355
        %4867 = vmatprep.subr.bf16.mxu0 0
        %4868 = vmatpush1.bf16.msra.mxu0 %v2356
        %4869 = vmatprep.subr.bf16.mxu0 0
        %4870 = vmatpush1.bf16.msra.mxu0 %v2357
        %4871 = vmatprep.subr.bf16.mxu0 0
        %4872 = vmatpush1.bf16.msra.mxu0 %v2358
        %4873 = vmatprep.subr.bf16.mxu0 0
        %4874 = vmatpush1.bf16.msra.mxu0 %v2359
        %4875 = vmatprep.subr.bf16.mxu0 0
        %4876 = vmatpush1.bf16.msra.mxu0 %v2360
        %4877 = vmatprep.subr.bf16.mxu0 0
        %4878 = vmatpush1.bf16.msra.mxu0 %v2361
        %4879 = vmatprep.subr.bf16.mxu0 0
        %4880 = vmatpush1.bf16.msra.mxu0 %v2362
        %4881 = vmatprep.subr.bf16.mxu0 0
        %4882 = vmatpush1.bf16.msra.mxu0 %v2363
        %4883 = vmatprep.subr.bf16.mxu0 0
        %4884 = vmatpush1.bf16.msra.mxu0 %v2364
        %4885 = vmatprep.subr.bf16.mxu0 0
        %4886 = vmatpush1.bf16.msra.mxu0 %v2365
        %4887 = vmatprep.subr.bf16.mxu0 0
        %4888 = vmatpush1.bf16.msra.mxu0 %v2366
        %4889 = vmatprep.subr.bf16.mxu0 0
        %4890 = vmatpush1.bf16.msra.mxu0 %v2367
        %4891 = vmatprep.subr.bf16.mxu0 0
        %4892 = vmatpush1.bf16.msra.mxu0 %v2368
        %4893 = vmatprep.mubr.bf16.mxu0 %v3210
        %4894 = vmatmul.mubr.bf16.gmra.mrb[0].mxu0 %v3209
        %v4895 = vpop.f32.mrb[0].mxu0
        %v4896 = vadd.f32 %v4799, %v4895
        %v4897 = vpop.f32.mrb[0].mxu0
        %v4898 = vpop.f32.mrb[0].mxu0
        %v4899 = vadd.f32 %v4802, %v4898
        %v4900 = vpop.f32.mrb[0].mxu0
        %4901 = vmatprep.mubr.bf16.mxu0 %v3242
        %4902 = vmatmul.mubr.bf16.gmra.mrb[0].mxu0 %v3241
        %v4903 = vpop.f32.mrb[0].mxu0
        %v4904 = vadd.f32 %v4807, %v4903
        %v4905 = vpop.f32.mrb[0].mxu0
        %v4906 = vpop.f32.mrb[0].mxu0
        %v4907 = vadd.f32 %v4810, %v4906
        %v4908 = vpop.f32.mrb[0].mxu0
        %4909 = vmatprep.mubr.bf16.mxu0 %v3274
        %4910 = vmatmul.mubr.bf16.gmra.mrb[0].mxu0 %v3273
        %v4911 = vpop.f32.mrb[0].mxu0
        %v4912 = vadd.f32 %v4815, %v4911
        %v4913 = vpop.f32.mrb[0].mxu0
        %v4914 = vpop.f32.mrb[0].mxu0
        %v4915 = vadd.f32 %v4818, %v4914
        %v4916 = vpop.f32.mrb[0].mxu0
        %4917 = vmatprep.mubr.bf16.mxu0 %v3306
        %4918 = vmatmul.mubr.bf16.gmra.mrb[0].mxu0 %v3305
        %v4919 = vpop.f32.mrb[0].mxu0
        %v4920 = vadd.f32 %v4823, %v4919
        %v4921 = vpop.f32.mrb[0].mxu0
        %v4922 = vpop.f32.mrb[0].mxu0
        %v4923 = vadd.f32 %v4826, %v4922
        %v4924 = vpop.f32.mrb[0].mxu0
        %4925 = vmatprep.mubr.bf16.mxu0 %v3338
        %4926 = vmatmul.mubr.bf16.gmra.mrb[0].mxu0 %v3337
        %v4927 = vpop.f32.mrb[0].mxu0
        %v4928 = vadd.f32 %v4831, %v4927
        %v4929 = vpop.f32.mrb[0].mxu0
        %v4930 = vpop.f32.mrb[0].mxu0
        %v4931 = vadd.f32 %v4834, %v4930
        %v4932 = vpop.f32.mrb[0].mxu0
        %4933 = vmatprep.mubr.bf16.mxu0 %v3370
        %4934 = vmatmul.mubr.bf16.gmra.mrb[0].mxu0 %v3369
        %v4935 = vpop.f32.mrb[0].mxu0
        %v4936 = vadd.f32 %v4839, %v4935
        %v4937 = vpop.f32.mrb[0].mxu0
        %v4938 = vpop.f32.mrb[0].mxu0
        %v4939 = vadd.f32 %v4842, %v4938
        %v4940 = vpop.f32.mrb[0].mxu0
        %4941 = vmatprep.mubr.bf16.mxu0 %v3402
        %4942 = vmatmul.mubr.bf16.gmra.mrb[0].mxu0 %v3401
        %v4943 = vpop.f32.mrb[0].mxu0
        %v4944 = vadd.f32 %v4847, %v4943
        %v4945 = vpop.f32.mrb[0].mxu0
        %v4946 = vpop.f32.mrb[0].mxu0
        %v4947 = vadd.f32 %v4850, %v4946
        %v4948 = vpop.f32.mrb[0].mxu0
        %4949 = vmatprep.mubr.bf16.mxu0 %v3434
        %4950 = vmatmul.mubr.bf16.gmra.mrb[0].mxu0 %v3433
        %v4951 = vpop.f32.mrb[0].mxu0
        %v4952 = vadd.f32 %v4855, %v4951
        %v4953 = vpop.f32.mrb[0].mxu0
        %v4954 = vpop.f32.mrb[0].mxu0
        %v4955 = vadd.f32 %v4858, %v4954
        %v4956 = vpop.f32.mrb[0].mxu0
        %4957 = vdwg.mxu0
        %4958 = vmatprep.subr.bf16.mxu0 0
        %4959 = vmatpush1.bf16.msra.mxu0 %v2369
        %4960 = vmatprep.subr.bf16.mxu0 0
        %4961 = vmatpush1.bf16.msra.mxu0 %v2370
        %4962 = vmatprep.subr.bf16.mxu0 0
        %4963 = vmatpush1.bf16.msra.mxu0 %v2371
        %4964 = vmatprep.subr.bf16.mxu0 0
        %4965 = vmatpush1.bf16.msra.mxu0 %v2372
        %4966 = vmatprep.subr.bf16.mxu0 0
        %4967 = vmatpush1.bf16.msra.mxu0 %v2373
        %4968 = vmatprep.subr.bf16.mxu0 0
        %4969 = vmatpush1.bf16.msra.mxu0 %v2374
        %4970 = vmatprep.subr.bf16.mxu0 0
        %4971 = vmatpush1.bf16.msra.mxu0 %v2375
        %4972 = vmatprep.subr.bf16.mxu0 0
        %4973 = vmatpush1.bf16.msra.mxu0 %v2376
        %4974 = vmatprep.subr.bf16.mxu0 0
        %4975 = vmatpush1.bf16.msra.mxu0 %v2377
        %4976 = vmatprep.subr.bf16.mxu0 0
        %4977 = vmatpush1.bf16.msra.mxu0 %v2378
        %4978 = vmatprep.subr.bf16.mxu0 0
        %4979 = vmatpush1.bf16.msra.mxu0 %v2379
        %4980 = vmatprep.subr.bf16.mxu0 0
        %4981 = vmatpush1.bf16.msra.mxu0 %v2380
        %4982 = vmatprep.subr.bf16.mxu0 0
        %4983 = vmatpush1.bf16.msra.mxu0 %v2381
        %4984 = vmatprep.subr.bf16.mxu0 0
        %4985 = vmatpush1.bf16.msra.mxu0 %v2382
        %4986 = vmatprep.subr.bf16.mxu0 0
        %4987 = vmatpush1.bf16.msra.mxu0 %v2383
        %4988 = vmatprep.subr.bf16.mxu0 0
        %4989 = vmatpush1.bf16.msra.mxu0 %v2384
        %4990 = vmatprep.mubr.bf16.mxu0 %v3212
        %4991 = vmatmul.mubr.bf16.gmra.mrb[0].mxu0 %v3211
        %v4992 = vpop.f32.mrb[0].mxu0
        %v4993 = vadd.f32 %v4896, %v4992
        %v4994 = vpop.f32.mrb[0].mxu0
        %v4995 = vpop.f32.mrb[0].mxu0
        %v4996 = vadd.f32 %v4899, %v4995
        %v4997 = vpop.f32.mrb[0].mxu0
        %4998 = vmatprep.mubr.bf16.mxu0 %v3244
        %4999 = vmatmul.mubr.bf16.gmra.mrb[0].mxu0 %v3243
        %v5000 = vpop.f32.mrb[0].mxu0
        %v5001 = vadd.f32 %v4904, %v5000
        %v5002 = vpop.f32.mrb[0].mxu0
        %v5003 = vpop.f32.mrb[0].mxu0
        %v5004 = vadd.f32 %v4907, %v5003
        %v5005 = vpop.f32.mrb[0].mxu0
        %5006 = vmatprep.mubr.bf16.mxu0 %v3276
        %5007 = vmatmul.mubr.bf16.gmra.mrb[0].mxu0 %v3275
        %v5008 = vpop.f32.mrb[0].mxu0
        %v5009 = vadd.f32 %v4912, %v5008
        %v5010 = vpop.f32.mrb[0].mxu0
        %v5011 = vpop.f32.mrb[0].mxu0
        %v5012 = vadd.f32 %v4915, %v5011
        %v5013 = vpop.f32.mrb[0].mxu0
        %5014 = vmatprep.mubr.bf16.mxu0 %v3308
        %5015 = vmatmul.mubr.bf16.gmra.mrb[0].mxu0 %v3307
        %v5016 = vpop.f32.mrb[0].mxu0
        %v5017 = vadd.f32 %v4920, %v5016
        %v5018 = vpop.f32.mrb[0].mxu0
        %v5019 = vpop.f32.mrb[0].mxu0
        %v5020 = vadd.f32 %v4923, %v5019
        %v5021 = vpop.f32.mrb[0].mxu0
        %5022 = vmatprep.mubr.bf16.mxu0 %v3340
        %5023 = vmatmul.mubr.bf16.gmra.mrb[0].mxu0 %v3339
        %v5024 = vpop.f32.mrb[0].mxu0
        %v5025 = vadd.f32 %v4928, %v5024
        %v5026 = vpop.f32.mrb[0].mxu0
        %v5027 = vpop.f32.mrb[0].mxu0
        %v5028 = vadd.f32 %v4931, %v5027
        %v5029 = vpop.f32.mrb[0].mxu0
        %5030 = vmatprep.mubr.bf16.mxu0 %v3372
        %5031 = vmatmul.mubr.bf16.gmra.mrb[0].mxu0 %v3371
        %v5032 = vpop.f32.mrb[0].mxu0
        %v5033 = vadd.f32 %v4936, %v5032
        %v5034 = vpop.f32.mrb[0].mxu0
        %v5035 = vpop.f32.mrb[0].mxu0
        %v5036 = vadd.f32 %v4939, %v5035
        %v5037 = vpop.f32.mrb[0].mxu0
        %5038 = vmatprep.mubr.bf16.mxu0 %v3404
        %5039 = vmatmul.mubr.bf16.gmra.mrb[0].mxu0 %v3403
        %v5040 = vpop.f32.mrb[0].mxu0
        %v5041 = vadd.f32 %v4944, %v5040
        %v5042 = vpop.f32.mrb[0].mxu0
        %v5043 = vpop.f32.mrb[0].mxu0
        %v5044 = vadd.f32 %v4947, %v5043
        %v5045 = vpop.f32.mrb[0].mxu0
        %5046 = vmatprep.mubr.bf16.mxu0 %v3436
        %5047 = vmatmul.mubr.bf16.gmra.mrb[0].mxu0 %v3435
        %v5048 = vpop.f32.mrb[0].mxu0
        %v5049 = vadd.f32 %v4952, %v5048
        %v5050 = vpop.f32.mrb[0].mxu0
        %v5051 = vpop.f32.mrb[0].mxu0
        %v5052 = vadd.f32 %v4955, %v5051
        %v5053 = vpop.f32.mrb[0].mxu0
        %5054 = vdwg.mxu0
        %5055 = vmatprep.subr.bf16.mxu0 0
        %5056 = vmatpush1.bf16.msra.mxu0 %v2385
        %5057 = vmatprep.subr.bf16.mxu0 0
        %5058 = vmatpush1.bf16.msra.mxu0 %v2386
        %5059 = vmatprep.subr.bf16.mxu0 0
        %5060 = vmatpush1.bf16.msra.mxu0 %v2387
        %5061 = vmatprep.subr.bf16.mxu0 0
        %5062 = vmatpush1.bf16.msra.mxu0 %v2388
        %5063 = vmatprep.subr.bf16.mxu0 0
        %5064 = vmatpush1.bf16.msra.mxu0 %v2389
        %5065 = vmatprep.subr.bf16.mxu0 0
        %5066 = vmatpush1.bf16.msra.mxu0 %v2390
        %5067 = vmatprep.subr.bf16.mxu0 0
        %5068 = vmatpush1.bf16.msra.mxu0 %v2391
        %5069 = vmatprep.subr.bf16.mxu0 0
        %5070 = vmatpush1.bf16.msra.mxu0 %v2392
        %5071 = vmatprep.subr.bf16.mxu0 0
        %5072 = vmatpush1.bf16.msra.mxu0 %v2393
        %5073 = vmatprep.subr.bf16.mxu0 0
        %5074 = vmatpush1.bf16.msra.mxu0 %v2394
        %5075 = vmatprep.subr.bf16.mxu0 0
        %5076 = vmatpush1.bf16.msra.mxu0 %v2395
        %5077 = vmatprep.subr.bf16.mxu0 0
        %5078 = vmatpush1.bf16.msra.mxu0 %v2396
        %5079 = vmatprep.subr.bf16.mxu0 0
        %5080 = vmatpush1.bf16.msra.mxu0 %v2397
        %5081 = vmatprep.subr.bf16.mxu0 0
        %5082 = vmatpush1.bf16.msra.mxu0 %v2398
        %5083 = vmatprep.subr.bf16.mxu0 0
        %5084 = vmatpush1.bf16.msra.mxu0 %v2399
        %5085 = vmatprep.subr.bf16.mxu0 0
        %5086 = vmatpush1.bf16.msra.mxu0 %v2400
        %5087 = vmatprep.mubr.bf16.mxu0 %v3214
        %5088 = vmatmul.mubr.bf16.gmra.mrb[0].mxu0 %v3213
        %v5089 = vpop.f32.mrb[0].mxu0
        %v5090 = vadd.f32 %v4993, %v5089
        %v5091 = vpop.f32.mrb[0].mxu0
        %v5092 = vpop.f32.mrb[0].mxu0
        %v5093 = vadd.f32 %v4996, %v5092
        %v5094 = vpop.f32.mrb[0].mxu0
        %5095 = vmatprep.mubr.bf16.mxu0 %v3246
        %5096 = vmatmul.mubr.bf16.gmra.mrb[0].mxu0 %v3245
        %v5097 = vpop.f32.mrb[0].mxu0
        %v5098 = vadd.f32 %v5001, %v5097
        %v5099 = vpop.f32.mrb[0].mxu0
        %v5100 = vpop.f32.mrb[0].mxu0
        %v5101 = vadd.f32 %v5004, %v5100
        %v5102 = vpop.f32.mrb[0].mxu0
        %5103 = vmatprep.mubr.bf16.mxu0 %v3278
        %5104 = vmatmul.mubr.bf16.gmra.mrb[0].mxu0 %v3277
        %v5105 = vpop.f32.mrb[0].mxu0
        %v5106 = vadd.f32 %v5009, %v5105
        %v5107 = vpop.f32.mrb[0].mxu0
        %v5108 = vpop.f32.mrb[0].mxu0
        %v5109 = vadd.f32 %v5012, %v5108
        %v5110 = vpop.f32.mrb[0].mxu0
        %5111 = vmatprep.mubr.bf16.mxu0 %v3310
        %5112 = vmatmul.mubr.bf16.gmra.mrb[0].mxu0 %v3309
        %v5113 = vpop.f32.mrb[0].mxu0
        %v5114 = vadd.f32 %v5017, %v5113
        %v5115 = vpop.f32.mrb[0].mxu0
        %v5116 = vpop.f32.mrb[0].mxu0
        %v5117 = vadd.f32 %v5020, %v5116
        %v5118 = vpop.f32.mrb[0].mxu0
        %5119 = vmatprep.mubr.bf16.mxu0 %v3342
        %5120 = vmatmul.mubr.bf16.gmra.mrb[0].mxu0 %v3341
        %v5121 = vpop.f32.mrb[0].mxu0
        %v5122 = vadd.f32 %v5025, %v5121
        %v5123 = vpop.f32.mrb[0].mxu0
        %v5124 = vpop.f32.mrb[0].mxu0
        %v5125 = vadd.f32 %v5028, %v5124
        %v5126 = vpop.f32.mrb[0].mxu0
        %5127 = vmatprep.mubr.bf16.mxu0 %v3374
        %5128 = vmatmul.mubr.bf16.gmra.mrb[0].mxu0 %v3373
        %v5129 = vpop.f32.mrb[0].mxu0
        %v5130 = vadd.f32 %v5033, %v5129
        %v5131 = vpop.f32.mrb[0].mxu0
        %v5132 = vpop.f32.mrb[0].mxu0
        %v5133 = vadd.f32 %v5036, %v5132
        %v5134 = vpop.f32.mrb[0].mxu0
        %5135 = vmatprep.mubr.bf16.mxu0 %v3406
        %5136 = vmatmul.mubr.bf16.gmra.mrb[0].mxu0 %v3405
        %v5137 = vpop.f32.mrb[0].mxu0
        %v5138 = vadd.f32 %v5041, %v5137
        %v5139 = vpop.f32.mrb[0].mxu0
        %v5140 = vpop.f32.mrb[0].mxu0
        %v5141 = vadd.f32 %v5044, %v5140
        %v5142 = vpop.f32.mrb[0].mxu0
        %5143 = vmatprep.mubr.bf16.mxu0 %v3438
        %5144 = vmatmul.mubr.bf16.gmra.mrb[0].mxu0 %v3437
        %v5145 = vpop.f32.mrb[0].mxu0
        %v5146 = vadd.f32 %v5049, %v5145
        %v5147 = vpop.f32.mrb[0].mxu0
        %v5148 = vpop.f32.mrb[0].mxu0
        %v5149 = vadd.f32 %v5052, %v5148
        %v5150 = vpop.f32.mrb[0].mxu0
        %5151 = vdwg.mxu0
        %5152 = vmatprep.subr.bf16.mxu0 0
        %5153 = vmatpush1.bf16.msra.mxu0 %v2401
        %5154 = vmatprep.subr.bf16.mxu0 0
        %5155 = vmatpush1.bf16.msra.mxu0 %v2402
        %5156 = vmatprep.subr.bf16.mxu0 0
        %5157 = vmatpush1.bf16.msra.mxu0 %v2403
        %5158 = vmatprep.subr.bf16.mxu0 0
        %5159 = vmatpush1.bf16.msra.mxu0 %v2404
        %5160 = vmatprep.subr.bf16.mxu0 0
        %5161 = vmatpush1.bf16.msra.mxu0 %v2405
        %5162 = vmatprep.subr.bf16.mxu0 0
        %5163 = vmatpush1.bf16.msra.mxu0 %v2406
        %5164 = vmatprep.subr.bf16.mxu0 0
        %5165 = vmatpush1.bf16.msra.mxu0 %v2407
        %5166 = vmatprep.subr.bf16.mxu0 0
        %5167 = vmatpush1.bf16.msra.mxu0 %v2408
        %5168 = vmatprep.subr.bf16.mxu0 0
        %5169 = vmatpush1.bf16.msra.mxu0 %v2409
        %5170 = vmatprep.subr.bf16.mxu0 0
        %5171 = vmatpush1.bf16.msra.mxu0 %v2410
        %5172 = vmatprep.subr.bf16.mxu0 0
        %5173 = vmatpush1.bf16.msra.mxu0 %v2411
        %5174 = vmatprep.subr.bf16.mxu0 0
        %5175 = vmatpush1.bf16.msra.mxu0 %v2412
        %5176 = vmatprep.subr.bf16.mxu0 0
        %5177 = vmatpush1.bf16.msra.mxu0 %v2413
        %5178 = vmatprep.subr.bf16.mxu0 0
        %5179 = vmatpush1.bf16.msra.mxu0 %v2414
        %5180 = vmatprep.subr.bf16.mxu0 0
        %5181 = vmatpush1.bf16.msra.mxu0 %v2415
        %5182 = vmatprep.subr.bf16.mxu0 0
        %5183 = vmatpush1.bf16.msra.mxu0 %v2416
        %5184 = vmatprep.mubr.bf16.mxu0 %v3216
        %5185 = vmatmul.mubr.bf16.gmra.mrb[0].mxu0 %v3215
        %v5186 = vpop.f32.mrb[0].mxu0
        %v5187 = vadd.f32 %v5090, %v5186
        %v5188 = vpop.f32.mrb[0].mxu0
        %v5189 = vpop.f32.mrb[0].mxu0
        %v5190 = vadd.f32 %v5093, %v5189
        %v5191 = vpop.f32.mrb[0].mxu0
        %5192 = vmatprep.mubr.bf16.mxu0 %v3248
        %5193 = vmatmul.mubr.bf16.gmra.mrb[0].mxu0 %v3247
        %v5194 = vpop.f32.mrb[0].mxu0
        %v5195 = vadd.f32 %v5098, %v5194
        %v5196 = vpop.f32.mrb[0].mxu0
        %v5197 = vpop.f32.mrb[0].mxu0
        %v5198 = vadd.f32 %v5101, %v5197
        %v5199 = vpop.f32.mrb[0].mxu0
        %5200 = vmatprep.mubr.bf16.mxu0 %v3280
        %5201 = vmatmul.mubr.bf16.gmra.mrb[0].mxu0 %v3279
        %v5202 = vpop.f32.mrb[0].mxu0
        %v5203 = vadd.f32 %v5106, %v5202
        %v5204 = vpop.f32.mrb[0].mxu0
        %v5205 = vpop.f32.mrb[0].mxu0
        %v5206 = vadd.f32 %v5109, %v5205
        %v5207 = vpop.f32.mrb[0].mxu0
        %5208 = vmatprep.mubr.bf16.mxu0 %v3312
        %5209 = vmatmul.mubr.bf16.gmra.mrb[0].mxu0 %v3311
        %v5210 = vpop.f32.mrb[0].mxu0
        %v5211 = vadd.f32 %v5114, %v5210
        %v5212 = vpop.f32.mrb[0].mxu0
        %v5213 = vpop.f32.mrb[0].mxu0
        %v5214 = vadd.f32 %v5117, %v5213
        %v5215 = vpop.f32.mrb[0].mxu0
        %5216 = vmatprep.mubr.bf16.mxu0 %v3344
        %5217 = vmatmul.mubr.bf16.gmra.mrb[0].mxu0 %v3343
        %v5218 = vpop.f32.mrb[0].mxu0
        %v5219 = vadd.f32 %v5122, %v5218
        %v5220 = vpop.f32.mrb[0].mxu0
        %v5221 = vpop.f32.mrb[0].mxu0
        %v5222 = vadd.f32 %v5125, %v5221
        %v5223 = vpop.f32.mrb[0].mxu0
        %5224 = vmatprep.mubr.bf16.mxu0 %v3376
        %5225 = vmatmul.mubr.bf16.gmra.mrb[0].mxu0 %v3375
        %v5226 = vpop.f32.mrb[0].mxu0
        %v5227 = vadd.f32 %v5130, %v5226
        %v5228 = vpop.f32.mrb[0].mxu0
        %v5229 = vpop.f32.mrb[0].mxu0
        %v5230 = vadd.f32 %v5133, %v5229
        %v5231 = vpop.f32.mrb[0].mxu0
        %5232 = vmatprep.mubr.bf16.mxu0 %v3408
        %5233 = vmatmul.mubr.bf16.gmra.mrb[0].mxu0 %v3407
        %v5234 = vpop.f32.mrb[0].mxu0
        %v5235 = vadd.f32 %v5138, %v5234
        %v5236 = vpop.f32.mrb[0].mxu0
        %v5237 = vpop.f32.mrb[0].mxu0
        %v5238 = vadd.f32 %v5141, %v5237
        %v5239 = vpop.f32.mrb[0].mxu0
        %5240 = vmatprep.mubr.bf16.mxu0 %v3440
        %5241 = vmatmul.mubr.bf16.gmra.mrb[0].mxu0 %v3439
        %v5242 = vpop.f32.mrb[0].mxu0
        %v5243 = vadd.f32 %v5146, %v5242
        %v5244 = vpop.f32.mrb[0].mxu0
        %v5245 = vpop.f32.mrb[0].mxu0
        %v5246 = vadd.f32 %v5149, %v5245
        %v5247 = vpop.f32.mrb[0].mxu0
        %5248 = vdwg.mxu0
        %v5249 = vadd.f32 %v1889, %v5187
        %v5250 = vadd.f32 %v1890, %v5190
        %v5251 = vadd.f32 %v1891, %v5195
        %v5252 = vadd.f32 %v1892, %v5198
        %v5253 = vadd.f32 %v1893, %v5203
        %v5254 = vadd.f32 %v1894, %v5206
        %v5255 = vadd.f32 %v1895, %v5211
        %v5256 = vadd.f32 %v1896, %v5214
        %v5257 = vadd.f32 %v1897, %v5219
        %v5258 = vadd.f32 %v1898, %v5222
        %v5259 = vadd.f32 %v1899, %v5227
        %v5260 = vadd.f32 %v1900, %v5230
        %v5261 = vadd.f32 %v1901, %v5235
        %v5262 = vadd.f32 %v1902, %v5238
        %v5263 = vadd.f32 %v1903, %v5243
        %v5264 = vadd.f32 %v1904, %v5246
        %vm5265 = vcmask 64512
        %5266 = vst.msk [vmem:[#allocation2] sm:$0xff] %vm5265, %v5249
        %5267 = vst.msk [vmem:[#allocation2 + $0x8] sm:$0xff] %vm5265, %v5250
        %5268 = vst.msk [vmem:[#allocation2 + $0x10] sm:$0xff] %vm5265, %v5251
        %5269 = vst.msk [vmem:[#allocation2 + $0x18] sm:$0xff] %vm5265, %v5252
        %5270 = vst.msk [vmem:[#allocation2 + $0x20] sm:$0xff] %vm5265, %v5253
        %5271 = vst.msk [vmem:[#allocation2 + $0x28] sm:$0xff] %vm5265, %v5254
        %5272 = vst.msk [vmem:[#allocation2 + $0x30] sm:$0xff] %vm5265, %v5255
        %5273 = vst.msk [vmem:[#allocation2 + $0x38] sm:$0xff] %vm5265, %v5256
        %5274 = vst.msk [vmem:[#allocation2 + $0x40] sm:$0xff] %vm5265, %v5257
        %5275 = vst.msk [vmem:[#allocation2 + $0x48] sm:$0xff] %vm5265, %v5258
        %5276 = vst.msk [vmem:[#allocation2 + $0x50] sm:$0xff] %vm5265, %v5259
        %5277 = vst.msk [vmem:[#allocation2 + $0x58] sm:$0xff] %vm5265, %v5260
        %5278 = vst.msk [vmem:[#allocation2 + $0x60] sm:$0xff] %vm5265, %v5261
        %5279 = vst.msk [vmem:[#allocation2 + $0x68] sm:$0xff] %vm5265, %v5262
        %5280 = vst.msk [vmem:[#allocation2 + $0x70] sm:$0xff] %vm5265, %v5263
        %5281 = vst.msk [vmem:[#allocation2 + $0x78] sm:$0xff] %vm5265, %v5264
        %p5282 = scmp.eq.s32.totalorder %s16, 3
        // Predicated region
        $region68: #{otucker_forward.6} parent=58 // pred_check
          %p5283 = pneg %p5282
        $region69: #{otucker_forward.6} parent=58 // pred_check_branch
          %5285 = sbr.rel (%p5283) target = $region71
        $region70: #{otucker_forward.6} parent=58 // pred_region
          %v5286 = vld [vmem:[#allocation2] sm:$0xff]
          %v5287 = vld [vmem:[#allocation2 + $0x8] sm:$0xff]
          %v5288 = vld [vmem:[#allocation2 + $0x10] sm:$0xff]
          %v5289 = vld [vmem:[#allocation2 + $0x18] sm:$0xff]
          %v5290 = vld [vmem:[#allocation2 + $0x20] sm:$0xff]
          %v5291 = vld [vmem:[#allocation2 + $0x28] sm:$0xff]
          %v5292 = vld [vmem:[#allocation2 + $0x30] sm:$0xff]
          %v5293 = vld [vmem:[#allocation2 + $0x38] sm:$0xff]
          %v5294 = vld [vmem:[#allocation2 + $0x40] sm:$0xff]
          %v5295 = vld [vmem:[#allocation2 + $0x48] sm:$0xff]
          %v5296 = vld [vmem:[#allocation2 + $0x50] sm:$0xff]
          %v5297 = vld [vmem:[#allocation2 + $0x58] sm:$0xff]
          %v5298 = vld [vmem:[#allocation2 + $0x60] sm:$0xff]
          %v5299 = vld [vmem:[#allocation2 + $0x68] sm:$0xff]
          %v5300 = vld [vmem:[#allocation2 + $0x70] sm:$0xff]
          %v5301 = vld [vmem:[#allocation2 + $0x78] sm:$0xff]
          %v5302 = vld [vmem:[%s4] sm:$0xff]
          %v5303 = vld [vmem:[%s4 + $0x8] sm:$0xff]
          %v5304 = vld [vmem:[%s4 + $0x10] sm:$0xff]
          %v5305 = vld [vmem:[%s4 + $0x18] sm:$0xff]
          %v5306 = vld [vmem:[%s4 + $0x20] sm:$0xff]
          %v5307 = vld [vmem:[%s4 + $0x28] sm:$0xff]
          %v5308 = vld [vmem:[%s4 + $0x30] sm:$0xff]
          %v5309 = vld [vmem:[%s4 + $0x38] sm:$0xff]
          %v5310 = vld [vmem:[%s4 + $0x40] sm:$0xff]
          %v5311 = vld [vmem:[%s4 + $0x48] sm:$0xff]
          %v5312 = vld [vmem:[%s4 + $0x50] sm:$0xff]
          %v5313 = vld [vmem:[%s4 + $0x58] sm:$0xff]
          %v5314 = vld [vmem:[%s4 + $0x60] sm:$0xff]
          %v5315 = vld [vmem:[%s4 + $0x68] sm:$0xff]
          %v5316 = vld [vmem:[%s4 + $0x70] sm:$0xff]
          %v5317 = vld [vmem:[%s4 + $0x78] sm:$0xff]
          %5319 = vset.pattern.permute.xlu0 0
          %5320 = vperm.xlu0 %5319, %v5302
          %v5321 = vpop.permute.xlu0 %5320
          %5324 = vset.pattern.permute.xlu0 0
          %5325 = vperm.xlu0 %5324, %v5303
          %v5326 = vpop.permute.xlu0 %5325
          %5329 = vset.pattern.permute.xlu0 0
          %5330 = vperm.xlu0 %5329, %v5304
          %v5331 = vpop.permute.xlu0 %5330
          %5334 = vset.pattern.permute.xlu0 0
          %5335 = vperm.xlu0 %5334, %v5305
          %v5336 = vpop.permute.xlu0 %5335
          %5339 = vset.pattern.permute.xlu0 0
          %5340 = vperm.xlu0 %5339, %v5306
          %v5341 = vpop.permute.xlu0 %5340
          %5344 = vset.pattern.permute.xlu0 0
          %5345 = vperm.xlu0 %5344, %v5307
          %v5346 = vpop.permute.xlu0 %5345
          %5349 = vset.pattern.permute.xlu0 0
          %5350 = vperm.xlu0 %5349, %v5308
          %v5351 = vpop.permute.xlu0 %5350
          %5354 = vset.pattern.permute.xlu0 0
          %5355 = vperm.xlu0 %5354, %v5309
          %v5356 = vpop.permute.xlu0 %5355
          %5359 = vset.pattern.permute.xlu0 0
          %5360 = vperm.xlu0 %5359, %v5310
          %v5361 = vpop.permute.xlu0 %5360
          %5364 = vset.pattern.permute.xlu0 0
          %5365 = vperm.xlu0 %5364, %v5311
          %v5366 = vpop.permute.xlu0 %5365
          %5369 = vset.pattern.permute.xlu0 0
          %5370 = vperm.xlu0 %5369, %v5312
          %v5371 = vpop.permute.xlu0 %5370
          %5374 = vset.pattern.permute.xlu0 0
          %5375 = vperm.xlu0 %5374, %v5313
          %v5376 = vpop.permute.xlu0 %5375
          %5379 = vset.pattern.permute.xlu0 0
          %5380 = vperm.xlu0 %5379, %v5314
          %v5381 = vpop.permute.xlu0 %5380
          %5384 = vset.pattern.permute.xlu0 0
          %5385 = vperm.xlu0 %5384, %v5315
          %v5386 = vpop.permute.xlu0 %5385
          %5389 = vset.pattern.permute.xlu0 0
          %5390 = vperm.xlu0 %5389, %v5316
          %v5391 = vpop.permute.xlu0 %5390
          %5394 = vset.pattern.permute.xlu0 0
          %5395 = vperm.xlu0 %5394, %v5317
          %v5396 = vpop.permute.xlu0 %5395
          %v5398 = vmul.f32 %v5286, %v5321
          %v5399 = vmul.f32 %v5287, %v5326
          %v5400 = vmul.f32 %v5288, %v5331
          %v5401 = vmul.f32 %v5289, %v5336
          %v5402 = vmul.f32 %v5290, %v5341
          %v5403 = vmul.f32 %v5291, %v5346
          %v5404 = vmul.f32 %v5292, %v5351
          %v5405 = vmul.f32 %v5293, %v5356
          %v5406 = vmul.f32 %v5294, %v5361
          %v5407 = vmul.f32 %v5295, %v5366
          %v5408 = vmul.f32 %v5296, %v5371
          %v5409 = vmul.f32 %v5297, %v5376
          %v5410 = vmul.f32 %v5298, %v5381
          %v5411 = vmul.f32 %v5299, %v5386
          %v5412 = vmul.f32 %v5300, %v5391
          %v5413 = vmul.f32 %v5301, %v5396
          %5414 = vset.pattern.permute.xlu0 1
          %5415 = vperm.xlu0 %5414, %v5302
          %v5416 = vpop.permute.xlu0 %5415
          %5418 = vset.pattern.permute.xlu0 1
          %5419 = vperm.xlu0 %5418, %v5303
          %v5420 = vpop.permute.xlu0 %5419
          %5422 = vset.pattern.permute.xlu0 1
          %5423 = vperm.xlu0 %5422, %v5304
          %v5424 = vpop.permute.xlu0 %5423
          %5426 = vset.pattern.permute.xlu0 1
          %5427 = vperm.xlu0 %5426, %v5305
          %v5428 = vpop.permute.xlu0 %5427
          %5430 = vset.pattern.permute.xlu0 1
          %5431 = vperm.xlu0 %5430, %v5306
          %v5432 = vpop.permute.xlu0 %5431
          %5434 = vset.pattern.permute.xlu0 1
          %5435 = vperm.xlu0 %5434, %v5307
          %v5436 = vpop.permute.xlu0 %5435
          %5438 = vset.pattern.permute.xlu0 1
          %5439 = vperm.xlu0 %5438, %v5308
          %v5440 = vpop.permute.xlu0 %5439
          %5442 = vset.pattern.permute.xlu0 1
          %5443 = vperm.xlu0 %5442, %v5309
          %v5444 = vpop.permute.xlu0 %5443
          %5446 = vset.pattern.permute.xlu0 1
          %5447 = vperm.xlu0 %5446, %v5310
          %v5448 = vpop.permute.xlu0 %5447
          %5450 = vset.pattern.permute.xlu0 1
          %5451 = vperm.xlu0 %5450, %v5311
          %v5452 = vpop.permute.xlu0 %5451
          %5454 = vset.pattern.permute.xlu0 1
          %5455 = vperm.xlu0 %5454, %v5312
          %v5456 = vpop.permute.xlu0 %5455
          %5458 = vset.pattern.permute.xlu0 1
          %5459 = vperm.xlu0 %5458, %v5313
          %v5460 = vpop.permute.xlu0 %5459
          %5462 = vset.pattern.permute.xlu0 1
          %5463 = vperm.xlu0 %5462, %v5314
          %v5464 = vpop.permute.xlu0 %5463
          %5466 = vset.pattern.permute.xlu0 1
          %5467 = vperm.xlu0 %5466, %v5315
          %v5468 = vpop.permute.xlu0 %5467
          %5470 = vset.pattern.permute.xlu0 1
          %5471 = vperm.xlu0 %5470, %v5316
          %v5472 = vpop.permute.xlu0 %5471
          %5474 = vset.pattern.permute.xlu0 1
          %5475 = vperm.xlu0 %5474, %v5317
          %v5476 = vpop.permute.xlu0 %5475
          %v5478 = vadd.f32 %v5398, %v5416
          %v5479 = vadd.f32 %v5399, %v5420
          %v5480 = vadd.f32 %v5400, %v5424
          %v5481 = vadd.f32 %v5401, %v5428
          %v5482 = vadd.f32 %v5402, %v5432
          %v5483 = vadd.f32 %v5403, %v5436
          %v5484 = vadd.f32 %v5404, %v5440
          %v5485 = vadd.f32 %v5405, %v5444
          %v5486 = vadd.f32 %v5406, %v5448
          %v5487 = vadd.f32 %v5407, %v5452
          %v5488 = vadd.f32 %v5408, %v5456
          %v5489 = vadd.f32 %v5409, %v5460
          %v5490 = vadd.f32 %v5410, %v5464
          %v5491 = vadd.f32 %v5411, %v5468
          %v5492 = vadd.f32 %v5412, %v5472
          %v5493 = vadd.f32 %v5413, %v5476
          %vm5494 = vcmp.gt.f32.partialorder %v5478, 0.0
          %vm5495 = vcmp.gt.f32.partialorder %v5479, 0.0
          %vm5496 = vcmp.gt.f32.partialorder %v5480, 0.0
          %vm5497 = vcmp.gt.f32.partialorder %v5481, 0.0
          %vm5498 = vcmp.gt.f32.partialorder %v5482, 0.0
          %vm5499 = vcmp.gt.f32.partialorder %v5483, 0.0
          %vm5500 = vcmp.gt.f32.partialorder %v5484, 0.0
          %vm5501 = vcmp.gt.f32.partialorder %v5485, 0.0
          %vm5502 = vcmp.gt.f32.partialorder %v5486, 0.0
          %vm5503 = vcmp.gt.f32.partialorder %v5487, 0.0
          %vm5504 = vcmp.gt.f32.partialorder %v5488, 0.0
          %vm5505 = vcmp.gt.f32.partialorder %v5489, 0.0
          %vm5506 = vcmp.gt.f32.partialorder %v5490, 0.0
          %vm5507 = vcmp.gt.f32.partialorder %v5491, 0.0
          %vm5508 = vcmp.gt.f32.partialorder %v5492, 0.0
          %vm5509 = vcmp.gt.f32.partialorder %v5493, 0.0
          %v5510 = vmul.f32 %v5478, 0.01
          %v5511 = vmul.f32 %v5479, 0.01
          %v5512 = vmul.f32 %v5480, 0.01
          %v5513 = vmul.f32 %v5481, 0.01
          %v5514 = vmul.f32 %v5482, 0.01
          %v5515 = vmul.f32 %v5483, 0.01
          %v5516 = vmul.f32 %v5484, 0.01
          %v5517 = vmul.f32 %v5485, 0.01
          %v5518 = vmul.f32 %v5486, 0.01
          %v5519 = vmul.f32 %v5487, 0.01
          %v5520 = vmul.f32 %v5488, 0.01
          %v5521 = vmul.f32 %v5489, 0.01
          %v5522 = vmul.f32 %v5490, 0.01
          %v5523 = vmul.f32 %v5491, 0.01
          %v5524 = vmul.f32 %v5492, 0.01
          %v5525 = vmul.f32 %v5493, 0.01
          %v5526 = vsel %vm5494, %v5478, %v5510
          %v5527 = vsel %vm5495, %v5479, %v5511
          %v5528 = vsel %vm5496, %v5480, %v5512
          %v5529 = vsel %vm5497, %v5481, %v5513
          %v5530 = vsel %vm5498, %v5482, %v5514
          %v5531 = vsel %vm5499, %v5483, %v5515
          %v5532 = vsel %vm5500, %v5484, %v5516
          %v5533 = vsel %vm5501, %v5485, %v5517
          %v5534 = vsel %vm5502, %v5486, %v5518
          %v5535 = vsel %vm5503, %v5487, %v5519
          %v5536 = vsel %vm5504, %v5488, %v5520
          %v5537 = vsel %vm5505, %v5489, %v5521
          %v5538 = vsel %vm5506, %v5490, %v5522
          %v5539 = vsel %vm5507, %v5491, %v5523
          %v5540 = vsel %vm5508, %v5492, %v5524
          %v5541 = vsel %vm5509, %v5493, %v5525
          %v5542 = vpack.c.bf16 %v5527, %v5526
          %v5543 = vpack.c.bf16 %v5529, %v5528
          %v5544 = vpack.c.bf16 %v5531, %v5530
          %v5545 = vpack.c.bf16 %v5533, %v5532
          %v5546 = vpack.c.bf16 %v5535, %v5534
          %v5547 = vpack.c.bf16 %v5537, %v5536
          %v5548 = vpack.c.bf16 %v5539, %v5538
          %v5549 = vpack.c.bf16 %v5541, %v5540
          %v5558 = vunpack.c.l.b16 %v5542
          %v5559 = vunpack.c.h.b16 %v5542
          %v5560 = vunpack.c.l.b16 %v5543
          %v5561 = vunpack.c.h.b16 %v5543
          %v5562 = vunpack.c.l.b16 %v5544
          %v5563 = vunpack.c.h.b16 %v5544
          %v5564 = vunpack.c.l.b16 %v5545
          %v5565 = vunpack.c.h.b16 %v5545
          %v5566 = vunpack.c.l.b16 %v5546
          %v5567 = vunpack.c.h.b16 %v5546
          %v5568 = vunpack.c.l.b16 %v5547
          %v5569 = vunpack.c.h.b16 %v5547
          %v5570 = vunpack.c.l.b16 %v5548
          %v5571 = vunpack.c.h.b16 %v5548
          %v5572 = vunpack.c.l.b16 %v5549
          %v5573 = vunpack.c.h.b16 %v5549
          %v5574 = vpack.c.b16 %v5558, %v5558
          %v5575 = vpack.c.b16 %v5559, %v5559
          %v5576 = vpack.c.b16 %v5560, %v5560
          %v5577 = vpack.c.b16 %v5561, %v5561
          %v5578 = vpack.c.b16 %v5562, %v5562
          %v5579 = vpack.c.b16 %v5563, %v5563
          %v5580 = vpack.c.b16 %v5564, %v5564
          %v5581 = vpack.c.b16 %v5565, %v5565
          %v5582 = vpack.c.b16 %v5566, %v5566
          %v5583 = vpack.c.b16 %v5567, %v5567
          %v5584 = vpack.c.b16 %v5568, %v5568
          %v5585 = vpack.c.b16 %v5569, %v5569
          %v5586 = vpack.c.b16 %v5570, %v5570
          %v5587 = vpack.c.b16 %v5571, %v5571
          %v5588 = vpack.c.b16 %v5572, %v5572
          %v5589 = vpack.c.b16 %v5573, %v5573
          %vm5606 = vcmask 60416
          %5607 = vst.msk [vmem:[%s5] sm:$0xf] %vm5606, %v5574
          %5608 = vst.msk [vmem:[%s5 + $0x4] sm:$0xf] %vm5606, %v5575
          %5609 = vst.msk [vmem:[%s5 + $0x8] sm:$0xf] %vm5606, %v5576
          %5610 = vst.msk [vmem:[%s5 + $0xc] sm:$0xf] %vm5606, %v5577
          %5611 = vst.msk [vmem:[%s5 + $0x10] sm:$0xf] %vm5606, %v5578
          %5612 = vst.msk [vmem:[%s5 + $0x14] sm:$0xf] %vm5606, %v5579
          %5613 = vst.msk [vmem:[%s5 + $0x18] sm:$0xf] %vm5606, %v5580
          %5614 = vst.msk [vmem:[%s5 + $0x1c] sm:$0xf] %vm5606, %v5581
          %5615 = vst.msk [vmem:[%s5 + $0x20] sm:$0xf] %vm5606, %v5582
          %5616 = vst.msk [vmem:[%s5 + $0x24] sm:$0xf] %vm5606, %v5583
          %5617 = vst.msk [vmem:[%s5 + $0x28] sm:$0xf] %vm5606, %v5584
          %5618 = vst.msk [vmem:[%s5 + $0x2c] sm:$0xf] %vm5606, %v5585
          %5619 = vst.msk [vmem:[%s5 + $0x30] sm:$0xf] %vm5606, %v5586
          %5620 = vst.msk [vmem:[%s5 + $0x34] sm:$0xf] %vm5606, %v5587
          %5621 = vst.msk [vmem:[%s5 + $0x38] sm:$0xf] %vm5606, %v5588
          %5622 = vst.msk [vmem:[%s5 + $0x3c] sm:$0xf] %vm5606, %v5589
        $region71: #{otucker_forward.6} parent=58 // pred_fallthru
          _
        // Predicated region
        $region72: #{otucker_forward.6} parent=58 // pred_check
          %p5623 = pneg %p144
        $region73: #{otucker_forward.6} parent=58 // pred_check_branch
          %5625 = sbr.rel (%p5623) target = $region75
        $region74: #{otucker_forward.6} parent=58 // pred_region
          _
        $region75: #{otucker_forward.6} parent=58 // pred_fallthru
          _
        // Predicated region
        $region76: #{otucker_forward.6} parent=58 // pred_check
          %p5626 = pneg %p144
        $region77: #{otucker_forward.6} parent=58 // pred_check_branch
          %5628 = sbr.rel (%p5626) target = $region79
        $region78: #{otucker_forward.6} parent=58 // pred_region
          _
        $region79: #{otucker_forward.6} parent=58 // pred_fallthru
          _
      $region59: #{otucker_forward.6} parent=5 // pred_fallthru
        _
      %p5629 = scmp.le.s32.totalorder 2, %s11
      // Predicated region
      $region80: #{otucker_forward.6} parent=5 // pred_check
        %p5630 = pneg %p5629
      $region81: #{otucker_forward.6} parent=5 // pred_check_branch
        %5632 = sbr.rel (%p5630) target = $region83
      $region82: #{otucker_forward.6} parent=5 // pred_region
        %s5633 = ssub.s32 %s11, 2
      $region83: #{otucker_forward.6} parent=5 // pred_fallthru
        _
    $region6: #{otucker_forward.6} parent=1 // loop_footer
      %s15 = sadd.s32 1, %s11
    $region7: #{otucker_forward.6} parent=1 // loop_footer_branch
      %10 = sbr.rel target = $region3
    $region8: #{otucker_forward.6} parent=1 // loop_exit
      _

</llo_original>
